<compile_context>
chip_gen: v7x
topology: tpu7x:2x2x1
jax: 0.10.0
libtpu: 0.0.40
codegen_flags: <defaults>
</compile_context>

<pallas_src>
import functools

import jax
import jax.numpy as jnp
from jax import lax
from jax.experimental import pallas as pl
from jax.experimental.pallas import tpu as pltpu


def _round_up(v, m):
    return (v + m - 1) // m * m


def _device_kind():
    try:
        return jax.devices()[0].device_kind.lower()
    except Exception:
        return ""


def _choose_block_b(B, kind):
    """Largest 8-aligned divisor of B under the per-generation tile cap.

    v5e: cap 128 (128x128 MXU, 16 MiB scoped-VMEM default).
    v6e/v7x: cap 256 (matches the 256x256 MXU M dimension).
    v7x additionally prefers >=2 batch tiles so ("parallel",) grid sharding
    can use both TensorCores.
    """
    is_v5e = ("v5 lite" in kind) or ("v5e" in kind) or ("v5litepod" in kind)
    is_v7 = ("v7" in kind) or ("tpu7" in kind)
    cap = 128 if is_v5e else 256
    cands = [d for d in range(8, min(B, cap) + 1, 8) if B % d == 0]
    if not cands:
        return B                      # no 8-aligned divisor: one full-batch tile
    if is_v7:
        multi = [d for d in cands if B // d >= 2]
        if multi:
            return max(multi)
    return max(cands)


def _padded_bytes(shape, dtype):
    """VMEM footprint of an array after (sublane, lane) tile padding."""
    itemsize = jnp.dtype(dtype).itemsize
    dims = list(shape)
    dims[-1] = _round_up(dims[-1], 128)
    if len(dims) >= 2:
        dims[-2] = _round_up(dims[-2], 8 * max(1, 4 // itemsize))
    n = 1
    for d in dims:
        n *= d
    return n * itemsize


def _vmem_limit_bytes(block_b, n_input, Hp, x_dtype, mm_dtype, gi_dtype,
                      single_buffer_weights):
    wbuf = 1 if single_buffer_weights else 2
    weights = wbuf * (
        _padded_bytes((n_input, 3 * Hp), mm_dtype)
        + _padded_bytes((Hp, 3 * Hp), mm_dtype)
        + _padded_bytes((1, 3 * Hp), jnp.float32)
        + _padded_bytes((1, Hp), jnp.float32)
        + _padded_bytes((Hp, 2), mm_dtype)
        + _padded_bytes((1, 2), jnp.float32))
    io = 2 * (_padded_bytes((block_b, n_input), x_dtype)
              + _padded_bytes((block_b, 2), jnp.float32))
    scratch = (_padded_bytes((block_b, Hp), jnp.float32)
               + _padded_bytes((block_b, 3 * Hp), gi_dtype)
               + 3 * _padded_bytes((block_b, 1), jnp.float32))
    # Per-step f32 temporaries: gh_rz (Bt,2Hp) + gh_n/r/z/n/new_hidden (Bt,Hp).
    temps = 7 * _padded_bytes((block_b, Hp), jnp.float32)
    total = weights + io + scratch + temps
    limit = int(total * 1.5) + (2 << 20)      # ~50% + 2 MiB compiler headroom
    return max(min(limit, 100 << 20), 16 << 20)


def _frugal_rnn_kernel(x_ref, w_ih_ref, w_hh_ref, b_gi_ref, b_hn_ref,
                       w_head_ref, b_head_ref, out_ref,
                       hidden_ref, gi_ref, halted_ref, niters_ref, fprobs_ref,
                       all_halted_ref,
                       *, budget, hp):
    Hp = hp
    Bt = hidden_ref.shape[0]
    mm_dtype = w_hh_ref.dtype                   # bf16 by default -> feeds the MXU

    # ---- per-batch-tile state init (PyTorch: hidden[:, 0] += budget) -------
    col = lax.broadcasted_iota(jnp.int32, (Bt, Hp), 1)
    hidden_ref[...] = jnp.where(col == 0,
                                jnp.asarray(budget, jnp.float32),
                                jnp.zeros((), jnp.float32))
    halted_ref[...] = jnp.zeros_like(halted_ref)     # 0.0 = active, 1.0 = halted
    niters_ref[...] = jnp.zeros_like(niters_ref)     # f32 accumulation (exact)
    fprobs_ref[...] = jnp.zeros_like(fprobs_ref)
    all_halted_ref[0] = 0                            # SMEM early-exit flag

    # x is loop-invariant -> input-to-hidden gates computed once per tile.
    # b_gi already folds b_ih + [b_hr, b_hz, 0]; only b_hn is applied per step
    # (it sits inside r * (W_hn h + b_hn)).
    gi_ref[...] = (jnp.dot(x_ref[...].astype(mm_dtype), w_ih_ref[...],
                           preferred_element_type=jnp.float32)
                   + b_gi_ref[...]).astype(gi_ref.dtype)

    def step_body(step, carry):
        # PyTorch `if halted_mask.all(): break`: once every row has halted the
        # SMEM flag (written at the end of the previous step) short-circuits
        # the whole step to a single scalar load + branch.
        @pl.when(all_halted_ref[0] == 0)
        def _run_step():
            hidden = hidden_ref[...]                        # (Bt, Hp)  f32 carry
            active = halted_ref[...] < 0.5                  # (Bt, 1)   bool
            h_mm = hidden.astype(mm_dtype)

            # Split recurrent matmul per gate so the r/z sigmoids (EUP/VPU)
            # overlap the MXU pass for the n gate.  Slices are lane-aligned
            # (Hp multiple of 128) -> zero-cost ref views.
            gh_rz = jnp.dot(h_mm, w_hh_ref[:, 0:2 * Hp],
                            preferred_element_type=jnp.float32)      # (Bt, 2Hp)
            r = jax.nn.sigmoid(gi_ref[:, 0 * Hp:1 * Hp].astype(jnp.float32)
                               + gh_rz[:, 0 * Hp:1 * Hp])
            z = jax.nn.sigmoid(gi_ref[:, 1 * Hp:2 * Hp].astype(jnp.float32)
                               + gh_rz[:, 1 * Hp:2 * Hp])
            gh_n = jnp.dot(h_mm, w_hh_ref[:, 2 * Hp:3 * Hp],
                           preferred_element_type=jnp.float32)       # (Bt, Hp)
            n = jnp.tanh(gi_ref[:, 2 * Hp:3 * Hp].astype(jnp.float32)
                         + r * (gh_n + b_hn_ref[...]))
            new_hidden = (1.0 - z) * n + z * hidden                  # f32

            # Fused stopper+predictor head: one (Bt,Hp) x (Hp,2) matmul.
            heads = (jnp.dot(new_hidden.astype(mm_dtype), w_head_ref[...],
                             preferred_element_type=jnp.float32)
                     + b_head_ref[...])                              # (Bt, 2)
            stop_logit = heads[:, 0:1]
            probs = heads[:, 1:2]
            # sigmoid(v).round() != 0  <=>  sigmoid(v) > 0.5  <=>  v > 0
            # (round-half-to-even maps sigmoid(0)=0.5 to 0 => strict `>` matches).
            halt = stop_logit > 0.0

            is_last = step == budget - 1
            set_final = jnp.logical_and(active, jnp.logical_or(halt, is_last))
            fprobs_ref[...] = jnp.where(set_final, probs, fprobs_ref[...])
            hidden_ref[...] = jnp.where(active, new_hidden, hidden)
            niters_ref[...] = jnp.where(active, niters_ref[...] + 1.0,
                                        niters_ref[...])
            new_halted = jnp.where(jnp.logical_and(active, halt),
                                   jnp.ones((), jnp.float32),
                                   halted_ref[...])
            halted_ref[...] = new_halted
            # Early-exit predicate for the NEXT step, computed here so the
            # cross-sublane reduce + vector->scalar move hides under this
            # step's tail instead of blocking the next matmul.
            all_halted_ref[0] = (jnp.sum(new_halted)
                                 > jnp.float32(Bt) - 0.5).astype(jnp.int32)

        return carry

    # Fully unroll short budgets; partial unroll keeps the LLO scheduler's view
    # across adjacent step boundaries for larger budgets.
    unroll = True if budget <= 16 else 4
    lax.fori_loop(0, budget, step_body, 0, unroll=unroll)

    # Single lane-packed (Bt, 2) output: col 0 = final_probs, col 1 = n_iters.
    out_ref[:, 0:1] = fprobs_ref[...].astype(out_ref.dtype)
    out_ref[:, 1:2] = niters_ref[...].astype(out_ref.dtype)


def _pack_params(params, n_hidden, matmul_dtype):
    """PyTorch-layout params -> padded / transposed / fused kernel layout."""
    H = n_hidden
    Hp = _round_up(H, 128)
    pad_h = Hp - H

    def pad_cols(w):                                   # (in, H) -> (in, Hp)
        return jnp.pad(w, ((0, 0), (0, pad_h)))

    w_ih_t = params["w_ih"].T                          # (n_input, 3H), gates [r|z|n]
    w_hh_t = params["w_hh"].T                          # (H, 3H)
    w_ih_p = jnp.concatenate([pad_cols(g) for g in jnp.split(w_ih_t, 3, axis=1)],
                             axis=1)                   # (n_input, 3Hp)
    w_hh_p = jnp.concatenate([pad_cols(g) for g in jnp.split(w_hh_t, 3, axis=1)],
                             axis=1)
    w_hh_p = jnp.pad(w_hh_p, ((0, pad_h), (0, 0)))     # (Hp, 3Hp)

    b_ih, b_hh = params["b_ih"], params["b_hh"]        # (3H,) each
    # Fold reset/update hidden biases into the loop-invariant input bias.
    b_gi_parts = [b_ih[0:H] + b_hh[0:H],               # r
                  b_ih[H:2 * H] + b_hh[H:2 * H],       # z
                  b_ih[2 * H:3 * H]]                   # n (input part only)
    b_gi = jnp.concatenate([jnp.pad(b, (0, pad_h)) for b in b_gi_parts]
                           ).reshape(1, 3 * Hp)
    b_hn = jnp.pad(b_hh[2 * H:3 * H], (0, pad_h)).reshape(1, Hp)

    # Fused stopper/predictor head: (Hp, 2), col 0 = stop logit, col 1 = prob.
    w_head = jnp.concatenate([params["w_stop"].T, params["w_pred"].T], axis=1)
    w_head = jnp.pad(w_head, ((0, pad_h), (0, 0)))
    b_head = jnp.concatenate([params["b_stop"], params["b_pred"]]).reshape(1, 2)

    return dict(
        w_ih=w_ih_p.astype(matmul_dtype),
        w_hh=w_hh_p.astype(matmul_dtype),
        b_gi=b_gi.astype(jnp.float32),
        b_hn=b_hn.astype(jnp.float32),
        w_head=w_head.astype(matmul_dtype),
        b_head=b_head.astype(jnp.float32),
    )


def frugal_rnn_forward(x, params, *, n_hidden, budget, block_b=None,
                       matmul_dtype=jnp.bfloat16, gi_dtype=None,
                       single_buffer_weights=True):
    """Returns (final_probs, n_iters), each shape (B,), dtype of x."""
    B, n_input = x.shape
    Hp = _round_up(n_hidden, 128)
    kind = _device_kind()
    is_v7 = ("v7" in kind) or ("tpu7" in kind)

    if block_b is None:
        block_b = _choose_block_b(B, kind)
    assert B % block_b == 0, "batch must be divisible by block_b"
    nb = B // block_b

    if gi_dtype is None:
        # bf16 gi only on v7x (64 MiB VMEM) and only in the bf16 matmul mode;
        # additive pre-activation so accuracy impact is small, padding stays 0.
        use_bf16_gi = is_v7 and jnp.dtype(matmul_dtype) == jnp.dtype(jnp.bfloat16)
        gi_dtype = jnp.bfloat16 if use_bf16_gi else jnp.float32

    kp = _pack_params(params, n_hidden, matmul_dtype)
    kernel = functools.partial(_frugal_rnn_kernel, budget=budget, hp=Hp)

    tile_map = lambda i: (i, 0)
    const_map = lambda i: (0, 0)

    scratch_shapes = [
        pltpu.VMEM((block_b, Hp), jnp.float32),        # hidden (f32 carry)
        pltpu.VMEM((block_b, 3 * Hp), gi_dtype),       # gi (loop-invariant gates)
        pltpu.VMEM((block_b, 1), jnp.float32),         # halted mask
        pltpu.VMEM((block_b, 1), jnp.float32),         # n_iters (f32)
        pltpu.VMEM((block_b, 1), jnp.float32),         # final_probs
        pltpu.SMEM((1,), jnp.int32),                   # all-halted early-exit flag
    ]
    out_spec = pl.BlockSpec((block_b, 2), tile_map)

    def run(single_buf):
        # Constant-index weights never change per tile: single-buffer them to
        # halve weight VMEM (the biggest capacity lever at large Hp).
        if single_buf:
            const_kw = dict(pipeline_mode=pl.Buffered(buffer_count=1))
        else:
            const_kw = {}
        in_specs = [
            pl.BlockSpec((block_b, n_input), tile_map),            # x
            pl.BlockSpec(kp["w_ih"].shape, const_map, **const_kw),
            pl.BlockSpec(kp["w_hh"].shape, const_map, **const_kw),
            pl.BlockSpec(kp["b_gi"].shape, const_map, **const_kw),
            pl.BlockSpec(kp["b_hn"].shape, const_map, **const_kw),
            pl.BlockSpec(kp["w_head"].shape, const_map, **const_kw),
            pl.BlockSpec(kp["b_head"].shape, const_map, **const_kw),
        ]
        vmem_limit = _vmem_limit_bytes(block_b, n_input, Hp, x.dtype,
                                       matmul_dtype, gi_dtype, single_buf)
        return pl.pallas_call(
            kernel,
            grid=(nb,),
            out_shape=jax.ShapeDtypeStruct((B, 2), jnp.float32),
            in_specs=in_specs,
            out_specs=out_spec,
            scratch_shapes=scratch_shapes,
            compiler_params=pltpu.CompilerParams(
                dimension_semantics=("parallel",),     # shard batch tiles across TCs
                vmem_limit_bytes=vmem_limit),
        )(x, kp["w_ih"], kp["w_hh"], kp["b_gi"], kp["b_hn"],
          kp["w_head"], kp["b_head"])

    if single_buffer_weights:
        try:
            out = run(True)
        except Exception:
            # Fallback if this JAX build rejects Buffered(1) on pallas_call specs.
            out = run(False)
    else:
        out = run(False)

    final_probs = out[:, 0].astype(x.dtype)
    n_iters = out[:, 1].astype(x.dtype)
    return final_probs, n_iters


def init_params(key, n_input, n_hidden):
    """Deterministic synthetic PyTorch-layout params, uniform(-1/sqrt(H), 1/sqrt(H))."""
    ks = jax.random.split(key, 8)
    k = 1.0 / (n_hidden ** 0.5)
    u = lambda kk, shape: jax.random.uniform(kk, shape, jnp.float32, -k, k)
    return {
        "w_ih": u(ks[0], (3 * n_hidden, n_input)),     # GRUCell.weight_ih [r|z|n]
        "w_hh": u(ks[1], (3 * n_hidden, n_hidden)),    # GRUCell.weight_hh
        "b_ih": u(ks[2], (3 * n_hidden,)),
        "b_hh": u(ks[3], (3 * n_hidden,)),
        "w_stop": u(ks[4], (1, n_hidden)),             # stopper Linear.weight
        "b_stop": u(ks[5], (1,)),
        "w_pred": u(ks[6], (1, n_hidden)),             # predictor Linear.weight
        "b_pred": u(ks[7], (1,)),
    }


if __name__ == "__main__":
    n_input, n_hidden, budget = 16, 32, 5
    batch = 8

    key = jax.random.PRNGKey(0)
    k_param, k_x = jax.random.split(key)
    params = init_params(k_param, n_input, n_hidden)
    x = jax.random.normal(k_x, (batch, n_input), jnp.float32)

    final_probs, n_iters = frugal_rnn_forward(x, params,
                                              n_hidden=n_hidden, budget=budget)
    jax.block_until_ready((final_probs, n_iters))

    assert final_probs.shape == (batch,) and n_iters.shape == (batch,)
    assert bool(jnp.all((n_iters >= 1.0) & (n_iters <= float(budget))))
    print("KERNEL_OK")
</pallas_src>

<mosaic_0001>
module attributes {stable_mosaic.version = 11 : i64} {
  func.func @_frugal_rnn_kernel(%arg0: i32, %arg1: memref<8x16xf32, #tpu.memory_space<vmem>>, %arg2: memref<16x384xbf16, #tpu.memory_space<vmem>>, %arg3: memref<128x384xbf16, #tpu.memory_space<vmem>>, %arg4: memref<1x384xf32, #tpu.memory_space<vmem>>, %arg5: memref<1x128xf32, #tpu.memory_space<vmem>>, %arg6: memref<128x2xbf16, #tpu.memory_space<vmem>>, %arg7: memref<1x2xf32, #tpu.memory_space<vmem>>, %arg8: memref<8x2xf32, #tpu.memory_space<vmem>>, %arg9: memref<8x128xf32, #tpu.memory_space<vmem>>, %arg10: memref<8x384xf32, #tpu.memory_space<vmem>>, %arg11: memref<8x1xf32, #tpu.memory_space<vmem>>, %arg12: memref<8x1xf32, #tpu.memory_space<vmem>>, %arg13: memref<8x1xf32, #tpu.memory_space<vmem>>, %arg14: memref<1xi32, #tpu.memory_space<smem>>) attributes {dimension_semantics = [#tpu.dimension_semantics<parallel>], iteration_bounds = array<i64: 1>, scalar_prefetch = 0 : i64, scratch_operands = 6 : i64, tpu.core_type = #tpu.core_type<tc>, window_params = [{transform_indices = @transform_0, window_bounds = array<i64: 8, 16>}, {pipeline_mode = #tpu.pipeline_mode<synchronous>, transform_indices = @transform_1, window_bounds = array<i64: 16, 384>}, {pipeline_mode = #tpu.pipeline_mode<synchronous>, transform_indices = @transform_2, window_bounds = array<i64: 128, 384>}, {pipeline_mode = #tpu.pipeline_mode<synchronous>, transform_indices = @transform_3, window_bounds = array<i64: 1, 384>}, {pipeline_mode = #tpu.pipeline_mode<synchronous>, transform_indices = @transform_4, window_bounds = array<i64: 1, 128>}, {pipeline_mode = #tpu.pipeline_mode<synchronous>, transform_indices = @transform_5, window_bounds = array<i64: 128, 2>}, {pipeline_mode = #tpu.pipeline_mode<synchronous>, transform_indices = @transform_6, window_bounds = array<i64: 1, 2>}, {transform_indices = @transform_7, window_bounds = array<i64: 8, 2>}]} {
    %0 = tpu.iota {dimensions = array<i32: 1>} : vector<8x128xi32>
    %c0_i32 = arith.constant 0 : i32
    %1 = vector.broadcast %c0_i32 : i32 to vector<8x128xi32>
    %2 = arith.cmpi eq, %0, %1 : vector<8x128xi32>
    %cst = arith.constant 5.000000e+00 : f32
    %cst_0 = arith.constant 0.000000e+00 : f32
    %3 = vector.broadcast %cst : f32 to vector<8x128xf32>
    %4 = vector.broadcast %cst_0 : f32 to vector<8x128xf32>
    %5 = arith.select %2, %3, %4 : vector<8x128xi1>, vector<8x128xf32>
    %c0 = arith.constant 0 : index
    %c0_1 = arith.constant 0 : index
    %6 = vector.load %arg9[%c0, %c0_1] : memref<8x128xf32, #tpu.memory_space<vmem>>, vector<8x128xf32>
    tpu.vector_store %arg9[%c0, %c0_1], %5 {strides = array<i32>} : memref<8x128xf32, #tpu.memory_space<vmem>>, vector<8x128xf32>,
    %cst_2 = arith.constant 0.000000e+00 : f32
    %7 = vector.broadcast %cst_2 : f32 to vector<8x1xf32>
    %c0_3 = arith.constant 0 : index
    %c0_4 = arith.constant 0 : index
    %8 = vector.load %arg11[%c0_3, %c0_4] : memref<8x1xf32, #tpu.memory_space<vmem>>, vector<8x1xf32>
    tpu.vector_store %arg11[%c0_3, %c0_4], %7 {strides = array<i32>} : memref<8x1xf32, #tpu.memory_space<vmem>>, vector<8x1xf32>,
    %cst_5 = arith.constant 0.000000e+00 : f32
    %9 = vector.broadcast %cst_5 : f32 to vector<8x1xf32>
    %c0_6 = arith.constant 0 : index
    %c0_7 = arith.constant 0 : index
    %10 = vector.load %arg12[%c0_6, %c0_7] : memref<8x1xf32, #tpu.memory_space<vmem>>, vector<8x1xf32>
    tpu.vector_store %arg12[%c0_6, %c0_7], %9 {strides = array<i32>} : memref<8x1xf32, #tpu.memory_space<vmem>>, vector<8x1xf32>,
    %cst_8 = arith.constant 0.000000e+00 : f32
    %11 = vector.broadcast %cst_8 : f32 to vector<8x1xf32>
    %c0_9 = arith.constant 0 : index
    %c0_10 = arith.constant 0 : index
    %12 = vector.load %arg13[%c0_9, %c0_10] : memref<8x1xf32, #tpu.memory_space<vmem>>, vector<8x1xf32>
    tpu.vector_store %arg13[%c0_9, %c0_10], %11 {strides = array<i32>} : memref<8x1xf32, #tpu.memory_space<vmem>>, vector<8x1xf32>,
    %c0_i32_11 = arith.constant 0 : i32
    %c0_12 = arith.constant 0 : index
    %13 = memref.load %arg14[%c0_12] : memref<1xi32, #tpu.memory_space<smem>>
    memref.store %c0_i32_11, %arg14[%c0_12] : memref<1xi32, #tpu.memory_space<smem>>
    %c0_13 = arith.constant 0 : index
    %c0_14 = arith.constant 0 : index
    %14 = vector.load %arg1[%c0_13, %c0_14] : memref<8x16xf32, #tpu.memory_space<vmem>>, vector<8x16xf32>
    %15 = arith.truncf %14 : vector<8x16xf32> to vector<8x16xbf16>
    %c0_15 = arith.constant 0 : index
    %c0_16 = arith.constant 0 : index
    %16 = vector.load %arg2[%c0_15, %c0_16] : memref<16x384xbf16, #tpu.memory_space<vmem>>, vector<16x384xbf16>
    %cst_17 = arith.constant dense<0.000000e+00> : vector<8x384xf32>
    %17 = tpu.matmul %15, %16, %cst_17 {dimension_numbers = #tpu.dot_dimension_numbers<[1], [0], [0], [1], [0, 0, 1, 1], [], []>} : vector<8x16xbf16>, vector<16x384xbf16>, vector<8x384xf32> -> vector<8x384xf32>
    %c0_18 = arith.constant 0 : index
    %c0_19 = arith.constant 0 : index
    %18 = vector.load %arg4[%c0_18, %c0_19] : memref<1x384xf32, #tpu.memory_space<vmem>>, vector<1x384xf32>
    %19 = vector.broadcast %18 : vector<1x384xf32> to vector<8x384xf32>
    %20 = arith.addf %17, %19 : vector<8x384xf32>
    %c0_20 = arith.constant 0 : index
    %c0_21 = arith.constant 0 : index
    %21 = vector.load %arg10[%c0_20, %c0_21] : memref<8x384xf32, #tpu.memory_space<vmem>>, vector<8x384xf32>
    tpu.vector_store %arg10[%c0_20, %c0_21], %20 {strides = array<i32>} : memref<8x384xf32, #tpu.memory_space<vmem>>, vector<8x384xf32>,
    %c0_i32_22 = arith.constant 0 : i32
    %c0_23 = arith.constant 0 : index
    %22 = memref.load %arg14[%c0_23] : memref<1xi32, #tpu.memory_space<smem>>
    %c0_i32_24 = arith.constant 0 : i32
    %23 = arith.cmpi eq, %22, %c0_i32_24 : i32
    %24 = arith.extui %23 : i1 to i32
    %c0_i32_25 = arith.constant 0 : i32
    %25 = arith.cmpi ne, %24, %c0_i32_25 : i32
    scf.if %25 {
      %c0_45 = arith.constant 0 : index
      %c0_46 = arith.constant 0 : index
      %46 = vector.load %arg9[%c0_45, %c0_46] : memref<8x128xf32, #tpu.memory_space<vmem>>, vector<8x128xf32>
      %c0_47 = arith.constant 0 : index
      %c0_48 = arith.constant 0 : index
      %47 = vector.load %arg11[%c0_47, %c0_48] : memref<8x1xf32, #tpu.memory_space<vmem>>, vector<8x1xf32>
      %cst_49 = arith.constant 5.000000e-01 : f32
      %48 = vector.broadcast %cst_49 : f32 to vector<8x1xf32>
      %49 = arith.cmpf olt, %47, %48 : vector<8x1xf32>
      %50 = arith.truncf %46 : vector<8x128xf32> to vector<8x128xbf16>
      %c0_50 = arith.constant 0 : index
      %c0_51 = arith.constant 0 : index
      %51 = vector.load %arg3[%c0_50, %c0_51] : memref<128x384xbf16, #tpu.memory_space<vmem>>, vector<128x256xbf16>
      %cst_52 = arith.constant dense<0.000000e+00> : vector<8x256xf32>
      %52 = tpu.matmul %50, %51, %cst_52 {dimension_numbers = #tpu.dot_dimension_numbers<[1], [0], [0], [1], [0, 0, 1, 1], [], []>} : vector<8x128xbf16>, vector<128x256xbf16>, vector<8x256xf32> -> vector<8x256xf32>
      %c0_53 = arith.constant 0 : index
      %c0_54 = arith.constant 0 : index
      %53 = vector.load %arg10[%c0_53, %c0_54] : memref<8x384xf32, #tpu.memory_space<vmem>>, vector<8x128xf32>
      %54 = vector.extract_strided_slice %52 {offsets = [0, 0], sizes = [8, 128], strides = [1, 1]} : vector<8x256xf32> to vector<8x128xf32>
      %55 = arith.addf %53, %54 : vector<8x128xf32>
      %56 = arith.negf %55 : vector<8x128xf32>
      %57 = math.exp %56 : vector<8x128xf32>
      %cst_55 = arith.constant 1.000000e+00 : f32
      %58 = vector.broadcast %cst_55 : f32 to vector<8x128xf32>
      %59 = arith.addf %58, %57 : vector<8x128xf32>
      %60 = arith.divf %58, %59 : vector<8x128xf32>
      %c0_56 = arith.constant 0 : index
      %c128 = arith.constant 128 : index
      %61 = vector.load %arg10[%c0_56, %c128] : memref<8x384xf32, #tpu.memory_space<vmem>>, vector<8x128xf32>
      %62 = vector.extract_strided_slice %52 {offsets = [0, 128], sizes = [8, 128], strides = [1, 1]} : vector<8x256xf32> to vector<8x128xf32>
      %63 = arith.addf %61, %62 : vector<8x128xf32>
      %64 = arith.negf %63 : vector<8x128xf32>
      %65 = math.exp %64 : vector<8x128xf32>
      %cst_57 = arith.constant 1.000000e+00 : f32
      %66 = vector.broadcast %cst_57 : f32 to vector<8x128xf32>
      %67 = arith.addf %66, %65 : vector<8x128xf32>
      %68 = arith.divf %66, %67 : vector<8x128xf32>
      %c0_58 = arith.constant 0 : index
      %c256 = arith.constant 256 : index
      %69 = vector.load %arg3[%c0_58, %c256] : memref<128x384xbf16, #tpu.memory_space<vmem>>, vector<128x128xbf16>
      %cst_59 = arith.constant dense<0.000000e+00> : vector<8x128xf32>
      %70 = tpu.matmul %50, %69, %cst_59 {dimension_numbers = #tpu.dot_dimension_numbers<[1], [0], [0], [1], [0, 0, 1, 1], [], []>} : vector<8x128xbf16>, vector<128x128xbf16>, vector<8x128xf32> -> vector<8x128xf32>
      %c0_60 = arith.constant 0 : index
      %c256_61 = arith.constant 256 : index
      %71 = vector.load %arg10[%c0_60, %c256_61] : memref<8x384xf32, #tpu.memory_space<vmem>>, vector<8x128xf32>
      %c0_62 = arith.constant 0 : index
      %c0_63 = arith.constant 0 : index
      %72 = vector.load %arg5[%c0_62, %c0_63] : memref<1x128xf32, #tpu.memory_space<vmem>>, vector<1x128xf32>
      %73 = vector.broadcast %72 : vector<1x128xf32> to vector<8x128xf32>
      %74 = arith.addf %70, %73 : vector<8x128xf32>
      %75 = arith.mulf %60, %74 : vector<8x128xf32>
      %76 = arith.addf %71, %75 : vector<8x128xf32>
      %77 = math.tanh %76 : vector<8x128xf32>
      %cst_64 = arith.constant 1.000000e+00 : f32
      %78 = vector.broadcast %cst_64 : f32 to vector<8x128xf32>
      %79 = arith.subf %78, %68 : vector<8x128xf32>
      %80 = arith.mulf %79, %77 : vector<8x128xf32>
      %81 = arith.mulf %68, %46 : vector<8x128xf32>
      %82 = arith.addf %80, %81 : vector<8x128xf32>
      %83 = arith.truncf %82 : vector<8x128xf32> to vector<8x128xbf16>
      %c0_65 = arith.constant 0 : index
      %c0_66 = arith.constant 0 : index
      %84 = vector.load %arg6[%c0_65, %c0_66] : memref<128x2xbf16, #tpu.memory_space<vmem>>, vector<128x2xbf16>
      %cst_67 = arith.constant dense<0.000000e+00> : vector<8x2xf32>
      %85 = tpu.matmul %83, %84, %cst_67 {dimension_numbers = #tpu.dot_dimension_numbers<[1], [0], [0], [1], [0, 0, 1, 1], [], []>} : vector<8x128xbf16>, vector<128x2xbf16>, vector<8x2xf32> -> vector<8x2xf32>
      %c0_68 = arith.constant 0 : index
      %c0_69 = arith.constant 0 : index
      %86 = vector.load %arg7[%c0_68, %c0_69] : memref<1x2xf32, #tpu.memory_space<vmem>>, vector<1x2xf32>
      %87 = vector.broadcast %86 : vector<1x2xf32> to vector<8x2xf32>
      %88 = arith.addf %85, %87 : vector<8x2xf32>
      %89 = vector.extract_strided_slice %88 {offsets = [0, 0], sizes = [8, 1], strides = [1, 1]} : vector<8x2xf32> to vector<8x1xf32>
      %90 = vector.extract_strided_slice %88 {offsets = [0, 1], sizes = [8, 1], strides = [1, 1]} : vector<8x2xf32> to vector<8x1xf32>
      %cst_70 = arith.constant 0.000000e+00 : f32
      %91 = vector.broadcast %cst_70 : f32 to vector<8x1xf32>
      %92 = arith.cmpf ogt, %89, %91 : vector<8x1xf32>
      %c4_i32_71 = arith.constant 4 : i32
      %93 = arith.cmpi eq, %c0_i32_22, %c4_i32_71 : i32
      %94 = vector.broadcast %93 : i1 to vector<8x1xi1>
      %95 = arith.ori %92, %94 : vector<8x1xi1>
      %96 = arith.andi %49, %95 : vector<8x1xi1>
      %c0_72 = arith.constant 0 : index
      %c0_73 = arith.constant 0 : index
      %97 = vector.load %arg13[%c0_72, %c0_73] : memref<8x1xf32, #tpu.memory_space<vmem>>, vector<8x1xf32>
      %98 = arith.select %96, %90, %97 : vector<8x1xi1>, vector<8x1xf32>
      %c0_74 = arith.constant 0 : index
      %c0_75 = arith.constant 0 : index
      %99 = vector.load %arg13[%c0_74, %c0_75] : memref<8x1xf32, #tpu.memory_space<vmem>>, vector<8x1xf32>
      tpu.vector_store %arg13[%c0_74, %c0_75], %98 {strides = array<i32>} : memref<8x1xf32, #tpu.memory_space<vmem>>, vector<8x1xf32>,
      %100 = vector.shape_cast %49 : vector<8x1xi1> to vector<8x1xi1>
      %101 = vector.broadcast %100 : vector<8x1xi1> to vector<8x128xi1>
      %102 = arith.select %101, %82, %46 : vector<8x128xi1>, vector<8x128xf32>
      %c0_76 = arith.constant 0 : index
      %c0_77 = arith.constant 0 : index
      %103 = vector.load %arg9[%c0_76, %c0_77] : memref<8x128xf32, #tpu.memory_space<vmem>>, vector<8x128xf32>
      tpu.vector_store %arg9[%c0_76, %c0_77], %102 {strides = array<i32>} : memref<8x128xf32, #tpu.memory_space<vmem>>, vector<8x128xf32>,
      %c0_78 = arith.constant 0 : index
      %c0_79 = arith.constant 0 : index
      %104 = vector.load %arg12[%c0_78, %c0_79] : memref<8x1xf32, #tpu.memory_space<vmem>>, vector<8x1xf32>
      %cst_80 = arith.constant 1.000000e+00 : f32
      %105 = vector.broadcast %cst_80 : f32 to vector<8x1xf32>
      %106 = arith.addf %104, %105 : vector<8x1xf32>
      %c0_81 = arith.constant 0 : index
      %c0_82 = arith.constant 0 : index
      %107 = vector.load %arg12[%c0_81, %c0_82] : memref<8x1xf32, #tpu.memory_space<vmem>>, vector<8x1xf32>
      %108 = arith.select %49, %106, %107 : vector<8x1xi1>, vector<8x1xf32>
      %c0_83 = arith.constant 0 : index
      %c0_84 = arith.constant 0 : index
      %109 = vector.load %arg12[%c0_83, %c0_84] : memref<8x1xf32, #tpu.memory_space<vmem>>, vector<8x1xf32>
      tpu.vector_store %arg12[%c0_83, %c0_84], %108 {strides = array<i32>} : memref<8x1xf32, #tpu.memory_space<vmem>>, vector<8x1xf32>,
      %110 = arith.andi %49, %92 : vector<8x1xi1>
      %c0_85 = arith.constant 0 : index
      %c0_86 = arith.constant 0 : index
      %111 = vector.load %arg11[%c0_85, %c0_86] : memref<8x1xf32, #tpu.memory_space<vmem>>, vector<8x1xf32>
      %cst_87 = arith.constant 1.000000e+00 : f32
      %112 = vector.broadcast %cst_87 : f32 to vector<8x1xf32>
      %113 = arith.select %110, %112, %111 : vector<8x1xi1>, vector<8x1xf32>
      %c0_88 = arith.constant 0 : index
      %c0_89 = arith.constant 0 : index
      %114 = vector.load %arg11[%c0_88, %c0_89] : memref<8x1xf32, #tpu.memory_space<vmem>>, vector<8x1xf32>
      tpu.vector_store %arg11[%c0_88, %c0_89], %113 {strides = array<i32>} : memref<8x1xf32, #tpu.memory_space<vmem>>, vector<8x1xf32>,
      %115 = vector.shape_cast %113 : vector<8x1xf32> to vector<1x8x1xf32>
      %cst_90 = arith.constant dense<0.000000e+00> : vector<1xf32>
      %116 = vector.multi_reduction <add>, %115, %cst_90 [1, 2] : vector<1x8x1xf32> to vector<1xf32>
      %117 = vector.shape_cast %116 : vector<1xf32> to vector<1x1x1xf32>
      %118 = vector.extract %117[0, 0, 0] : f32 from vector<1x1x1xf32>
      %cst_91 = arith.constant 8.000000e+00 : f32
      %cst_92 = arith.constant 5.000000e-01 : f32
      %119 = arith.subf %cst_91, %cst_92 : f32
      %120 = arith.cmpf ogt, %118, %119 : f32
      %121 = arith.extui %120 : i1 to i32
      %c0_93 = arith.constant 0 : index
      %122 = memref.load %arg14[%c0_93] : memref<1xi32, #tpu.memory_space<smem>>
      memref.store %121, %arg14[%c0_93] : memref<1xi32, #tpu.memory_space<smem>>
    } else {
    }
    %c1_i32 = arith.constant 1 : i32
    %c0_26 = arith.constant 0 : index
    %26 = memref.load %arg14[%c0_26] : memref<1xi32, #tpu.memory_space<smem>>
    %c0_i32_27 = arith.constant 0 : i32
    %27 = arith.cmpi eq, %26, %c0_i32_27 : i32
    %28 = arith.extui %27 : i1 to i32
    %c0_i32_28 = arith.constant 0 : i32
    %29 = arith.cmpi ne, %28, %c0_i32_28 : i32
    scf.if %29 {
      %c0_45 = arith.constant 0 : index
      %c0_46 = arith.constant 0 : index
      %46 = vector.load %arg9[%c0_45, %c0_46] : memref<8x128xf32, #tpu.memory_space<vmem>>, vector<8x128xf32>
      %c0_47 = arith.constant 0 : index
      %c0_48 = arith.constant 0 : index
      %47 = vector.load %arg11[%c0_47, %c0_48] : memref<8x1xf32, #tpu.memory_space<vmem>>, vector<8x1xf32>
      %cst_49 = arith.constant 5.000000e-01 : f32
      %48 = vector.broadcast %cst_49 : f32 to vector<8x1xf32>
      %49 = arith.cmpf olt, %47, %48 : vector<8x1xf32>
      %50 = arith.truncf %46 : vector<8x128xf32> to vector<8x128xbf16>
      %c0_50 = arith.constant 0 : index
      %c0_51 = arith.constant 0 : index
      %51 = vector.load %arg3[%c0_50, %c0_51] : memref<128x384xbf16, #tpu.memory_space<vmem>>, vector<128x256xbf16>
      %cst_52 = arith.constant dense<0.000000e+00> : vector<8x256xf32>
      %52 = tpu.matmul %50, %51, %cst_52 {dimension_numbers = #tpu.dot_dimension_numbers<[1], [0], [0], [1], [0, 0, 1, 1], [], []>} : vector<8x128xbf16>, vector<128x256xbf16>, vector<8x256xf32> -> vector<8x256xf32>
      %c0_53 = arith.constant 0 : index
      %c0_54 = arith.constant 0 : index
      %53 = vector.load %arg10[%c0_53, %c0_54] : memref<8x384xf32, #tpu.memory_space<vmem>>, vector<8x128xf32>
      %54 = vector.extract_strided_slice %52 {offsets = [0, 0], sizes = [8, 128], strides = [1, 1]} : vector<8x256xf32> to vector<8x128xf32>
      %55 = arith.addf %53, %54 : vector<8x128xf32>
      %56 = arith.negf %55 : vector<8x128xf32>
      %57 = math.exp %56 : vector<8x128xf32>
      %cst_55 = arith.constant 1.000000e+00 : f32
      %58 = vector.broadcast %cst_55 : f32 to vector<8x128xf32>
      %59 = arith.addf %58, %57 : vector<8x128xf32>
      %60 = arith.divf %58, %59 : vector<8x128xf32>
      %c0_56 = arith.constant 0 : index
      %c128 = arith.constant 128 : index
      %61 = vector.load %arg10[%c0_56, %c128] : memref<8x384xf32, #tpu.memory_space<vmem>>, vector<8x128xf32>
      %62 = vector.extract_strided_slice %52 {offsets = [0, 128], sizes = [8, 128], strides = [1, 1]} : vector<8x256xf32> to vector<8x128xf32>
      %63 = arith.addf %61, %62 : vector<8x128xf32>
      %64 = arith.negf %63 : vector<8x128xf32>
      %65 = math.exp %64 : vector<8x128xf32>
      %cst_57 = arith.constant 1.000000e+00 : f32
      %66 = vector.broadcast %cst_57 : f32 to vector<8x128xf32>
      %67 = arith.addf %66, %65 : vector<8x128xf32>
      %68 = arith.divf %66, %67 : vector<8x128xf32>
      %c0_58 = arith.constant 0 : index
      %c256 = arith.constant 256 : index
      %69 = vector.load %arg3[%c0_58, %c256] : memref<128x384xbf16, #tpu.memory_space<vmem>>, vector<128x128xbf16>
      %cst_59 = arith.constant dense<0.000000e+00> : vector<8x128xf32>
      %70 = tpu.matmul %50, %69, %cst_59 {dimension_numbers = #tpu.dot_dimension_numbers<[1], [0], [0], [1], [0, 0, 1, 1], [], []>} : vector<8x128xbf16>, vector<128x128xbf16>, vector<8x128xf32> -> vector<8x128xf32>
      %c0_60 = arith.constant 0 : index
      %c256_61 = arith.constant 256 : index
      %71 = vector.load %arg10[%c0_60, %c256_61] : memref<8x384xf32, #tpu.memory_space<vmem>>, vector<8x128xf32>
      %c0_62 = arith.constant 0 : index
      %c0_63 = arith.constant 0 : index
      %72 = vector.load %arg5[%c0_62, %c0_63] : memref<1x128xf32, #tpu.memory_space<vmem>>, vector<1x128xf32>
      %73 = vector.broadcast %72 : vector<1x128xf32> to vector<8x128xf32>
      %74 = arith.addf %70, %73 : vector<8x128xf32>
      %75 = arith.mulf %60, %74 : vector<8x128xf32>
      %76 = arith.addf %71, %75 : vector<8x128xf32>
      %77 = math.tanh %76 : vector<8x128xf32>
      %cst_64 = arith.constant 1.000000e+00 : f32
      %78 = vector.broadcast %cst_64 : f32 to vector<8x128xf32>
      %79 = arith.subf %78, %68 : vector<8x128xf32>
      %80 = arith.mulf %79, %77 : vector<8x128xf32>
      %81 = arith.mulf %68, %46 : vector<8x128xf32>
      %82 = arith.addf %80, %81 : vector<8x128xf32>
      %83 = arith.truncf %82 : vector<8x128xf32> to vector<8x128xbf16>
      %c0_65 = arith.constant 0 : index
      %c0_66 = arith.constant 0 : index
      %84 = vector.load %arg6[%c0_65, %c0_66] : memref<128x2xbf16, #tpu.memory_space<vmem>>, vector<128x2xbf16>
      %cst_67 = arith.constant dense<0.000000e+00> : vector<8x2xf32>
      %85 = tpu.matmul %83, %84, %cst_67 {dimension_numbers = #tpu.dot_dimension_numbers<[1], [0], [0], [1], [0, 0, 1, 1], [], []>} : vector<8x128xbf16>, vector<128x2xbf16>, vector<8x2xf32> -> vector<8x2xf32>
      %c0_68 = arith.constant 0 : index
      %c0_69 = arith.constant 0 : index
      %86 = vector.load %arg7[%c0_68, %c0_69] : memref<1x2xf32, #tpu.memory_space<vmem>>, vector<1x2xf32>
      %87 = vector.broadcast %86 : vector<1x2xf32> to vector<8x2xf32>
      %88 = arith.addf %85, %87 : vector<8x2xf32>
      %89 = vector.extract_strided_slice %88 {offsets = [0, 0], sizes = [8, 1], strides = [1, 1]} : vector<8x2xf32> to vector<8x1xf32>
      %90 = vector.extract_strided_slice %88 {offsets = [0, 1], sizes = [8, 1], strides = [1, 1]} : vector<8x2xf32> to vector<8x1xf32>
      %cst_70 = arith.constant 0.000000e+00 : f32
      %91 = vector.broadcast %cst_70 : f32 to vector<8x1xf32>
      %92 = arith.cmpf ogt, %89, %91 : vector<8x1xf32>
      %c4_i32_71 = arith.constant 4 : i32
      %93 = arith.cmpi eq, %c1_i32, %c4_i32_71 : i32
      %94 = vector.broadcast %93 : i1 to vector<8x1xi1>
      %95 = arith.ori %92, %94 : vector<8x1xi1>
      %96 = arith.andi %49, %95 : vector<8x1xi1>
      %c0_72 = arith.constant 0 : index
      %c0_73 = arith.constant 0 : index
      %97 = vector.load %arg13[%c0_72, %c0_73] : memref<8x1xf32, #tpu.memory_space<vmem>>, vector<8x1xf32>
      %98 = arith.select %96, %90, %97 : vector<8x1xi1>, vector<8x1xf32>
      %c0_74 = arith.constant 0 : index
      %c0_75 = arith.constant 0 : index
      %99 = vector.load %arg13[%c0_74, %c0_75] : memref<8x1xf32, #tpu.memory_space<vmem>>, vector<8x1xf32>
      tpu.vector_store %arg13[%c0_74, %c0_75], %98 {strides = array<i32>} : memref<8x1xf32, #tpu.memory_space<vmem>>, vector<8x1xf32>,
      %100 = vector.shape_cast %49 : vector<8x1xi1> to vector<8x1xi1>
      %101 = vector.broadcast %100 : vector<8x1xi1> to vector<8x128xi1>
      %102 = arith.select %101, %82, %46 : vector<8x128xi1>, vector<8x128xf32>
      %c0_76 = arith.constant 0 : index
      %c0_77 = arith.constant 0 : index
      %103 = vector.load %arg9[%c0_76, %c0_77] : memref<8x128xf32, #tpu.memory_space<vmem>>, vector<8x128xf32>
      tpu.vector_store %arg9[%c0_76, %c0_77], %102 {strides = array<i32>} : memref<8x128xf32, #tpu.memory_space<vmem>>, vector<8x128xf32>,
      %c0_78 = arith.constant 0 : index
      %c0_79 = arith.constant 0 : index
      %104 = vector.load %arg12[%c0_78, %c0_79] : memref<8x1xf32, #tpu.memory_space<vmem>>, vector<8x1xf32>
      %cst_80 = arith.constant 1.000000e+00 : f32
      %105 = vector.broadcast %cst_80 : f32 to vector<8x1xf32>
      %106 = arith.addf %104, %105 : vector<8x1xf32>
      %c0_81 = arith.constant 0 : index
      %c0_82 = arith.constant 0 : index
      %107 = vector.load %arg12[%c0_81, %c0_82] : memref<8x1xf32, #tpu.memory_space<vmem>>, vector<8x1xf32>
      %108 = arith.select %49, %106, %107 : vector<8x1xi1>, vector<8x1xf32>
      %c0_83 = arith.constant 0 : index
      %c0_84 = arith.constant 0 : index
      %109 = vector.load %arg12[%c0_83, %c0_84] : memref<8x1xf32, #tpu.memory_space<vmem>>, vector<8x1xf32>
      tpu.vector_store %arg12[%c0_83, %c0_84], %108 {strides = array<i32>} : memref<8x1xf32, #tpu.memory_space<vmem>>, vector<8x1xf32>,
      %110 = arith.andi %49, %92 : vector<8x1xi1>
      %c0_85 = arith.constant 0 : index
      %c0_86 = arith.constant 0 : index
      %111 = vector.load %arg11[%c0_85, %c0_86] : memref<8x1xf32, #tpu.memory_space<vmem>>, vector<8x1xf32>
      %cst_87 = arith.constant 1.000000e+00 : f32
      %112 = vector.broadcast %cst_87 : f32 to vector<8x1xf32>
      %113 = arith.select %110, %112, %111 : vector<8x1xi1>, vector<8x1xf32>
      %c0_88 = arith.constant 0 : index
      %c0_89 = arith.constant 0 : index
      %114 = vector.load %arg11[%c0_88, %c0_89] : memref<8x1xf32, #tpu.memory_space<vmem>>, vector<8x1xf32>
      tpu.vector_store %arg11[%c0_88, %c0_89], %113 {strides = array<i32>} : memref<8x1xf32, #tpu.memory_space<vmem>>, vector<8x1xf32>,
      %115 = vector.shape_cast %113 : vector<8x1xf32> to vector<1x8x1xf32>
      %cst_90 = arith.constant dense<0.000000e+00> : vector<1xf32>
      %116 = vector.multi_reduction <add>, %115, %cst_90 [1, 2] : vector<1x8x1xf32> to vector<1xf32>
      %117 = vector.shape_cast %116 : vector<1xf32> to vector<1x1x1xf32>
      %118 = vector.extract %117[0, 0, 0] : f32 from vector<1x1x1xf32>
      %cst_91 = arith.constant 8.000000e+00 : f32
      %cst_92 = arith.constant 5.000000e-01 : f32
      %119 = arith.subf %cst_91, %cst_92 : f32
      %120 = arith.cmpf ogt, %118, %119 : f32
      %121 = arith.extui %120 : i1 to i32
      %c0_93 = arith.constant 0 : index
      %122 = memref.load %arg14[%c0_93] : memref<1xi32, #tpu.memory_space<smem>>
      memref.store %121, %arg14[%c0_93] : memref<1xi32, #tpu.memory_space<smem>>
    } else {
    }
    %c2_i32 = arith.constant 2 : i32
    %c0_29 = arith.constant 0 : index
    %30 = memref.load %arg14[%c0_29] : memref<1xi32, #tpu.memory_space<smem>>
    %c0_i32_30 = arith.constant 0 : i32
    %31 = arith.cmpi eq, %30, %c0_i32_30 : i32
    %32 = arith.extui %31 : i1 to i32
    %c0_i32_31 = arith.constant 0 : i32
    %33 = arith.cmpi ne, %32, %c0_i32_31 : i32
    scf.if %33 {
      %c0_45 = arith.constant 0 : index
      %c0_46 = arith.constant 0 : index
      %46 = vector.load %arg9[%c0_45, %c0_46] : memref<8x128xf32, #tpu.memory_space<vmem>>, vector<8x128xf32>
      %c0_47 = arith.constant 0 : index
      %c0_48 = arith.constant 0 : index
      %47 = vector.load %arg11[%c0_47, %c0_48] : memref<8x1xf32, #tpu.memory_space<vmem>>, vector<8x1xf32>
      %cst_49 = arith.constant 5.000000e-01 : f32
      %48 = vector.broadcast %cst_49 : f32 to vector<8x1xf32>
      %49 = arith.cmpf olt, %47, %48 : vector<8x1xf32>
      %50 = arith.truncf %46 : vector<8x128xf32> to vector<8x128xbf16>
      %c0_50 = arith.constant 0 : index
      %c0_51 = arith.constant 0 : index
      %51 = vector.load %arg3[%c0_50, %c0_51] : memref<128x384xbf16, #tpu.memory_space<vmem>>, vector<128x256xbf16>
      %cst_52 = arith.constant dense<0.000000e+00> : vector<8x256xf32>
      %52 = tpu.matmul %50, %51, %cst_52 {dimension_numbers = #tpu.dot_dimension_numbers<[1], [0], [0], [1], [0, 0, 1, 1], [], []>} : vector<8x128xbf16>, vector<128x256xbf16>, vector<8x256xf32> -> vector<8x256xf32>
      %c0_53 = arith.constant 0 : index
      %c0_54 = arith.constant 0 : index
      %53 = vector.load %arg10[%c0_53, %c0_54] : memref<8x384xf32, #tpu.memory_space<vmem>>, vector<8x128xf32>
      %54 = vector.extract_strided_slice %52 {offsets = [0, 0], sizes = [8, 128], strides = [1, 1]} : vector<8x256xf32> to vector<8x128xf32>
      %55 = arith.addf %53, %54 : vector<8x128xf32>
      %56 = arith.negf %55 : vector<8x128xf32>
      %57 = math.exp %56 : vector<8x128xf32>
      %cst_55 = arith.constant 1.000000e+00 : f32
      %58 = vector.broadcast %cst_55 : f32 to vector<8x128xf32>
      %59 = arith.addf %58, %57 : vector<8x128xf32>
      %60 = arith.divf %58, %59 : vector<8x128xf32>
      %c0_56 = arith.constant 0 : index
      %c128 = arith.constant 128 : index
      %61 = vector.load %arg10[%c0_56, %c128] : memref<8x384xf32, #tpu.memory_space<vmem>>, vector<8x128xf32>
      %62 = vector.extract_strided_slice %52 {offsets = [0, 128], sizes = [8, 128], strides = [1, 1]} : vector<8x256xf32> to vector<8x128xf32>
      %63 = arith.addf %61, %62 : vector<8x128xf32>
      %64 = arith.negf %63 : vector<8x128xf32>
      %65 = math.exp %64 : vector<8x128xf32>
      %cst_57 = arith.constant 1.000000e+00 : f32
      %66 = vector.broadcast %cst_57 : f32 to vector<8x128xf32>
      %67 = arith.addf %66, %65 : vector<8x128xf32>
      %68 = arith.divf %66, %67 : vector<8x128xf32>
      %c0_58 = arith.constant 0 : index
      %c256 = arith.constant 256 : index
      %69 = vector.load %arg3[%c0_58, %c256] : memref<128x384xbf16, #tpu.memory_space<vmem>>, vector<128x128xbf16>
      %cst_59 = arith.constant dense<0.000000e+00> : vector<8x128xf32>
      %70 = tpu.matmul %50, %69, %cst_59 {dimension_numbers = #tpu.dot_dimension_numbers<[1], [0], [0], [1], [0, 0, 1, 1], [], []>} : vector<8x128xbf16>, vector<128x128xbf16>, vector<8x128xf32> -> vector<8x128xf32>
      %c0_60 = arith.constant 0 : index
      %c256_61 = arith.constant 256 : index
      %71 = vector.load %arg10[%c0_60, %c256_61] : memref<8x384xf32, #tpu.memory_space<vmem>>, vector<8x128xf32>
      %c0_62 = arith.constant 0 : index
      %c0_63 = arith.constant 0 : index
      %72 = vector.load %arg5[%c0_62, %c0_63] : memref<1x128xf32, #tpu.memory_space<vmem>>, vector<1x128xf32>
      %73 = vector.broadcast %72 : vector<1x128xf32> to vector<8x128xf32>
      %74 = arith.addf %70, %73 : vector<8x128xf32>
      %75 = arith.mulf %60, %74 : vector<8x128xf32>
      %76 = arith.addf %71, %75 : vector<8x128xf32>
      %77 = math.tanh %76 : vector<8x128xf32>
      %cst_64 = arith.constant 1.000000e+00 : f32
      %78 = vector.broadcast %cst_64 : f32 to vector<8x128xf32>
      %79 = arith.subf %78, %68 : vector<8x128xf32>
      %80 = arith.mulf %79, %77 : vector<8x128xf32>
      %81 = arith.mulf %68, %46 : vector<8x128xf32>
      %82 = arith.addf %80, %81 : vector<8x128xf32>
      %83 = arith.truncf %82 : vector<8x128xf32> to vector<8x128xbf16>
      %c0_65 = arith.constant 0 : index
      %c0_66 = arith.constant 0 : index
      %84 = vector.load %arg6[%c0_65, %c0_66] : memref<128x2xbf16, #tpu.memory_space<vmem>>, vector<128x2xbf16>
      %cst_67 = arith.constant dense<0.000000e+00> : vector<8x2xf32>
      %85 = tpu.matmul %83, %84, %cst_67 {dimension_numbers = #tpu.dot_dimension_numbers<[1], [0], [0], [1], [0, 0, 1, 1], [], []>} : vector<8x128xbf16>, vector<128x2xbf16>, vector<8x2xf32> -> vector<8x2xf32>
      %c0_68 = arith.constant 0 : index
      %c0_69 = arith.constant 0 : index
      %86 = vector.load %arg7[%c0_68, %c0_69] : memref<1x2xf32, #tpu.memory_space<vmem>>, vector<1x2xf32>
      %87 = vector.broadcast %86 : vector<1x2xf32> to vector<8x2xf32>
      %88 = arith.addf %85, %87 : vector<8x2xf32>
      %89 = vector.extract_strided_slice %88 {offsets = [0, 0], sizes = [8, 1], strides = [1, 1]} : vector<8x2xf32> to vector<8x1xf32>
      %90 = vector.extract_strided_slice %88 {offsets = [0, 1], sizes = [8, 1], strides = [1, 1]} : vector<8x2xf32> to vector<8x1xf32>
      %cst_70 = arith.constant 0.000000e+00 : f32
      %91 = vector.broadcast %cst_70 : f32 to vector<8x1xf32>
      %92 = arith.cmpf ogt, %89, %91 : vector<8x1xf32>
      %c4_i32_71 = arith.constant 4 : i32
      %93 = arith.cmpi eq, %c2_i32, %c4_i32_71 : i32
      %94 = vector.broadcast %93 : i1 to vector<8x1xi1>
      %95 = arith.ori %92, %94 : vector<8x1xi1>
      %96 = arith.andi %49, %95 : vector<8x1xi1>
      %c0_72 = arith.constant 0 : index
      %c0_73 = arith.constant 0 : index
      %97 = vector.load %arg13[%c0_72, %c0_73] : memref<8x1xf32, #tpu.memory_space<vmem>>, vector<8x1xf32>
      %98 = arith.select %96, %90, %97 : vector<8x1xi1>, vector<8x1xf32>
      %c0_74 = arith.constant 0 : index
      %c0_75 = arith.constant 0 : index
      %99 = vector.load %arg13[%c0_74, %c0_75] : memref<8x1xf32, #tpu.memory_space<vmem>>, vector<8x1xf32>
      tpu.vector_store %arg13[%c0_74, %c0_75], %98 {strides = array<i32>} : memref<8x1xf32, #tpu.memory_space<vmem>>, vector<8x1xf32>,
      %100 = vector.shape_cast %49 : vector<8x1xi1> to vector<8x1xi1>
      %101 = vector.broadcast %100 : vector<8x1xi1> to vector<8x128xi1>
      %102 = arith.select %101, %82, %46 : vector<8x128xi1>, vector<8x128xf32>
      %c0_76 = arith.constant 0 : index
      %c0_77 = arith.constant 0 : index
      %103 = vector.load %arg9[%c0_76, %c0_77] : memref<8x128xf32, #tpu.memory_space<vmem>>, vector<8x128xf32>
      tpu.vector_store %arg9[%c0_76, %c0_77], %102 {strides = array<i32>} : memref<8x128xf32, #tpu.memory_space<vmem>>, vector<8x128xf32>,
      %c0_78 = arith.constant 0 : index
      %c0_79 = arith.constant 0 : index
      %104 = vector.load %arg12[%c0_78, %c0_79] : memref<8x1xf32, #tpu.memory_space<vmem>>, vector<8x1xf32>
      %cst_80 = arith.constant 1.000000e+00 : f32
      %105 = vector.broadcast %cst_80 : f32 to vector<8x1xf32>
      %106 = arith.addf %104, %105 : vector<8x1xf32>
      %c0_81 = arith.constant 0 : index
      %c0_82 = arith.constant 0 : index
      %107 = vector.load %arg12[%c0_81, %c0_82] : memref<8x1xf32, #tpu.memory_space<vmem>>, vector<8x1xf32>
      %108 = arith.select %49, %106, %107 : vector<8x1xi1>, vector<8x1xf32>
      %c0_83 = arith.constant 0 : index
      %c0_84 = arith.constant 0 : index
      %109 = vector.load %arg12[%c0_83, %c0_84] : memref<8x1xf32, #tpu.memory_space<vmem>>, vector<8x1xf32>
      tpu.vector_store %arg12[%c0_83, %c0_84], %108 {strides = array<i32>} : memref<8x1xf32, #tpu.memory_space<vmem>>, vector<8x1xf32>,
      %110 = arith.andi %49, %92 : vector<8x1xi1>
      %c0_85 = arith.constant 0 : index
      %c0_86 = arith.constant 0 : index
      %111 = vector.load %arg11[%c0_85, %c0_86] : memref<8x1xf32, #tpu.memory_space<vmem>>, vector<8x1xf32>
      %cst_87 = arith.constant 1.000000e+00 : f32
      %112 = vector.broadcast %cst_87 : f32 to vector<8x1xf32>
      %113 = arith.select %110, %112, %111 : vector<8x1xi1>, vector<8x1xf32>
      %c0_88 = arith.constant 0 : index
      %c0_89 = arith.constant 0 : index
      %114 = vector.load %arg11[%c0_88, %c0_89] : memref<8x1xf32, #tpu.memory_space<vmem>>, vector<8x1xf32>
      tpu.vector_store %arg11[%c0_88, %c0_89], %113 {strides = array<i32>} : memref<8x1xf32, #tpu.memory_space<vmem>>, vector<8x1xf32>,
      %115 = vector.shape_cast %113 : vector<8x1xf32> to vector<1x8x1xf32>
      %cst_90 = arith.constant dense<0.000000e+00> : vector<1xf32>
      %116 = vector.multi_reduction <add>, %115, %cst_90 [1, 2] : vector<1x8x1xf32> to vector<1xf32>
      %117 = vector.shape_cast %116 : vector<1xf32> to vector<1x1x1xf32>
      %118 = vector.extract %117[0, 0, 0] : f32 from vector<1x1x1xf32>
      %cst_91 = arith.constant 8.000000e+00 : f32
      %cst_92 = arith.constant 5.000000e-01 : f32
      %119 = arith.subf %cst_91, %cst_92 : f32
      %120 = arith.cmpf ogt, %118, %119 : f32
      %121 = arith.extui %120 : i1 to i32
      %c0_93 = arith.constant 0 : index
      %122 = memref.load %arg14[%c0_93] : memref<1xi32, #tpu.memory_space<smem>>
      memref.store %121, %arg14[%c0_93] : memref<1xi32, #tpu.memory_space<smem>>
    } else {
    }
    %c3_i32 = arith.constant 3 : i32
    %c0_32 = arith.constant 0 : index
    %34 = memref.load %arg14[%c0_32] : memref<1xi32, #tpu.memory_space<smem>>
    %c0_i32_33 = arith.constant 0 : i32
    %35 = arith.cmpi eq, %34, %c0_i32_33 : i32
    %36 = arith.extui %35 : i1 to i32
    %c0_i32_34 = arith.constant 0 : i32
    %37 = arith.cmpi ne, %36, %c0_i32_34 : i32
    scf.if %37 {
      %c0_45 = arith.constant 0 : index
      %c0_46 = arith.constant 0 : index
      %46 = vector.load %arg9[%c0_45, %c0_46] : memref<8x128xf32, #tpu.memory_space<vmem>>, vector<8x128xf32>
      %c0_47 = arith.constant 0 : index
      %c0_48 = arith.constant 0 : index
      %47 = vector.load %arg11[%c0_47, %c0_48] : memref<8x1xf32, #tpu.memory_space<vmem>>, vector<8x1xf32>
      %cst_49 = arith.constant 5.000000e-01 : f32
      %48 = vector.broadcast %cst_49 : f32 to vector<8x1xf32>
      %49 = arith.cmpf olt, %47, %48 : vector<8x1xf32>
      %50 = arith.truncf %46 : vector<8x128xf32> to vector<8x128xbf16>
      %c0_50 = arith.constant 0 : index
      %c0_51 = arith.constant 0 : index
      %51 = vector.load %arg3[%c0_50, %c0_51] : memref<128x384xbf16, #tpu.memory_space<vmem>>, vector<128x256xbf16>
      %cst_52 = arith.constant dense<0.000000e+00> : vector<8x256xf32>
      %52 = tpu.matmul %50, %51, %cst_52 {dimension_numbers = #tpu.dot_dimension_numbers<[1], [0], [0], [1], [0, 0, 1, 1], [], []>} : vector<8x128xbf16>, vector<128x256xbf16>, vector<8x256xf32> -> vector<8x256xf32>
      %c0_53 = arith.constant 0 : index
      %c0_54 = arith.constant 0 : index
      %53 = vector.load %arg10[%c0_53, %c0_54] : memref<8x384xf32, #tpu.memory_space<vmem>>, vector<8x128xf32>
      %54 = vector.extract_strided_slice %52 {offsets = [0, 0], sizes = [8, 128], strides = [1, 1]} : vector<8x256xf32> to vector<8x128xf32>
      %55 = arith.addf %53, %54 : vector<8x128xf32>
      %56 = arith.negf %55 : vector<8x128xf32>
      %57 = math.exp %56 : vector<8x128xf32>
      %cst_55 = arith.constant 1.000000e+00 : f32
      %58 = vector.broadcast %cst_55 : f32 to vector<8x128xf32>
      %59 = arith.addf %58, %57 : vector<8x128xf32>
      %60 = arith.divf %58, %59 : vector<8x128xf32>
      %c0_56 = arith.constant 0 : index
      %c128 = arith.constant 128 : index
      %61 = vector.load %arg10[%c0_56, %c128] : memref<8x384xf32, #tpu.memory_space<vmem>>, vector<8x128xf32>
      %62 = vector.extract_strided_slice %52 {offsets = [0, 128], sizes = [8, 128], strides = [1, 1]} : vector<8x256xf32> to vector<8x128xf32>
      %63 = arith.addf %61, %62 : vector<8x128xf32>
      %64 = arith.negf %63 : vector<8x128xf32>
      %65 = math.exp %64 : vector<8x128xf32>
      %cst_57 = arith.constant 1.000000e+00 : f32
      %66 = vector.broadcast %cst_57 : f32 to vector<8x128xf32>
      %67 = arith.addf %66, %65 : vector<8x128xf32>
      %68 = arith.divf %66, %67 : vector<8x128xf32>
      %c0_58 = arith.constant 0 : index
      %c256 = arith.constant 256 : index
      %69 = vector.load %arg3[%c0_58, %c256] : memref<128x384xbf16, #tpu.memory_space<vmem>>, vector<128x128xbf16>
      %cst_59 = arith.constant dense<0.000000e+00> : vector<8x128xf32>
      %70 = tpu.matmul %50, %69, %cst_59 {dimension_numbers = #tpu.dot_dimension_numbers<[1], [0], [0], [1], [0, 0, 1, 1], [], []>} : vector<8x128xbf16>, vector<128x128xbf16>, vector<8x128xf32> -> vector<8x128xf32>
      %c0_60 = arith.constant 0 : index
      %c256_61 = arith.constant 256 : index
      %71 = vector.load %arg10[%c0_60, %c256_61] : memref<8x384xf32, #tpu.memory_space<vmem>>, vector<8x128xf32>
      %c0_62 = arith.constant 0 : index
      %c0_63 = arith.constant 0 : index
      %72 = vector.load %arg5[%c0_62, %c0_63] : memref<1x128xf32, #tpu.memory_space<vmem>>, vector<1x128xf32>
      %73 = vector.broadcast %72 : vector<1x128xf32> to vector<8x128xf32>
      %74 = arith.addf %70, %73 : vector<8x128xf32>
      %75 = arith.mulf %60, %74 : vector<8x128xf32>
      %76 = arith.addf %71, %75 : vector<8x128xf32>
      %77 = math.tanh %76 : vector<8x128xf32>
      %cst_64 = arith.constant 1.000000e+00 : f32
      %78 = vector.broadcast %cst_64 : f32 to vector<8x128xf32>
      %79 = arith.subf %78, %68 : vector<8x128xf32>
      %80 = arith.mulf %79, %77 : vector<8x128xf32>
      %81 = arith.mulf %68, %46 : vector<8x128xf32>
      %82 = arith.addf %80, %81 : vector<8x128xf32>
      %83 = arith.truncf %82 : vector<8x128xf32> to vector<8x128xbf16>
      %c0_65 = arith.constant 0 : index
      %c0_66 = arith.constant 0 : index
      %84 = vector.load %arg6[%c0_65, %c0_66] : memref<128x2xbf16, #tpu.memory_space<vmem>>, vector<128x2xbf16>
      %cst_67 = arith.constant dense<0.000000e+00> : vector<8x2xf32>
      %85 = tpu.matmul %83, %84, %cst_67 {dimension_numbers = #tpu.dot_dimension_numbers<[1], [0], [0], [1], [0, 0, 1, 1], [], []>} : vector<8x128xbf16>, vector<128x2xbf16>, vector<8x2xf32> -> vector<8x2xf32>
      %c0_68 = arith.constant 0 : index
      %c0_69 = arith.constant 0 : index
      %86 = vector.load %arg7[%c0_68, %c0_69] : memref<1x2xf32, #tpu.memory_space<vmem>>, vector<1x2xf32>
      %87 = vector.broadcast %86 : vector<1x2xf32> to vector<8x2xf32>
      %88 = arith.addf %85, %87 : vector<8x2xf32>
      %89 = vector.extract_strided_slice %88 {offsets = [0, 0], sizes = [8, 1], strides = [1, 1]} : vector<8x2xf32> to vector<8x1xf32>
      %90 = vector.extract_strided_slice %88 {offsets = [0, 1], sizes = [8, 1], strides = [1, 1]} : vector<8x2xf32> to vector<8x1xf32>
      %cst_70 = arith.constant 0.000000e+00 : f32
      %91 = vector.broadcast %cst_70 : f32 to vector<8x1xf32>
      %92 = arith.cmpf ogt, %89, %91 : vector<8x1xf32>
      %c4_i32_71 = arith.constant 4 : i32
      %93 = arith.cmpi eq, %c3_i32, %c4_i32_71 : i32
      %94 = vector.broadcast %93 : i1 to vector<8x1xi1>
      %95 = arith.ori %92, %94 : vector<8x1xi1>
      %96 = arith.andi %49, %95 : vector<8x1xi1>
      %c0_72 = arith.constant 0 : index
      %c0_73 = arith.constant 0 : index
      %97 = vector.load %arg13[%c0_72, %c0_73] : memref<8x1xf32, #tpu.memory_space<vmem>>, vector<8x1xf32>
      %98 = arith.select %96, %90, %97 : vector<8x1xi1>, vector<8x1xf32>
      %c0_74 = arith.constant 0 : index
      %c0_75 = arith.constant 0 : index
      %99 = vector.load %arg13[%c0_74, %c0_75] : memref<8x1xf32, #tpu.memory_space<vmem>>, vector<8x1xf32>
      tpu.vector_store %arg13[%c0_74, %c0_75], %98 {strides = array<i32>} : memref<8x1xf32, #tpu.memory_space<vmem>>, vector<8x1xf32>,
      %100 = vector.shape_cast %49 : vector<8x1xi1> to vector<8x1xi1>
      %101 = vector.broadcast %100 : vector<8x1xi1> to vector<8x128xi1>
      %102 = arith.select %101, %82, %46 : vector<8x128xi1>, vector<8x128xf32>
      %c0_76 = arith.constant 0 : index
      %c0_77 = arith.constant 0 : index
      %103 = vector.load %arg9[%c0_76, %c0_77] : memref<8x128xf32, #tpu.memory_space<vmem>>, vector<8x128xf32>
      tpu.vector_store %arg9[%c0_76, %c0_77], %102 {strides = array<i32>} : memref<8x128xf32, #tpu.memory_space<vmem>>, vector<8x128xf32>,
      %c0_78 = arith.constant 0 : index
      %c0_79 = arith.constant 0 : index
      %104 = vector.load %arg12[%c0_78, %c0_79] : memref<8x1xf32, #tpu.memory_space<vmem>>, vector<8x1xf32>
      %cst_80 = arith.constant 1.000000e+00 : f32
      %105 = vector.broadcast %cst_80 : f32 to vector<8x1xf32>
      %106 = arith.addf %104, %105 : vector<8x1xf32>
      %c0_81 = arith.constant 0 : index
      %c0_82 = arith.constant 0 : index
      %107 = vector.load %arg12[%c0_81, %c0_82] : memref<8x1xf32, #tpu.memory_space<vmem>>, vector<8x1xf32>
      %108 = arith.select %49, %106, %107 : vector<8x1xi1>, vector<8x1xf32>
      %c0_83 = arith.constant 0 : index
      %c0_84 = arith.constant 0 : index
      %109 = vector.load %arg12[%c0_83, %c0_84] : memref<8x1xf32, #tpu.memory_space<vmem>>, vector<8x1xf32>
      tpu.vector_store %arg12[%c0_83, %c0_84], %108 {strides = array<i32>} : memref<8x1xf32, #tpu.memory_space<vmem>>, vector<8x1xf32>,
      %110 = arith.andi %49, %92 : vector<8x1xi1>
      %c0_85 = arith.constant 0 : index
      %c0_86 = arith.constant 0 : index
      %111 = vector.load %arg11[%c0_85, %c0_86] : memref<8x1xf32, #tpu.memory_space<vmem>>, vector<8x1xf32>
      %cst_87 = arith.constant 1.000000e+00 : f32
      %112 = vector.broadcast %cst_87 : f32 to vector<8x1xf32>
      %113 = arith.select %110, %112, %111 : vector<8x1xi1>, vector<8x1xf32>
      %c0_88 = arith.constant 0 : index
      %c0_89 = arith.constant 0 : index
      %114 = vector.load %arg11[%c0_88, %c0_89] : memref<8x1xf32, #tpu.memory_space<vmem>>, vector<8x1xf32>
      tpu.vector_store %arg11[%c0_88, %c0_89], %113 {strides = array<i32>} : memref<8x1xf32, #tpu.memory_space<vmem>>, vector<8x1xf32>,
      %115 = vector.shape_cast %113 : vector<8x1xf32> to vector<1x8x1xf32>
      %cst_90 = arith.constant dense<0.000000e+00> : vector<1xf32>
      %116 = vector.multi_reduction <add>, %115, %cst_90 [1, 2] : vector<1x8x1xf32> to vector<1xf32>
      %117 = vector.shape_cast %116 : vector<1xf32> to vector<1x1x1xf32>
      %118 = vector.extract %117[0, 0, 0] : f32 from vector<1x1x1xf32>
      %cst_91 = arith.constant 8.000000e+00 : f32
      %cst_92 = arith.constant 5.000000e-01 : f32
      %119 = arith.subf %cst_91, %cst_92 : f32
      %120 = arith.cmpf ogt, %118, %119 : f32
      %121 = arith.extui %120 : i1 to i32
      %c0_93 = arith.constant 0 : index
      %122 = memref.load %arg14[%c0_93] : memref<1xi32, #tpu.memory_space<smem>>
      memref.store %121, %arg14[%c0_93] : memref<1xi32, #tpu.memory_space<smem>>
    } else {
    }
    %c4_i32 = arith.constant 4 : i32
    %c0_35 = arith.constant 0 : index
    %38 = memref.load %arg14[%c0_35] : memref<1xi32, #tpu.memory_space<smem>>
    %c0_i32_36 = arith.constant 0 : i32
    %39 = arith.cmpi eq, %38, %c0_i32_36 : i32
    %40 = arith.extui %39 : i1 to i32
    %c0_i32_37 = arith.constant 0 : i32
    %41 = arith.cmpi ne, %40, %c0_i32_37 : i32
    scf.if %41 {
      %c0_45 = arith.constant 0 : index
      %c0_46 = arith.constant 0 : index
      %46 = vector.load %arg9[%c0_45, %c0_46] : memref<8x128xf32, #tpu.memory_space<vmem>>, vector<8x128xf32>
      %c0_47 = arith.constant 0 : index
      %c0_48 = arith.constant 0 : index
      %47 = vector.load %arg11[%c0_47, %c0_48] : memref<8x1xf32, #tpu.memory_space<vmem>>, vector<8x1xf32>
      %cst_49 = arith.constant 5.000000e-01 : f32
      %48 = vector.broadcast %cst_49 : f32 to vector<8x1xf32>
      %49 = arith.cmpf olt, %47, %48 : vector<8x1xf32>
      %50 = arith.truncf %46 : vector<8x128xf32> to vector<8x128xbf16>
      %c0_50 = arith.constant 0 : index
      %c0_51 = arith.constant 0 : index
      %51 = vector.load %arg3[%c0_50, %c0_51] : memref<128x384xbf16, #tpu.memory_space<vmem>>, vector<128x256xbf16>
      %cst_52 = arith.constant dense<0.000000e+00> : vector<8x256xf32>
      %52 = tpu.matmul %50, %51, %cst_52 {dimension_numbers = #tpu.dot_dimension_numbers<[1], [0], [0], [1], [0, 0, 1, 1], [], []>} : vector<8x128xbf16>, vector<128x256xbf16>, vector<8x256xf32> -> vector<8x256xf32>
      %c0_53 = arith.constant 0 : index
      %c0_54 = arith.constant 0 : index
      %53 = vector.load %arg10[%c0_53, %c0_54] : memref<8x384xf32, #tpu.memory_space<vmem>>, vector<8x128xf32>
      %54 = vector.extract_strided_slice %52 {offsets = [0, 0], sizes = [8, 128], strides = [1, 1]} : vector<8x256xf32> to vector<8x128xf32>
      %55 = arith.addf %53, %54 : vector<8x128xf32>
      %56 = arith.negf %55 : vector<8x128xf32>
      %57 = math.exp %56 : vector<8x128xf32>
      %cst_55 = arith.constant 1.000000e+00 : f32
      %58 = vector.broadcast %cst_55 : f32 to vector<8x128xf32>
      %59 = arith.addf %58, %57 : vector<8x128xf32>
      %60 = arith.divf %58, %59 : vector<8x128xf32>
      %c0_56 = arith.constant 0 : index
      %c128 = arith.constant 128 : index
      %61 = vector.load %arg10[%c0_56, %c128] : memref<8x384xf32, #tpu.memory_space<vmem>>, vector<8x128xf32>
      %62 = vector.extract_strided_slice %52 {offsets = [0, 128], sizes = [8, 128], strides = [1, 1]} : vector<8x256xf32> to vector<8x128xf32>
      %63 = arith.addf %61, %62 : vector<8x128xf32>
      %64 = arith.negf %63 : vector<8x128xf32>
      %65 = math.exp %64 : vector<8x128xf32>
      %cst_57 = arith.constant 1.000000e+00 : f32
      %66 = vector.broadcast %cst_57 : f32 to vector<8x128xf32>
      %67 = arith.addf %66, %65 : vector<8x128xf32>
      %68 = arith.divf %66, %67 : vector<8x128xf32>
      %c0_58 = arith.constant 0 : index
      %c256 = arith.constant 256 : index
      %69 = vector.load %arg3[%c0_58, %c256] : memref<128x384xbf16, #tpu.memory_space<vmem>>, vector<128x128xbf16>
      %cst_59 = arith.constant dense<0.000000e+00> : vector<8x128xf32>
      %70 = tpu.matmul %50, %69, %cst_59 {dimension_numbers = #tpu.dot_dimension_numbers<[1], [0], [0], [1], [0, 0, 1, 1], [], []>} : vector<8x128xbf16>, vector<128x128xbf16>, vector<8x128xf32> -> vector<8x128xf32>
      %c0_60 = arith.constant 0 : index
      %c256_61 = arith.constant 256 : index
      %71 = vector.load %arg10[%c0_60, %c256_61] : memref<8x384xf32, #tpu.memory_space<vmem>>, vector<8x128xf32>
      %c0_62 = arith.constant 0 : index
      %c0_63 = arith.constant 0 : index
      %72 = vector.load %arg5[%c0_62, %c0_63] : memref<1x128xf32, #tpu.memory_space<vmem>>, vector<1x128xf32>
      %73 = vector.broadcast %72 : vector<1x128xf32> to vector<8x128xf32>
      %74 = arith.addf %70, %73 : vector<8x128xf32>
      %75 = arith.mulf %60, %74 : vector<8x128xf32>
      %76 = arith.addf %71, %75 : vector<8x128xf32>
      %77 = math.tanh %76 : vector<8x128xf32>
      %cst_64 = arith.constant 1.000000e+00 : f32
      %78 = vector.broadcast %cst_64 : f32 to vector<8x128xf32>
      %79 = arith.subf %78, %68 : vector<8x128xf32>
      %80 = arith.mulf %79, %77 : vector<8x128xf32>
      %81 = arith.mulf %68, %46 : vector<8x128xf32>
      %82 = arith.addf %80, %81 : vector<8x128xf32>
      %83 = arith.truncf %82 : vector<8x128xf32> to vector<8x128xbf16>
      %c0_65 = arith.constant 0 : index
      %c0_66 = arith.constant 0 : index
      %84 = vector.load %arg6[%c0_65, %c0_66] : memref<128x2xbf16, #tpu.memory_space<vmem>>, vector<128x2xbf16>
      %cst_67 = arith.constant dense<0.000000e+00> : vector<8x2xf32>
      %85 = tpu.matmul %83, %84, %cst_67 {dimension_numbers = #tpu.dot_dimension_numbers<[1], [0], [0], [1], [0, 0, 1, 1], [], []>} : vector<8x128xbf16>, vector<128x2xbf16>, vector<8x2xf32> -> vector<8x2xf32>
      %c0_68 = arith.constant 0 : index
      %c0_69 = arith.constant 0 : index
      %86 = vector.load %arg7[%c0_68, %c0_69] : memref<1x2xf32, #tpu.memory_space<vmem>>, vector<1x2xf32>
      %87 = vector.broadcast %86 : vector<1x2xf32> to vector<8x2xf32>
      %88 = arith.addf %85, %87 : vector<8x2xf32>
      %89 = vector.extract_strided_slice %88 {offsets = [0, 0], sizes = [8, 1], strides = [1, 1]} : vector<8x2xf32> to vector<8x1xf32>
      %90 = vector.extract_strided_slice %88 {offsets = [0, 1], sizes = [8, 1], strides = [1, 1]} : vector<8x2xf32> to vector<8x1xf32>
      %cst_70 = arith.constant 0.000000e+00 : f32
      %91 = vector.broadcast %cst_70 : f32 to vector<8x1xf32>
      %92 = arith.cmpf ogt, %89, %91 : vector<8x1xf32>
      %c4_i32_71 = arith.constant 4 : i32
      %93 = arith.cmpi eq, %c4_i32, %c4_i32_71 : i32
      %94 = vector.broadcast %93 : i1 to vector<8x1xi1>
      %95 = arith.ori %92, %94 : vector<8x1xi1>
      %96 = arith.andi %49, %95 : vector<8x1xi1>
      %c0_72 = arith.constant 0 : index
      %c0_73 = arith.constant 0 : index
      %97 = vector.load %arg13[%c0_72, %c0_73] : memref<8x1xf32, #tpu.memory_space<vmem>>, vector<8x1xf32>
      %98 = arith.select %96, %90, %97 : vector<8x1xi1>, vector<8x1xf32>
      %c0_74 = arith.constant 0 : index
      %c0_75 = arith.constant 0 : index
      %99 = vector.load %arg13[%c0_74, %c0_75] : memref<8x1xf32, #tpu.memory_space<vmem>>, vector<8x1xf32>
      tpu.vector_store %arg13[%c0_74, %c0_75], %98 {strides = array<i32>} : memref<8x1xf32, #tpu.memory_space<vmem>>, vector<8x1xf32>,
      %100 = vector.shape_cast %49 : vector<8x1xi1> to vector<8x1xi1>
      %101 = vector.broadcast %100 : vector<8x1xi1> to vector<8x128xi1>
      %102 = arith.select %101, %82, %46 : vector<8x128xi1>, vector<8x128xf32>
      %c0_76 = arith.constant 0 : index
      %c0_77 = arith.constant 0 : index
      %103 = vector.load %arg9[%c0_76, %c0_77] : memref<8x128xf32, #tpu.memory_space<vmem>>, vector<8x128xf32>
      tpu.vector_store %arg9[%c0_76, %c0_77], %102 {strides = array<i32>} : memref<8x128xf32, #tpu.memory_space<vmem>>, vector<8x128xf32>,
      %c0_78 = arith.constant 0 : index
      %c0_79 = arith.constant 0 : index
      %104 = vector.load %arg12[%c0_78, %c0_79] : memref<8x1xf32, #tpu.memory_space<vmem>>, vector<8x1xf32>
      %cst_80 = arith.constant 1.000000e+00 : f32
      %105 = vector.broadcast %cst_80 : f32 to vector<8x1xf32>
      %106 = arith.addf %104, %105 : vector<8x1xf32>
      %c0_81 = arith.constant 0 : index
      %c0_82 = arith.constant 0 : index
      %107 = vector.load %arg12[%c0_81, %c0_82] : memref<8x1xf32, #tpu.memory_space<vmem>>, vector<8x1xf32>
      %108 = arith.select %49, %106, %107 : vector<8x1xi1>, vector<8x1xf32>
      %c0_83 = arith.constant 0 : index
      %c0_84 = arith.constant 0 : index
      %109 = vector.load %arg12[%c0_83, %c0_84] : memref<8x1xf32, #tpu.memory_space<vmem>>, vector<8x1xf32>
      tpu.vector_store %arg12[%c0_83, %c0_84], %108 {strides = array<i32>} : memref<8x1xf32, #tpu.memory_space<vmem>>, vector<8x1xf32>,
      %110 = arith.andi %49, %92 : vector<8x1xi1>
      %c0_85 = arith.constant 0 : index
      %c0_86 = arith.constant 0 : index
      %111 = vector.load %arg11[%c0_85, %c0_86] : memref<8x1xf32, #tpu.memory_space<vmem>>, vector<8x1xf32>
      %cst_87 = arith.constant 1.000000e+00 : f32
      %112 = vector.broadcast %cst_87 : f32 to vector<8x1xf32>
      %113 = arith.select %110, %112, %111 : vector<8x1xi1>, vector<8x1xf32>
      %c0_88 = arith.constant 0 : index
      %c0_89 = arith.constant 0 : index
      %114 = vector.load %arg11[%c0_88, %c0_89] : memref<8x1xf32, #tpu.memory_space<vmem>>, vector<8x1xf32>
      tpu.vector_store %arg11[%c0_88, %c0_89], %113 {strides = array<i32>} : memref<8x1xf32, #tpu.memory_space<vmem>>, vector<8x1xf32>,
      %115 = vector.shape_cast %113 : vector<8x1xf32> to vector<1x8x1xf32>
      %cst_90 = arith.constant dense<0.000000e+00> : vector<1xf32>
      %116 = vector.multi_reduction <add>, %115, %cst_90 [1, 2] : vector<1x8x1xf32> to vector<1xf32>
      %117 = vector.shape_cast %116 : vector<1xf32> to vector<1x1x1xf32>
      %118 = vector.extract %117[0, 0, 0] : f32 from vector<1x1x1xf32>
      %cst_91 = arith.constant 8.000000e+00 : f32
      %cst_92 = arith.constant 5.000000e-01 : f32
      %119 = arith.subf %cst_91, %cst_92 : f32
      %120 = arith.cmpf ogt, %118, %119 : f32
      %121 = arith.extui %120 : i1 to i32
      %c0_93 = arith.constant 0 : index
      %122 = memref.load %arg14[%c0_93] : memref<1xi32, #tpu.memory_space<smem>>
      memref.store %121, %arg14[%c0_93] : memref<1xi32, #tpu.memory_space<smem>>
    } else {
    }
    %c5_i32 = arith.constant 5 : i32
    %c0_38 = arith.constant 0 : index
    %c0_39 = arith.constant 0 : index
    %42 = vector.load %arg13[%c0_38, %c0_39] : memref<8x1xf32, #tpu.memory_space<vmem>>, vector<8x1xf32>
    %c0_40 = arith.constant 0 : index
    %c0_41 = arith.constant 0 : index
    %43 = vector.load %arg8[%c0_40, %c0_41] : memref<8x2xf32, #tpu.memory_space<vmem>>, vector<8x1xf32>
    tpu.vector_store %arg8[%c0_40, %c0_41], %42 {strides = array<i32>} : memref<8x2xf32, #tpu.memory_space<vmem>>, vector<8x1xf32>,
    %c0_42 = arith.constant 0 : index
    %c0_43 = arith.constant 0 : index
    %44 = vector.load %arg12[%c0_42, %c0_43] : memref<8x1xf32, #tpu.memory_space<vmem>>, vector<8x1xf32>
    %c0_44 = arith.constant 0 : index
    %c1 = arith.constant 1 : index
    %45 = vector.load %arg8[%c0_44, %c1] : memref<8x2xf32, #tpu.memory_space<vmem>>, vector<8x1xf32>
    tpu.vector_store %arg8[%c0_44, %c1], %44 {strides = array<i32>} : memref<8x2xf32, #tpu.memory_space<vmem>>, vector<8x1xf32>,
    return
  }
  func.func @transform_0(%arg0: i32) -> (i32, i32) {
    %c0_i32 = arith.constant 0 : i32
    %c0_i32_0 = arith.constant 0 : i32
    return %arg0, %c0_i32 : i32, i32
  }
  func.func @transform_1(%arg0: i32) -> (i32, i32) {
    %c0_i32 = arith.constant 0 : i32
    %c0_i32_0 = arith.constant 0 : i32
    %c0_i32_1 = arith.constant 0 : i32
    return %c0_i32, %c0_i32_0 : i32, i32
  }
  func.func @transform_2(%arg0: i32) -> (i32, i32) {
    %c0_i32 = arith.constant 0 : i32
    %c0_i32_0 = arith.constant 0 : i32
    %c0_i32_1 = arith.constant 0 : i32
    return %c0_i32, %c0_i32_0 : i32, i32
  }
  func.func @transform_3(%arg0: i32) -> (i32, i32) {
    %c0_i32 = arith.constant 0 : i32
    %c0_i32_0 = arith.constant 0 : i32
    %c0_i32_1 = arith.constant 0 : i32
    return %c0_i32, %c0_i32_0 : i32, i32
  }
  func.func @transform_4(%arg0: i32) -> (i32, i32) {
    %c0_i32 = arith.constant 0 : i32
    %c0_i32_0 = arith.constant 0 : i32
    %c0_i32_1 = arith.constant 0 : i32
    return %c0_i32, %c0_i32_0 : i32, i32
  }
  func.func @transform_5(%arg0: i32) -> (i32, i32) {
    %c0_i32 = arith.constant 0 : i32
    %c0_i32_0 = arith.constant 0 : i32
    %c0_i32_1 = arith.constant 0 : i32
    return %c0_i32, %c0_i32_0 : i32, i32
  }
  func.func @transform_6(%arg0: i32) -> (i32, i32) {
    %c0_i32 = arith.constant 0 : i32
    %c0_i32_0 = arith.constant 0 : i32
    %c0_i32_1 = arith.constant 0 : i32
    return %c0_i32, %c0_i32_0 : i32, i32
  }
  func.func @transform_7(%arg0: i32) -> (i32, i32) {
    %c0_i32 = arith.constant 0 : i32
    %c0_i32_0 = arith.constant 0 : i32
    return %arg0, %c0_i32 : i32, i32
  }
}

module attributes {stable_mosaic.version = 11 : i64} {
  func.func @_frugal_rnn_kernel(%arg0: i32, %arg1: memref<8x16xf32, #tpu.memory_space<vmem>>, %arg2: memref<16x384xbf16, #tpu.memory_space<vmem>>, %arg3: memref<128x384xbf16, #tpu.memory_space<vmem>>, %arg4: memref<1x384xf32, #tpu.memory_space<vmem>>, %arg5: memref<1x128xf32, #tpu.memory_space<vmem>>, %arg6: memref<128x2xbf16, #tpu.memory_space<vmem>>, %arg7: memref<1x2xf32, #tpu.memory_space<vmem>>, %arg8: memref<8x2xf32, #tpu.memory_space<vmem>>, %arg9: memref<8x128xf32, #tpu.memory_space<vmem>>, %arg10: memref<8x384xf32, #tpu.memory_space<vmem>>, %arg11: memref<8x1xf32, #tpu.memory_space<vmem>>, %arg12: memref<8x1xf32, #tpu.memory_space<vmem>>, %arg13: memref<8x1xf32, #tpu.memory_space<vmem>>, %arg14: memref<1xi32, #tpu.memory_space<smem>>) attributes {dimension_semantics = [#tpu.dimension_semantics<parallel>], iteration_bounds = array<i64: 1>, scalar_prefetch = 0 : i64, scratch_operands = 6 : i64, tpu.core_type = #tpu.core_type<tc>, window_params = [{transform_indices = @transform_0, window_bounds = array<i64: 8, 16>}, {pipeline_mode = #tpu.pipeline_mode<synchronous>, transform_indices = @transform_1, window_bounds = array<i64: 16, 384>}, {pipeline_mode = #tpu.pipeline_mode<synchronous>, transform_indices = @transform_2, window_bounds = array<i64: 128, 384>}, {pipeline_mode = #tpu.pipeline_mode<synchronous>, transform_indices = @transform_3, window_bounds = array<i64: 1, 384>}, {pipeline_mode = #tpu.pipeline_mode<synchronous>, transform_indices = @transform_4, window_bounds = array<i64: 1, 128>}, {pipeline_mode = #tpu.pipeline_mode<synchronous>, transform_indices = @transform_5, window_bounds = array<i64: 128, 2>}, {pipeline_mode = #tpu.pipeline_mode<synchronous>, transform_indices = @transform_6, window_bounds = array<i64: 1, 2>}, {transform_indices = @transform_7, window_bounds = array<i64: 8, 2>}]} {
    %0 = tpu.iota {dimensions = array<i32: 1>} : vector<8x128xi32>
    %c0_i32 = arith.constant 0 : i32
    %1 = vector.broadcast %c0_i32 : i32 to vector<8x128xi32>
    %2 = arith.cmpi eq, %0, %1 : vector<8x128xi32>
    %cst = arith.constant 5.000000e+00 : f32
    %cst_0 = arith.constant 0.000000e+00 : f32
    %3 = vector.broadcast %cst : f32 to vector<8x128xf32>
    %4 = vector.broadcast %cst_0 : f32 to vector<8x128xf32>
    %5 = arith.select %2, %3, %4 : vector<8x128xi1>, vector<8x128xf32>
    %c0 = arith.constant 0 : index
    %c0_1 = arith.constant 0 : index
    %6 = vector.load %arg9[%c0, %c0_1] : memref<8x128xf32, #tpu.memory_space<vmem>>, vector<8x128xf32>
    tpu.vector_store %arg9[%c0, %c0_1], %5 {strides = array<i32>} : memref<8x128xf32, #tpu.memory_space<vmem>>, vector<8x128xf32>,
    %cst_2 = arith.constant 0.000000e+00 : f32
    %7 = vector.broadcast %cst_2 : f32 to vector<8x1xf32>
    %c0_3 = arith.constant 0 : index
    %c0_4 = arith.constant 0 : index
    %8 = vector.load %arg11[%c0_3, %c0_4] : memref<8x1xf32, #tpu.memory_space<vmem>>, vector<8x1xf32>
    tpu.vector_store %arg11[%c0_3, %c0_4], %7 {strides = array<i32>} : memref<8x1xf32, #tpu.memory_space<vmem>>, vector<8x1xf32>,
    %cst_5 = arith.constant 0.000000e+00 : f32
    %9 = vector.broadcast %cst_5 : f32 to vector<8x1xf32>
    %c0_6 = arith.constant 0 : index
    %c0_7 = arith.constant 0 : index
    %10 = vector.load %arg12[%c0_6, %c0_7] : memref<8x1xf32, #tpu.memory_space<vmem>>, vector<8x1xf32>
    tpu.vector_store %arg12[%c0_6, %c0_7], %9 {strides = array<i32>} : memref<8x1xf32, #tpu.memory_space<vmem>>, vector<8x1xf32>,
    %cst_8 = arith.constant 0.000000e+00 : f32
    %11 = vector.broadcast %cst_8 : f32 to vector<8x1xf32>
    %c0_9 = arith.constant 0 : index
    %c0_10 = arith.constant 0 : index
    %12 = vector.load %arg13[%c0_9, %c0_10] : memref<8x1xf32, #tpu.memory_space<vmem>>, vector<8x1xf32>
    tpu.vector_store %arg13[%c0_9, %c0_10], %11 {strides = array<i32>} : memref<8x1xf32, #tpu.memory_space<vmem>>, vector<8x1xf32>,
    %c0_i32_11 = arith.constant 0 : i32
    %c0_12 = arith.constant 0 : index
    %13 = memref.load %arg14[%c0_12] : memref<1xi32, #tpu.memory_space<smem>>
    memref.store %c0_i32_11, %arg14[%c0_12] : memref<1xi32, #tpu.memory_space<smem>>
    %c0_13 = arith.constant 0 : index
    %c0_14 = arith.constant 0 : index
    %14 = vector.load %arg1[%c0_13, %c0_14] : memref<8x16xf32, #tpu.memory_space<vmem>>, vector<8x16xf32>
    %15 = arith.truncf %14 : vector<8x16xf32> to vector<8x16xbf16>
    %c0_15 = arith.constant 0 : index
    %c0_16 = arith.constant 0 : index
    %16 = vector.load %arg2[%c0_15, %c0_16] : memref<16x384xbf16, #tpu.memory_space<vmem>>, vector<16x384xbf16>
    %cst_17 = arith.constant dense<0.000000e+00> : vector<8x384xf32>
    %17 = tpu.matmul %15, %16, %cst_17 {dimension_numbers = #tpu.dot_dimension_numbers<[1], [0], [0], [1], [0, 0, 1, 1], [], []>} : vector<8x16xbf16>, vector<16x384xbf16>, vector<8x384xf32> -> vector<8x384xf32>
    %c0_18 = arith.constant 0 : index
    %c0_19 = arith.constant 0 : index
    %18 = vector.load %arg4[%c0_18, %c0_19] : memref<1x384xf32, #tpu.memory_space<vmem>>, vector<1x384xf32>
    %19 = vector.broadcast %18 : vector<1x384xf32> to vector<8x384xf32>
    %20 = arith.addf %17, %19 : vector<8x384xf32>
    %c0_20 = arith.constant 0 : index
    %c0_21 = arith.constant 0 : index
    %21 = vector.load %arg10[%c0_20, %c0_21] : memref<8x384xf32, #tpu.memory_space<vmem>>, vector<8x384xf32>
    tpu.vector_store %arg10[%c0_20, %c0_21], %20 {strides = array<i32>} : memref<8x384xf32, #tpu.memory_space<vmem>>, vector<8x384xf32>,
    %c0_i32_22 = arith.constant 0 : i32
    %c0_23 = arith.constant 0 : index
    %22 = memref.load %arg14[%c0_23] : memref<1xi32, #tpu.memory_space<smem>>
    %c0_i32_24 = arith.constant 0 : i32
    %23 = arith.cmpi eq, %22, %c0_i32_24 : i32
    %24 = arith.extui %23 : i1 to i32
    %c0_i32_25 = arith.constant 0 : i32
    %25 = arith.cmpi ne, %24, %c0_i32_25 : i32
    scf.if %25 {
      %c0_45 = arith.constant 0 : index
      %c0_46 = arith.constant 0 : index
      %46 = vector.load %arg9[%c0_45, %c0_46] : memref<8x128xf32, #tpu.memory_space<vmem>>, vector<8x128xf32>
      %c0_47 = arith.constant 0 : index
      %c0_48 = arith.constant 0 : index
      %47 = vector.load %arg11[%c0_47, %c0_48] : memref<8x1xf32, #tpu.memory_space<vmem>>, vector<8x1xf32>
      %cst_49 = arith.constant 5.000000e-01 : f32
      %48 = vector.broadcast %cst_49 : f32 to vector<8x1xf32>
      %49 = arith.cmpf olt, %47, %48 : vector<8x1xf32>
      %50 = arith.truncf %46 : vector<8x128xf32> to vector<8x128xbf16>
      %c0_50 = arith.constant 0 : index
      %c0_51 = arith.constant 0 : index
      %51 = vector.load %arg3[%c0_50, %c0_51] : memref<128x384xbf16, #tpu.memory_space<vmem>>, vector<128x256xbf16>
      %cst_52 = arith.constant dense<0.000000e+00> : vector<8x256xf32>
      %52 = tpu.matmul %50, %51, %cst_52 {dimension_numbers = #tpu.dot_dimension_numbers<[1], [0], [0], [1], [0, 0, 1, 1], [], []>} : vector<8x128xbf16>, vector<128x256xbf16>, vector<8x256xf32> -> vector<8x256xf32>
      %c0_53 = arith.constant 0 : index
      %c0_54 = arith.constant 0 : index
      %53 = vector.load %arg10[%c0_53, %c0_54] : memref<8x384xf32, #tpu.memory_space<vmem>>, vector<8x128xf32>
      %54 = vector.extract_strided_slice %52 {offsets = [0, 0], sizes = [8, 128], strides = [1, 1]} : vector<8x256xf32> to vector<8x128xf32>
      %55 = arith.addf %53, %54 : vector<8x128xf32>
      %56 = arith.negf %55 : vector<8x128xf32>
      %57 = math.exp %56 : vector<8x128xf32>
      %cst_55 = arith.constant 1.000000e+00 : f32
      %58 = vector.broadcast %cst_55 : f32 to vector<8x128xf32>
      %59 = arith.addf %58, %57 : vector<8x128xf32>
      %60 = arith.divf %58, %59 : vector<8x128xf32>
      %c0_56 = arith.constant 0 : index
      %c128 = arith.constant 128 : index
      %61 = vector.load %arg10[%c0_56, %c128] : memref<8x384xf32, #tpu.memory_space<vmem>>, vector<8x128xf32>
      %62 = vector.extract_strided_slice %52 {offsets = [0, 128], sizes = [8, 128], strides = [1, 1]} : vector<8x256xf32> to vector<8x128xf32>
      %63 = arith.addf %61, %62 : vector<8x128xf32>
      %64 = arith.negf %63 : vector<8x128xf32>
      %65 = math.exp %64 : vector<8x128xf32>
      %cst_57 = arith.constant 1.000000e+00 : f32
      %66 = vector.broadcast %cst_57 : f32 to vector<8x128xf32>
      %67 = arith.addf %66, %65 : vector<8x128xf32>
      %68 = arith.divf %66, %67 : vector<8x128xf32>
      %c0_58 = arith.constant 0 : index
      %c256 = arith.constant 256 : index
      %69 = vector.load %arg3[%c0_58, %c256] : memref<128x384xbf16, #tpu.memory_space<vmem>>, vector<128x128xbf16>
      %cst_59 = arith.constant dense<0.000000e+00> : vector<8x128xf32>
      %70 = tpu.matmul %50, %69, %cst_59 {dimension_numbers = #tpu.dot_dimension_numbers<[1], [0], [0], [1], [0, 0, 1, 1], [], []>} : vector<8x128xbf16>, vector<128x128xbf16>, vector<8x128xf32> -> vector<8x128xf32>
      %c0_60 = arith.constant 0 : index
      %c256_61 = arith.constant 256 : index
      %71 = vector.load %arg10[%c0_60, %c256_61] : memref<8x384xf32, #tpu.memory_space<vmem>>, vector<8x128xf32>
      %c0_62 = arith.constant 0 : index
      %c0_63 = arith.constant 0 : index
      %72 = vector.load %arg5[%c0_62, %c0_63] : memref<1x128xf32, #tpu.memory_space<vmem>>, vector<1x128xf32>
      %73 = vector.broadcast %72 : vector<1x128xf32> to vector<8x128xf32>
      %74 = arith.addf %70, %73 : vector<8x128xf32>
      %75 = arith.mulf %60, %74 : vector<8x128xf32>
      %76 = arith.addf %71, %75 : vector<8x128xf32>
      %77 = math.tanh %76 : vector<8x128xf32>
      %cst_64 = arith.constant 1.000000e+00 : f32
      %78 = vector.broadcast %cst_64 : f32 to vector<8x128xf32>
      %79 = arith.subf %78, %68 : vector<8x128xf32>
      %80 = arith.mulf %79, %77 : vector<8x128xf32>
      %81 = arith.mulf %68, %46 : vector<8x128xf32>
      %82 = arith.addf %80, %81 : vector<8x128xf32>
      %83 = arith.truncf %82 : vector<8x128xf32> to vector<8x128xbf16>
      %c0_65 = arith.constant 0 : index
      %c0_66 = arith.constant 0 : index
      %84 = vector.load %arg6[%c0_65, %c0_66] : memref<128x2xbf16, #tpu.memory_space<vmem>>, vector<128x2xbf16>
      %cst_67 = arith.constant dense<0.000000e+00> : vector<8x2xf32>
      %85 = tpu.matmul %83, %84, %cst_67 {dimension_numbers = #tpu.dot_dimension_numbers<[1], [0], [0], [1], [0, 0, 1, 1], [], []>} : vector<8x128xbf16>, vector<128x2xbf16>, vector<8x2xf32> -> vector<8x2xf32>
      %c0_68 = arith.constant 0 : index
      %c0_69 = arith.constant 0 : index
      %86 = vector.load %arg7[%c0_68, %c0_69] : memref<1x2xf32, #tpu.memory_space<vmem>>, vector<1x2xf32>
      %87 = vector.broadcast %86 : vector<1x2xf32> to vector<8x2xf32>
      %88 = arith.addf %85, %87 : vector<8x2xf32>
      %89 = vector.extract_strided_slice %88 {offsets = [0, 0], sizes = [8, 1], strides = [1, 1]} : vector<8x2xf32> to vector<8x1xf32>
      %90 = vector.extract_strided_slice %88 {offsets = [0, 1], sizes = [8, 1], strides = [1, 1]} : vector<8x2xf32> to vector<8x1xf32>
      %cst_70 = arith.constant 0.000000e+00 : f32
      %91 = vector.broadcast %cst_70 : f32 to vector<8x1xf32>
      %92 = arith.cmpf ogt, %89, %91 : vector<8x1xf32>
      %c4_i32_71 = arith.constant 4 : i32
      %93 = arith.cmpi eq, %c0_i32_22, %c4_i32_71 : i32
      %94 = vector.broadcast %93 : i1 to vector<8x1xi1>
      %95 = arith.ori %92, %94 : vector<8x1xi1>
      %96 = arith.andi %49, %95 : vector<8x1xi1>
      %c0_72 = arith.constant 0 : index
      %c0_73 = arith.constant 0 : index
      %97 = vector.load %arg13[%c0_72, %c0_73] : memref<8x1xf32, #tpu.memory_space<vmem>>, vector<8x1xf32>
      %98 = arith.select %96, %90, %97 : vector<8x1xi1>, vector<8x1xf32>
      %c0_74 = arith.constant 0 : index
      %c0_75 = arith.constant 0 : index
      %99 = vector.load %arg13[%c0_74, %c0_75] : memref<8x1xf32, #tpu.memory_space<vmem>>, vector<8x1xf32>
      tpu.vector_store %arg13[%c0_74, %c0_75], %98 {strides = array<i32>} : memref<8x1xf32, #tpu.memory_space<vmem>>, vector<8x1xf32>,
      %100 = vector.shape_cast %49 : vector<8x1xi1> to vector<8x1xi1>
      %101 = vector.broadcast %100 : vector<8x1xi1> to vector<8x128xi1>
      %102 = arith.select %101, %82, %46 : vector<8x128xi1>, vector<8x128xf32>
      %c0_76 = arith.constant 0 : index
      %c0_77 = arith.constant 0 : index
      %103 = vector.load %arg9[%c0_76, %c0_77] : memref<8x128xf32, #tpu.memory_space<vmem>>, vector<8x128xf32>
      tpu.vector_store %arg9[%c0_76, %c0_77], %102 {strides = array<i32>} : memref<8x128xf32, #tpu.memory_space<vmem>>, vector<8x128xf32>,
      %c0_78 = arith.constant 0 : index
      %c0_79 = arith.constant 0 : index
      %104 = vector.load %arg12[%c0_78, %c0_79] : memref<8x1xf32, #tpu.memory_space<vmem>>, vector<8x1xf32>
      %cst_80 = arith.constant 1.000000e+00 : f32
      %105 = vector.broadcast %cst_80 : f32 to vector<8x1xf32>
      %106 = arith.addf %104, %105 : vector<8x1xf32>
      %c0_81 = arith.constant 0 : index
      %c0_82 = arith.constant 0 : index
      %107 = vector.load %arg12[%c0_81, %c0_82] : memref<8x1xf32, #tpu.memory_space<vmem>>, vector<8x1xf32>
      %108 = arith.select %49, %106, %107 : vector<8x1xi1>, vector<8x1xf32>
      %c0_83 = arith.constant 0 : index
      %c0_84 = arith.constant 0 : index
      %109 = vector.load %arg12[%c0_83, %c0_84] : memref<8x1xf32, #tpu.memory_space<vmem>>, vector<8x1xf32>
      tpu.vector_store %arg12[%c0_83, %c0_84], %108 {strides = array<i32>} : memref<8x1xf32, #tpu.memory_space<vmem>>, vector<8x1xf32>,
      %110 = arith.andi %49, %92 : vector<8x1xi1>
      %c0_85 = arith.constant 0 : index
      %c0_86 = arith.constant 0 : index
      %111 = vector.load %arg11[%c0_85, %c0_86] : memref<8x1xf32, #tpu.memory_space<vmem>>, vector<8x1xf32>
      %cst_87 = arith.constant 1.000000e+00 : f32
      %112 = vector.broadcast %cst_87 : f32 to vector<8x1xf32>
      %113 = arith.select %110, %112, %111 : vector<8x1xi1>, vector<8x1xf32>
      %c0_88 = arith.constant 0 : index
      %c0_89 = arith.constant 0 : index
      %114 = vector.load %arg11[%c0_88, %c0_89] : memref<8x1xf32, #tpu.memory_space<vmem>>, vector<8x1xf32>
      tpu.vector_store %arg11[%c0_88, %c0_89], %113 {strides = array<i32>} : memref<8x1xf32, #tpu.memory_space<vmem>>, vector<8x1xf32>,
      %115 = vector.shape_cast %113 : vector<8x1xf32> to vector<1x8x1xf32>
      %cst_90 = arith.constant dense<0.000000e+00> : vector<1xf32>
      %116 = vector.multi_reduction <add>, %115, %cst_90 [1, 2] : vector<1x8x1xf32> to vector<1xf32>
      %117 = vector.shape_cast %116 : vector<1xf32> to vector<1x1x1xf32>
      %118 = vector.extract %117[0, 0, 0] : f32 from vector<1x1x1xf32>
      %cst_91 = arith.constant 8.000000e+00 : f32
      %cst_92 = arith.constant 5.000000e-01 : f32
      %119 = arith.subf %cst_91, %cst_92 : f32
      %120 = arith.cmpf ogt, %118, %119 : f32
      %121 = arith.extui %120 : i1 to i32
      %c0_93 = arith.constant 0 : index
      %122 = memref.load %arg14[%c0_93] : memref<1xi32, #tpu.memory_space<smem>>
      memref.store %121, %arg14[%c0_93] : memref<1xi32, #tpu.memory_space<smem>>
    } else {
    }
    %c1_i32 = arith.constant 1 : i32
    %c0_26 = arith.constant 0 : index
    %26 = memref.load %arg14[%c0_26] : memref<1xi32, #tpu.memory_space<smem>>
    %c0_i32_27 = arith.constant 0 : i32
    %27 = arith.cmpi eq, %26, %c0_i32_27 : i32
    %28 = arith.extui %27 : i1 to i32
    %c0_i32_28 = arith.constant 0 : i32
    %29 = arith.cmpi ne, %28, %c0_i32_28 : i32
    scf.if %29 {
      %c0_45 = arith.constant 0 : index
      %c0_46 = arith.constant 0 : index
      %46 = vector.load %arg9[%c0_45, %c0_46] : memref<8x128xf32, #tpu.memory_space<vmem>>, vector<8x128xf32>
      %c0_47 = arith.constant 0 : index
      %c0_48 = arith.constant 0 : index
      %47 = vector.load %arg11[%c0_47, %c0_48] : memref<8x1xf32, #tpu.memory_space<vmem>>, vector<8x1xf32>
      %cst_49 = arith.constant 5.000000e-01 : f32
      %48 = vector.broadcast %cst_49 : f32 to vector<8x1xf32>
      %49 = arith.cmpf olt, %47, %48 : vector<8x1xf32>
      %50 = arith.truncf %46 : vector<8x128xf32> to vector<8x128xbf16>
      %c0_50 = arith.constant 0 : index
      %c0_51 = arith.constant 0 : index
      %51 = vector.load %arg3[%c0_50, %c0_51] : memref<128x384xbf16, #tpu.memory_space<vmem>>, vector<128x256xbf16>
      %cst_52 = arith.constant dense<0.000000e+00> : vector<8x256xf32>
      %52 = tpu.matmul %50, %51, %cst_52 {dimension_numbers = #tpu.dot_dimension_numbers<[1], [0], [0], [1], [0, 0, 1, 1], [], []>} : vector<8x128xbf16>, vector<128x256xbf16>, vector<8x256xf32> -> vector<8x256xf32>
      %c0_53 = arith.constant 0 : index
      %c0_54 = arith.constant 0 : index
      %53 = vector.load %arg10[%c0_53, %c0_54] : memref<8x384xf32, #tpu.memory_space<vmem>>, vector<8x128xf32>
      %54 = vector.extract_strided_slice %52 {offsets = [0, 0], sizes = [8, 128], strides = [1, 1]} : vector<8x256xf32> to vector<8x128xf32>
      %55 = arith.addf %53, %54 : vector<8x128xf32>
      %56 = arith.negf %55 : vector<8x128xf32>
      %57 = math.exp %56 : vector<8x128xf32>
      %cst_55 = arith.constant 1.000000e+00 : f32
      %58 = vector.broadcast %cst_55 : f32 to vector<8x128xf32>
      %59 = arith.addf %58, %57 : vector<8x128xf32>
      %60 = arith.divf %58, %59 : vector<8x128xf32>
      %c0_56 = arith.constant 0 : index
      %c128 = arith.constant 128 : index
      %61 = vector.load %arg10[%c0_56, %c128] : memref<8x384xf32, #tpu.memory_space<vmem>>, vector<8x128xf32>
      %62 = vector.extract_strided_slice %52 {offsets = [0, 128], sizes = [8, 128], strides = [1, 1]} : vector<8x256xf32> to vector<8x128xf32>
      %63 = arith.addf %61, %62 : vector<8x128xf32>
      %64 = arith.negf %63 : vector<8x128xf32>
      %65 = math.exp %64 : vector<8x128xf32>
      %cst_57 = arith.constant 1.000000e+00 : f32
      %66 = vector.broadcast %cst_57 : f32 to vector<8x128xf32>
      %67 = arith.addf %66, %65 : vector<8x128xf32>
      %68 = arith.divf %66, %67 : vector<8x128xf32>
      %c0_58 = arith.constant 0 : index
      %c256 = arith.constant 256 : index
      %69 = vector.load %arg3[%c0_58, %c256] : memref<128x384xbf16, #tpu.memory_space<vmem>>, vector<128x128xbf16>
      %cst_59 = arith.constant dense<0.000000e+00> : vector<8x128xf32>
      %70 = tpu.matmul %50, %69, %cst_59 {dimension_numbers = #tpu.dot_dimension_numbers<[1], [0], [0], [1], [0, 0, 1, 1], [], []>} : vector<8x128xbf16>, vector<128x128xbf16>, vector<8x128xf32> -> vector<8x128xf32>
      %c0_60 = arith.constant 0 : index
      %c256_61 = arith.constant 256 : index
      %71 = vector.load %arg10[%c0_60, %c256_61] : memref<8x384xf32, #tpu.memory_space<vmem>>, vector<8x128xf32>
      %c0_62 = arith.constant 0 : index
      %c0_63 = arith.constant 0 : index
      %72 = vector.load %arg5[%c0_62, %c0_63] : memref<1x128xf32, #tpu.memory_space<vmem>>, vector<1x128xf32>
      %73 = vector.broadcast %72 : vector<1x128xf32> to vector<8x128xf32>
      %74 = arith.addf %70, %73 : vector<8x128xf32>
      %75 = arith.mulf %60, %74 : vector<8x128xf32>
      %76 = arith.addf %71, %75 : vector<8x128xf32>
      %77 = math.tanh %76 : vector<8x128xf32>
      %cst_64 = arith.constant 1.000000e+00 : f32
      %78 = vector.broadcast %cst_64 : f32 to vector<8x128xf32>
      %79 = arith.subf %78, %68 : vector<8x128xf32>
      %80 = arith.mulf %79, %77 : vector<8x128xf32>
      %81 = arith.mulf %68, %46 : vector<8x128xf32>
      %82 = arith.addf %80, %81 : vector<8x128xf32>
      %83 = arith.truncf %82 : vector<8x128xf32> to vector<8x128xbf16>
      %c0_65 = arith.constant 0 : index
      %c0_66 = arith.constant 0 : index
      %84 = vector.load %arg6[%c0_65, %c0_66] : memref<128x2xbf16, #tpu.memory_space<vmem>>, vector<128x2xbf16>
      %cst_67 = arith.constant dense<0.000000e+00> : vector<8x2xf32>
      %85 = tpu.matmul %83, %84, %cst_67 {dimension_numbers = #tpu.dot_dimension_numbers<[1], [0], [0], [1], [0, 0, 1, 1], [], []>} : vector<8x128xbf16>, vector<128x2xbf16>, vector<8x2xf32> -> vector<8x2xf32>
      %c0_68 = arith.constant 0 : index
      %c0_69 = arith.constant 0 : index
      %86 = vector.load %arg7[%c0_68, %c0_69] : memref<1x2xf32, #tpu.memory_space<vmem>>, vector<1x2xf32>
      %87 = vector.broadcast %86 : vector<1x2xf32> to vector<8x2xf32>
      %88 = arith.addf %85, %87 : vector<8x2xf32>
      %89 = vector.extract_strided_slice %88 {offsets = [0, 0], sizes = [8, 1], strides = [1, 1]} : vector<8x2xf32> to vector<8x1xf32>
      %90 = vector.extract_strided_slice %88 {offsets = [0, 1], sizes = [8, 1], strides = [1, 1]} : vector<8x2xf32> to vector<8x1xf32>
      %cst_70 = arith.constant 0.000000e+00 : f32
      %91 = vector.broadcast %cst_70 : f32 to vector<8x1xf32>
      %92 = arith.cmpf ogt, %89, %91 : vector<8x1xf32>
      %c4_i32_71 = arith.constant 4 : i32
      %93 = arith.cmpi eq, %c1_i32, %c4_i32_71 : i32
      %94 = vector.broadcast %93 : i1 to vector<8x1xi1>
      %95 = arith.ori %92, %94 : vector<8x1xi1>
      %96 = arith.andi %49, %95 : vector<8x1xi1>
      %c0_72 = arith.constant 0 : index
      %c0_73 = arith.constant 0 : index
      %97 = vector.load %arg13[%c0_72, %c0_73] : memref<8x1xf32, #tpu.memory_space<vmem>>, vector<8x1xf32>
      %98 = arith.select %96, %90, %97 : vector<8x1xi1>, vector<8x1xf32>
      %c0_74 = arith.constant 0 : index
      %c0_75 = arith.constant 0 : index
      %99 = vector.load %arg13[%c0_74, %c0_75] : memref<8x1xf32, #tpu.memory_space<vmem>>, vector<8x1xf32>
      tpu.vector_store %arg13[%c0_74, %c0_75], %98 {strides = array<i32>} : memref<8x1xf32, #tpu.memory_space<vmem>>, vector<8x1xf32>,
      %100 = vector.shape_cast %49 : vector<8x1xi1> to vector<8x1xi1>
      %101 = vector.broadcast %100 : vector<8x1xi1> to vector<8x128xi1>
      %102 = arith.select %101, %82, %46 : vector<8x128xi1>, vector<8x128xf32>
      %c0_76 = arith.constant 0 : index
      %c0_77 = arith.constant 0 : index
      %103 = vector.load %arg9[%c0_76, %c0_77] : memref<8x128xf32, #tpu.memory_space<vmem>>, vector<8x128xf32>
      tpu.vector_store %arg9[%c0_76, %c0_77], %102 {strides = array<i32>} : memref<8x128xf32, #tpu.memory_space<vmem>>, vector<8x128xf32>,
      %c0_78 = arith.constant 0 : index
      %c0_79 = arith.constant 0 : index
      %104 = vector.load %arg12[%c0_78, %c0_79] : memref<8x1xf32, #tpu.memory_space<vmem>>, vector<8x1xf32>
      %cst_80 = arith.constant 1.000000e+00 : f32
      %105 = vector.broadcast %cst_80 : f32 to vector<8x1xf32>
      %106 = arith.addf %104, %105 : vector<8x1xf32>
      %c0_81 = arith.constant 0 : index
      %c0_82 = arith.constant 0 : index
      %107 = vector.load %arg12[%c0_81, %c0_82] : memref<8x1xf32, #tpu.memory_space<vmem>>, vector<8x1xf32>
      %108 = arith.select %49, %106, %107 : vector<8x1xi1>, vector<8x1xf32>
      %c0_83 = arith.constant 0 : index
      %c0_84 = arith.constant 0 : index
      %109 = vector.load %arg12[%c0_83, %c0_84] : memref<8x1xf32, #tpu.memory_space<vmem>>, vector<8x1xf32>
      tpu.vector_store %arg12[%c0_83, %c0_84], %108 {strides = array<i32>} : memref<8x1xf32, #tpu.memory_space<vmem>>, vector<8x1xf32>,
      %110 = arith.andi %49, %92 : vector<8x1xi1>
      %c0_85 = arith.constant 0 : index
      %c0_86 = arith.constant 0 : index
      %111 = vector.load %arg11[%c0_85, %c0_86] : memref<8x1xf32, #tpu.memory_space<vmem>>, vector<8x1xf32>
      %cst_87 = arith.constant 1.000000e+00 : f32
      %112 = vector.broadcast %cst_87 : f32 to vector<8x1xf32>
      %113 = arith.select %110, %112, %111 : vector<8x1xi1>, vector<8x1xf32>
      %c0_88 = arith.constant 0 : index
      %c0_89 = arith.constant 0 : index
      %114 = vector.load %arg11[%c0_88, %c0_89] : memref<8x1xf32, #tpu.memory_space<vmem>>, vector<8x1xf32>
      tpu.vector_store %arg11[%c0_88, %c0_89], %113 {strides = array<i32>} : memref<8x1xf32, #tpu.memory_space<vmem>>, vector<8x1xf32>,
      %115 = vector.shape_cast %113 : vector<8x1xf32> to vector<1x8x1xf32>
      %cst_90 = arith.constant dense<0.000000e+00> : vector<1xf32>
      %116 = vector.multi_reduction <add>, %115, %cst_90 [1, 2] : vector<1x8x1xf32> to vector<1xf32>
      %117 = vector.shape_cast %116 : vector<1xf32> to vector<1x1x1xf32>
      %118 = vector.extract %117[0, 0, 0] : f32 from vector<1x1x1xf32>
      %cst_91 = arith.constant 8.000000e+00 : f32
      %cst_92 = arith.constant 5.000000e-01 : f32
      %119 = arith.subf %cst_91, %cst_92 : f32
      %120 = arith.cmpf ogt, %118, %119 : f32
      %121 = arith.extui %120 : i1 to i32
      %c0_93 = arith.constant 0 : index
      %122 = memref.load %arg14[%c0_93] : memref<1xi32, #tpu.memory_space<smem>>
      memref.store %121, %arg14[%c0_93] : memref<1xi32, #tpu.memory_space<smem>>
    } else {
    }
    %c2_i32 = arith.constant 2 : i32
    %c0_29 = arith.constant 0 : index
    %30 = memref.load %arg14[%c0_29] : memref<1xi32, #tpu.memory_space<smem>>
    %c0_i32_30 = arith.constant 0 : i32
    %31 = arith.cmpi eq, %30, %c0_i32_30 : i32
    %32 = arith.extui %31 : i1 to i32
    %c0_i32_31 = arith.constant 0 : i32
    %33 = arith.cmpi ne, %32, %c0_i32_31 : i32
    scf.if %33 {
      %c0_45 = arith.constant 0 : index
      %c0_46 = arith.constant 0 : index
      %46 = vector.load %arg9[%c0_45, %c0_46] : memref<8x128xf32, #tpu.memory_space<vmem>>, vector<8x128xf32>
      %c0_47 = arith.constant 0 : index
      %c0_48 = arith.constant 0 : index
      %47 = vector.load %arg11[%c0_47, %c0_48] : memref<8x1xf32, #tpu.memory_space<vmem>>, vector<8x1xf32>
      %cst_49 = arith.constant 5.000000e-01 : f32
      %48 = vector.broadcast %cst_49 : f32 to vector<8x1xf32>
      %49 = arith.cmpf olt, %47, %48 : vector<8x1xf32>
      %50 = arith.truncf %46 : vector<8x128xf32> to vector<8x128xbf16>
      %c0_50 = arith.constant 0 : index
      %c0_51 = arith.constant 0 : index
      %51 = vector.load %arg3[%c0_50, %c0_51] : memref<128x384xbf16, #tpu.memory_space<vmem>>, vector<128x256xbf16>
      %cst_52 = arith.constant dense<0.000000e+00> : vector<8x256xf32>
      %52 = tpu.matmul %50, %51, %cst_52 {dimension_numbers = #tpu.dot_dimension_numbers<[1], [0], [0], [1], [0, 0, 1, 1], [], []>} : vector<8x128xbf16>, vector<128x256xbf16>, vector<8x256xf32> -> vector<8x256xf32>
      %c0_53 = arith.constant 0 : index
      %c0_54 = arith.constant 0 : index
      %53 = vector.load %arg10[%c0_53, %c0_54] : memref<8x384xf32, #tpu.memory_space<vmem>>, vector<8x128xf32>
      %54 = vector.extract_strided_slice %52 {offsets = [0, 0], sizes = [8, 128], strides = [1, 1]} : vector<8x256xf32> to vector<8x128xf32>
      %55 = arith.addf %53, %54 : vector<8x128xf32>
      %56 = arith.negf %55 : vector<8x128xf32>
      %57 = math.exp %56 : vector<8x128xf32>
      %cst_55 = arith.constant 1.000000e+00 : f32
      %58 = vector.broadcast %cst_55 : f32 to vector<8x128xf32>
      %59 = arith.addf %58, %57 : vector<8x128xf32>
      %60 = arith.divf %58, %59 : vector<8x128xf32>
      %c0_56 = arith.constant 0 : index
      %c128 = arith.constant 128 : index
      %61 = vector.load %arg10[%c0_56, %c128] : memref<8x384xf32, #tpu.memory_space<vmem>>, vector<8x128xf32>
      %62 = vector.extract_strided_slice %52 {offsets = [0, 128], sizes = [8, 128], strides = [1, 1]} : vector<8x256xf32> to vector<8x128xf32>
      %63 = arith.addf %61, %62 : vector<8x128xf32>
      %64 = arith.negf %63 : vector<8x128xf32>
      %65 = math.exp %64 : vector<8x128xf32>
      %cst_57 = arith.constant 1.000000e+00 : f32
      %66 = vector.broadcast %cst_57 : f32 to vector<8x128xf32>
      %67 = arith.addf %66, %65 : vector<8x128xf32>
      %68 = arith.divf %66, %67 : vector<8x128xf32>
      %c0_58 = arith.constant 0 : index
      %c256 = arith.constant 256 : index
      %69 = vector.load %arg3[%c0_58, %c256] : memref<128x384xbf16, #tpu.memory_space<vmem>>, vector<128x128xbf16>
      %cst_59 = arith.constant dense<0.000000e+00> : vector<8x128xf32>
      %70 = tpu.matmul %50, %69, %cst_59 {dimension_numbers = #tpu.dot_dimension_numbers<[1], [0], [0], [1], [0, 0, 1, 1], [], []>} : vector<8x128xbf16>, vector<128x128xbf16>, vector<8x128xf32> -> vector<8x128xf32>
      %c0_60 = arith.constant 0 : index
      %c256_61 = arith.constant 256 : index
      %71 = vector.load %arg10[%c0_60, %c256_61] : memref<8x384xf32, #tpu.memory_space<vmem>>, vector<8x128xf32>
      %c0_62 = arith.constant 0 : index
      %c0_63 = arith.constant 0 : index
      %72 = vector.load %arg5[%c0_62, %c0_63] : memref<1x128xf32, #tpu.memory_space<vmem>>, vector<1x128xf32>
      %73 = vector.broadcast %72 : vector<1x128xf32> to vector<8x128xf32>
      %74 = arith.addf %70, %73 : vector<8x128xf32>
      %75 = arith.mulf %60, %74 : vector<8x128xf32>
      %76 = arith.addf %71, %75 : vector<8x128xf32>
      %77 = math.tanh %76 : vector<8x128xf32>
      %cst_64 = arith.constant 1.000000e+00 : f32
      %78 = vector.broadcast %cst_64 : f32 to vector<8x128xf32>
      %79 = arith.subf %78, %68 : vector<8x128xf32>
      %80 = arith.mulf %79, %77 : vector<8x128xf32>
      %81 = arith.mulf %68, %46 : vector<8x128xf32>
      %82 = arith.addf %80, %81 : vector<8x128xf32>
      %83 = arith.truncf %82 : vector<8x128xf32> to vector<8x128xbf16>
      %c0_65 = arith.constant 0 : index
      %c0_66 = arith.constant 0 : index
      %84 = vector.load %arg6[%c0_65, %c0_66] : memref<128x2xbf16, #tpu.memory_space<vmem>>, vector<128x2xbf16>
      %cst_67 = arith.constant dense<0.000000e+00> : vector<8x2xf32>
      %85 = tpu.matmul %83, %84, %cst_67 {dimension_numbers = #tpu.dot_dimension_numbers<[1], [0], [0], [1], [0, 0, 1, 1], [], []>} : vector<8x128xbf16>, vector<128x2xbf16>, vector<8x2xf32> -> vector<8x2xf32>
      %c0_68 = arith.constant 0 : index
      %c0_69 = arith.constant 0 : index
      %86 = vector.load %arg7[%c0_68, %c0_69] : memref<1x2xf32, #tpu.memory_space<vmem>>, vector<1x2xf32>
      %87 = vector.broadcast %86 : vector<1x2xf32> to vector<8x2xf32>
      %88 = arith.addf %85, %87 : vector<8x2xf32>
      %89 = vector.extract_strided_slice %88 {offsets = [0, 0], sizes = [8, 1], strides = [1, 1]} : vector<8x2xf32> to vector<8x1xf32>
      %90 = vector.extract_strided_slice %88 {offsets = [0, 1], sizes = [8, 1], strides = [1, 1]} : vector<8x2xf32> to vector<8x1xf32>
      %cst_70 = arith.constant 0.000000e+00 : f32
      %91 = vector.broadcast %cst_70 : f32 to vector<8x1xf32>
      %92 = arith.cmpf ogt, %89, %91 : vector<8x1xf32>
      %c4_i32_71 = arith.constant 4 : i32
      %93 = arith.cmpi eq, %c2_i32, %c4_i32_71 : i32
      %94 = vector.broadcast %93 : i1 to vector<8x1xi1>
      %95 = arith.ori %92, %94 : vector<8x1xi1>
      %96 = arith.andi %49, %95 : vector<8x1xi1>
      %c0_72 = arith.constant 0 : index
      %c0_73 = arith.constant 0 : index
      %97 = vector.load %arg13[%c0_72, %c0_73] : memref<8x1xf32, #tpu.memory_space<vmem>>, vector<8x1xf32>
      %98 = arith.select %96, %90, %97 : vector<8x1xi1>, vector<8x1xf32>
      %c0_74 = arith.constant 0 : index
      %c0_75 = arith.constant 0 : index
      %99 = vector.load %arg13[%c0_74, %c0_75] : memref<8x1xf32, #tpu.memory_space<vmem>>, vector<8x1xf32>
      tpu.vector_store %arg13[%c0_74, %c0_75], %98 {strides = array<i32>} : memref<8x1xf32, #tpu.memory_space<vmem>>, vector<8x1xf32>,
      %100 = vector.shape_cast %49 : vector<8x1xi1> to vector<8x1xi1>
      %101 = vector.broadcast %100 : vector<8x1xi1> to vector<8x128xi1>
      %102 = arith.select %101, %82, %46 : vector<8x128xi1>, vector<8x128xf32>
      %c0_76 = arith.constant 0 : index
      %c0_77 = arith.constant 0 : index
      %103 = vector.load %arg9[%c0_76, %c0_77] : memref<8x128xf32, #tpu.memory_space<vmem>>, vector<8x128xf32>
      tpu.vector_store %arg9[%c0_76, %c0_77], %102 {strides = array<i32>} : memref<8x128xf32, #tpu.memory_space<vmem>>, vector<8x128xf32>,
      %c0_78 = arith.constant 0 : index
      %c0_79 = arith.constant 0 : index
      %104 = vector.load %arg12[%c0_78, %c0_79] : memref<8x1xf32, #tpu.memory_space<vmem>>, vector<8x1xf32>
      %cst_80 = arith.constant 1.000000e+00 : f32
      %105 = vector.broadcast %cst_80 : f32 to vector<8x1xf32>
      %106 = arith.addf %104, %105 : vector<8x1xf32>
      %c0_81 = arith.constant 0 : index
      %c0_82 = arith.constant 0 : index
      %107 = vector.load %arg12[%c0_81, %c0_82] : memref<8x1xf32, #tpu.memory_space<vmem>>, vector<8x1xf32>
      %108 = arith.select %49, %106, %107 : vector<8x1xi1>, vector<8x1xf32>
      %c0_83 = arith.constant 0 : index
      %c0_84 = arith.constant 0 : index
      %109 = vector.load %arg12[%c0_83, %c0_84] : memref<8x1xf32, #tpu.memory_space<vmem>>, vector<8x1xf32>
      tpu.vector_store %arg12[%c0_83, %c0_84], %108 {strides = array<i32>} : memref<8x1xf32, #tpu.memory_space<vmem>>, vector<8x1xf32>,
      %110 = arith.andi %49, %92 : vector<8x1xi1>
      %c0_85 = arith.constant 0 : index
      %c0_86 = arith.constant 0 : index
      %111 = vector.load %arg11[%c0_85, %c0_86] : memref<8x1xf32, #tpu.memory_space<vmem>>, vector<8x1xf32>
      %cst_87 = arith.constant 1.000000e+00 : f32
      %112 = vector.broadcast %cst_87 : f32 to vector<8x1xf32>
      %113 = arith.select %110, %112, %111 : vector<8x1xi1>, vector<8x1xf32>
      %c0_88 = arith.constant 0 : index
      %c0_89 = arith.constant 0 : index
      %114 = vector.load %arg11[%c0_88, %c0_89] : memref<8x1xf32, #tpu.memory_space<vmem>>, vector<8x1xf32>
      tpu.vector_store %arg11[%c0_88, %c0_89], %113 {strides = array<i32>} : memref<8x1xf32, #tpu.memory_space<vmem>>, vector<8x1xf32>,
      %115 = vector.shape_cast %113 : vector<8x1xf32> to vector<1x8x1xf32>
      %cst_90 = arith.constant dense<0.000000e+00> : vector<1xf32>
      %116 = vector.multi_reduction <add>, %115, %cst_90 [1, 2] : vector<1x8x1xf32> to vector<1xf32>
      %117 = vector.shape_cast %116 : vector<1xf32> to vector<1x1x1xf32>
      %118 = vector.extract %117[0, 0, 0] : f32 from vector<1x1x1xf32>
      %cst_91 = arith.constant 8.000000e+00 : f32
      %cst_92 = arith.constant 5.000000e-01 : f32
      %119 = arith.subf %cst_91, %cst_92 : f32
      %120 = arith.cmpf ogt, %118, %119 : f32
      %121 = arith.extui %120 : i1 to i32
      %c0_93 = arith.constant 0 : index
      %122 = memref.load %arg14[%c0_93] : memref<1xi32, #tpu.memory_space<smem>>
      memref.store %121, %arg14[%c0_93] : memref<1xi32, #tpu.memory_space<smem>>
    } else {
    }
    %c3_i32 = arith.constant 3 : i32
    %c0_32 = arith.constant 0 : index
    %34 = memref.load %arg14[%c0_32] : memref<1xi32, #tpu.memory_space<smem>>
    %c0_i32_33 = arith.constant 0 : i32
    %35 = arith.cmpi eq, %34, %c0_i32_33 : i32
    %36 = arith.extui %35 : i1 to i32
    %c0_i32_34 = arith.constant 0 : i32
    %37 = arith.cmpi ne, %36, %c0_i32_34 : i32
    scf.if %37 {
      %c0_45 = arith.constant 0 : index
      %c0_46 = arith.constant 0 : index
      %46 = vector.load %arg9[%c0_45, %c0_46] : memref<8x128xf32, #tpu.memory_space<vmem>>, vector<8x128xf32>
      %c0_47 = arith.constant 0 : index
      %c0_48 = arith.constant 0 : index
      %47 = vector.load %arg11[%c0_47, %c0_48] : memref<8x1xf32, #tpu.memory_space<vmem>>, vector<8x1xf32>
      %cst_49 = arith.constant 5.000000e-01 : f32
      %48 = vector.broadcast %cst_49 : f32 to vector<8x1xf32>
      %49 = arith.cmpf olt, %47, %48 : vector<8x1xf32>
      %50 = arith.truncf %46 : vector<8x128xf32> to vector<8x128xbf16>
      %c0_50 = arith.constant 0 : index
      %c0_51 = arith.constant 0 : index
      %51 = vector.load %arg3[%c0_50, %c0_51] : memref<128x384xbf16, #tpu.memory_space<vmem>>, vector<128x256xbf16>
      %cst_52 = arith.constant dense<0.000000e+00> : vector<8x256xf32>
      %52 = tpu.matmul %50, %51, %cst_52 {dimension_numbers = #tpu.dot_dimension_numbers<[1], [0], [0], [1], [0, 0, 1, 1], [], []>} : vector<8x128xbf16>, vector<128x256xbf16>, vector<8x256xf32> -> vector<8x256xf32>
      %c0_53 = arith.constant 0 : index
      %c0_54 = arith.constant 0 : index
      %53 = vector.load %arg10[%c0_53, %c0_54] : memref<8x384xf32, #tpu.memory_space<vmem>>, vector<8x128xf32>
      %54 = vector.extract_strided_slice %52 {offsets = [0, 0], sizes = [8, 128], strides = [1, 1]} : vector<8x256xf32> to vector<8x128xf32>
      %55 = arith.addf %53, %54 : vector<8x128xf32>
      %56 = arith.negf %55 : vector<8x128xf32>
      %57 = math.exp %56 : vector<8x128xf32>
      %cst_55 = arith.constant 1.000000e+00 : f32
      %58 = vector.broadcast %cst_55 : f32 to vector<8x128xf32>
      %59 = arith.addf %58, %57 : vector<8x128xf32>
      %60 = arith.divf %58, %59 : vector<8x128xf32>
      %c0_56 = arith.constant 0 : index
      %c128 = arith.constant 128 : index
      %61 = vector.load %arg10[%c0_56, %c128] : memref<8x384xf32, #tpu.memory_space<vmem>>, vector<8x128xf32>
      %62 = vector.extract_strided_slice %52 {offsets = [0, 128], sizes = [8, 128], strides = [1, 1]} : vector<8x256xf32> to vector<8x128xf32>
      %63 = arith.addf %61, %62 : vector<8x128xf32>
      %64 = arith.negf %63 : vector<8x128xf32>
      %65 = math.exp %64 : vector<8x128xf32>
      %cst_57 = arith.constant 1.000000e+00 : f32
      %66 = vector.broadcast %cst_57 : f32 to vector<8x128xf32>
      %67 = arith.addf %66, %65 : vector<8x128xf32>
      %68 = arith.divf %66, %67 : vector<8x128xf32>
      %c0_58 = arith.constant 0 : index
      %c256 = arith.constant 256 : index
      %69 = vector.load %arg3[%c0_58, %c256] : memref<128x384xbf16, #tpu.memory_space<vmem>>, vector<128x128xbf16>
      %cst_59 = arith.constant dense<0.000000e+00> : vector<8x128xf32>
      %70 = tpu.matmul %50, %69, %cst_59 {dimension_numbers = #tpu.dot_dimension_numbers<[1], [0], [0], [1], [0, 0, 1, 1], [], []>} : vector<8x128xbf16>, vector<128x128xbf16>, vector<8x128xf32> -> vector<8x128xf32>
      %c0_60 = arith.constant 0 : index
      %c256_61 = arith.constant 256 : index
      %71 = vector.load %arg10[%c0_60, %c256_61] : memref<8x384xf32, #tpu.memory_space<vmem>>, vector<8x128xf32>
      %c0_62 = arith.constant 0 : index
      %c0_63 = arith.constant 0 : index
      %72 = vector.load %arg5[%c0_62, %c0_63] : memref<1x128xf32, #tpu.memory_space<vmem>>, vector<1x128xf32>
      %73 = vector.broadcast %72 : vector<1x128xf32> to vector<8x128xf32>
      %74 = arith.addf %70, %73 : vector<8x128xf32>
      %75 = arith.mulf %60, %74 : vector<8x128xf32>
      %76 = arith.addf %71, %75 : vector<8x128xf32>
      %77 = math.tanh %76 : vector<8x128xf32>
      %cst_64 = arith.constant 1.000000e+00 : f32
      %78 = vector.broadcast %cst_64 : f32 to vector<8x128xf32>
      %79 = arith.subf %78, %68 : vector<8x128xf32>
      %80 = arith.mulf %79, %77 : vector<8x128xf32>
      %81 = arith.mulf %68, %46 : vector<8x128xf32>
      %82 = arith.addf %80, %81 : vector<8x128xf32>
      %83 = arith.truncf %82 : vector<8x128xf32> to vector<8x128xbf16>
      %c0_65 = arith.constant 0 : index
      %c0_66 = arith.constant 0 : index
      %84 = vector.load %arg6[%c0_65, %c0_66] : memref<128x2xbf16, #tpu.memory_space<vmem>>, vector<128x2xbf16>
      %cst_67 = arith.constant dense<0.000000e+00> : vector<8x2xf32>
      %85 = tpu.matmul %83, %84, %cst_67 {dimension_numbers = #tpu.dot_dimension_numbers<[1], [0], [0], [1], [0, 0, 1, 1], [], []>} : vector<8x128xbf16>, vector<128x2xbf16>, vector<8x2xf32> -> vector<8x2xf32>
      %c0_68 = arith.constant 0 : index
      %c0_69 = arith.constant 0 : index
      %86 = vector.load %arg7[%c0_68, %c0_69] : memref<1x2xf32, #tpu.memory_space<vmem>>, vector<1x2xf32>
      %87 = vector.broadcast %86 : vector<1x2xf32> to vector<8x2xf32>
      %88 = arith.addf %85, %87 : vector<8x2xf32>
      %89 = vector.extract_strided_slice %88 {offsets = [0, 0], sizes = [8, 1], strides = [1, 1]} : vector<8x2xf32> to vector<8x1xf32>
      %90 = vector.extract_strided_slice %88 {offsets = [0, 1], sizes = [8, 1], strides = [1, 1]} : vector<8x2xf32> to vector<8x1xf32>
      %cst_70 = arith.constant 0.000000e+00 : f32
      %91 = vector.broadcast %cst_70 : f32 to vector<8x1xf32>
      %92 = arith.cmpf ogt, %89, %91 : vector<8x1xf32>
      %c4_i32_71 = arith.constant 4 : i32
      %93 = arith.cmpi eq, %c3_i32, %c4_i32_71 : i32
      %94 = vector.broadcast %93 : i1 to vector<8x1xi1>
      %95 = arith.ori %92, %94 : vector<8x1xi1>
      %96 = arith.andi %49, %95 : vector<8x1xi1>
      %c0_72 = arith.constant 0 : index
      %c0_73 = arith.constant 0 : index
      %97 = vector.load %arg13[%c0_72, %c0_73] : memref<8x1xf32, #tpu.memory_space<vmem>>, vector<8x1xf32>
      %98 = arith.select %96, %90, %97 : vector<8x1xi1>, vector<8x1xf32>
      %c0_74 = arith.constant 0 : index
      %c0_75 = arith.constant 0 : index
      %99 = vector.load %arg13[%c0_74, %c0_75] : memref<8x1xf32, #tpu.memory_space<vmem>>, vector<8x1xf32>
      tpu.vector_store %arg13[%c0_74, %c0_75], %98 {strides = array<i32>} : memref<8x1xf32, #tpu.memory_space<vmem>>, vector<8x1xf32>,
      %100 = vector.shape_cast %49 : vector<8x1xi1> to vector<8x1xi1>
      %101 = vector.broadcast %100 : vector<8x1xi1> to vector<8x128xi1>
      %102 = arith.select %101, %82, %46 : vector<8x128xi1>, vector<8x128xf32>
      %c0_76 = arith.constant 0 : index
      %c0_77 = arith.constant 0 : index
      %103 = vector.load %arg9[%c0_76, %c0_77] : memref<8x128xf32, #tpu.memory_space<vmem>>, vector<8x128xf32>
      tpu.vector_store %arg9[%c0_76, %c0_77], %102 {strides = array<i32>} : memref<8x128xf32, #tpu.memory_space<vmem>>, vector<8x128xf32>,
      %c0_78 = arith.constant 0 : index
      %c0_79 = arith.constant 0 : index
      %104 = vector.load %arg12[%c0_78, %c0_79] : memref<8x1xf32, #tpu.memory_space<vmem>>, vector<8x1xf32>
      %cst_80 = arith.constant 1.000000e+00 : f32
      %105 = vector.broadcast %cst_80 : f32 to vector<8x1xf32>
      %106 = arith.addf %104, %105 : vector<8x1xf32>
      %c0_81 = arith.constant 0 : index
      %c0_82 = arith.constant 0 : index
      %107 = vector.load %arg12[%c0_81, %c0_82] : memref<8x1xf32, #tpu.memory_space<vmem>>, vector<8x1xf32>
      %108 = arith.select %49, %106, %107 : vector<8x1xi1>, vector<8x1xf32>
      %c0_83 = arith.constant 0 : index
      %c0_84 = arith.constant 0 : index
      %109 = vector.load %arg12[%c0_83, %c0_84] : memref<8x1xf32, #tpu.memory_space<vmem>>, vector<8x1xf32>
      tpu.vector_store %arg12[%c0_83, %c0_84], %108 {strides = array<i32>} : memref<8x1xf32, #tpu.memory_space<vmem>>, vector<8x1xf32>,
      %110 = arith.andi %49, %92 : vector<8x1xi1>
      %c0_85 = arith.constant 0 : index
      %c0_86 = arith.constant 0 : index
      %111 = vector.load %arg11[%c0_85, %c0_86] : memref<8x1xf32, #tpu.memory_space<vmem>>, vector<8x1xf32>
      %cst_87 = arith.constant 1.000000e+00 : f32
      %112 = vector.broadcast %cst_87 : f32 to vector<8x1xf32>
      %113 = arith.select %110, %112, %111 : vector<8x1xi1>, vector<8x1xf32>
      %c0_88 = arith.constant 0 : index
      %c0_89 = arith.constant 0 : index
      %114 = vector.load %arg11[%c0_88, %c0_89] : memref<8x1xf32, #tpu.memory_space<vmem>>, vector<8x1xf32>
      tpu.vector_store %arg11[%c0_88, %c0_89], %113 {strides = array<i32>} : memref<8x1xf32, #tpu.memory_space<vmem>>, vector<8x1xf32>,
      %115 = vector.shape_cast %113 : vector<8x1xf32> to vector<1x8x1xf32>
      %cst_90 = arith.constant dense<0.000000e+00> : vector<1xf32>
      %116 = vector.multi_reduction <add>, %115, %cst_90 [1, 2] : vector<1x8x1xf32> to vector<1xf32>
      %117 = vector.shape_cast %116 : vector<1xf32> to vector<1x1x1xf32>
      %118 = vector.extract %117[0, 0, 0] : f32 from vector<1x1x1xf32>
      %cst_91 = arith.constant 8.000000e+00 : f32
      %cst_92 = arith.constant 5.000000e-01 : f32
      %119 = arith.subf %cst_91, %cst_92 : f32
      %120 = arith.cmpf ogt, %118, %119 : f32
      %121 = arith.extui %120 : i1 to i32
      %c0_93 = arith.constant 0 : index
      %122 = memref.load %arg14[%c0_93] : memref<1xi32, #tpu.memory_space<smem>>
      memref.store %121, %arg14[%c0_93] : memref<1xi32, #tpu.memory_space<smem>>
    } else {
    }
    %c4_i32 = arith.constant 4 : i32
    %c0_35 = arith.constant 0 : index
    %38 = memref.load %arg14[%c0_35] : memref<1xi32, #tpu.memory_space<smem>>
    %c0_i32_36 = arith.constant 0 : i32
    %39 = arith.cmpi eq, %38, %c0_i32_36 : i32
    %40 = arith.extui %39 : i1 to i32
    %c0_i32_37 = arith.constant 0 : i32
    %41 = arith.cmpi ne, %40, %c0_i32_37 : i32
    scf.if %41 {
      %c0_45 = arith.constant 0 : index
      %c0_46 = arith.constant 0 : index
      %46 = vector.load %arg9[%c0_45, %c0_46] : memref<8x128xf32, #tpu.memory_space<vmem>>, vector<8x128xf32>
      %c0_47 = arith.constant 0 : index
      %c0_48 = arith.constant 0 : index
      %47 = vector.load %arg11[%c0_47, %c0_48] : memref<8x1xf32, #tpu.memory_space<vmem>>, vector<8x1xf32>
      %cst_49 = arith.constant 5.000000e-01 : f32
      %48 = vector.broadcast %cst_49 : f32 to vector<8x1xf32>
      %49 = arith.cmpf olt, %47, %48 : vector<8x1xf32>
      %50 = arith.truncf %46 : vector<8x128xf32> to vector<8x128xbf16>
      %c0_50 = arith.constant 0 : index
      %c0_51 = arith.constant 0 : index
      %51 = vector.load %arg3[%c0_50, %c0_51] : memref<128x384xbf16, #tpu.memory_space<vmem>>, vector<128x256xbf16>
      %cst_52 = arith.constant dense<0.000000e+00> : vector<8x256xf32>
      %52 = tpu.matmul %50, %51, %cst_52 {dimension_numbers = #tpu.dot_dimension_numbers<[1], [0], [0], [1], [0, 0, 1, 1], [], []>} : vector<8x128xbf16>, vector<128x256xbf16>, vector<8x256xf32> -> vector<8x256xf32>
      %c0_53 = arith.constant 0 : index
      %c0_54 = arith.constant 0 : index
      %53 = vector.load %arg10[%c0_53, %c0_54] : memref<8x384xf32, #tpu.memory_space<vmem>>, vector<8x128xf32>
      %54 = vector.extract_strided_slice %52 {offsets = [0, 0], sizes = [8, 128], strides = [1, 1]} : vector<8x256xf32> to vector<8x128xf32>
      %55 = arith.addf %53, %54 : vector<8x128xf32>
      %56 = arith.negf %55 : vector<8x128xf32>
      %57 = math.exp %56 : vector<8x128xf32>
      %cst_55 = arith.constant 1.000000e+00 : f32
      %58 = vector.broadcast %cst_55 : f32 to vector<8x128xf32>
      %59 = arith.addf %58, %57 : vector<8x128xf32>
      %60 = arith.divf %58, %59 : vector<8x128xf32>
      %c0_56 = arith.constant 0 : index
      %c128 = arith.constant 128 : index
      %61 = vector.load %arg10[%c0_56, %c128] : memref<8x384xf32, #tpu.memory_space<vmem>>, vector<8x128xf32>
      %62 = vector.extract_strided_slice %52 {offsets = [0, 128], sizes = [8, 128], strides = [1, 1]} : vector<8x256xf32> to vector<8x128xf32>
      %63 = arith.addf %61, %62 : vector<8x128xf32>
      %64 = arith.negf %63 : vector<8x128xf32>
      %65 = math.exp %64 : vector<8x128xf32>
      %cst_57 = arith.constant 1.000000e+00 : f32
      %66 = vector.broadcast %cst_57 : f32 to vector<8x128xf32>
      %67 = arith.addf %66, %65 : vector<8x128xf32>
      %68 = arith.divf %66, %67 : vector<8x128xf32>
      %c0_58 = arith.constant 0 : index
      %c256 = arith.constant 256 : index
      %69 = vector.load %arg3[%c0_58, %c256] : memref<128x384xbf16, #tpu.memory_space<vmem>>, vector<128x128xbf16>
      %cst_59 = arith.constant dense<0.000000e+00> : vector<8x128xf32>
      %70 = tpu.matmul %50, %69, %cst_59 {dimension_numbers = #tpu.dot_dimension_numbers<[1], [0], [0], [1], [0, 0, 1, 1], [], []>} : vector<8x128xbf16>, vector<128x128xbf16>, vector<8x128xf32> -> vector<8x128xf32>
      %c0_60 = arith.constant 0 : index
      %c256_61 = arith.constant 256 : index
      %71 = vector.load %arg10[%c0_60, %c256_61] : memref<8x384xf32, #tpu.memory_space<vmem>>, vector<8x128xf32>
      %c0_62 = arith.constant 0 : index
      %c0_63 = arith.constant 0 : index
      %72 = vector.load %arg5[%c0_62, %c0_63] : memref<1x128xf32, #tpu.memory_space<vmem>>, vector<1x128xf32>
      %73 = vector.broadcast %72 : vector<1x128xf32> to vector<8x128xf32>
      %74 = arith.addf %70, %73 : vector<8x128xf32>
      %75 = arith.mulf %60, %74 : vector<8x128xf32>
      %76 = arith.addf %71, %75 : vector<8x128xf32>
      %77 = math.tanh %76 : vector<8x128xf32>
      %cst_64 = arith.constant 1.000000e+00 : f32
      %78 = vector.broadcast %cst_64 : f32 to vector<8x128xf32>
      %79 = arith.subf %78, %68 : vector<8x128xf32>
      %80 = arith.mulf %79, %77 : vector<8x128xf32>
      %81 = arith.mulf %68, %46 : vector<8x128xf32>
      %82 = arith.addf %80, %81 : vector<8x128xf32>
      %83 = arith.truncf %82 : vector<8x128xf32> to vector<8x128xbf16>
      %c0_65 = arith.constant 0 : index
      %c0_66 = arith.constant 0 : index
      %84 = vector.load %arg6[%c0_65, %c0_66] : memref<128x2xbf16, #tpu.memory_space<vmem>>, vector<128x2xbf16>
      %cst_67 = arith.constant dense<0.000000e+00> : vector<8x2xf32>
      %85 = tpu.matmul %83, %84, %cst_67 {dimension_numbers = #tpu.dot_dimension_numbers<[1], [0], [0], [1], [0, 0, 1, 1], [], []>} : vector<8x128xbf16>, vector<128x2xbf16>, vector<8x2xf32> -> vector<8x2xf32>
      %c0_68 = arith.constant 0 : index
      %c0_69 = arith.constant 0 : index
      %86 = vector.load %arg7[%c0_68, %c0_69] : memref<1x2xf32, #tpu.memory_space<vmem>>, vector<1x2xf32>
      %87 = vector.broadcast %86 : vector<1x2xf32> to vector<8x2xf32>
      %88 = arith.addf %85, %87 : vector<8x2xf32>
      %89 = vector.extract_strided_slice %88 {offsets = [0, 0], sizes = [8, 1], strides = [1, 1]} : vector<8x2xf32> to vector<8x1xf32>
      %90 = vector.extract_strided_slice %88 {offsets = [0, 1], sizes = [8, 1], strides = [1, 1]} : vector<8x2xf32> to vector<8x1xf32>
      %cst_70 = arith.constant 0.000000e+00 : f32
      %91 = vector.broadcast %cst_70 : f32 to vector<8x1xf32>
      %92 = arith.cmpf ogt, %89, %91 : vector<8x1xf32>
      %c4_i32_71 = arith.constant 4 : i32
      %93 = arith.cmpi eq, %c4_i32, %c4_i32_71 : i32
      %94 = vector.broadcast %93 : i1 to vector<8x1xi1>
      %95 = arith.ori %92, %94 : vector<8x1xi1>
      %96 = arith.andi %49, %95 : vector<8x1xi1>
      %c0_72 = arith.constant 0 : index
      %c0_73 = arith.constant 0 : index
      %97 = vector.load %arg13[%c0_72, %c0_73] : memref<8x1xf32, #tpu.memory_space<vmem>>, vector<8x1xf32>
      %98 = arith.select %96, %90, %97 : vector<8x1xi1>, vector<8x1xf32>
      %c0_74 = arith.constant 0 : index
      %c0_75 = arith.constant 0 : index
      %99 = vector.load %arg13[%c0_74, %c0_75] : memref<8x1xf32, #tpu.memory_space<vmem>>, vector<8x1xf32>
      tpu.vector_store %arg13[%c0_74, %c0_75], %98 {strides = array<i32>} : memref<8x1xf32, #tpu.memory_space<vmem>>, vector<8x1xf32>,
      %100 = vector.shape_cast %49 : vector<8x1xi1> to vector<8x1xi1>
      %101 = vector.broadcast %100 : vector<8x1xi1> to vector<8x128xi1>
      %102 = arith.select %101, %82, %46 : vector<8x128xi1>, vector<8x128xf32>
      %c0_76 = arith.constant 0 : index
      %c0_77 = arith.constant 0 : index
      %103 = vector.load %arg9[%c0_76, %c0_77] : memref<8x128xf32, #tpu.memory_space<vmem>>, vector<8x128xf32>
      tpu.vector_store %arg9[%c0_76, %c0_77], %102 {strides = array<i32>} : memref<8x128xf32, #tpu.memory_space<vmem>>, vector<8x128xf32>,
      %c0_78 = arith.constant 0 : index
      %c0_79 = arith.constant 0 : index
      %104 = vector.load %arg12[%c0_78, %c0_79] : memref<8x1xf32, #tpu.memory_space<vmem>>, vector<8x1xf32>
      %cst_80 = arith.constant 1.000000e+00 : f32
      %105 = vector.broadcast %cst_80 : f32 to vector<8x1xf32>
      %106 = arith.addf %104, %105 : vector<8x1xf32>
      %c0_81 = arith.constant 0 : index
      %c0_82 = arith.constant 0 : index
      %107 = vector.load %arg12[%c0_81, %c0_82] : memref<8x1xf32, #tpu.memory_space<vmem>>, vector<8x1xf32>
      %108 = arith.select %49, %106, %107 : vector<8x1xi1>, vector<8x1xf32>
      %c0_83 = arith.constant 0 : index
      %c0_84 = arith.constant 0 : index
      %109 = vector.load %arg12[%c0_83, %c0_84] : memref<8x1xf32, #tpu.memory_space<vmem>>, vector<8x1xf32>
      tpu.vector_store %arg12[%c0_83, %c0_84], %108 {strides = array<i32>} : memref<8x1xf32, #tpu.memory_space<vmem>>, vector<8x1xf32>,
      %110 = arith.andi %49, %92 : vector<8x1xi1>
      %c0_85 = arith.constant 0 : index
      %c0_86 = arith.constant 0 : index
      %111 = vector.load %arg11[%c0_85, %c0_86] : memref<8x1xf32, #tpu.memory_space<vmem>>, vector<8x1xf32>
      %cst_87 = arith.constant 1.000000e+00 : f32
      %112 = vector.broadcast %cst_87 : f32 to vector<8x1xf32>
      %113 = arith.select %110, %112, %111 : vector<8x1xi1>, vector<8x1xf32>
      %c0_88 = arith.constant 0 : index
      %c0_89 = arith.constant 0 : index
      %114 = vector.load %arg11[%c0_88, %c0_89] : memref<8x1xf32, #tpu.memory_space<vmem>>, vector<8x1xf32>
      tpu.vector_store %arg11[%c0_88, %c0_89], %113 {strides = array<i32>} : memref<8x1xf32, #tpu.memory_space<vmem>>, vector<8x1xf32>,
      %115 = vector.shape_cast %113 : vector<8x1xf32> to vector<1x8x1xf32>
      %cst_90 = arith.constant dense<0.000000e+00> : vector<1xf32>
      %116 = vector.multi_reduction <add>, %115, %cst_90 [1, 2] : vector<1x8x1xf32> to vector<1xf32>
      %117 = vector.shape_cast %116 : vector<1xf32> to vector<1x1x1xf32>
      %118 = vector.extract %117[0, 0, 0] : f32 from vector<1x1x1xf32>
      %cst_91 = arith.constant 8.000000e+00 : f32
      %cst_92 = arith.constant 5.000000e-01 : f32
      %119 = arith.subf %cst_91, %cst_92 : f32
      %120 = arith.cmpf ogt, %118, %119 : f32
      %121 = arith.extui %120 : i1 to i32
      %c0_93 = arith.constant 0 : index
      %122 = memref.load %arg14[%c0_93] : memref<1xi32, #tpu.memory_space<smem>>
      memref.store %121, %arg14[%c0_93] : memref<1xi32, #tpu.memory_space<smem>>
    } else {
    }
    %c5_i32 = arith.constant 5 : i32
    %c0_38 = arith.constant 0 : index
    %c0_39 = arith.constant 0 : index
    %42 = vector.load %arg13[%c0_38, %c0_39] : memref<8x1xf32, #tpu.memory_space<vmem>>, vector<8x1xf32>
    %c0_40 = arith.constant 0 : index
    %c0_41 = arith.constant 0 : index
    %43 = vector.load %arg8[%c0_40, %c0_41] : memref<8x2xf32, #tpu.memory_space<vmem>>, vector<8x1xf32>
    tpu.vector_store %arg8[%c0_40, %c0_41], %42 {strides = array<i32>} : memref<8x2xf32, #tpu.memory_space<vmem>>, vector<8x1xf32>,
    %c0_42 = arith.constant 0 : index
    %c0_43 = arith.constant 0 : index
    %44 = vector.load %arg12[%c0_42, %c0_43] : memref<8x1xf32, #tpu.memory_space<vmem>>, vector<8x1xf32>
    %c0_44 = arith.constant 0 : index
    %c1 = arith.constant 1 : index
    %45 = vector.load %arg8[%c0_44, %c1] : memref<8x2xf32, #tpu.memory_space<vmem>>, vector<8x1xf32>
    tpu.vector_store %arg8[%c0_44, %c1], %44 {strides = array<i32>} : memref<8x2xf32, #tpu.memory_space<vmem>>, vector<8x1xf32>,
    return
  }
  func.func @transform_0(%arg0: i32) -> (i32, i32) {
    %c0_i32 = arith.constant 0 : i32
    %c0_i32_0 = arith.constant 0 : i32
    return %arg0, %c0_i32 : i32, i32
  }
  func.func @transform_1(%arg0: i32) -> (i32, i32) {
    %c0_i32 = arith.constant 0 : i32
    %c0_i32_0 = arith.constant 0 : i32
    %c0_i32_1 = arith.constant 0 : i32
    return %c0_i32, %c0_i32_0 : i32, i32
  }
  func.func @transform_2(%arg0: i32) -> (i32, i32) {
    %c0_i32 = arith.constant 0 : i32
    %c0_i32_0 = arith.constant 0 : i32
    %c0_i32_1 = arith.constant 0 : i32
    return %c0_i32, %c0_i32_0 : i32, i32
  }
  func.func @transform_3(%arg0: i32) -> (i32, i32) {
    %c0_i32 = arith.constant 0 : i32
    %c0_i32_0 = arith.constant 0 : i32
    %c0_i32_1 = arith.constant 0 : i32
    return %c0_i32, %c0_i32_0 : i32, i32
  }
  func.func @transform_4(%arg0: i32) -> (i32, i32) {
    %c0_i32 = arith.constant 0 : i32
    %c0_i32_0 = arith.constant 0 : i32
    %c0_i32_1 = arith.constant 0 : i32
    return %c0_i32, %c0_i32_0 : i32, i32
  }
  func.func @transform_5(%arg0: i32) -> (i32, i32) {
    %c0_i32 = arith.constant 0 : i32
    %c0_i32_0 = arith.constant 0 : i32
    %c0_i32_1 = arith.constant 0 : i32
    return %c0_i32, %c0_i32_0 : i32, i32
  }
  func.func @transform_6(%arg0: i32) -> (i32, i32) {
    %c0_i32 = arith.constant 0 : i32
    %c0_i32_0 = arith.constant 0 : i32
    %c0_i32_1 = arith.constant 0 : i32
    return %c0_i32, %c0_i32_0 : i32, i32
  }
  func.func @transform_7(%arg0: i32) -> (i32, i32) {
    %c0_i32 = arith.constant 0 : i32
    %c0_i32_0 = arith.constant 0 : i32
    return %arg0, %c0_i32 : i32, i32
  }
}

</mosaic_0001>

<llo_original>
// kernel: tpu_custom_call.1
$region0: #{tpu_custom_call.1}
  #allocation0 [shape = 'u32[]', space=smem, size = 0x4, offset = 0x4, fixed_abs, tag = 'smem constant byte address 0x4 - core index']
  #allocation1 [shape = 'u32[144,128]{1,0:T(1,128)}', space=vmem, size = 0x12000, scoped, tag = 'internal scratch']
  #allocation2 [shape = 'f32[8,128]{1,0:T(8,128)}', space=vmem, size = 0x1000, scoped, tag = 'scratch operand']
  #allocation3 [shape = 'f32[8,384]{1,0:T(8,128)}', space=vmem, size = 0x3000, scoped, tag = 'scratch operand']
  #allocation4 [shape = 'f32[8,1]{1,0:T(8,128)}', space=vmem, size = 0x1000, scoped, tag = 'scratch operand']
  #allocation5 [shape = 'f32[8,1]{1,0:T(8,128)}', space=vmem, size = 0x1000, scoped, tag = 'scratch operand']
  #allocation6 [shape = 'f32[8,1]{1,0:T(8,128)}', space=vmem, size = 0x1000, scoped, tag = 'scratch operand']
  #allocation7 [shape = 's32[1]{0:T(128)}', space=smem, size = 0x200, scoped, tag = 'scratch operand']
  %s0 = inlined_call_operand.vmem [shape: f32[8,16], index: 0, kind: input, shape index: {}]
  %s1 = inlined_call_operand.vmem [shape: bf16[16,384], index: 1, kind: input, shape index: {}]
  %s2 = inlined_call_operand.hbm [shape: bf16[128,384], index: 2, kind: input, shape index: {}]
  %s3 = inlined_call_operand.vmem [shape: f32[1,384], index: 3, kind: input, shape index: {}]
  %s4 = inlined_call_operand.vmem [shape: f32[1,128], index: 4, kind: input, shape index: {}]
  %s5 = inlined_call_operand.vmem [shape: bf16[128,2], index: 5, kind: input, shape index: {}]
  %s6 = inlined_call_operand.vmem [shape: f32[1,2], index: 6, kind: input, shape index: {}]
  %s7 = inlined_call_operand.vmem [shape: f32[8,2], index: 7, kind: output, shape index: {}]
  %s8 = sld [smem:[#allocation0]]
  $region62: #{tpu_custom_call.1} parent=0
    _
  %s10 = ssub.s32 1, %s8
  %s11 = scalar_select 0, %s10, %s8
  $region1: #{tpu_custom_call.1} parent=0
    #allocation8 [shape = 'u8[98304]{0}', space=vmem, size = 0x18000, scoped, tag = 'input window, operand 2, single buffered']
    #allocation9 [shape = 's32[1]{0}', space=sflag, size = 0x4, scoped, tag = 'scoped memory for tpu_custom_call.1']
    %12 = vsyncpa [#allocation9], 0
    // Predicated region
    $region2: #{tpu_custom_call.1} parent=1 // pred_check
      _
    $region3: #{tpu_custom_call.1} parent=1 // pred_check_branch
      %14 = sbr.rel (0) target = $region5
    $region4: #{tpu_custom_call.1} parent=1 // pred_region
      _
    $region5: #{tpu_custom_call.1} parent=1 // pred_fallthru
      _
    // Predicated region
    $region6: #{tpu_custom_call.1} parent=1 // pred_check
      _
    $region7: #{tpu_custom_call.1} parent=1 // pred_check_branch
      %16 = sbr.rel (0) target = $region9
    $region8: #{tpu_custom_call.1} parent=1 // pred_region
      _
    $region9: #{tpu_custom_call.1} parent=1 // pred_fallthru
      _
    // Predicated region
    $region10: #{tpu_custom_call.1} parent=1 // pred_check
      _
    $region11: #{tpu_custom_call.1} parent=1 // pred_check_branch
      %18 = sbr.rel (0) target = $region13
    $region12: #{tpu_custom_call.1} parent=1 // pred_region
      %s20 = ssub.s32 3072, 3072
      %21 = vsyncadd [#allocation9], %s20
      %s22 = sshll.u32 [#allocation8], 4
      %s23 = int_to_ptr.vmem [resolvable:$true] %s22
      %28 = dma.hbm_to_vmem [thread:$0]  %s2, 3072, %s23, [#allocation9], 192, 192, 12
    $region13: #{tpu_custom_call.1} parent=1 // pred_fallthru
      _
    // Predicated region
    $region14: #{tpu_custom_call.1} parent=1 // pred_check
      _
    $region15: #{tpu_custom_call.1} parent=1 // pred_check_branch
      %30 = sbr.rel (0) target = $region17
    $region16: #{tpu_custom_call.1} parent=1 // pred_region
      _
    $region17: #{tpu_custom_call.1} parent=1 // pred_fallthru
      _
    // Predicated region
    $region18: #{tpu_custom_call.1} parent=1 // pred_check
      _
    $region19: #{tpu_custom_call.1} parent=1 // pred_check_branch
      %32 = sbr.rel (0) target = $region21
    $region20: #{tpu_custom_call.1} parent=1 // pred_region
      _
    $region21: #{tpu_custom_call.1} parent=1 // pred_fallthru
      _
    // Predicated region
    $region22: #{tpu_custom_call.1} parent=1 // pred_check
      _
    $region23: #{tpu_custom_call.1} parent=1 // pred_check_branch
      %34 = sbr.rel (0) target = $region25
    $region24: #{tpu_custom_call.1} parent=1 // pred_region
      _
    $region25: #{tpu_custom_call.1} parent=1 // pred_fallthru
      _
    // Predicated region
    $region26: #{tpu_custom_call.1} parent=1 // pred_check
      _
    $region27: #{tpu_custom_call.1} parent=1 // pred_check_branch
      %36 = sbr.rel (0) target = $region29
    $region28: #{tpu_custom_call.1} parent=1 // pred_region
      _
    $region29: #{tpu_custom_call.1} parent=1 // pred_fallthru
      _
    // Predicated region
    $region30: #{tpu_custom_call.1} parent=1 // pred_check
      _
    $region31: #{tpu_custom_call.1} parent=1 // pred_check_branch
      %38 = sbr.rel (0) target = $region33
    $region32: #{tpu_custom_call.1} parent=1 // pred_region
      %39 = dma.done [#allocation9], 3072
    $region33: #{tpu_custom_call.1} parent=1 // pred_fallthru
      _
    %v41 = vlaneseq
    %v42 = vand.u32 %v41, 127
    %vm43 = vcmp.eq.s32.totalorder %v42, 0
    %v44 = vsel %vm43, 5.0, 0.0
    %45 = vst [vmem:[#allocation2] sm:$0xff] %v44
    %vm46 = vcmask 7168
    %47 = vst.msk [vmem:[#allocation4] sm:$0xff] %vm46, 0.0
    %48 = vst.msk [vmem:[#allocation5] sm:$0xff] %vm46, 0.0
    %49 = vst.msk [vmem:[#allocation6] sm:$0xff] %vm46, 0.0
    %s50 = scalar_lea.smem [#allocation7], 0
    %51 = sst [smem:[%s50]] 0
    %v52 = vld [vmem:[%s0] sm:$0xff]
    %v53 = vpack.c.bf16 %v52, %v52
    %v54 = vld [vmem:[%s1] sm:$0xff]
    %v55 = vld [vmem:[%s1 + $0x8] sm:$0xf]
    %v56 = vld [vmem:[%s1 + $0xc] sm:$0xff]
    %v57 = vld [vmem:[%s1 + $0x14] sm:$0xf]
    %v58 = vld [vmem:[%s3] sm:$0x7]
    %v60 = vlaneseq
    %v61 = vshrl.u32 %v60, 7
    %v62 = vsub.s32 0, %v61
    %v63 = vrot.slane %v58, %v62
    %v64 = vlaneseq
    %v65 = vshrl.u32 %v64, 7
    %v66 = vsub.s32 1, %v65
    %v67 = vrot.slane %v58, %v66
    %v68 = vlaneseq
    %v69 = vshrl.u32 %v68, 7
    %v70 = vsub.s32 2, %v69
    %v71 = vrot.slane %v58, %v70
    %v79 = vunpack.c.l.b16 %v54
    %v80 = vunpack.c.h.b16 %v54
    %v81 = vunpack.c.l.b16 %v55
    %v82 = vunpack.c.l.b16 %v56
    %v83 = vunpack.c.h.b16 %v56
    %v84 = vunpack.c.l.b16 %v57
    %v85 = vpack.c.b16 %v82, %v79
    %v86 = vpack.c.b16 %v83, %v80
    %v87 = vpack.c.b16 %v84, %v81
    %vm91 = vcmask 130048
    %v93 = vsel %vm91, %v53, 0
    %95 = vmatprep.subr.bf16.mxu0 %v86
    %96 = vmatpush1.bf16.msra.mxu0 %v85
    %97 = vmatprep.subr.bf16.mxu0 0
    %98 = vmatpush1.bf16.msra.mxu0 0
    %99 = vmatprep.subr.bf16.mxu0 0
    %100 = vmatpush1.bf16.msra.mxu0 0
    %101 = vmatprep.subr.bf16.mxu0 0
    %102 = vmatpush1.bf16.msra.mxu0 0
    %103 = vmatprep.subr.bf16.mxu0 0
    %104 = vmatpush1.bf16.msra.mxu0 0
    %105 = vmatprep.subr.bf16.mxu0 0
    %106 = vmatpush1.bf16.msra.mxu0 0
    %107 = vmatprep.subr.bf16.mxu0 0
    %108 = vmatpush1.bf16.msra.mxu0 0
    %109 = vmatprep.subr.bf16.mxu0 0
    %110 = vmatpush1.bf16.msra.mxu0 0
    %111 = vmatprep.subr.bf16.mxu0 0
    %112 = vmatpush1.bf16.msra.mxu0 0
    %113 = vmatprep.subr.bf16.mxu0 0
    %114 = vmatpush1.bf16.msra.mxu0 0
    %115 = vmatprep.subr.bf16.mxu0 0
    %116 = vmatpush1.bf16.msra.mxu0 0
    %117 = vmatprep.subr.bf16.mxu0 0
    %118 = vmatpush1.bf16.msra.mxu0 0
    %119 = vmatprep.subr.bf16.mxu0 0
    %120 = vmatpush1.bf16.msra.mxu0 0
    %121 = vmatprep.subr.bf16.mxu0 0
    %122 = vmatpush1.bf16.msra.mxu0 0
    %123 = vmatprep.subr.bf16.mxu0 0
    %124 = vmatpush1.bf16.msra.mxu0 0
    %125 = vmatprep.subr.bf16.mxu0 0
    %126 = vmatpush1.bf16.msra.mxu0 0
    %127 = vmatprep.mubr.bf16.mxu0 0
    %128 = vmatmul.mubr.bf16.gmra.mrb[0].mxu0 %v93
    %v129 = vpop.f32.mrb[0].mxu0
    %v130 = vadd.f32 %v63, %v129
    %v131 = vpop.f32.mrb[0].mxu0
    %v132 = vadd.f32 %v67, %v131
    %v133 = vpop.f32.mrb[0].mxu0
    %v134 = vpop.f32.mrb[0].mxu0
    %135 = vdwg.mxu0
    %136 = vmatprep.subr.bf16.mxu0 0
    %137 = vmatpush1.bf16.msra.mxu0 %v87
    %138 = vmatprep.subr.bf16.mxu0 0
    %139 = vmatpush1.bf16.msra.mxu0 0
    %140 = vmatprep.subr.bf16.mxu0 0
    %141 = vmatpush1.bf16.msra.mxu0 0
    %142 = vmatprep.subr.bf16.mxu0 0
    %143 = vmatpush1.bf16.msra.mxu0 0
    %144 = vmatprep.subr.bf16.mxu0 0
    %145 = vmatpush1.bf16.msra.mxu0 0
    %146 = vmatprep.subr.bf16.mxu0 0
    %147 = vmatpush1.bf16.msra.mxu0 0
    %148 = vmatprep.subr.bf16.mxu0 0
    %149 = vmatpush1.bf16.msra.mxu0 0
    %150 = vmatprep.subr.bf16.mxu0 0
    %151 = vmatpush1.bf16.msra.mxu0 0
    %152 = vmatprep.subr.bf16.mxu0 0
    %153 = vmatpush1.bf16.msra.mxu0 0
    %154 = vmatprep.subr.bf16.mxu0 0
    %155 = vmatpush1.bf16.msra.mxu0 0
    %156 = vmatprep.subr.bf16.mxu0 0
    %157 = vmatpush1.bf16.msra.mxu0 0
    %158 = vmatprep.subr.bf16.mxu0 0
    %159 = vmatpush1.bf16.msra.mxu0 0
    %160 = vmatprep.subr.bf16.mxu0 0
    %161 = vmatpush1.bf16.msra.mxu0 0
    %162 = vmatprep.subr.bf16.mxu0 0
    %163 = vmatpush1.bf16.msra.mxu0 0
    %164 = vmatprep.subr.bf16.mxu0 0
    %165 = vmatpush1.bf16.msra.mxu0 0
    %166 = vmatprep.subr.bf16.mxu0 0
    %167 = vmatpush1.bf16.msra.mxu0 0
    %168 = vmatprep.mubr.bf16.mxu0 0
    %169 = vmatmul.mubr.bf16.gmra.mrb[0].mxu0 %v93
    %v170 = vpop.f32.mrb[0].mxu0
    %v171 = vadd.f32 %v71, %v170
    %v172 = vpop.f32.mrb[0].mxu0
    %v173 = vpop.f32.mrb[0].mxu0
    %v174 = vpop.f32.mrb[0].mxu0
    %175 = vdwg.mxu0
    %176 = vst [vmem:[#allocation3] sm:$0xff] %v130
    %177 = vst [vmem:[#allocation3 + $0x8] sm:$0xff] %v132
    %178 = vst [vmem:[#allocation3 + $0x10] sm:$0xff] %v171
    %s179 = sld [smem:[#allocation7]]
    %p180 = scmp.eq.s32.totalorder %s179, 0
    // Predicated region
    $region34: #{tpu_custom_call.1} parent=1 // pred_check
      %p181 = pneg %p180
    $region35: #{tpu_custom_call.1} parent=1 // pred_check_branch
      %183 = sbr.rel (%p181) target = $region37
    $region36: #{tpu_custom_call.1} parent=1 // pred_region
      %v184 = vld [vmem:[#allocation2] sm:$0xff]
      %v185 = vld [vmem:[#allocation4] sm:$0xff]
      %vm186 = vcmp.lt.f32.partialorder %v185, 0.5
      %v187 = vpack.c.bf16 %v184, %v184
      %v188 = vld [vmem:[#allocation8] sm:$0xff]
      %v189 = vld [vmem:[#allocation8 + $0xc] sm:$0xff]
      %v190 = vld [vmem:[#allocation8 + $0x18] sm:$0xff]
      %v191 = vld [vmem:[#allocation8 + $0x24] sm:$0xff]
      %v192 = vld [vmem:[#allocation8 + $0x30] sm:$0xff]
      %v193 = vld [vmem:[#allocation8 + $0x3c] sm:$0xff]
      %v194 = vld [vmem:[#allocation8 + $0x48] sm:$0xff]
      %v195 = vld [vmem:[#allocation8 + $0x54] sm:$0xff]
      %v196 = vld [vmem:[#allocation8 + $0x60] sm:$0xff]
      %v197 = vld [vmem:[#allocation8 + $0x6c] sm:$0xff]
      %v198 = vld [vmem:[#allocation8 + $0x78] sm:$0xff]
      %v199 = vld [vmem:[#allocation8 + $0x84] sm:$0xff]
      %v200 = vld [vmem:[#allocation8 + $0x90] sm:$0xff]
      %v201 = vld [vmem:[#allocation8 + $0x9c] sm:$0xff]
      %v202 = vld [vmem:[#allocation8 + $0xa8] sm:$0xff]
      %v203 = vld [vmem:[#allocation8 + $0xb4] sm:$0xff]
      %v220 = vunpack.c.l.b16 %v188
      %v221 = vunpack.c.h.b16 %v188
      %v222 = vunpack.c.l.b16 %v189
      %v223 = vunpack.c.h.b16 %v189
      %v224 = vunpack.c.l.b16 %v190
      %v225 = vunpack.c.h.b16 %v190
      %v226 = vunpack.c.l.b16 %v191
      %v227 = vunpack.c.h.b16 %v191
      %v228 = vunpack.c.l.b16 %v192
      %v229 = vunpack.c.h.b16 %v192
      %v230 = vunpack.c.l.b16 %v193
      %v231 = vunpack.c.h.b16 %v193
      %v232 = vunpack.c.l.b16 %v194
      %v233 = vunpack.c.h.b16 %v194
      %v234 = vunpack.c.l.b16 %v195
      %v235 = vunpack.c.h.b16 %v195
      %v236 = vunpack.c.l.b16 %v196
      %v237 = vunpack.c.h.b16 %v196
      %v238 = vunpack.c.l.b16 %v197
      %v239 = vunpack.c.h.b16 %v197
      %v240 = vunpack.c.l.b16 %v198
      %v241 = vunpack.c.h.b16 %v198
      %v242 = vunpack.c.l.b16 %v199
      %v243 = vunpack.c.h.b16 %v199
      %v244 = vunpack.c.l.b16 %v200
      %v245 = vunpack.c.h.b16 %v200
      %v246 = vunpack.c.l.b16 %v201
      %v247 = vunpack.c.h.b16 %v201
      %v248 = vunpack.c.l.b16 %v202
      %v249 = vunpack.c.h.b16 %v202
      %v250 = vunpack.c.l.b16 %v203
      %v251 = vunpack.c.h.b16 %v203
      %v252 = vpack.c.b16 %v222, %v220
      %v253 = vpack.c.b16 %v223, %v221
      %v254 = vpack.c.b16 %v226, %v224
      %v255 = vpack.c.b16 %v227, %v225
      %v256 = vpack.c.b16 %v230, %v228
      %v257 = vpack.c.b16 %v231, %v229
      %v258 = vpack.c.b16 %v234, %v232
      %v259 = vpack.c.b16 %v235, %v233
      %v260 = vpack.c.b16 %v238, %v236
      %v261 = vpack.c.b16 %v239, %v237
      %v262 = vpack.c.b16 %v242, %v240
      %v263 = vpack.c.b16 %v243, %v241
      %v264 = vpack.c.b16 %v246, %v244
      %v265 = vpack.c.b16 %v247, %v245
      %v266 = vpack.c.b16 %v250, %v248
      %v267 = vpack.c.b16 %v251, %v249
      %284 = vmatprep.subr.bf16.mxu0 %v253
      %285 = vmatpush1.bf16.msra.mxu0 %v252
      %286 = vmatprep.subr.bf16.mxu0 %v255
      %287 = vmatpush1.bf16.msra.mxu0 %v254
      %288 = vmatprep.subr.bf16.mxu0 %v257
      %289 = vmatpush1.bf16.msra.mxu0 %v256
      %290 = vmatprep.subr.bf16.mxu0 %v259
      %291 = vmatpush1.bf16.msra.mxu0 %v258
      %292 = vmatprep.subr.bf16.mxu0 %v261
      %293 = vmatpush1.bf16.msra.mxu0 %v260
      %294 = vmatprep.subr.bf16.mxu0 %v263
      %295 = vmatpush1.bf16.msra.mxu0 %v262
      %296 = vmatprep.subr.bf16.mxu0 %v265
      %297 = vmatpush1.bf16.msra.mxu0 %v264
      %298 = vmatprep.subr.bf16.mxu0 %v267
      %299 = vmatpush1.bf16.msra.mxu0 %v266
      %300 = vmatprep.subr.bf16.mxu0 0
      %301 = vmatpush1.bf16.msra.mxu0 0
      %302 = vmatprep.subr.bf16.mxu0 0
      %303 = vmatpush1.bf16.msra.mxu0 0
      %304 = vmatprep.subr.bf16.mxu0 0
      %305 = vmatpush1.bf16.msra.mxu0 0
      %306 = vmatprep.subr.bf16.mxu0 0
      %307 = vmatpush1.bf16.msra.mxu0 0
      %308 = vmatprep.subr.bf16.mxu0 0
      %309 = vmatpush1.bf16.msra.mxu0 0
      %310 = vmatprep.subr.bf16.mxu0 0
      %311 = vmatpush1.bf16.msra.mxu0 0
      %312 = vmatprep.subr.bf16.mxu0 0
      %313 = vmatpush1.bf16.msra.mxu0 0
      %314 = vmatprep.subr.bf16.mxu0 0
      %315 = vmatpush1.bf16.msra.mxu0 0
      %316 = vmatprep.mubr.bf16.mxu0 0
      %317 = vmatmul.mubr.bf16.gmra.mrb[0].mxu0 %v187
      %v318 = vpop.f32.mrb[0].mxu0
      %v319 = vadd.f32 0.0, %v318
      %v320 = vpop.f32.mrb[0].mxu0
      %v321 = vadd.f32 0.0, %v320
      %v322 = vpop.f32.mrb[0].mxu0
      %v323 = vpop.f32.mrb[0].mxu0
      %324 = vdwg.mxu0
      %v325 = vld [vmem:[#allocation3] sm:$0xff]
      %v326 = vadd.f32 %v325, %v319
      %v327 = vxor.u32 %v326, 2147483648
      %v328 = vmul.f32 %v327, 1.442695
      %v329 = vpow.pop %v328
      %v330 = vadd.f32 %v329, 1.0
      %v331 = vrcp.pop %v330
      %v332 = vmul.f32 1.0, %v331
      %v333 = vld [vmem:[#allocation3 + $0x8] sm:$0xff]
      %v334 = vadd.f32 %v333, %v321
      %v335 = vxor.u32 %v334, 2147483648
      %v336 = vmul.f32 %v335, 1.442695
      %v337 = vpow.pop %v336
      %v338 = vadd.f32 %v337, 1.0
      %v339 = vrcp.pop %v338
      %v340 = vmul.f32 1.0, %v339
      %v341 = vld [vmem:[#allocation8 + $0x8] sm:$0xf]
      %v342 = vld [vmem:[#allocation8 + $0x14] sm:$0xf]
      %v343 = vld [vmem:[#allocation8 + $0x20] sm:$0xf]
      %v344 = vld [vmem:[#allocation8 + $0x2c] sm:$0xf]
      %v345 = vld [vmem:[#allocation8 + $0x38] sm:$0xf]
      %v346 = vld [vmem:[#allocation8 + $0x44] sm:$0xf]
      %v347 = vld [vmem:[#allocation8 + $0x50] sm:$0xf]
      %v348 = vld [vmem:[#allocation8 + $0x5c] sm:$0xf]
      %v349 = vld [vmem:[#allocation8 + $0x68] sm:$0xf]
      %v350 = vld [vmem:[#allocation8 + $0x74] sm:$0xf]
      %v351 = vld [vmem:[#allocation8 + $0x80] sm:$0xf]
      %v352 = vld [vmem:[#allocation8 + $0x8c] sm:$0xf]
      %v353 = vld [vmem:[#allocation8 + $0x98] sm:$0xf]
      %v354 = vld [vmem:[#allocation8 + $0xa4] sm:$0xf]
      %v355 = vld [vmem:[#allocation8 + $0xb0] sm:$0xf]
      %v356 = vld [vmem:[#allocation8 + $0xbc] sm:$0xf]
      %v357 = vld [vmem:[#allocation3 + $0x10] sm:$0xff]
      %v358 = vld [vmem:[%s4] sm:$0x1]
      %v360 = vlaneseq
      %v361 = vshrl.u32 %v360, 7
      %v362 = vsub.s32 0, %v361
      %v363 = vrot.slane %v358, %v362
      %v381 = vunpack.c.l.b16 %v341
      %v382 = vunpack.c.l.b16 %v342
      %v383 = vunpack.c.l.b16 %v343
      %v384 = vunpack.c.l.b16 %v344
      %v385 = vunpack.c.l.b16 %v345
      %v386 = vunpack.c.l.b16 %v346
      %v387 = vunpack.c.l.b16 %v347
      %v388 = vunpack.c.l.b16 %v348
      %v389 = vunpack.c.l.b16 %v349
      %v390 = vunpack.c.l.b16 %v350
      %v391 = vunpack.c.l.b16 %v351
      %v392 = vunpack.c.l.b16 %v352
      %v393 = vunpack.c.l.b16 %v353
      %v394 = vunpack.c.l.b16 %v354
      %v395 = vunpack.c.l.b16 %v355
      %v396 = vunpack.c.l.b16 %v356
      %v397 = vpack.c.b16 %v382, %v381
      %v398 = vpack.c.b16 %v384, %v383
      %v399 = vpack.c.b16 %v386, %v385
      %v400 = vpack.c.b16 %v388, %v387
      %v401 = vpack.c.b16 %v390, %v389
      %v402 = vpack.c.b16 %v392, %v391
      %v403 = vpack.c.b16 %v394, %v393
      %v404 = vpack.c.b16 %v396, %v395
      %413 = vmatprep.subr.bf16.mxu0 0
      %414 = vmatpush1.bf16.msra.mxu0 %v397
      %415 = vmatprep.subr.bf16.mxu0 0
      %416 = vmatpush1.bf16.msra.mxu0 %v398
      %417 = vmatprep.subr.bf16.mxu0 0
      %418 = vmatpush1.bf16.msra.mxu0 %v399
      %419 = vmatprep.subr.bf16.mxu0 0
      %420 = vmatpush1.bf16.msra.mxu0 %v400
      %421 = vmatprep.subr.bf16.mxu0 0
      %422 = vmatpush1.bf16.msra.mxu0 %v401
      %423 = vmatprep.subr.bf16.mxu0 0
      %424 = vmatpush1.bf16.msra.mxu0 %v402
      %425 = vmatprep.subr.bf16.mxu0 0
      %426 = vmatpush1.bf16.msra.mxu0 %v403
      %427 = vmatprep.subr.bf16.mxu0 0
      %428 = vmatpush1.bf16.msra.mxu0 %v404
      %429 = vmatprep.subr.bf16.mxu0 0
      %430 = vmatpush1.bf16.msra.mxu0 0
      %431 = vmatprep.subr.bf16.mxu0 0
      %432 = vmatpush1.bf16.msra.mxu0 0
      %433 = vmatprep.subr.bf16.mxu0 0
      %434 = vmatpush1.bf16.msra.mxu0 0
      %435 = vmatprep.subr.bf16.mxu0 0
      %436 = vmatpush1.bf16.msra.mxu0 0
      %437 = vmatprep.subr.bf16.mxu0 0
      %438 = vmatpush1.bf16.msra.mxu0 0
      %439 = vmatprep.subr.bf16.mxu0 0
      %440 = vmatpush1.bf16.msra.mxu0 0
      %441 = vmatprep.subr.bf16.mxu0 0
      %442 = vmatpush1.bf16.msra.mxu0 0
      %443 = vmatprep.subr.bf16.mxu0 0
      %444 = vmatpush1.bf16.msra.mxu0 0
      %445 = vmatprep.mubr.bf16.mxu0 0
      %446 = vmatmul.mubr.bf16.gmra.mrb[0].mxu0 %v187
      %v447 = vpop.f32.mrb[0].mxu0
      %v448 = vadd.f32 %v363, %v447
      %v449 = vpop.f32.mrb[0].mxu0
      %v450 = vpop.f32.mrb[0].mxu0
      %v451 = vpop.f32.mrb[0].mxu0
      %452 = vdwg.mxu0
      %v453 = vmul.f32 %v332, %v448
      %v454 = vadd.f32 %v357, %v453
      %v455 = vtanh.pop %v454
      %v456 = vsub.f32 1.0, %v340
      %v457 = vmul.f32 %v456, %v455
      %v458 = vmul.f32 %v340, %v184
      %v459 = vadd.f32 %v457, %v458
      %v460 = vpack.c.bf16 %v459, %v459
      %v461 = vld [vmem:[%s5] sm:$0xf]
      %v462 = vld [vmem:[%s5 + $0x4] sm:$0xf]
      %v463 = vld [vmem:[%s5 + $0x8] sm:$0xf]
      %v464 = vld [vmem:[%s5 + $0xc] sm:$0xf]
      %v465 = vld [vmem:[%s5 + $0x10] sm:$0xf]
      %v466 = vld [vmem:[%s5 + $0x14] sm:$0xf]
      %v467 = vld [vmem:[%s5 + $0x18] sm:$0xf]
      %v468 = vld [vmem:[%s5 + $0x1c] sm:$0xf]
      %v469 = vld [vmem:[%s5 + $0x20] sm:$0xf]
      %v470 = vld [vmem:[%s5 + $0x24] sm:$0xf]
      %v471 = vld [vmem:[%s5 + $0x28] sm:$0xf]
      %v472 = vld [vmem:[%s5 + $0x2c] sm:$0xf]
      %v473 = vld [vmem:[%s5 + $0x30] sm:$0xf]
      %v474 = vld [vmem:[%s5 + $0x34] sm:$0xf]
      %v475 = vld [vmem:[%s5 + $0x38] sm:$0xf]
      %v476 = vld [vmem:[%s5 + $0x3c] sm:$0xf]
      %v477 = vld [vmem:[%s6] sm:$0x1]
      %v479 = vlaneseq
      %v480 = vshrl.u32 %v479, 7
      %v481 = vsub.s32 0, %v480
      %v482 = vrot.slane %v477, %v481
      %v500 = vunpack.c.l.b16 %v461
      %v501 = vunpack.c.l.b16 %v462
      %v502 = vunpack.c.l.b16 %v463
      %v503 = vunpack.c.l.b16 %v464
      %v504 = vunpack.c.l.b16 %v465
      %v505 = vunpack.c.l.b16 %v466
      %v506 = vunpack.c.l.b16 %v467
      %v507 = vunpack.c.l.b16 %v468
      %v508 = vunpack.c.l.b16 %v469
      %v509 = vunpack.c.l.b16 %v470
      %v510 = vunpack.c.l.b16 %v471
      %v511 = vunpack.c.l.b16 %v472
      %v512 = vunpack.c.l.b16 %v473
      %v513 = vunpack.c.l.b16 %v474
      %v514 = vunpack.c.l.b16 %v475
      %v515 = vunpack.c.l.b16 %v476
      %v516 = vpack.c.b16 %v501, %v500
      %v517 = vpack.c.b16 %v503, %v502
      %v518 = vpack.c.b16 %v505, %v504
      %v519 = vpack.c.b16 %v507, %v506
      %v520 = vpack.c.b16 %v509, %v508
      %v521 = vpack.c.b16 %v511, %v510
      %v522 = vpack.c.b16 %v513, %v512
      %v523 = vpack.c.b16 %v515, %v514
      %532 = vmatprep.subr.bf16.mxu0 0
      %533 = vmatpush1.bf16.msra.mxu0 %v516
      %534 = vmatprep.subr.bf16.mxu0 0
      %535 = vmatpush1.bf16.msra.mxu0 %v517
      %536 = vmatprep.subr.bf16.mxu0 0
      %537 = vmatpush1.bf16.msra.mxu0 %v518
      %538 = vmatprep.subr.bf16.mxu0 0
      %539 = vmatpush1.bf16.msra.mxu0 %v519
      %540 = vmatprep.subr.bf16.mxu0 0
      %541 = vmatpush1.bf16.msra.mxu0 %v520
      %542 = vmatprep.subr.bf16.mxu0 0
      %543 = vmatpush1.bf16.msra.mxu0 %v521
      %544 = vmatprep.subr.bf16.mxu0 0
      %545 = vmatpush1.bf16.msra.mxu0 %v522
      %546 = vmatprep.subr.bf16.mxu0 0
      %547 = vmatpush1.bf16.msra.mxu0 %v523
      %548 = vmatprep.subr.bf16.mxu0 0
      %549 = vmatpush1.bf16.msra.mxu0 0
      %550 = vmatprep.subr.bf16.mxu0 0
      %551 = vmatpush1.bf16.msra.mxu0 0
      %552 = vmatprep.subr.bf16.mxu0 0
      %553 = vmatpush1.bf16.msra.mxu0 0
      %554 = vmatprep.subr.bf16.mxu0 0
      %555 = vmatpush1.bf16.msra.mxu0 0
      %556 = vmatprep.subr.bf16.mxu0 0
      %557 = vmatpush1.bf16.msra.mxu0 0
      %558 = vmatprep.subr.bf16.mxu0 0
      %559 = vmatpush1.bf16.msra.mxu0 0
      %560 = vmatprep.subr.bf16.mxu0 0
      %561 = vmatpush1.bf16.msra.mxu0 0
      %562 = vmatprep.subr.bf16.mxu0 0
      %563 = vmatpush1.bf16.msra.mxu0 0
      %564 = vmatprep.mubr.bf16.mxu0 0
      %565 = vmatmul.mubr.bf16.gmra.mrb[0].mxu0 %v460
      %v566 = vpop.f32.mrb[0].mxu0
      %v567 = vadd.f32 %v482, %v566
      %v568 = vpop.f32.mrb[0].mxu0
      %v569 = vpop.f32.mrb[0].mxu0
      %v570 = vpop.f32.mrb[0].mxu0
      %571 = vdwg.mxu0
      %vm572 = vcmp.gt.f32.partialorder %v567, 0.0
      %vm573 = vmand %vm186, %vm572
      %v574 = vld [vmem:[#allocation6] sm:$0xff]
      %576 = vrot.lane.b32.xlu0 %v567, 127
      %v577 = vpop.permute.xlu0 %576
      %v579 = vsel %vm573, %v577, %v574
      %580 = vst.msk [vmem:[#allocation6] sm:$0xff] %vm46, %v579
      %v581 = vsel %vm186, 1, 0
      %582 = vset.pattern.permute.xlu0 0
      %583 = vperm.xlu0 %582, %v581
      %v584 = vpop.permute.xlu0 %583
      %vm585 = vcmp.eq.s32.totalorder %v584, 1
      %v586 = vsel %vm585, %v459, %v184
      %587 = vst [vmem:[#allocation2] sm:$0xff] %v586
      %v588 = vld [vmem:[#allocation5] sm:$0xff]
      %v589 = vadd.f32 %v588, 1.0
      %v590 = vsel %vm186, %v589, %v588
      %591 = vst.msk [vmem:[#allocation5] sm:$0xff] %vm46, %v590
      %v592 = vld [vmem:[#allocation4] sm:$0xff]
      %v593 = vsel %vm573, 1.0, %v592
      %594 = vst.msk [vmem:[#allocation4] sm:$0xff] %vm46, %v593
      %v595 = vsel %vm46, %v593, 0.0
      %596 = vadd.xlane.f32.xlu0 %v595
      %v597 = vpop.xlane.xlu0 %596
      %v598 = vrot.slane %v597, 4
      %v599 = vadd.f32 %v597, %v598
      %v600 = vrot.slane %v599, 2
      %v601 = vadd.f32 %v599, %v600
      %v602 = vrot.slane %v601, 1
      %v603 = vadd.f32 %v601, %v602
      %s604 = vtos %v603
      %p605 = scmp.gt.f32.partialorder %s604, 7.5
      %s606 = scalar_select %p605, 1, 0
      %607 = sst [smem:[%s50]] %s606
    $region37: #{tpu_custom_call.1} parent=1 // pred_fallthru
      _
    %s608 = sld [smem:[#allocation7]]
    %p609 = scmp.eq.s32.totalorder %s608, 0
    // Predicated region
    $region38: #{tpu_custom_call.1} parent=1 // pred_check
      %p610 = pneg %p609
    $region39: #{tpu_custom_call.1} parent=1 // pred_check_branch
      %612 = sbr.rel (%p610) target = $region41
    $region40: #{tpu_custom_call.1} parent=1 // pred_region
      %v613 = vld [vmem:[#allocation2] sm:$0xff]
      %v614 = vld [vmem:[#allocation4] sm:$0xff]
      %vm615 = vcmp.lt.f32.partialorder %v614, 0.5
      %v616 = vpack.c.bf16 %v613, %v613
      %v617 = vld [vmem:[#allocation8] sm:$0xff]
      %v618 = vld [vmem:[#allocation8 + $0xc] sm:$0xff]
      %v619 = vld [vmem:[#allocation8 + $0x18] sm:$0xff]
      %v620 = vld [vmem:[#allocation8 + $0x24] sm:$0xff]
      %v621 = vld [vmem:[#allocation8 + $0x30] sm:$0xff]
      %v622 = vld [vmem:[#allocation8 + $0x3c] sm:$0xff]
      %v623 = vld [vmem:[#allocation8 + $0x48] sm:$0xff]
      %v624 = vld [vmem:[#allocation8 + $0x54] sm:$0xff]
      %v625 = vld [vmem:[#allocation8 + $0x60] sm:$0xff]
      %v626 = vld [vmem:[#allocation8 + $0x6c] sm:$0xff]
      %v627 = vld [vmem:[#allocation8 + $0x78] sm:$0xff]
      %v628 = vld [vmem:[#allocation8 + $0x84] sm:$0xff]
      %v629 = vld [vmem:[#allocation8 + $0x90] sm:$0xff]
      %v630 = vld [vmem:[#allocation8 + $0x9c] sm:$0xff]
      %v631 = vld [vmem:[#allocation8 + $0xa8] sm:$0xff]
      %v632 = vld [vmem:[#allocation8 + $0xb4] sm:$0xff]
      %v649 = vunpack.c.l.b16 %v617
      %v650 = vunpack.c.h.b16 %v617
      %v651 = vunpack.c.l.b16 %v618
      %v652 = vunpack.c.h.b16 %v618
      %v653 = vunpack.c.l.b16 %v619
      %v654 = vunpack.c.h.b16 %v619
      %v655 = vunpack.c.l.b16 %v620
      %v656 = vunpack.c.h.b16 %v620
      %v657 = vunpack.c.l.b16 %v621
      %v658 = vunpack.c.h.b16 %v621
      %v659 = vunpack.c.l.b16 %v622
      %v660 = vunpack.c.h.b16 %v622
      %v661 = vunpack.c.l.b16 %v623
      %v662 = vunpack.c.h.b16 %v623
      %v663 = vunpack.c.l.b16 %v624
      %v664 = vunpack.c.h.b16 %v624
      %v665 = vunpack.c.l.b16 %v625
      %v666 = vunpack.c.h.b16 %v625
      %v667 = vunpack.c.l.b16 %v626
      %v668 = vunpack.c.h.b16 %v626
      %v669 = vunpack.c.l.b16 %v627
      %v670 = vunpack.c.h.b16 %v627
      %v671 = vunpack.c.l.b16 %v628
      %v672 = vunpack.c.h.b16 %v628
      %v673 = vunpack.c.l.b16 %v629
      %v674 = vunpack.c.h.b16 %v629
      %v675 = vunpack.c.l.b16 %v630
      %v676 = vunpack.c.h.b16 %v630
      %v677 = vunpack.c.l.b16 %v631
      %v678 = vunpack.c.h.b16 %v631
      %v679 = vunpack.c.l.b16 %v632
      %v680 = vunpack.c.h.b16 %v632
      %v681 = vpack.c.b16 %v651, %v649
      %v682 = vpack.c.b16 %v652, %v650
      %v683 = vpack.c.b16 %v655, %v653
      %v684 = vpack.c.b16 %v656, %v654
      %v685 = vpack.c.b16 %v659, %v657
      %v686 = vpack.c.b16 %v660, %v658
      %v687 = vpack.c.b16 %v663, %v661
      %v688 = vpack.c.b16 %v664, %v662
      %v689 = vpack.c.b16 %v667, %v665
      %v690 = vpack.c.b16 %v668, %v666
      %v691 = vpack.c.b16 %v671, %v669
      %v692 = vpack.c.b16 %v672, %v670
      %v693 = vpack.c.b16 %v675, %v673
      %v694 = vpack.c.b16 %v676, %v674
      %v695 = vpack.c.b16 %v679, %v677
      %v696 = vpack.c.b16 %v680, %v678
      %713 = vmatprep.subr.bf16.mxu0 %v682
      %714 = vmatpush1.bf16.msra.mxu0 %v681
      %715 = vmatprep.subr.bf16.mxu0 %v684
      %716 = vmatpush1.bf16.msra.mxu0 %v683
      %717 = vmatprep.subr.bf16.mxu0 %v686
      %718 = vmatpush1.bf16.msra.mxu0 %v685
      %719 = vmatprep.subr.bf16.mxu0 %v688
      %720 = vmatpush1.bf16.msra.mxu0 %v687
      %721 = vmatprep.subr.bf16.mxu0 %v690
      %722 = vmatpush1.bf16.msra.mxu0 %v689
      %723 = vmatprep.subr.bf16.mxu0 %v692
      %724 = vmatpush1.bf16.msra.mxu0 %v691
      %725 = vmatprep.subr.bf16.mxu0 %v694
      %726 = vmatpush1.bf16.msra.mxu0 %v693
      %727 = vmatprep.subr.bf16.mxu0 %v696
      %728 = vmatpush1.bf16.msra.mxu0 %v695
      %729 = vmatprep.subr.bf16.mxu0 0
      %730 = vmatpush1.bf16.msra.mxu0 0
      %731 = vmatprep.subr.bf16.mxu0 0
      %732 = vmatpush1.bf16.msra.mxu0 0
      %733 = vmatprep.subr.bf16.mxu0 0
      %734 = vmatpush1.bf16.msra.mxu0 0
      %735 = vmatprep.subr.bf16.mxu0 0
      %736 = vmatpush1.bf16.msra.mxu0 0
      %737 = vmatprep.subr.bf16.mxu0 0
      %738 = vmatpush1.bf16.msra.mxu0 0
      %739 = vmatprep.subr.bf16.mxu0 0
      %740 = vmatpush1.bf16.msra.mxu0 0
      %741 = vmatprep.subr.bf16.mxu0 0
      %742 = vmatpush1.bf16.msra.mxu0 0
      %743 = vmatprep.subr.bf16.mxu0 0
      %744 = vmatpush1.bf16.msra.mxu0 0
      %745 = vmatprep.mubr.bf16.mxu0 0
      %746 = vmatmul.mubr.bf16.gmra.mrb[0].mxu0 %v616
      %v747 = vpop.f32.mrb[0].mxu0
      %v748 = vadd.f32 0.0, %v747
      %v749 = vpop.f32.mrb[0].mxu0
      %v750 = vadd.f32 0.0, %v749
      %v751 = vpop.f32.mrb[0].mxu0
      %v752 = vpop.f32.mrb[0].mxu0
      %753 = vdwg.mxu0
      %v754 = vld [vmem:[#allocation3] sm:$0xff]
      %v755 = vadd.f32 %v754, %v748
      %v756 = vxor.u32 %v755, 2147483648
      %v757 = vmul.f32 %v756, 1.442695
      %v758 = vpow.pop %v757
      %v759 = vadd.f32 %v758, 1.0
      %v760 = vrcp.pop %v759
      %v761 = vmul.f32 1.0, %v760
      %v762 = vld [vmem:[#allocation3 + $0x8] sm:$0xff]
      %v763 = vadd.f32 %v762, %v750
      %v764 = vxor.u32 %v763, 2147483648
      %v765 = vmul.f32 %v764, 1.442695
      %v766 = vpow.pop %v765
      %v767 = vadd.f32 %v766, 1.0
      %v768 = vrcp.pop %v767
      %v769 = vmul.f32 1.0, %v768
      %v770 = vld [vmem:[#allocation8 + $0x8] sm:$0xf]
      %v771 = vld [vmem:[#allocation8 + $0x14] sm:$0xf]
      %v772 = vld [vmem:[#allocation8 + $0x20] sm:$0xf]
      %v773 = vld [vmem:[#allocation8 + $0x2c] sm:$0xf]
      %v774 = vld [vmem:[#allocation8 + $0x38] sm:$0xf]
      %v775 = vld [vmem:[#allocation8 + $0x44] sm:$0xf]
      %v776 = vld [vmem:[#allocation8 + $0x50] sm:$0xf]
      %v777 = vld [vmem:[#allocation8 + $0x5c] sm:$0xf]
      %v778 = vld [vmem:[#allocation8 + $0x68] sm:$0xf]
      %v779 = vld [vmem:[#allocation8 + $0x74] sm:$0xf]
      %v780 = vld [vmem:[#allocation8 + $0x80] sm:$0xf]
      %v781 = vld [vmem:[#allocation8 + $0x8c] sm:$0xf]
      %v782 = vld [vmem:[#allocation8 + $0x98] sm:$0xf]
      %v783 = vld [vmem:[#allocation8 + $0xa4] sm:$0xf]
      %v784 = vld [vmem:[#allocation8 + $0xb0] sm:$0xf]
      %v785 = vld [vmem:[#allocation8 + $0xbc] sm:$0xf]
      %v786 = vld [vmem:[#allocation3 + $0x10] sm:$0xff]
      %v787 = vld [vmem:[%s4] sm:$0x1]
      %v789 = vlaneseq
      %v790 = vshrl.u32 %v789, 7
      %v791 = vsub.s32 0, %v790
      %v792 = vrot.slane %v787, %v791
      %v810 = vunpack.c.l.b16 %v770
      %v811 = vunpack.c.l.b16 %v771
      %v812 = vunpack.c.l.b16 %v772
      %v813 = vunpack.c.l.b16 %v773
      %v814 = vunpack.c.l.b16 %v774
      %v815 = vunpack.c.l.b16 %v775
      %v816 = vunpack.c.l.b16 %v776
      %v817 = vunpack.c.l.b16 %v777
      %v818 = vunpack.c.l.b16 %v778
      %v819 = vunpack.c.l.b16 %v779
      %v820 = vunpack.c.l.b16 %v780
      %v821 = vunpack.c.l.b16 %v781
      %v822 = vunpack.c.l.b16 %v782
      %v823 = vunpack.c.l.b16 %v783
      %v824 = vunpack.c.l.b16 %v784
      %v825 = vunpack.c.l.b16 %v785
      %v826 = vpack.c.b16 %v811, %v810
      %v827 = vpack.c.b16 %v813, %v812
      %v828 = vpack.c.b16 %v815, %v814
      %v829 = vpack.c.b16 %v817, %v816
      %v830 = vpack.c.b16 %v819, %v818
      %v831 = vpack.c.b16 %v821, %v820
      %v832 = vpack.c.b16 %v823, %v822
      %v833 = vpack.c.b16 %v825, %v824
      %842 = vmatprep.subr.bf16.mxu0 0
      %843 = vmatpush1.bf16.msra.mxu0 %v826
      %844 = vmatprep.subr.bf16.mxu0 0
      %845 = vmatpush1.bf16.msra.mxu0 %v827
      %846 = vmatprep.subr.bf16.mxu0 0
      %847 = vmatpush1.bf16.msra.mxu0 %v828
      %848 = vmatprep.subr.bf16.mxu0 0
      %849 = vmatpush1.bf16.msra.mxu0 %v829
      %850 = vmatprep.subr.bf16.mxu0 0
      %851 = vmatpush1.bf16.msra.mxu0 %v830
      %852 = vmatprep.subr.bf16.mxu0 0
      %853 = vmatpush1.bf16.msra.mxu0 %v831
      %854 = vmatprep.subr.bf16.mxu0 0
      %855 = vmatpush1.bf16.msra.mxu0 %v832
      %856 = vmatprep.subr.bf16.mxu0 0
      %857 = vmatpush1.bf16.msra.mxu0 %v833
      %858 = vmatprep.subr.bf16.mxu0 0
      %859 = vmatpush1.bf16.msra.mxu0 0
      %860 = vmatprep.subr.bf16.mxu0 0
      %861 = vmatpush1.bf16.msra.mxu0 0
      %862 = vmatprep.subr.bf16.mxu0 0
      %863 = vmatpush1.bf16.msra.mxu0 0
      %864 = vmatprep.subr.bf16.mxu0 0
      %865 = vmatpush1.bf16.msra.mxu0 0
      %866 = vmatprep.subr.bf16.mxu0 0
      %867 = vmatpush1.bf16.msra.mxu0 0
      %868 = vmatprep.subr.bf16.mxu0 0
      %869 = vmatpush1.bf16.msra.mxu0 0
      %870 = vmatprep.subr.bf16.mxu0 0
      %871 = vmatpush1.bf16.msra.mxu0 0
      %872 = vmatprep.subr.bf16.mxu0 0
      %873 = vmatpush1.bf16.msra.mxu0 0
      %874 = vmatprep.mubr.bf16.mxu0 0
      %875 = vmatmul.mubr.bf16.gmra.mrb[0].mxu0 %v616
      %v876 = vpop.f32.mrb[0].mxu0
      %v877 = vadd.f32 %v792, %v876
      %v878 = vpop.f32.mrb[0].mxu0
      %v879 = vpop.f32.mrb[0].mxu0
      %v880 = vpop.f32.mrb[0].mxu0
      %881 = vdwg.mxu0
      %v882 = vmul.f32 %v761, %v877
      %v883 = vadd.f32 %v786, %v882
      %v884 = vtanh.pop %v883
      %v885 = vsub.f32 1.0, %v769
      %v886 = vmul.f32 %v885, %v884
      %v887 = vmul.f32 %v769, %v613
      %v888 = vadd.f32 %v886, %v887
      %v889 = vpack.c.bf16 %v888, %v888
      %v890 = vld [vmem:[%s5] sm:$0xf]
      %v891 = vld [vmem:[%s5 + $0x4] sm:$0xf]
      %v892 = vld [vmem:[%s5 + $0x8] sm:$0xf]
      %v893 = vld [vmem:[%s5 + $0xc] sm:$0xf]
      %v894 = vld [vmem:[%s5 + $0x10] sm:$0xf]
      %v895 = vld [vmem:[%s5 + $0x14] sm:$0xf]
      %v896 = vld [vmem:[%s5 + $0x18] sm:$0xf]
      %v897 = vld [vmem:[%s5 + $0x1c] sm:$0xf]
      %v898 = vld [vmem:[%s5 + $0x20] sm:$0xf]
      %v899 = vld [vmem:[%s5 + $0x24] sm:$0xf]
      %v900 = vld [vmem:[%s5 + $0x28] sm:$0xf]
      %v901 = vld [vmem:[%s5 + $0x2c] sm:$0xf]
      %v902 = vld [vmem:[%s5 + $0x30] sm:$0xf]
      %v903 = vld [vmem:[%s5 + $0x34] sm:$0xf]
      %v904 = vld [vmem:[%s5 + $0x38] sm:$0xf]
      %v905 = vld [vmem:[%s5 + $0x3c] sm:$0xf]
      %v906 = vld [vmem:[%s6] sm:$0x1]
      %v908 = vlaneseq
      %v909 = vshrl.u32 %v908, 7
      %v910 = vsub.s32 0, %v909
      %v911 = vrot.slane %v906, %v910
      %v929 = vunpack.c.l.b16 %v890
      %v930 = vunpack.c.l.b16 %v891
      %v931 = vunpack.c.l.b16 %v892
      %v932 = vunpack.c.l.b16 %v893
      %v933 = vunpack.c.l.b16 %v894
      %v934 = vunpack.c.l.b16 %v895
      %v935 = vunpack.c.l.b16 %v896
      %v936 = vunpack.c.l.b16 %v897
      %v937 = vunpack.c.l.b16 %v898
      %v938 = vunpack.c.l.b16 %v899
      %v939 = vunpack.c.l.b16 %v900
      %v940 = vunpack.c.l.b16 %v901
      %v941 = vunpack.c.l.b16 %v902
      %v942 = vunpack.c.l.b16 %v903
      %v943 = vunpack.c.l.b16 %v904
      %v944 = vunpack.c.l.b16 %v905
      %v945 = vpack.c.b16 %v930, %v929
      %v946 = vpack.c.b16 %v932, %v931
      %v947 = vpack.c.b16 %v934, %v933
      %v948 = vpack.c.b16 %v936, %v935
      %v949 = vpack.c.b16 %v938, %v937
      %v950 = vpack.c.b16 %v940, %v939
      %v951 = vpack.c.b16 %v942, %v941
      %v952 = vpack.c.b16 %v944, %v943
      %961 = vmatprep.subr.bf16.mxu0 0
      %962 = vmatpush1.bf16.msra.mxu0 %v945
      %963 = vmatprep.subr.bf16.mxu0 0
      %964 = vmatpush1.bf16.msra.mxu0 %v946
      %965 = vmatprep.subr.bf16.mxu0 0
      %966 = vmatpush1.bf16.msra.mxu0 %v947
      %967 = vmatprep.subr.bf16.mxu0 0
      %968 = vmatpush1.bf16.msra.mxu0 %v948
      %969 = vmatprep.subr.bf16.mxu0 0
      %970 = vmatpush1.bf16.msra.mxu0 %v949
      %971 = vmatprep.subr.bf16.mxu0 0
      %972 = vmatpush1.bf16.msra.mxu0 %v950
      %973 = vmatprep.subr.bf16.mxu0 0
      %974 = vmatpush1.bf16.msra.mxu0 %v951
      %975 = vmatprep.subr.bf16.mxu0 0
      %976 = vmatpush1.bf16.msra.mxu0 %v952
      %977 = vmatprep.subr.bf16.mxu0 0
      %978 = vmatpush1.bf16.msra.mxu0 0
      %979 = vmatprep.subr.bf16.mxu0 0
      %980 = vmatpush1.bf16.msra.mxu0 0
      %981 = vmatprep.subr.bf16.mxu0 0
      %982 = vmatpush1.bf16.msra.mxu0 0
      %983 = vmatprep.subr.bf16.mxu0 0
      %984 = vmatpush1.bf16.msra.mxu0 0
      %985 = vmatprep.subr.bf16.mxu0 0
      %986 = vmatpush1.bf16.msra.mxu0 0
      %987 = vmatprep.subr.bf16.mxu0 0
      %988 = vmatpush1.bf16.msra.mxu0 0
      %989 = vmatprep.subr.bf16.mxu0 0
      %990 = vmatpush1.bf16.msra.mxu0 0
      %991 = vmatprep.subr.bf16.mxu0 0
      %992 = vmatpush1.bf16.msra.mxu0 0
      %993 = vmatprep.mubr.bf16.mxu0 0
      %994 = vmatmul.mubr.bf16.gmra.mrb[0].mxu0 %v889
      %v995 = vpop.f32.mrb[0].mxu0
      %v996 = vadd.f32 %v911, %v995
      %v997 = vpop.f32.mrb[0].mxu0
      %v998 = vpop.f32.mrb[0].mxu0
      %v999 = vpop.f32.mrb[0].mxu0
      %1000 = vdwg.mxu0
      %vm1001 = vcmp.gt.f32.partialorder %v996, 0.0
      %vm1002 = vmand %vm615, %vm1001
      %v1003 = vld [vmem:[#allocation6] sm:$0xff]
      %1005 = vrot.lane.b32.xlu0 %v996, 127
      %v1006 = vpop.permute.xlu0 %1005
      %v1008 = vsel %vm1002, %v1006, %v1003
      %1009 = vst.msk [vmem:[#allocation6] sm:$0xff] %vm46, %v1008
      %v1010 = vsel %vm615, 1, 0
      %1011 = vset.pattern.permute.xlu0 0
      %1012 = vperm.xlu0 %1011, %v1010
      %v1013 = vpop.permute.xlu0 %1012
      %vm1014 = vcmp.eq.s32.totalorder %v1013, 1
      %v1015 = vsel %vm1014, %v888, %v613
      %1016 = vst [vmem:[#allocation2] sm:$0xff] %v1015
      %v1017 = vld [vmem:[#allocation5] sm:$0xff]
      %v1018 = vadd.f32 %v1017, 1.0
      %v1019 = vsel %vm615, %v1018, %v1017
      %1020 = vst.msk [vmem:[#allocation5] sm:$0xff] %vm46, %v1019
      %v1021 = vld [vmem:[#allocation4] sm:$0xff]
      %v1022 = vsel %vm1002, 1.0, %v1021
      %1023 = vst.msk [vmem:[#allocation4] sm:$0xff] %vm46, %v1022
      %v1024 = vsel %vm46, %v1022, 0.0
      %1025 = vadd.xlane.f32.xlu0 %v1024
      %v1026 = vpop.xlane.xlu0 %1025
      %v1027 = vrot.slane %v1026, 4
      %v1028 = vadd.f32 %v1026, %v1027
      %v1029 = vrot.slane %v1028, 2
      %v1030 = vadd.f32 %v1028, %v1029
      %v1031 = vrot.slane %v1030, 1
      %v1032 = vadd.f32 %v1030, %v1031
      %s1033 = vtos %v1032
      %p1034 = scmp.gt.f32.partialorder %s1033, 7.5
      %s1035 = scalar_select %p1034, 1, 0
      %1036 = sst [smem:[%s50]] %s1035
    $region41: #{tpu_custom_call.1} parent=1 // pred_fallthru
      _
    %s1037 = sld [smem:[#allocation7]]
    %p1038 = scmp.eq.s32.totalorder %s1037, 0
    // Predicated region
    $region42: #{tpu_custom_call.1} parent=1 // pred_check
      %p1039 = pneg %p1038
    $region43: #{tpu_custom_call.1} parent=1 // pred_check_branch
      %1041 = sbr.rel (%p1039) target = $region45
    $region44: #{tpu_custom_call.1} parent=1 // pred_region
      %v1042 = vld [vmem:[#allocation2] sm:$0xff]
      %v1043 = vld [vmem:[#allocation4] sm:$0xff]
      %vm1044 = vcmp.lt.f32.partialorder %v1043, 0.5
      %v1045 = vpack.c.bf16 %v1042, %v1042
      %v1046 = vld [vmem:[#allocation8] sm:$0xff]
      %v1047 = vld [vmem:[#allocation8 + $0xc] sm:$0xff]
      %v1048 = vld [vmem:[#allocation8 + $0x18] sm:$0xff]
      %v1049 = vld [vmem:[#allocation8 + $0x24] sm:$0xff]
      %v1050 = vld [vmem:[#allocation8 + $0x30] sm:$0xff]
      %v1051 = vld [vmem:[#allocation8 + $0x3c] sm:$0xff]
      %v1052 = vld [vmem:[#allocation8 + $0x48] sm:$0xff]
      %v1053 = vld [vmem:[#allocation8 + $0x54] sm:$0xff]
      %v1054 = vld [vmem:[#allocation8 + $0x60] sm:$0xff]
      %v1055 = vld [vmem:[#allocation8 + $0x6c] sm:$0xff]
      %v1056 = vld [vmem:[#allocation8 + $0x78] sm:$0xff]
      %v1057 = vld [vmem:[#allocation8 + $0x84] sm:$0xff]
      %v1058 = vld [vmem:[#allocation8 + $0x90] sm:$0xff]
      %v1059 = vld [vmem:[#allocation8 + $0x9c] sm:$0xff]
      %v1060 = vld [vmem:[#allocation8 + $0xa8] sm:$0xff]
      %v1061 = vld [vmem:[#allocation8 + $0xb4] sm:$0xff]
      %v1078 = vunpack.c.l.b16 %v1046
      %v1079 = vunpack.c.h.b16 %v1046
      %v1080 = vunpack.c.l.b16 %v1047
      %v1081 = vunpack.c.h.b16 %v1047
      %v1082 = vunpack.c.l.b16 %v1048
      %v1083 = vunpack.c.h.b16 %v1048
      %v1084 = vunpack.c.l.b16 %v1049
      %v1085 = vunpack.c.h.b16 %v1049
      %v1086 = vunpack.c.l.b16 %v1050
      %v1087 = vunpack.c.h.b16 %v1050
      %v1088 = vunpack.c.l.b16 %v1051
      %v1089 = vunpack.c.h.b16 %v1051
      %v1090 = vunpack.c.l.b16 %v1052
      %v1091 = vunpack.c.h.b16 %v1052
      %v1092 = vunpack.c.l.b16 %v1053
      %v1093 = vunpack.c.h.b16 %v1053
      %v1094 = vunpack.c.l.b16 %v1054
      %v1095 = vunpack.c.h.b16 %v1054
      %v1096 = vunpack.c.l.b16 %v1055
      %v1097 = vunpack.c.h.b16 %v1055
      %v1098 = vunpack.c.l.b16 %v1056
      %v1099 = vunpack.c.h.b16 %v1056
      %v1100 = vunpack.c.l.b16 %v1057
      %v1101 = vunpack.c.h.b16 %v1057
      %v1102 = vunpack.c.l.b16 %v1058
      %v1103 = vunpack.c.h.b16 %v1058
      %v1104 = vunpack.c.l.b16 %v1059
      %v1105 = vunpack.c.h.b16 %v1059
      %v1106 = vunpack.c.l.b16 %v1060
      %v1107 = vunpack.c.h.b16 %v1060
      %v1108 = vunpack.c.l.b16 %v1061
      %v1109 = vunpack.c.h.b16 %v1061
      %v1110 = vpack.c.b16 %v1080, %v1078
      %v1111 = vpack.c.b16 %v1081, %v1079
      %v1112 = vpack.c.b16 %v1084, %v1082
      %v1113 = vpack.c.b16 %v1085, %v1083
      %v1114 = vpack.c.b16 %v1088, %v1086
      %v1115 = vpack.c.b16 %v1089, %v1087
      %v1116 = vpack.c.b16 %v1092, %v1090
      %v1117 = vpack.c.b16 %v1093, %v1091
      %v1118 = vpack.c.b16 %v1096, %v1094
      %v1119 = vpack.c.b16 %v1097, %v1095
      %v1120 = vpack.c.b16 %v1100, %v1098
      %v1121 = vpack.c.b16 %v1101, %v1099
      %v1122 = vpack.c.b16 %v1104, %v1102
      %v1123 = vpack.c.b16 %v1105, %v1103
      %v1124 = vpack.c.b16 %v1108, %v1106
      %v1125 = vpack.c.b16 %v1109, %v1107
      %1142 = vmatprep.subr.bf16.mxu0 %v1111
      %1143 = vmatpush1.bf16.msra.mxu0 %v1110
      %1144 = vmatprep.subr.bf16.mxu0 %v1113
      %1145 = vmatpush1.bf16.msra.mxu0 %v1112
      %1146 = vmatprep.subr.bf16.mxu0 %v1115
      %1147 = vmatpush1.bf16.msra.mxu0 %v1114
      %1148 = vmatprep.subr.bf16.mxu0 %v1117
      %1149 = vmatpush1.bf16.msra.mxu0 %v1116
      %1150 = vmatprep.subr.bf16.mxu0 %v1119
      %1151 = vmatpush1.bf16.msra.mxu0 %v1118
      %1152 = vmatprep.subr.bf16.mxu0 %v1121
      %1153 = vmatpush1.bf16.msra.mxu0 %v1120
      %1154 = vmatprep.subr.bf16.mxu0 %v1123
      %1155 = vmatpush1.bf16.msra.mxu0 %v1122
      %1156 = vmatprep.subr.bf16.mxu0 %v1125
      %1157 = vmatpush1.bf16.msra.mxu0 %v1124
      %1158 = vmatprep.subr.bf16.mxu0 0
      %1159 = vmatpush1.bf16.msra.mxu0 0
      %1160 = vmatprep.subr.bf16.mxu0 0
      %1161 = vmatpush1.bf16.msra.mxu0 0
      %1162 = vmatprep.subr.bf16.mxu0 0
      %1163 = vmatpush1.bf16.msra.mxu0 0
      %1164 = vmatprep.subr.bf16.mxu0 0
      %1165 = vmatpush1.bf16.msra.mxu0 0
      %1166 = vmatprep.subr.bf16.mxu0 0
      %1167 = vmatpush1.bf16.msra.mxu0 0
      %1168 = vmatprep.subr.bf16.mxu0 0
      %1169 = vmatpush1.bf16.msra.mxu0 0
      %1170 = vmatprep.subr.bf16.mxu0 0
      %1171 = vmatpush1.bf16.msra.mxu0 0
      %1172 = vmatprep.subr.bf16.mxu0 0
      %1173 = vmatpush1.bf16.msra.mxu0 0
      %1174 = vmatprep.mubr.bf16.mxu0 0
      %1175 = vmatmul.mubr.bf16.gmra.mrb[0].mxu0 %v1045
      %v1176 = vpop.f32.mrb[0].mxu0
      %v1177 = vadd.f32 0.0, %v1176
      %v1178 = vpop.f32.mrb[0].mxu0
      %v1179 = vadd.f32 0.0, %v1178
      %v1180 = vpop.f32.mrb[0].mxu0
      %v1181 = vpop.f32.mrb[0].mxu0
      %1182 = vdwg.mxu0
      %v1183 = vld [vmem:[#allocation3] sm:$0xff]
      %v1184 = vadd.f32 %v1183, %v1177
      %v1185 = vxor.u32 %v1184, 2147483648
      %v1186 = vmul.f32 %v1185, 1.442695
      %v1187 = vpow.pop %v1186
      %v1188 = vadd.f32 %v1187, 1.0
      %v1189 = vrcp.pop %v1188
      %v1190 = vmul.f32 1.0, %v1189
      %v1191 = vld [vmem:[#allocation3 + $0x8] sm:$0xff]
      %v1192 = vadd.f32 %v1191, %v1179
      %v1193 = vxor.u32 %v1192, 2147483648
      %v1194 = vmul.f32 %v1193, 1.442695
      %v1195 = vpow.pop %v1194
      %v1196 = vadd.f32 %v1195, 1.0
      %v1197 = vrcp.pop %v1196
      %v1198 = vmul.f32 1.0, %v1197
      %v1199 = vld [vmem:[#allocation8 + $0x8] sm:$0xf]
      %v1200 = vld [vmem:[#allocation8 + $0x14] sm:$0xf]
      %v1201 = vld [vmem:[#allocation8 + $0x20] sm:$0xf]
      %v1202 = vld [vmem:[#allocation8 + $0x2c] sm:$0xf]
      %v1203 = vld [vmem:[#allocation8 + $0x38] sm:$0xf]
      %v1204 = vld [vmem:[#allocation8 + $0x44] sm:$0xf]
      %v1205 = vld [vmem:[#allocation8 + $0x50] sm:$0xf]
      %v1206 = vld [vmem:[#allocation8 + $0x5c] sm:$0xf]
      %v1207 = vld [vmem:[#allocation8 + $0x68] sm:$0xf]
      %v1208 = vld [vmem:[#allocation8 + $0x74] sm:$0xf]
      %v1209 = vld [vmem:[#allocation8 + $0x80] sm:$0xf]
      %v1210 = vld [vmem:[#allocation8 + $0x8c] sm:$0xf]
      %v1211 = vld [vmem:[#allocation8 + $0x98] sm:$0xf]
      %v1212 = vld [vmem:[#allocation8 + $0xa4] sm:$0xf]
      %v1213 = vld [vmem:[#allocation8 + $0xb0] sm:$0xf]
      %v1214 = vld [vmem:[#allocation8 + $0xbc] sm:$0xf]
      %v1215 = vld [vmem:[#allocation3 + $0x10] sm:$0xff]
      %v1216 = vld [vmem:[%s4] sm:$0x1]
      %v1218 = vlaneseq
      %v1219 = vshrl.u32 %v1218, 7
      %v1220 = vsub.s32 0, %v1219
      %v1221 = vrot.slane %v1216, %v1220
      %v1239 = vunpack.c.l.b16 %v1199
      %v1240 = vunpack.c.l.b16 %v1200
      %v1241 = vunpack.c.l.b16 %v1201
      %v1242 = vunpack.c.l.b16 %v1202
      %v1243 = vunpack.c.l.b16 %v1203
      %v1244 = vunpack.c.l.b16 %v1204
      %v1245 = vunpack.c.l.b16 %v1205
      %v1246 = vunpack.c.l.b16 %v1206
      %v1247 = vunpack.c.l.b16 %v1207
      %v1248 = vunpack.c.l.b16 %v1208
      %v1249 = vunpack.c.l.b16 %v1209
      %v1250 = vunpack.c.l.b16 %v1210
      %v1251 = vunpack.c.l.b16 %v1211
      %v1252 = vunpack.c.l.b16 %v1212
      %v1253 = vunpack.c.l.b16 %v1213
      %v1254 = vunpack.c.l.b16 %v1214
      %v1255 = vpack.c.b16 %v1240, %v1239
      %v1256 = vpack.c.b16 %v1242, %v1241
      %v1257 = vpack.c.b16 %v1244, %v1243
      %v1258 = vpack.c.b16 %v1246, %v1245
      %v1259 = vpack.c.b16 %v1248, %v1247
      %v1260 = vpack.c.b16 %v1250, %v1249
      %v1261 = vpack.c.b16 %v1252, %v1251
      %v1262 = vpack.c.b16 %v1254, %v1253
      %1271 = vmatprep.subr.bf16.mxu0 0
      %1272 = vmatpush1.bf16.msra.mxu0 %v1255
      %1273 = vmatprep.subr.bf16.mxu0 0
      %1274 = vmatpush1.bf16.msra.mxu0 %v1256
      %1275 = vmatprep.subr.bf16.mxu0 0
      %1276 = vmatpush1.bf16.msra.mxu0 %v1257
      %1277 = vmatprep.subr.bf16.mxu0 0
      %1278 = vmatpush1.bf16.msra.mxu0 %v1258
      %1279 = vmatprep.subr.bf16.mxu0 0
      %1280 = vmatpush1.bf16.msra.mxu0 %v1259
      %1281 = vmatprep.subr.bf16.mxu0 0
      %1282 = vmatpush1.bf16.msra.mxu0 %v1260
      %1283 = vmatprep.subr.bf16.mxu0 0
      %1284 = vmatpush1.bf16.msra.mxu0 %v1261
      %1285 = vmatprep.subr.bf16.mxu0 0
      %1286 = vmatpush1.bf16.msra.mxu0 %v1262
      %1287 = vmatprep.subr.bf16.mxu0 0
      %1288 = vmatpush1.bf16.msra.mxu0 0
      %1289 = vmatprep.subr.bf16.mxu0 0
      %1290 = vmatpush1.bf16.msra.mxu0 0
      %1291 = vmatprep.subr.bf16.mxu0 0
      %1292 = vmatpush1.bf16.msra.mxu0 0
      %1293 = vmatprep.subr.bf16.mxu0 0
      %1294 = vmatpush1.bf16.msra.mxu0 0
      %1295 = vmatprep.subr.bf16.mxu0 0
      %1296 = vmatpush1.bf16.msra.mxu0 0
      %1297 = vmatprep.subr.bf16.mxu0 0
      %1298 = vmatpush1.bf16.msra.mxu0 0
      %1299 = vmatprep.subr.bf16.mxu0 0
      %1300 = vmatpush1.bf16.msra.mxu0 0
      %1301 = vmatprep.subr.bf16.mxu0 0
      %1302 = vmatpush1.bf16.msra.mxu0 0
      %1303 = vmatprep.mubr.bf16.mxu0 0
      %1304 = vmatmul.mubr.bf16.gmra.mrb[0].mxu0 %v1045
      %v1305 = vpop.f32.mrb[0].mxu0
      %v1306 = vadd.f32 %v1221, %v1305
      %v1307 = vpop.f32.mrb[0].mxu0
      %v1308 = vpop.f32.mrb[0].mxu0
      %v1309 = vpop.f32.mrb[0].mxu0
      %1310 = vdwg.mxu0
      %v1311 = vmul.f32 %v1190, %v1306
      %v1312 = vadd.f32 %v1215, %v1311
      %v1313 = vtanh.pop %v1312
      %v1314 = vsub.f32 1.0, %v1198
      %v1315 = vmul.f32 %v1314, %v1313
      %v1316 = vmul.f32 %v1198, %v1042
      %v1317 = vadd.f32 %v1315, %v1316
      %v1318 = vpack.c.bf16 %v1317, %v1317
      %v1319 = vld [vmem:[%s5] sm:$0xf]
      %v1320 = vld [vmem:[%s5 + $0x4] sm:$0xf]
      %v1321 = vld [vmem:[%s5 + $0x8] sm:$0xf]
      %v1322 = vld [vmem:[%s5 + $0xc] sm:$0xf]
      %v1323 = vld [vmem:[%s5 + $0x10] sm:$0xf]
      %v1324 = vld [vmem:[%s5 + $0x14] sm:$0xf]
      %v1325 = vld [vmem:[%s5 + $0x18] sm:$0xf]
      %v1326 = vld [vmem:[%s5 + $0x1c] sm:$0xf]
      %v1327 = vld [vmem:[%s5 + $0x20] sm:$0xf]
      %v1328 = vld [vmem:[%s5 + $0x24] sm:$0xf]
      %v1329 = vld [vmem:[%s5 + $0x28] sm:$0xf]
      %v1330 = vld [vmem:[%s5 + $0x2c] sm:$0xf]
      %v1331 = vld [vmem:[%s5 + $0x30] sm:$0xf]
      %v1332 = vld [vmem:[%s5 + $0x34] sm:$0xf]
      %v1333 = vld [vmem:[%s5 + $0x38] sm:$0xf]
      %v1334 = vld [vmem:[%s5 + $0x3c] sm:$0xf]
      %v1335 = vld [vmem:[%s6] sm:$0x1]
      %v1337 = vlaneseq
      %v1338 = vshrl.u32 %v1337, 7
      %v1339 = vsub.s32 0, %v1338
      %v1340 = vrot.slane %v1335, %v1339
      %v1358 = vunpack.c.l.b16 %v1319
      %v1359 = vunpack.c.l.b16 %v1320
      %v1360 = vunpack.c.l.b16 %v1321
      %v1361 = vunpack.c.l.b16 %v1322
      %v1362 = vunpack.c.l.b16 %v1323
      %v1363 = vunpack.c.l.b16 %v1324
      %v1364 = vunpack.c.l.b16 %v1325
      %v1365 = vunpack.c.l.b16 %v1326
      %v1366 = vunpack.c.l.b16 %v1327
      %v1367 = vunpack.c.l.b16 %v1328
      %v1368 = vunpack.c.l.b16 %v1329
      %v1369 = vunpack.c.l.b16 %v1330
      %v1370 = vunpack.c.l.b16 %v1331
      %v1371 = vunpack.c.l.b16 %v1332
      %v1372 = vunpack.c.l.b16 %v1333
      %v1373 = vunpack.c.l.b16 %v1334
      %v1374 = vpack.c.b16 %v1359, %v1358
      %v1375 = vpack.c.b16 %v1361, %v1360
      %v1376 = vpack.c.b16 %v1363, %v1362
      %v1377 = vpack.c.b16 %v1365, %v1364
      %v1378 = vpack.c.b16 %v1367, %v1366
      %v1379 = vpack.c.b16 %v1369, %v1368
      %v1380 = vpack.c.b16 %v1371, %v1370
      %v1381 = vpack.c.b16 %v1373, %v1372
      %1390 = vmatprep.subr.bf16.mxu0 0
      %1391 = vmatpush1.bf16.msra.mxu0 %v1374
      %1392 = vmatprep.subr.bf16.mxu0 0
      %1393 = vmatpush1.bf16.msra.mxu0 %v1375
      %1394 = vmatprep.subr.bf16.mxu0 0
      %1395 = vmatpush1.bf16.msra.mxu0 %v1376
      %1396 = vmatprep.subr.bf16.mxu0 0
      %1397 = vmatpush1.bf16.msra.mxu0 %v1377
      %1398 = vmatprep.subr.bf16.mxu0 0
      %1399 = vmatpush1.bf16.msra.mxu0 %v1378
      %1400 = vmatprep.subr.bf16.mxu0 0
      %1401 = vmatpush1.bf16.msra.mxu0 %v1379
      %1402 = vmatprep.subr.bf16.mxu0 0
      %1403 = vmatpush1.bf16.msra.mxu0 %v1380
      %1404 = vmatprep.subr.bf16.mxu0 0
      %1405 = vmatpush1.bf16.msra.mxu0 %v1381
      %1406 = vmatprep.subr.bf16.mxu0 0
      %1407 = vmatpush1.bf16.msra.mxu0 0
      %1408 = vmatprep.subr.bf16.mxu0 0
      %1409 = vmatpush1.bf16.msra.mxu0 0
      %1410 = vmatprep.subr.bf16.mxu0 0
      %1411 = vmatpush1.bf16.msra.mxu0 0
      %1412 = vmatprep.subr.bf16.mxu0 0
      %1413 = vmatpush1.bf16.msra.mxu0 0
      %1414 = vmatprep.subr.bf16.mxu0 0
      %1415 = vmatpush1.bf16.msra.mxu0 0
      %1416 = vmatprep.subr.bf16.mxu0 0
      %1417 = vmatpush1.bf16.msra.mxu0 0
      %1418 = vmatprep.subr.bf16.mxu0 0
      %1419 = vmatpush1.bf16.msra.mxu0 0
      %1420 = vmatprep.subr.bf16.mxu0 0
      %1421 = vmatpush1.bf16.msra.mxu0 0
      %1422 = vmatprep.mubr.bf16.mxu0 0
      %1423 = vmatmul.mubr.bf16.gmra.mrb[0].mxu0 %v1318
      %v1424 = vpop.f32.mrb[0].mxu0
      %v1425 = vadd.f32 %v1340, %v1424
      %v1426 = vpop.f32.mrb[0].mxu0
      %v1427 = vpop.f32.mrb[0].mxu0
      %v1428 = vpop.f32.mrb[0].mxu0
      %1429 = vdwg.mxu0
      %vm1430 = vcmp.gt.f32.partialorder %v1425, 0.0
      %vm1431 = vmand %vm1044, %vm1430
      %v1432 = vld [vmem:[#allocation6] sm:$0xff]
      %1434 = vrot.lane.b32.xlu0 %v1425, 127
      %v1435 = vpop.permute.xlu0 %1434
      %v1437 = vsel %vm1431, %v1435, %v1432
      %1438 = vst.msk [vmem:[#allocation6] sm:$0xff] %vm46, %v1437
      %v1439 = vsel %vm1044, 1, 0
      %1440 = vset.pattern.permute.xlu0 0
      %1441 = vperm.xlu0 %1440, %v1439
      %v1442 = vpop.permute.xlu0 %1441
      %vm1443 = vcmp.eq.s32.totalorder %v1442, 1
      %v1444 = vsel %vm1443, %v1317, %v1042
      %1445 = vst [vmem:[#allocation2] sm:$0xff] %v1444
      %v1446 = vld [vmem:[#allocation5] sm:$0xff]
      %v1447 = vadd.f32 %v1446, 1.0
      %v1448 = vsel %vm1044, %v1447, %v1446
      %1449 = vst.msk [vmem:[#allocation5] sm:$0xff] %vm46, %v1448
      %v1450 = vld [vmem:[#allocation4] sm:$0xff]
      %v1451 = vsel %vm1431, 1.0, %v1450
      %1452 = vst.msk [vmem:[#allocation4] sm:$0xff] %vm46, %v1451
      %v1453 = vsel %vm46, %v1451, 0.0
      %1454 = vadd.xlane.f32.xlu0 %v1453
      %v1455 = vpop.xlane.xlu0 %1454
      %v1456 = vrot.slane %v1455, 4
      %v1457 = vadd.f32 %v1455, %v1456
      %v1458 = vrot.slane %v1457, 2
      %v1459 = vadd.f32 %v1457, %v1458
      %v1460 = vrot.slane %v1459, 1
      %v1461 = vadd.f32 %v1459, %v1460
      %s1462 = vtos %v1461
      %p1463 = scmp.gt.f32.partialorder %s1462, 7.5
      %s1464 = scalar_select %p1463, 1, 0
      %1465 = sst [smem:[%s50]] %s1464
    $region45: #{tpu_custom_call.1} parent=1 // pred_fallthru
      _
    %s1466 = sld [smem:[#allocation7]]
    %p1467 = scmp.eq.s32.totalorder %s1466, 0
    // Predicated region
    $region46: #{tpu_custom_call.1} parent=1 // pred_check
      %p1468 = pneg %p1467
    $region47: #{tpu_custom_call.1} parent=1 // pred_check_branch
      %1470 = sbr.rel (%p1468) target = $region49
    $region48: #{tpu_custom_call.1} parent=1 // pred_region
      %v1471 = vld [vmem:[#allocation2] sm:$0xff]
      %v1472 = vld [vmem:[#allocation4] sm:$0xff]
      %vm1473 = vcmp.lt.f32.partialorder %v1472, 0.5
      %v1474 = vpack.c.bf16 %v1471, %v1471
      %v1475 = vld [vmem:[#allocation8] sm:$0xff]
      %v1476 = vld [vmem:[#allocation8 + $0xc] sm:$0xff]
      %v1477 = vld [vmem:[#allocation8 + $0x18] sm:$0xff]
      %v1478 = vld [vmem:[#allocation8 + $0x24] sm:$0xff]
      %v1479 = vld [vmem:[#allocation8 + $0x30] sm:$0xff]
      %v1480 = vld [vmem:[#allocation8 + $0x3c] sm:$0xff]
      %v1481 = vld [vmem:[#allocation8 + $0x48] sm:$0xff]
      %v1482 = vld [vmem:[#allocation8 + $0x54] sm:$0xff]
      %v1483 = vld [vmem:[#allocation8 + $0x60] sm:$0xff]
      %v1484 = vld [vmem:[#allocation8 + $0x6c] sm:$0xff]
      %v1485 = vld [vmem:[#allocation8 + $0x78] sm:$0xff]
      %v1486 = vld [vmem:[#allocation8 + $0x84] sm:$0xff]
      %v1487 = vld [vmem:[#allocation8 + $0x90] sm:$0xff]
      %v1488 = vld [vmem:[#allocation8 + $0x9c] sm:$0xff]
      %v1489 = vld [vmem:[#allocation8 + $0xa8] sm:$0xff]
      %v1490 = vld [vmem:[#allocation8 + $0xb4] sm:$0xff]
      %v1507 = vunpack.c.l.b16 %v1475
      %v1508 = vunpack.c.h.b16 %v1475
      %v1509 = vunpack.c.l.b16 %v1476
      %v1510 = vunpack.c.h.b16 %v1476
      %v1511 = vunpack.c.l.b16 %v1477
      %v1512 = vunpack.c.h.b16 %v1477
      %v1513 = vunpack.c.l.b16 %v1478
      %v1514 = vunpack.c.h.b16 %v1478
      %v1515 = vunpack.c.l.b16 %v1479
      %v1516 = vunpack.c.h.b16 %v1479
      %v1517 = vunpack.c.l.b16 %v1480
      %v1518 = vunpack.c.h.b16 %v1480
      %v1519 = vunpack.c.l.b16 %v1481
      %v1520 = vunpack.c.h.b16 %v1481
      %v1521 = vunpack.c.l.b16 %v1482
      %v1522 = vunpack.c.h.b16 %v1482
      %v1523 = vunpack.c.l.b16 %v1483
      %v1524 = vunpack.c.h.b16 %v1483
      %v1525 = vunpack.c.l.b16 %v1484
      %v1526 = vunpack.c.h.b16 %v1484
      %v1527 = vunpack.c.l.b16 %v1485
      %v1528 = vunpack.c.h.b16 %v1485
      %v1529 = vunpack.c.l.b16 %v1486
      %v1530 = vunpack.c.h.b16 %v1486
      %v1531 = vunpack.c.l.b16 %v1487
      %v1532 = vunpack.c.h.b16 %v1487
      %v1533 = vunpack.c.l.b16 %v1488
      %v1534 = vunpack.c.h.b16 %v1488
      %v1535 = vunpack.c.l.b16 %v1489
      %v1536 = vunpack.c.h.b16 %v1489
      %v1537 = vunpack.c.l.b16 %v1490
      %v1538 = vunpack.c.h.b16 %v1490
      %v1539 = vpack.c.b16 %v1509, %v1507
      %v1540 = vpack.c.b16 %v1510, %v1508
      %v1541 = vpack.c.b16 %v1513, %v1511
      %v1542 = vpack.c.b16 %v1514, %v1512
      %v1543 = vpack.c.b16 %v1517, %v1515
      %v1544 = vpack.c.b16 %v1518, %v1516
      %v1545 = vpack.c.b16 %v1521, %v1519
      %v1546 = vpack.c.b16 %v1522, %v1520
      %v1547 = vpack.c.b16 %v1525, %v1523
      %v1548 = vpack.c.b16 %v1526, %v1524
      %v1549 = vpack.c.b16 %v1529, %v1527
      %v1550 = vpack.c.b16 %v1530, %v1528
      %v1551 = vpack.c.b16 %v1533, %v1531
      %v1552 = vpack.c.b16 %v1534, %v1532
      %v1553 = vpack.c.b16 %v1537, %v1535
      %v1554 = vpack.c.b16 %v1538, %v1536
      %1571 = vmatprep.subr.bf16.mxu0 %v1540
      %1572 = vmatpush1.bf16.msra.mxu0 %v1539
      %1573 = vmatprep.subr.bf16.mxu0 %v1542
      %1574 = vmatpush1.bf16.msra.mxu0 %v1541
      %1575 = vmatprep.subr.bf16.mxu0 %v1544
      %1576 = vmatpush1.bf16.msra.mxu0 %v1543
      %1577 = vmatprep.subr.bf16.mxu0 %v1546
      %1578 = vmatpush1.bf16.msra.mxu0 %v1545
      %1579 = vmatprep.subr.bf16.mxu0 %v1548
      %1580 = vmatpush1.bf16.msra.mxu0 %v1547
      %1581 = vmatprep.subr.bf16.mxu0 %v1550
      %1582 = vmatpush1.bf16.msra.mxu0 %v1549
      %1583 = vmatprep.subr.bf16.mxu0 %v1552
      %1584 = vmatpush1.bf16.msra.mxu0 %v1551
      %1585 = vmatprep.subr.bf16.mxu0 %v1554
      %1586 = vmatpush1.bf16.msra.mxu0 %v1553
      %1587 = vmatprep.subr.bf16.mxu0 0
      %1588 = vmatpush1.bf16.msra.mxu0 0
      %1589 = vmatprep.subr.bf16.mxu0 0
      %1590 = vmatpush1.bf16.msra.mxu0 0
      %1591 = vmatprep.subr.bf16.mxu0 0
      %1592 = vmatpush1.bf16.msra.mxu0 0
      %1593 = vmatprep.subr.bf16.mxu0 0
      %1594 = vmatpush1.bf16.msra.mxu0 0
      %1595 = vmatprep.subr.bf16.mxu0 0
      %1596 = vmatpush1.bf16.msra.mxu0 0
      %1597 = vmatprep.subr.bf16.mxu0 0
      %1598 = vmatpush1.bf16.msra.mxu0 0
      %1599 = vmatprep.subr.bf16.mxu0 0
      %1600 = vmatpush1.bf16.msra.mxu0 0
      %1601 = vmatprep.subr.bf16.mxu0 0
      %1602 = vmatpush1.bf16.msra.mxu0 0
      %1603 = vmatprep.mubr.bf16.mxu0 0
      %1604 = vmatmul.mubr.bf16.gmra.mrb[0].mxu0 %v1474
      %v1605 = vpop.f32.mrb[0].mxu0
      %v1606 = vadd.f32 0.0, %v1605
      %v1607 = vpop.f32.mrb[0].mxu0
      %v1608 = vadd.f32 0.0, %v1607
      %v1609 = vpop.f32.mrb[0].mxu0
      %v1610 = vpop.f32.mrb[0].mxu0
      %1611 = vdwg.mxu0
      %v1612 = vld [vmem:[#allocation3] sm:$0xff]
      %v1613 = vadd.f32 %v1612, %v1606
      %v1614 = vxor.u32 %v1613, 2147483648
      %v1615 = vmul.f32 %v1614, 1.442695
      %v1616 = vpow.pop %v1615
      %v1617 = vadd.f32 %v1616, 1.0
      %v1618 = vrcp.pop %v1617
      %v1619 = vmul.f32 1.0, %v1618
      %v1620 = vld [vmem:[#allocation3 + $0x8] sm:$0xff]
      %v1621 = vadd.f32 %v1620, %v1608
      %v1622 = vxor.u32 %v1621, 2147483648
      %v1623 = vmul.f32 %v1622, 1.442695
      %v1624 = vpow.pop %v1623
      %v1625 = vadd.f32 %v1624, 1.0
      %v1626 = vrcp.pop %v1625
      %v1627 = vmul.f32 1.0, %v1626
      %v1628 = vld [vmem:[#allocation8 + $0x8] sm:$0xf]
      %v1629 = vld [vmem:[#allocation8 + $0x14] sm:$0xf]
      %v1630 = vld [vmem:[#allocation8 + $0x20] sm:$0xf]
      %v1631 = vld [vmem:[#allocation8 + $0x2c] sm:$0xf]
      %v1632 = vld [vmem:[#allocation8 + $0x38] sm:$0xf]
      %v1633 = vld [vmem:[#allocation8 + $0x44] sm:$0xf]
      %v1634 = vld [vmem:[#allocation8 + $0x50] sm:$0xf]
      %v1635 = vld [vmem:[#allocation8 + $0x5c] sm:$0xf]
      %v1636 = vld [vmem:[#allocation8 + $0x68] sm:$0xf]
      %v1637 = vld [vmem:[#allocation8 + $0x74] sm:$0xf]
      %v1638 = vld [vmem:[#allocation8 + $0x80] sm:$0xf]
      %v1639 = vld [vmem:[#allocation8 + $0x8c] sm:$0xf]
      %v1640 = vld [vmem:[#allocation8 + $0x98] sm:$0xf]
      %v1641 = vld [vmem:[#allocation8 + $0xa4] sm:$0xf]
      %v1642 = vld [vmem:[#allocation8 + $0xb0] sm:$0xf]
      %v1643 = vld [vmem:[#allocation8 + $0xbc] sm:$0xf]
      %v1644 = vld [vmem:[#allocation3 + $0x10] sm:$0xff]
      %v1645 = vld [vmem:[%s4] sm:$0x1]
      %v1647 = vlaneseq
      %v1648 = vshrl.u32 %v1647, 7
      %v1649 = vsub.s32 0, %v1648
      %v1650 = vrot.slane %v1645, %v1649
      %v1668 = vunpack.c.l.b16 %v1628
      %v1669 = vunpack.c.l.b16 %v1629
      %v1670 = vunpack.c.l.b16 %v1630
      %v1671 = vunpack.c.l.b16 %v1631
      %v1672 = vunpack.c.l.b16 %v1632
      %v1673 = vunpack.c.l.b16 %v1633
      %v1674 = vunpack.c.l.b16 %v1634
      %v1675 = vunpack.c.l.b16 %v1635
      %v1676 = vunpack.c.l.b16 %v1636
      %v1677 = vunpack.c.l.b16 %v1637
      %v1678 = vunpack.c.l.b16 %v1638
      %v1679 = vunpack.c.l.b16 %v1639
      %v1680 = vunpack.c.l.b16 %v1640
      %v1681 = vunpack.c.l.b16 %v1641
      %v1682 = vunpack.c.l.b16 %v1642
      %v1683 = vunpack.c.l.b16 %v1643
      %v1684 = vpack.c.b16 %v1669, %v1668
      %v1685 = vpack.c.b16 %v1671, %v1670
      %v1686 = vpack.c.b16 %v1673, %v1672
      %v1687 = vpack.c.b16 %v1675, %v1674
      %v1688 = vpack.c.b16 %v1677, %v1676
      %v1689 = vpack.c.b16 %v1679, %v1678
      %v1690 = vpack.c.b16 %v1681, %v1680
      %v1691 = vpack.c.b16 %v1683, %v1682
      %1700 = vmatprep.subr.bf16.mxu0 0
      %1701 = vmatpush1.bf16.msra.mxu0 %v1684
      %1702 = vmatprep.subr.bf16.mxu0 0
      %1703 = vmatpush1.bf16.msra.mxu0 %v1685
      %1704 = vmatprep.subr.bf16.mxu0 0
      %1705 = vmatpush1.bf16.msra.mxu0 %v1686
      %1706 = vmatprep.subr.bf16.mxu0 0
      %1707 = vmatpush1.bf16.msra.mxu0 %v1687
      %1708 = vmatprep.subr.bf16.mxu0 0
      %1709 = vmatpush1.bf16.msra.mxu0 %v1688
      %1710 = vmatprep.subr.bf16.mxu0 0
      %1711 = vmatpush1.bf16.msra.mxu0 %v1689
      %1712 = vmatprep.subr.bf16.mxu0 0
      %1713 = vmatpush1.bf16.msra.mxu0 %v1690
      %1714 = vmatprep.subr.bf16.mxu0 0
      %1715 = vmatpush1.bf16.msra.mxu0 %v1691
      %1716 = vmatprep.subr.bf16.mxu0 0
      %1717 = vmatpush1.bf16.msra.mxu0 0
      %1718 = vmatprep.subr.bf16.mxu0 0
      %1719 = vmatpush1.bf16.msra.mxu0 0
      %1720 = vmatprep.subr.bf16.mxu0 0
      %1721 = vmatpush1.bf16.msra.mxu0 0
      %1722 = vmatprep.subr.bf16.mxu0 0
      %1723 = vmatpush1.bf16.msra.mxu0 0
      %1724 = vmatprep.subr.bf16.mxu0 0
      %1725 = vmatpush1.bf16.msra.mxu0 0
      %1726 = vmatprep.subr.bf16.mxu0 0
      %1727 = vmatpush1.bf16.msra.mxu0 0
      %1728 = vmatprep.subr.bf16.mxu0 0
      %1729 = vmatpush1.bf16.msra.mxu0 0
      %1730 = vmatprep.subr.bf16.mxu0 0
      %1731 = vmatpush1.bf16.msra.mxu0 0
      %1732 = vmatprep.mubr.bf16.mxu0 0
      %1733 = vmatmul.mubr.bf16.gmra.mrb[0].mxu0 %v1474
      %v1734 = vpop.f32.mrb[0].mxu0
      %v1735 = vadd.f32 %v1650, %v1734
      %v1736 = vpop.f32.mrb[0].mxu0
      %v1737 = vpop.f32.mrb[0].mxu0
      %v1738 = vpop.f32.mrb[0].mxu0
      %1739 = vdwg.mxu0
      %v1740 = vmul.f32 %v1619, %v1735
      %v1741 = vadd.f32 %v1644, %v1740
      %v1742 = vtanh.pop %v1741
      %v1743 = vsub.f32 1.0, %v1627
      %v1744 = vmul.f32 %v1743, %v1742
      %v1745 = vmul.f32 %v1627, %v1471
      %v1746 = vadd.f32 %v1744, %v1745
      %v1747 = vpack.c.bf16 %v1746, %v1746
      %v1748 = vld [vmem:[%s5] sm:$0xf]
      %v1749 = vld [vmem:[%s5 + $0x4] sm:$0xf]
      %v1750 = vld [vmem:[%s5 + $0x8] sm:$0xf]
      %v1751 = vld [vmem:[%s5 + $0xc] sm:$0xf]
      %v1752 = vld [vmem:[%s5 + $0x10] sm:$0xf]
      %v1753 = vld [vmem:[%s5 + $0x14] sm:$0xf]
      %v1754 = vld [vmem:[%s5 + $0x18] sm:$0xf]
      %v1755 = vld [vmem:[%s5 + $0x1c] sm:$0xf]
      %v1756 = vld [vmem:[%s5 + $0x20] sm:$0xf]
      %v1757 = vld [vmem:[%s5 + $0x24] sm:$0xf]
      %v1758 = vld [vmem:[%s5 + $0x28] sm:$0xf]
      %v1759 = vld [vmem:[%s5 + $0x2c] sm:$0xf]
      %v1760 = vld [vmem:[%s5 + $0x30] sm:$0xf]
      %v1761 = vld [vmem:[%s5 + $0x34] sm:$0xf]
      %v1762 = vld [vmem:[%s5 + $0x38] sm:$0xf]
      %v1763 = vld [vmem:[%s5 + $0x3c] sm:$0xf]
      %v1764 = vld [vmem:[%s6] sm:$0x1]
      %v1766 = vlaneseq
      %v1767 = vshrl.u32 %v1766, 7
      %v1768 = vsub.s32 0, %v1767
      %v1769 = vrot.slane %v1764, %v1768
      %v1787 = vunpack.c.l.b16 %v1748
      %v1788 = vunpack.c.l.b16 %v1749
      %v1789 = vunpack.c.l.b16 %v1750
      %v1790 = vunpack.c.l.b16 %v1751
      %v1791 = vunpack.c.l.b16 %v1752
      %v1792 = vunpack.c.l.b16 %v1753
      %v1793 = vunpack.c.l.b16 %v1754
      %v1794 = vunpack.c.l.b16 %v1755
      %v1795 = vunpack.c.l.b16 %v1756
      %v1796 = vunpack.c.l.b16 %v1757
      %v1797 = vunpack.c.l.b16 %v1758
      %v1798 = vunpack.c.l.b16 %v1759
      %v1799 = vunpack.c.l.b16 %v1760
      %v1800 = vunpack.c.l.b16 %v1761
      %v1801 = vunpack.c.l.b16 %v1762
      %v1802 = vunpack.c.l.b16 %v1763
      %v1803 = vpack.c.b16 %v1788, %v1787
      %v1804 = vpack.c.b16 %v1790, %v1789
      %v1805 = vpack.c.b16 %v1792, %v1791
      %v1806 = vpack.c.b16 %v1794, %v1793
      %v1807 = vpack.c.b16 %v1796, %v1795
      %v1808 = vpack.c.b16 %v1798, %v1797
      %v1809 = vpack.c.b16 %v1800, %v1799
      %v1810 = vpack.c.b16 %v1802, %v1801
      %1819 = vmatprep.subr.bf16.mxu0 0
      %1820 = vmatpush1.bf16.msra.mxu0 %v1803
      %1821 = vmatprep.subr.bf16.mxu0 0
      %1822 = vmatpush1.bf16.msra.mxu0 %v1804
      %1823 = vmatprep.subr.bf16.mxu0 0
      %1824 = vmatpush1.bf16.msra.mxu0 %v1805
      %1825 = vmatprep.subr.bf16.mxu0 0
      %1826 = vmatpush1.bf16.msra.mxu0 %v1806
      %1827 = vmatprep.subr.bf16.mxu0 0
      %1828 = vmatpush1.bf16.msra.mxu0 %v1807
      %1829 = vmatprep.subr.bf16.mxu0 0
      %1830 = vmatpush1.bf16.msra.mxu0 %v1808
      %1831 = vmatprep.subr.bf16.mxu0 0
      %1832 = vmatpush1.bf16.msra.mxu0 %v1809
      %1833 = vmatprep.subr.bf16.mxu0 0
      %1834 = vmatpush1.bf16.msra.mxu0 %v1810
      %1835 = vmatprep.subr.bf16.mxu0 0
      %1836 = vmatpush1.bf16.msra.mxu0 0
      %1837 = vmatprep.subr.bf16.mxu0 0
      %1838 = vmatpush1.bf16.msra.mxu0 0
      %1839 = vmatprep.subr.bf16.mxu0 0
      %1840 = vmatpush1.bf16.msra.mxu0 0
      %1841 = vmatprep.subr.bf16.mxu0 0
      %1842 = vmatpush1.bf16.msra.mxu0 0
      %1843 = vmatprep.subr.bf16.mxu0 0
      %1844 = vmatpush1.bf16.msra.mxu0 0
      %1845 = vmatprep.subr.bf16.mxu0 0
      %1846 = vmatpush1.bf16.msra.mxu0 0
      %1847 = vmatprep.subr.bf16.mxu0 0
      %1848 = vmatpush1.bf16.msra.mxu0 0
      %1849 = vmatprep.subr.bf16.mxu0 0
      %1850 = vmatpush1.bf16.msra.mxu0 0
      %1851 = vmatprep.mubr.bf16.mxu0 0
      %1852 = vmatmul.mubr.bf16.gmra.mrb[0].mxu0 %v1747
      %v1853 = vpop.f32.mrb[0].mxu0
      %v1854 = vadd.f32 %v1769, %v1853
      %v1855 = vpop.f32.mrb[0].mxu0
      %v1856 = vpop.f32.mrb[0].mxu0
      %v1857 = vpop.f32.mrb[0].mxu0
      %1858 = vdwg.mxu0
      %vm1859 = vcmp.gt.f32.partialorder %v1854, 0.0
      %vm1860 = vmand %vm1473, %vm1859
      %v1861 = vld [vmem:[#allocation6] sm:$0xff]
      %1863 = vrot.lane.b32.xlu0 %v1854, 127
      %v1864 = vpop.permute.xlu0 %1863
      %v1866 = vsel %vm1860, %v1864, %v1861
      %1867 = vst.msk [vmem:[#allocation6] sm:$0xff] %vm46, %v1866
      %v1868 = vsel %vm1473, 1, 0
      %1869 = vset.pattern.permute.xlu0 0
      %1870 = vperm.xlu0 %1869, %v1868
      %v1871 = vpop.permute.xlu0 %1870
      %vm1872 = vcmp.eq.s32.totalorder %v1871, 1
      %v1873 = vsel %vm1872, %v1746, %v1471
      %1874 = vst [vmem:[#allocation2] sm:$0xff] %v1873
      %v1875 = vld [vmem:[#allocation5] sm:$0xff]
      %v1876 = vadd.f32 %v1875, 1.0
      %v1877 = vsel %vm1473, %v1876, %v1875
      %1878 = vst.msk [vmem:[#allocation5] sm:$0xff] %vm46, %v1877
      %v1879 = vld [vmem:[#allocation4] sm:$0xff]
      %v1880 = vsel %vm1860, 1.0, %v1879
      %1881 = vst.msk [vmem:[#allocation4] sm:$0xff] %vm46, %v1880
      %v1882 = vsel %vm46, %v1880, 0.0
      %1883 = vadd.xlane.f32.xlu0 %v1882
      %v1884 = vpop.xlane.xlu0 %1883
      %v1885 = vrot.slane %v1884, 4
      %v1886 = vadd.f32 %v1884, %v1885
      %v1887 = vrot.slane %v1886, 2
      %v1888 = vadd.f32 %v1886, %v1887
      %v1889 = vrot.slane %v1888, 1
      %v1890 = vadd.f32 %v1888, %v1889
      %s1891 = vtos %v1890
      %p1892 = scmp.gt.f32.partialorder %s1891, 7.5
      %s1893 = scalar_select %p1892, 1, 0
      %1894 = sst [smem:[%s50]] %s1893
    $region49: #{tpu_custom_call.1} parent=1 // pred_fallthru
      _
    %s1895 = sld [smem:[#allocation7]]
    %p1896 = scmp.eq.s32.totalorder %s1895, 0
    // Predicated region
    $region50: #{tpu_custom_call.1} parent=1 // pred_check
      %p1897 = pneg %p1896
    $region51: #{tpu_custom_call.1} parent=1 // pred_check_branch
      %1899 = sbr.rel (%p1897) target = $region53
    $region52: #{tpu_custom_call.1} parent=1 // pred_region
      %v1900 = vld [vmem:[#allocation2] sm:$0xff]
      %v1901 = vld [vmem:[#allocation4] sm:$0xff]
      %vm1902 = vcmp.lt.f32.partialorder %v1901, 0.5
      %v1903 = vpack.c.bf16 %v1900, %v1900
      %v1904 = vld [vmem:[#allocation8] sm:$0xff]
      %v1905 = vld [vmem:[#allocation8 + $0xc] sm:$0xff]
      %v1906 = vld [vmem:[#allocation8 + $0x18] sm:$0xff]
      %v1907 = vld [vmem:[#allocation8 + $0x24] sm:$0xff]
      %v1908 = vld [vmem:[#allocation8 + $0x30] sm:$0xff]
      %v1909 = vld [vmem:[#allocation8 + $0x3c] sm:$0xff]
      %v1910 = vld [vmem:[#allocation8 + $0x48] sm:$0xff]
      %v1911 = vld [vmem:[#allocation8 + $0x54] sm:$0xff]
      %v1912 = vld [vmem:[#allocation8 + $0x60] sm:$0xff]
      %v1913 = vld [vmem:[#allocation8 + $0x6c] sm:$0xff]
      %v1914 = vld [vmem:[#allocation8 + $0x78] sm:$0xff]
      %v1915 = vld [vmem:[#allocation8 + $0x84] sm:$0xff]
      %v1916 = vld [vmem:[#allocation8 + $0x90] sm:$0xff]
      %v1917 = vld [vmem:[#allocation8 + $0x9c] sm:$0xff]
      %v1918 = vld [vmem:[#allocation8 + $0xa8] sm:$0xff]
      %v1919 = vld [vmem:[#allocation8 + $0xb4] sm:$0xff]
      %v1936 = vunpack.c.l.b16 %v1904
      %v1937 = vunpack.c.h.b16 %v1904
      %v1938 = vunpack.c.l.b16 %v1905
      %v1939 = vunpack.c.h.b16 %v1905
      %v1940 = vunpack.c.l.b16 %v1906
      %v1941 = vunpack.c.h.b16 %v1906
      %v1942 = vunpack.c.l.b16 %v1907
      %v1943 = vunpack.c.h.b16 %v1907
      %v1944 = vunpack.c.l.b16 %v1908
      %v1945 = vunpack.c.h.b16 %v1908
      %v1946 = vunpack.c.l.b16 %v1909
      %v1947 = vunpack.c.h.b16 %v1909
      %v1948 = vunpack.c.l.b16 %v1910
      %v1949 = vunpack.c.h.b16 %v1910
      %v1950 = vunpack.c.l.b16 %v1911
      %v1951 = vunpack.c.h.b16 %v1911
      %v1952 = vunpack.c.l.b16 %v1912
      %v1953 = vunpack.c.h.b16 %v1912
      %v1954 = vunpack.c.l.b16 %v1913
      %v1955 = vunpack.c.h.b16 %v1913
      %v1956 = vunpack.c.l.b16 %v1914
      %v1957 = vunpack.c.h.b16 %v1914
      %v1958 = vunpack.c.l.b16 %v1915
      %v1959 = vunpack.c.h.b16 %v1915
      %v1960 = vunpack.c.l.b16 %v1916
      %v1961 = vunpack.c.h.b16 %v1916
      %v1962 = vunpack.c.l.b16 %v1917
      %v1963 = vunpack.c.h.b16 %v1917
      %v1964 = vunpack.c.l.b16 %v1918
      %v1965 = vunpack.c.h.b16 %v1918
      %v1966 = vunpack.c.l.b16 %v1919
      %v1967 = vunpack.c.h.b16 %v1919
      %v1968 = vpack.c.b16 %v1938, %v1936
      %v1969 = vpack.c.b16 %v1939, %v1937
      %v1970 = vpack.c.b16 %v1942, %v1940
      %v1971 = vpack.c.b16 %v1943, %v1941
      %v1972 = vpack.c.b16 %v1946, %v1944
      %v1973 = vpack.c.b16 %v1947, %v1945
      %v1974 = vpack.c.b16 %v1950, %v1948
      %v1975 = vpack.c.b16 %v1951, %v1949
      %v1976 = vpack.c.b16 %v1954, %v1952
      %v1977 = vpack.c.b16 %v1955, %v1953
      %v1978 = vpack.c.b16 %v1958, %v1956
      %v1979 = vpack.c.b16 %v1959, %v1957
      %v1980 = vpack.c.b16 %v1962, %v1960
      %v1981 = vpack.c.b16 %v1963, %v1961
      %v1982 = vpack.c.b16 %v1966, %v1964
      %v1983 = vpack.c.b16 %v1967, %v1965
      %2000 = vmatprep.subr.bf16.mxu0 %v1969
      %2001 = vmatpush1.bf16.msra.mxu0 %v1968
      %2002 = vmatprep.subr.bf16.mxu0 %v1971
      %2003 = vmatpush1.bf16.msra.mxu0 %v1970
      %2004 = vmatprep.subr.bf16.mxu0 %v1973
      %2005 = vmatpush1.bf16.msra.mxu0 %v1972
      %2006 = vmatprep.subr.bf16.mxu0 %v1975
      %2007 = vmatpush1.bf16.msra.mxu0 %v1974
      %2008 = vmatprep.subr.bf16.mxu0 %v1977
      %2009 = vmatpush1.bf16.msra.mxu0 %v1976
      %2010 = vmatprep.subr.bf16.mxu0 %v1979
      %2011 = vmatpush1.bf16.msra.mxu0 %v1978
      %2012 = vmatprep.subr.bf16.mxu0 %v1981
      %2013 = vmatpush1.bf16.msra.mxu0 %v1980
      %2014 = vmatprep.subr.bf16.mxu0 %v1983
      %2015 = vmatpush1.bf16.msra.mxu0 %v1982
      %2016 = vmatprep.subr.bf16.mxu0 0
      %2017 = vmatpush1.bf16.msra.mxu0 0
      %2018 = vmatprep.subr.bf16.mxu0 0
      %2019 = vmatpush1.bf16.msra.mxu0 0
      %2020 = vmatprep.subr.bf16.mxu0 0
      %2021 = vmatpush1.bf16.msra.mxu0 0
      %2022 = vmatprep.subr.bf16.mxu0 0
      %2023 = vmatpush1.bf16.msra.mxu0 0
      %2024 = vmatprep.subr.bf16.mxu0 0
      %2025 = vmatpush1.bf16.msra.mxu0 0
      %2026 = vmatprep.subr.bf16.mxu0 0
      %2027 = vmatpush1.bf16.msra.mxu0 0
      %2028 = vmatprep.subr.bf16.mxu0 0
      %2029 = vmatpush1.bf16.msra.mxu0 0
      %2030 = vmatprep.subr.bf16.mxu0 0
      %2031 = vmatpush1.bf16.msra.mxu0 0
      %2032 = vmatprep.mubr.bf16.mxu0 0
      %2033 = vmatmul.mubr.bf16.gmra.mrb[0].mxu0 %v1903
      %v2034 = vpop.f32.mrb[0].mxu0
      %v2035 = vadd.f32 0.0, %v2034
      %v2036 = vpop.f32.mrb[0].mxu0
      %v2037 = vadd.f32 0.0, %v2036
      %v2038 = vpop.f32.mrb[0].mxu0
      %v2039 = vpop.f32.mrb[0].mxu0
      %2040 = vdwg.mxu0
      %v2041 = vld [vmem:[#allocation3] sm:$0xff]
      %v2042 = vadd.f32 %v2041, %v2035
      %v2043 = vxor.u32 %v2042, 2147483648
      %v2044 = vmul.f32 %v2043, 1.442695
      %v2045 = vpow.pop %v2044
      %v2046 = vadd.f32 %v2045, 1.0
      %v2047 = vrcp.pop %v2046
      %v2048 = vmul.f32 1.0, %v2047
      %v2049 = vld [vmem:[#allocation3 + $0x8] sm:$0xff]
      %v2050 = vadd.f32 %v2049, %v2037
      %v2051 = vxor.u32 %v2050, 2147483648
      %v2052 = vmul.f32 %v2051, 1.442695
      %v2053 = vpow.pop %v2052
      %v2054 = vadd.f32 %v2053, 1.0
      %v2055 = vrcp.pop %v2054
      %v2056 = vmul.f32 1.0, %v2055
      %v2057 = vld [vmem:[#allocation8 + $0x8] sm:$0xf]
      %v2058 = vld [vmem:[#allocation8 + $0x14] sm:$0xf]
      %v2059 = vld [vmem:[#allocation8 + $0x20] sm:$0xf]
      %v2060 = vld [vmem:[#allocation8 + $0x2c] sm:$0xf]
      %v2061 = vld [vmem:[#allocation8 + $0x38] sm:$0xf]
      %v2062 = vld [vmem:[#allocation8 + $0x44] sm:$0xf]
      %v2063 = vld [vmem:[#allocation8 + $0x50] sm:$0xf]
      %v2064 = vld [vmem:[#allocation8 + $0x5c] sm:$0xf]
      %v2065 = vld [vmem:[#allocation8 + $0x68] sm:$0xf]
      %v2066 = vld [vmem:[#allocation8 + $0x74] sm:$0xf]
      %v2067 = vld [vmem:[#allocation8 + $0x80] sm:$0xf]
      %v2068 = vld [vmem:[#allocation8 + $0x8c] sm:$0xf]
      %v2069 = vld [vmem:[#allocation8 + $0x98] sm:$0xf]
      %v2070 = vld [vmem:[#allocation8 + $0xa4] sm:$0xf]
      %v2071 = vld [vmem:[#allocation8 + $0xb0] sm:$0xf]
      %v2072 = vld [vmem:[#allocation8 + $0xbc] sm:$0xf]
      %v2073 = vld [vmem:[#allocation3 + $0x10] sm:$0xff]
      %v2074 = vld [vmem:[%s4] sm:$0x1]
      %v2076 = vlaneseq
      %v2077 = vshrl.u32 %v2076, 7
      %v2078 = vsub.s32 0, %v2077
      %v2079 = vrot.slane %v2074, %v2078
      %v2097 = vunpack.c.l.b16 %v2057
      %v2098 = vunpack.c.l.b16 %v2058
      %v2099 = vunpack.c.l.b16 %v2059
      %v2100 = vunpack.c.l.b16 %v2060
      %v2101 = vunpack.c.l.b16 %v2061
      %v2102 = vunpack.c.l.b16 %v2062
      %v2103 = vunpack.c.l.b16 %v2063
      %v2104 = vunpack.c.l.b16 %v2064
      %v2105 = vunpack.c.l.b16 %v2065
      %v2106 = vunpack.c.l.b16 %v2066
      %v2107 = vunpack.c.l.b16 %v2067
      %v2108 = vunpack.c.l.b16 %v2068
      %v2109 = vunpack.c.l.b16 %v2069
      %v2110 = vunpack.c.l.b16 %v2070
      %v2111 = vunpack.c.l.b16 %v2071
      %v2112 = vunpack.c.l.b16 %v2072
      %v2113 = vpack.c.b16 %v2098, %v2097
      %v2114 = vpack.c.b16 %v2100, %v2099
      %v2115 = vpack.c.b16 %v2102, %v2101
      %v2116 = vpack.c.b16 %v2104, %v2103
      %v2117 = vpack.c.b16 %v2106, %v2105
      %v2118 = vpack.c.b16 %v2108, %v2107
      %v2119 = vpack.c.b16 %v2110, %v2109
      %v2120 = vpack.c.b16 %v2112, %v2111
      %2129 = vmatprep.subr.bf16.mxu0 0
      %2130 = vmatpush1.bf16.msra.mxu0 %v2113
      %2131 = vmatprep.subr.bf16.mxu0 0
      %2132 = vmatpush1.bf16.msra.mxu0 %v2114
      %2133 = vmatprep.subr.bf16.mxu0 0
      %2134 = vmatpush1.bf16.msra.mxu0 %v2115
      %2135 = vmatprep.subr.bf16.mxu0 0
      %2136 = vmatpush1.bf16.msra.mxu0 %v2116
      %2137 = vmatprep.subr.bf16.mxu0 0
      %2138 = vmatpush1.bf16.msra.mxu0 %v2117
      %2139 = vmatprep.subr.bf16.mxu0 0
      %2140 = vmatpush1.bf16.msra.mxu0 %v2118
      %2141 = vmatprep.subr.bf16.mxu0 0
      %2142 = vmatpush1.bf16.msra.mxu0 %v2119
      %2143 = vmatprep.subr.bf16.mxu0 0
      %2144 = vmatpush1.bf16.msra.mxu0 %v2120
      %2145 = vmatprep.subr.bf16.mxu0 0
      %2146 = vmatpush1.bf16.msra.mxu0 0
      %2147 = vmatprep.subr.bf16.mxu0 0
      %2148 = vmatpush1.bf16.msra.mxu0 0
      %2149 = vmatprep.subr.bf16.mxu0 0
      %2150 = vmatpush1.bf16.msra.mxu0 0
      %2151 = vmatprep.subr.bf16.mxu0 0
      %2152 = vmatpush1.bf16.msra.mxu0 0
      %2153 = vmatprep.subr.bf16.mxu0 0
      %2154 = vmatpush1.bf16.msra.mxu0 0
      %2155 = vmatprep.subr.bf16.mxu0 0
      %2156 = vmatpush1.bf16.msra.mxu0 0
      %2157 = vmatprep.subr.bf16.mxu0 0
      %2158 = vmatpush1.bf16.msra.mxu0 0
      %2159 = vmatprep.subr.bf16.mxu0 0
      %2160 = vmatpush1.bf16.msra.mxu0 0
      %2161 = vmatprep.mubr.bf16.mxu0 0
      %2162 = vmatmul.mubr.bf16.gmra.mrb[0].mxu0 %v1903
      %v2163 = vpop.f32.mrb[0].mxu0
      %v2164 = vadd.f32 %v2079, %v2163
      %v2165 = vpop.f32.mrb[0].mxu0
      %v2166 = vpop.f32.mrb[0].mxu0
      %v2167 = vpop.f32.mrb[0].mxu0
      %2168 = vdwg.mxu0
      %v2169 = vmul.f32 %v2048, %v2164
      %v2170 = vadd.f32 %v2073, %v2169
      %v2171 = vtanh.pop %v2170
      %v2172 = vsub.f32 1.0, %v2056
      %v2173 = vmul.f32 %v2172, %v2171
      %v2174 = vmul.f32 %v2056, %v1900
      %v2175 = vadd.f32 %v2173, %v2174
      %v2176 = vpack.c.bf16 %v2175, %v2175
      %v2177 = vld [vmem:[%s5] sm:$0xf]
      %v2178 = vld [vmem:[%s5 + $0x4] sm:$0xf]
      %v2179 = vld [vmem:[%s5 + $0x8] sm:$0xf]
      %v2180 = vld [vmem:[%s5 + $0xc] sm:$0xf]
      %v2181 = vld [vmem:[%s5 + $0x10] sm:$0xf]
      %v2182 = vld [vmem:[%s5 + $0x14] sm:$0xf]
      %v2183 = vld [vmem:[%s5 + $0x18] sm:$0xf]
      %v2184 = vld [vmem:[%s5 + $0x1c] sm:$0xf]
      %v2185 = vld [vmem:[%s5 + $0x20] sm:$0xf]
      %v2186 = vld [vmem:[%s5 + $0x24] sm:$0xf]
      %v2187 = vld [vmem:[%s5 + $0x28] sm:$0xf]
      %v2188 = vld [vmem:[%s5 + $0x2c] sm:$0xf]
      %v2189 = vld [vmem:[%s5 + $0x30] sm:$0xf]
      %v2190 = vld [vmem:[%s5 + $0x34] sm:$0xf]
      %v2191 = vld [vmem:[%s5 + $0x38] sm:$0xf]
      %v2192 = vld [vmem:[%s5 + $0x3c] sm:$0xf]
      %v2193 = vld [vmem:[%s6] sm:$0x1]
      %v2195 = vlaneseq
      %v2196 = vshrl.u32 %v2195, 7
      %v2197 = vsub.s32 0, %v2196
      %v2198 = vrot.slane %v2193, %v2197
      %v2216 = vunpack.c.l.b16 %v2177
      %v2217 = vunpack.c.l.b16 %v2178
      %v2218 = vunpack.c.l.b16 %v2179
      %v2219 = vunpack.c.l.b16 %v2180
      %v2220 = vunpack.c.l.b16 %v2181
      %v2221 = vunpack.c.l.b16 %v2182
      %v2222 = vunpack.c.l.b16 %v2183
      %v2223 = vunpack.c.l.b16 %v2184
      %v2224 = vunpack.c.l.b16 %v2185
      %v2225 = vunpack.c.l.b16 %v2186
      %v2226 = vunpack.c.l.b16 %v2187
      %v2227 = vunpack.c.l.b16 %v2188
      %v2228 = vunpack.c.l.b16 %v2189
      %v2229 = vunpack.c.l.b16 %v2190
      %v2230 = vunpack.c.l.b16 %v2191
      %v2231 = vunpack.c.l.b16 %v2192
      %v2232 = vpack.c.b16 %v2217, %v2216
      %v2233 = vpack.c.b16 %v2219, %v2218
      %v2234 = vpack.c.b16 %v2221, %v2220
      %v2235 = vpack.c.b16 %v2223, %v2222
      %v2236 = vpack.c.b16 %v2225, %v2224
      %v2237 = vpack.c.b16 %v2227, %v2226
      %v2238 = vpack.c.b16 %v2229, %v2228
      %v2239 = vpack.c.b16 %v2231, %v2230
      %2248 = vmatprep.subr.bf16.mxu0 0
      %2249 = vmatpush1.bf16.msra.mxu0 %v2232
      %2250 = vmatprep.subr.bf16.mxu0 0
      %2251 = vmatpush1.bf16.msra.mxu0 %v2233
      %2252 = vmatprep.subr.bf16.mxu0 0
      %2253 = vmatpush1.bf16.msra.mxu0 %v2234
      %2254 = vmatprep.subr.bf16.mxu0 0
      %2255 = vmatpush1.bf16.msra.mxu0 %v2235
      %2256 = vmatprep.subr.bf16.mxu0 0
      %2257 = vmatpush1.bf16.msra.mxu0 %v2236
      %2258 = vmatprep.subr.bf16.mxu0 0
      %2259 = vmatpush1.bf16.msra.mxu0 %v2237
      %2260 = vmatprep.subr.bf16.mxu0 0
      %2261 = vmatpush1.bf16.msra.mxu0 %v2238
      %2262 = vmatprep.subr.bf16.mxu0 0
      %2263 = vmatpush1.bf16.msra.mxu0 %v2239
      %2264 = vmatprep.subr.bf16.mxu0 0
      %2265 = vmatpush1.bf16.msra.mxu0 0
      %2266 = vmatprep.subr.bf16.mxu0 0
      %2267 = vmatpush1.bf16.msra.mxu0 0
      %2268 = vmatprep.subr.bf16.mxu0 0
      %2269 = vmatpush1.bf16.msra.mxu0 0
      %2270 = vmatprep.subr.bf16.mxu0 0
      %2271 = vmatpush1.bf16.msra.mxu0 0
      %2272 = vmatprep.subr.bf16.mxu0 0
      %2273 = vmatpush1.bf16.msra.mxu0 0
      %2274 = vmatprep.subr.bf16.mxu0 0
      %2275 = vmatpush1.bf16.msra.mxu0 0
      %2276 = vmatprep.subr.bf16.mxu0 0
      %2277 = vmatpush1.bf16.msra.mxu0 0
      %2278 = vmatprep.subr.bf16.mxu0 0
      %2279 = vmatpush1.bf16.msra.mxu0 0
      %2280 = vmatprep.mubr.bf16.mxu0 0
      %2281 = vmatmul.mubr.bf16.gmra.mrb[0].mxu0 %v2176
      %v2282 = vpop.f32.mrb[0].mxu0
      %v2283 = vadd.f32 %v2198, %v2282
      %v2284 = vpop.f32.mrb[0].mxu0
      %v2285 = vpop.f32.mrb[0].mxu0
      %v2286 = vpop.f32.mrb[0].mxu0
      %2287 = vdwg.mxu0
      %vm2288 = vcmp.gt.f32.partialorder %v2283, 0.0
      %v2289 = vld [vmem:[#allocation6] sm:$0xff]
      %2291 = vrot.lane.b32.xlu0 %v2283, 127
      %v2292 = vpop.permute.xlu0 %2291
      %v2294 = vsel %vm1902, %v2292, %v2289
      %2295 = vst.msk [vmem:[#allocation6] sm:$0xff] %vm46, %v2294
      %v2296 = vsel %vm1902, 1, 0
      %2297 = vset.pattern.permute.xlu0 0
      %2298 = vperm.xlu0 %2297, %v2296
      %v2299 = vpop.permute.xlu0 %2298
      %vm2300 = vcmp.eq.s32.totalorder %v2299, 1
      %v2301 = vsel %vm2300, %v2175, %v1900
      %2302 = vst [vmem:[#allocation2] sm:$0xff] %v2301
      %v2303 = vld [vmem:[#allocation5] sm:$0xff]
      %v2304 = vadd.f32 %v2303, 1.0
      %v2305 = vsel %vm1902, %v2304, %v2303
      %2306 = vst.msk [vmem:[#allocation5] sm:$0xff] %vm46, %v2305
      %vm2307 = vmand %vm1902, %vm2288
      %v2308 = vld [vmem:[#allocation4] sm:$0xff]
      %v2309 = vsel %vm2307, 1.0, %v2308
      %2310 = vst.msk [vmem:[#allocation4] sm:$0xff] %vm46, %v2309
      %v2311 = vsel %vm46, %v2309, 0.0
      %2312 = vadd.xlane.f32.xlu0 %v2311
      %v2313 = vpop.xlane.xlu0 %2312
      %v2314 = vrot.slane %v2313, 4
      %v2315 = vadd.f32 %v2313, %v2314
      %v2316 = vrot.slane %v2315, 2
      %v2317 = vadd.f32 %v2315, %v2316
      %v2318 = vrot.slane %v2317, 1
      %v2319 = vadd.f32 %v2317, %v2318
      %s2320 = vtos %v2319
      %p2321 = scmp.gt.f32.partialorder %s2320, 7.5
      %s2322 = scalar_select %p2321, 1, 0
      %2323 = sst [smem:[%s50]] %s2322
    $region53: #{tpu_custom_call.1} parent=1 // pred_fallthru
      _
    %v2324 = vld [vmem:[#allocation6] sm:$0xff]
    %2325 = vst.msk [vmem:[%s7] sm:$0xff] %vm46, %v2324
    %v2326 = vld [vmem:[#allocation5] sm:$0xff]
    %2328 = vrot.lane.b32.xlu0 %v2326, 1
    %v2329 = vpop.permute.xlu0 %2328
    %vm2331 = vcmask 15368
    %2332 = vst.msk [vmem:[%s7] sm:$0xff] %vm2331, %v2329
    // Predicated region
    $region54: #{tpu_custom_call.1} parent=1 // pred_check
      _
    $region55: #{tpu_custom_call.1} parent=1 // pred_check_branch
      %2334 = sbr.rel (0) target = $region57
    $region56: #{tpu_custom_call.1} parent=1 // pred_region
      _
    $region57: #{tpu_custom_call.1} parent=1 // pred_fallthru
      _
    // Predicated region
    $region58: #{tpu_custom_call.1} parent=1 // pred_check
      _
    $region59: #{tpu_custom_call.1} parent=1 // pred_check_branch
      %2336 = sbr.rel (0) target = $region61
    $region60: #{tpu_custom_call.1} parent=1 // pred_region
      _
    $region61: #{tpu_custom_call.1} parent=1 // pred_fallthru
      _
    %2337 = vsyncpa [#allocation9], 1

// kernel: tpu_custom_call.1
$region0: #{tpu_custom_call.1}
  #allocation0 [shape = 'u32[]', space=smem, size = 0x4, offset = 0x4, fixed_abs, tag = 'smem constant byte address 0x4 - core index']
  #allocation1 [shape = 'u32[144,128]{1,0:T(1,128)}', space=vmem, size = 0x12000, scoped, tag = 'internal scratch']
  #allocation2 [shape = 'f32[8,128]{1,0:T(8,128)}', space=vmem, size = 0x1000, scoped, tag = 'scratch operand']
  #allocation3 [shape = 'f32[8,384]{1,0:T(8,128)}', space=vmem, size = 0x3000, scoped, tag = 'scratch operand']
  #allocation4 [shape = 'f32[8,1]{1,0:T(8,128)}', space=vmem, size = 0x1000, scoped, tag = 'scratch operand']
  #allocation5 [shape = 'f32[8,1]{1,0:T(8,128)}', space=vmem, size = 0x1000, scoped, tag = 'scratch operand']
  #allocation6 [shape = 'f32[8,1]{1,0:T(8,128)}', space=vmem, size = 0x1000, scoped, tag = 'scratch operand']
  #allocation7 [shape = 's32[1]{0:T(128)}', space=smem, size = 0x200, scoped, tag = 'scratch operand']
  %s0 = inlined_call_operand.vmem [shape: f32[8,16], index: 0, kind: input, shape index: {}]
  %s1 = inlined_call_operand.vmem [shape: bf16[16,384], index: 1, kind: input, shape index: {}]
  %s2 = inlined_call_operand.hbm [shape: bf16[128,384], index: 2, kind: input, shape index: {}]
  %s3 = inlined_call_operand.vmem [shape: f32[1,384], index: 3, kind: input, shape index: {}]
  %s4 = inlined_call_operand.vmem [shape: f32[1,128], index: 4, kind: input, shape index: {}]
  %s5 = inlined_call_operand.vmem [shape: bf16[128,2], index: 5, kind: input, shape index: {}]
  %s6 = inlined_call_operand.vmem [shape: f32[1,2], index: 6, kind: input, shape index: {}]
  %s7 = inlined_call_operand.vmem [shape: f32[8,2], index: 7, kind: output, shape index: {}]
  %s8 = sld [smem:[#allocation0]]
  $region62: #{tpu_custom_call.1} parent=0
    _
  %s10 = ssub.s32 1, %s8
  %s11 = scalar_select 0, %s10, %s8
  $region1: #{tpu_custom_call.1} parent=0
    #allocation8 [shape = 'u8[98304]{0}', space=vmem, size = 0x18000, scoped, tag = 'input window, operand 2, single buffered']
    #allocation9 [shape = 's32[1]{0}', space=sflag, size = 0x4, scoped, tag = 'scoped memory for tpu_custom_call.1']
    %12 = vsyncpa [#allocation9], 0
    // Predicated region
    $region2: #{tpu_custom_call.1} parent=1 // pred_check
      _
    $region3: #{tpu_custom_call.1} parent=1 // pred_check_branch
      %14 = sbr.rel (0) target = $region5
    $region4: #{tpu_custom_call.1} parent=1 // pred_region
      _
    $region5: #{tpu_custom_call.1} parent=1 // pred_fallthru
      _
    // Predicated region
    $region6: #{tpu_custom_call.1} parent=1 // pred_check
      _
    $region7: #{tpu_custom_call.1} parent=1 // pred_check_branch
      %16 = sbr.rel (0) target = $region9
    $region8: #{tpu_custom_call.1} parent=1 // pred_region
      _
    $region9: #{tpu_custom_call.1} parent=1 // pred_fallthru
      _
    // Predicated region
    $region10: #{tpu_custom_call.1} parent=1 // pred_check
      _
    $region11: #{tpu_custom_call.1} parent=1 // pred_check_branch
      %18 = sbr.rel (0) target = $region13
    $region12: #{tpu_custom_call.1} parent=1 // pred_region
      %s20 = ssub.s32 3072, 3072
      %21 = vsyncadd [#allocation9], %s20
      %s22 = sshll.u32 [#allocation8], 4
      %s23 = int_to_ptr.vmem [resolvable:$true] %s22
      %28 = dma.hbm_to_vmem [thread:$0]  %s2, 3072, %s23, [#allocation9], 192, 192, 12
    $region13: #{tpu_custom_call.1} parent=1 // pred_fallthru
      _
    // Predicated region
    $region14: #{tpu_custom_call.1} parent=1 // pred_check
      _
    $region15: #{tpu_custom_call.1} parent=1 // pred_check_branch
      %30 = sbr.rel (0) target = $region17
    $region16: #{tpu_custom_call.1} parent=1 // pred_region
      _
    $region17: #{tpu_custom_call.1} parent=1 // pred_fallthru
      _
    // Predicated region
    $region18: #{tpu_custom_call.1} parent=1 // pred_check
      _
    $region19: #{tpu_custom_call.1} parent=1 // pred_check_branch
      %32 = sbr.rel (0) target = $region21
    $region20: #{tpu_custom_call.1} parent=1 // pred_region
      _
    $region21: #{tpu_custom_call.1} parent=1 // pred_fallthru
      _
    // Predicated region
    $region22: #{tpu_custom_call.1} parent=1 // pred_check
      _
    $region23: #{tpu_custom_call.1} parent=1 // pred_check_branch
      %34 = sbr.rel (0) target = $region25
    $region24: #{tpu_custom_call.1} parent=1 // pred_region
      _
    $region25: #{tpu_custom_call.1} parent=1 // pred_fallthru
      _
    // Predicated region
    $region26: #{tpu_custom_call.1} parent=1 // pred_check
      _
    $region27: #{tpu_custom_call.1} parent=1 // pred_check_branch
      %36 = sbr.rel (0) target = $region29
    $region28: #{tpu_custom_call.1} parent=1 // pred_region
      _
    $region29: #{tpu_custom_call.1} parent=1 // pred_fallthru
      _
    // Predicated region
    $region30: #{tpu_custom_call.1} parent=1 // pred_check
      _
    $region31: #{tpu_custom_call.1} parent=1 // pred_check_branch
      %38 = sbr.rel (0) target = $region33
    $region32: #{tpu_custom_call.1} parent=1 // pred_region
      %39 = dma.done [#allocation9], 3072
    $region33: #{tpu_custom_call.1} parent=1 // pred_fallthru
      _
    %v41 = vlaneseq
    %v42 = vand.u32 %v41, 127
    %vm43 = vcmp.eq.s32.totalorder %v42, 0
    %v44 = vsel %vm43, 5.0, 0.0
    %45 = vst [vmem:[#allocation2] sm:$0xff] %v44
    %vm46 = vcmask 7168
    %47 = vst.msk [vmem:[#allocation4] sm:$0xff] %vm46, 0.0
    %48 = vst.msk [vmem:[#allocation5] sm:$0xff] %vm46, 0.0
    %49 = vst.msk [vmem:[#allocation6] sm:$0xff] %vm46, 0.0
    %s50 = scalar_lea.smem [#allocation7], 0
    %51 = sst [smem:[%s50]] 0
    %v52 = vld [vmem:[%s0] sm:$0xff]
    %v53 = vpack.c.bf16 %v52, %v52
    %v54 = vld [vmem:[%s1] sm:$0xff]
    %v55 = vld [vmem:[%s1 + $0x8] sm:$0xf]
    %v56 = vld [vmem:[%s1 + $0xc] sm:$0xff]
    %v57 = vld [vmem:[%s1 + $0x14] sm:$0xf]
    %v58 = vld [vmem:[%s3] sm:$0x7]
    %v60 = vlaneseq
    %v61 = vshrl.u32 %v60, 7
    %v62 = vsub.s32 0, %v61
    %v63 = vrot.slane %v58, %v62
    %v64 = vlaneseq
    %v65 = vshrl.u32 %v64, 7
    %v66 = vsub.s32 1, %v65
    %v67 = vrot.slane %v58, %v66
    %v68 = vlaneseq
    %v69 = vshrl.u32 %v68, 7
    %v70 = vsub.s32 2, %v69
    %v71 = vrot.slane %v58, %v70
    %v79 = vunpack.c.l.b16 %v54
    %v80 = vunpack.c.h.b16 %v54
    %v81 = vunpack.c.l.b16 %v55
    %v82 = vunpack.c.l.b16 %v56
    %v83 = vunpack.c.h.b16 %v56
    %v84 = vunpack.c.l.b16 %v57
    %v85 = vpack.c.b16 %v82, %v79
    %v86 = vpack.c.b16 %v83, %v80
    %v87 = vpack.c.b16 %v84, %v81
    %vm91 = vcmask 130048
    %v93 = vsel %vm91, %v53, 0
    %95 = vmatprep.subr.bf16.mxu0 %v86
    %96 = vmatpush1.bf16.msra.mxu0 %v85
    %97 = vmatprep.subr.bf16.mxu0 0
    %98 = vmatpush1.bf16.msra.mxu0 0
    %99 = vmatprep.subr.bf16.mxu0 0
    %100 = vmatpush1.bf16.msra.mxu0 0
    %101 = vmatprep.subr.bf16.mxu0 0
    %102 = vmatpush1.bf16.msra.mxu0 0
    %103 = vmatprep.subr.bf16.mxu0 0
    %104 = vmatpush1.bf16.msra.mxu0 0
    %105 = vmatprep.subr.bf16.mxu0 0
    %106 = vmatpush1.bf16.msra.mxu0 0
    %107 = vmatprep.subr.bf16.mxu0 0
    %108 = vmatpush1.bf16.msra.mxu0 0
    %109 = vmatprep.subr.bf16.mxu0 0
    %110 = vmatpush1.bf16.msra.mxu0 0
    %111 = vmatprep.subr.bf16.mxu0 0
    %112 = vmatpush1.bf16.msra.mxu0 0
    %113 = vmatprep.subr.bf16.mxu0 0
    %114 = vmatpush1.bf16.msra.mxu0 0
    %115 = vmatprep.subr.bf16.mxu0 0
    %116 = vmatpush1.bf16.msra.mxu0 0
    %117 = vmatprep.subr.bf16.mxu0 0
    %118 = vmatpush1.bf16.msra.mxu0 0
    %119 = vmatprep.subr.bf16.mxu0 0
    %120 = vmatpush1.bf16.msra.mxu0 0
    %121 = vmatprep.subr.bf16.mxu0 0
    %122 = vmatpush1.bf16.msra.mxu0 0
    %123 = vmatprep.subr.bf16.mxu0 0
    %124 = vmatpush1.bf16.msra.mxu0 0
    %125 = vmatprep.subr.bf16.mxu0 0
    %126 = vmatpush1.bf16.msra.mxu0 0
    %127 = vmatprep.mubr.bf16.mxu0 0
    %128 = vmatmul.mubr.bf16.gmra.mrb[0].mxu0 %v93
    %v129 = vpop.f32.mrb[0].mxu0
    %v130 = vadd.f32 %v63, %v129
    %v131 = vpop.f32.mrb[0].mxu0
    %v132 = vadd.f32 %v67, %v131
    %v133 = vpop.f32.mrb[0].mxu0
    %v134 = vpop.f32.mrb[0].mxu0
    %135 = vdwg.mxu0
    %136 = vmatprep.subr.bf16.mxu0 0
    %137 = vmatpush1.bf16.msra.mxu0 %v87
    %138 = vmatprep.subr.bf16.mxu0 0
    %139 = vmatpush1.bf16.msra.mxu0 0
    %140 = vmatprep.subr.bf16.mxu0 0
    %141 = vmatpush1.bf16.msra.mxu0 0
    %142 = vmatprep.subr.bf16.mxu0 0
    %143 = vmatpush1.bf16.msra.mxu0 0
    %144 = vmatprep.subr.bf16.mxu0 0
    %145 = vmatpush1.bf16.msra.mxu0 0
    %146 = vmatprep.subr.bf16.mxu0 0
    %147 = vmatpush1.bf16.msra.mxu0 0
    %148 = vmatprep.subr.bf16.mxu0 0
    %149 = vmatpush1.bf16.msra.mxu0 0
    %150 = vmatprep.subr.bf16.mxu0 0
    %151 = vmatpush1.bf16.msra.mxu0 0
    %152 = vmatprep.subr.bf16.mxu0 0
    %153 = vmatpush1.bf16.msra.mxu0 0
    %154 = vmatprep.subr.bf16.mxu0 0
    %155 = vmatpush1.bf16.msra.mxu0 0
    %156 = vmatprep.subr.bf16.mxu0 0
    %157 = vmatpush1.bf16.msra.mxu0 0
    %158 = vmatprep.subr.bf16.mxu0 0
    %159 = vmatpush1.bf16.msra.mxu0 0
    %160 = vmatprep.subr.bf16.mxu0 0
    %161 = vmatpush1.bf16.msra.mxu0 0
    %162 = vmatprep.subr.bf16.mxu0 0
    %163 = vmatpush1.bf16.msra.mxu0 0
    %164 = vmatprep.subr.bf16.mxu0 0
    %165 = vmatpush1.bf16.msra.mxu0 0
    %166 = vmatprep.subr.bf16.mxu0 0
    %167 = vmatpush1.bf16.msra.mxu0 0
    %168 = vmatprep.mubr.bf16.mxu0 0
    %169 = vmatmul.mubr.bf16.gmra.mrb[0].mxu0 %v93
    %v170 = vpop.f32.mrb[0].mxu0
    %v171 = vadd.f32 %v71, %v170
    %v172 = vpop.f32.mrb[0].mxu0
    %v173 = vpop.f32.mrb[0].mxu0
    %v174 = vpop.f32.mrb[0].mxu0
    %175 = vdwg.mxu0
    %176 = vst [vmem:[#allocation3] sm:$0xff] %v130
    %177 = vst [vmem:[#allocation3 + $0x8] sm:$0xff] %v132
    %178 = vst [vmem:[#allocation3 + $0x10] sm:$0xff] %v171
    %s179 = sld [smem:[#allocation7]]
    %p180 = scmp.eq.s32.totalorder %s179, 0
    // Predicated region
    $region34: #{tpu_custom_call.1} parent=1 // pred_check
      %p181 = pneg %p180
    $region35: #{tpu_custom_call.1} parent=1 // pred_check_branch
      %183 = sbr.rel (%p181) target = $region37
    $region36: #{tpu_custom_call.1} parent=1 // pred_region
      %v184 = vld [vmem:[#allocation2] sm:$0xff]
      %v185 = vld [vmem:[#allocation4] sm:$0xff]
      %vm186 = vcmp.lt.f32.partialorder %v185, 0.5
      %v187 = vpack.c.bf16 %v184, %v184
      %v188 = vld [vmem:[#allocation8] sm:$0xff]
      %v189 = vld [vmem:[#allocation8 + $0xc] sm:$0xff]
      %v190 = vld [vmem:[#allocation8 + $0x18] sm:$0xff]
      %v191 = vld [vmem:[#allocation8 + $0x24] sm:$0xff]
      %v192 = vld [vmem:[#allocation8 + $0x30] sm:$0xff]
      %v193 = vld [vmem:[#allocation8 + $0x3c] sm:$0xff]
      %v194 = vld [vmem:[#allocation8 + $0x48] sm:$0xff]
      %v195 = vld [vmem:[#allocation8 + $0x54] sm:$0xff]
      %v196 = vld [vmem:[#allocation8 + $0x60] sm:$0xff]
      %v197 = vld [vmem:[#allocation8 + $0x6c] sm:$0xff]
      %v198 = vld [vmem:[#allocation8 + $0x78] sm:$0xff]
      %v199 = vld [vmem:[#allocation8 + $0x84] sm:$0xff]
      %v200 = vld [vmem:[#allocation8 + $0x90] sm:$0xff]
      %v201 = vld [vmem:[#allocation8 + $0x9c] sm:$0xff]
      %v202 = vld [vmem:[#allocation8 + $0xa8] sm:$0xff]
      %v203 = vld [vmem:[#allocation8 + $0xb4] sm:$0xff]
      %v220 = vunpack.c.l.b16 %v188
      %v221 = vunpack.c.h.b16 %v188
      %v222 = vunpack.c.l.b16 %v189
      %v223 = vunpack.c.h.b16 %v189
      %v224 = vunpack.c.l.b16 %v190
      %v225 = vunpack.c.h.b16 %v190
      %v226 = vunpack.c.l.b16 %v191
      %v227 = vunpack.c.h.b16 %v191
      %v228 = vunpack.c.l.b16 %v192
      %v229 = vunpack.c.h.b16 %v192
      %v230 = vunpack.c.l.b16 %v193
      %v231 = vunpack.c.h.b16 %v193
      %v232 = vunpack.c.l.b16 %v194
      %v233 = vunpack.c.h.b16 %v194
      %v234 = vunpack.c.l.b16 %v195
      %v235 = vunpack.c.h.b16 %v195
      %v236 = vunpack.c.l.b16 %v196
      %v237 = vunpack.c.h.b16 %v196
      %v238 = vunpack.c.l.b16 %v197
      %v239 = vunpack.c.h.b16 %v197
      %v240 = vunpack.c.l.b16 %v198
      %v241 = vunpack.c.h.b16 %v198
      %v242 = vunpack.c.l.b16 %v199
      %v243 = vunpack.c.h.b16 %v199
      %v244 = vunpack.c.l.b16 %v200
      %v245 = vunpack.c.h.b16 %v200
      %v246 = vunpack.c.l.b16 %v201
      %v247 = vunpack.c.h.b16 %v201
      %v248 = vunpack.c.l.b16 %v202
      %v249 = vunpack.c.h.b16 %v202
      %v250 = vunpack.c.l.b16 %v203
      %v251 = vunpack.c.h.b16 %v203
      %v252 = vpack.c.b16 %v222, %v220
      %v253 = vpack.c.b16 %v223, %v221
      %v254 = vpack.c.b16 %v226, %v224
      %v255 = vpack.c.b16 %v227, %v225
      %v256 = vpack.c.b16 %v230, %v228
      %v257 = vpack.c.b16 %v231, %v229
      %v258 = vpack.c.b16 %v234, %v232
      %v259 = vpack.c.b16 %v235, %v233
      %v260 = vpack.c.b16 %v238, %v236
      %v261 = vpack.c.b16 %v239, %v237
      %v262 = vpack.c.b16 %v242, %v240
      %v263 = vpack.c.b16 %v243, %v241
      %v264 = vpack.c.b16 %v246, %v244
      %v265 = vpack.c.b16 %v247, %v245
      %v266 = vpack.c.b16 %v250, %v248
      %v267 = vpack.c.b16 %v251, %v249
      %284 = vmatprep.subr.bf16.mxu0 %v253
      %285 = vmatpush1.bf16.msra.mxu0 %v252
      %286 = vmatprep.subr.bf16.mxu0 %v255
      %287 = vmatpush1.bf16.msra.mxu0 %v254
      %288 = vmatprep.subr.bf16.mxu0 %v257
      %289 = vmatpush1.bf16.msra.mxu0 %v256
      %290 = vmatprep.subr.bf16.mxu0 %v259
      %291 = vmatpush1.bf16.msra.mxu0 %v258
      %292 = vmatprep.subr.bf16.mxu0 %v261
      %293 = vmatpush1.bf16.msra.mxu0 %v260
      %294 = vmatprep.subr.bf16.mxu0 %v263
      %295 = vmatpush1.bf16.msra.mxu0 %v262
      %296 = vmatprep.subr.bf16.mxu0 %v265
      %297 = vmatpush1.bf16.msra.mxu0 %v264
      %298 = vmatprep.subr.bf16.mxu0 %v267
      %299 = vmatpush1.bf16.msra.mxu0 %v266
      %300 = vmatprep.subr.bf16.mxu0 0
      %301 = vmatpush1.bf16.msra.mxu0 0
      %302 = vmatprep.subr.bf16.mxu0 0
      %303 = vmatpush1.bf16.msra.mxu0 0
      %304 = vmatprep.subr.bf16.mxu0 0
      %305 = vmatpush1.bf16.msra.mxu0 0
      %306 = vmatprep.subr.bf16.mxu0 0
      %307 = vmatpush1.bf16.msra.mxu0 0
      %308 = vmatprep.subr.bf16.mxu0 0
      %309 = vmatpush1.bf16.msra.mxu0 0
      %310 = vmatprep.subr.bf16.mxu0 0
      %311 = vmatpush1.bf16.msra.mxu0 0
      %312 = vmatprep.subr.bf16.mxu0 0
      %313 = vmatpush1.bf16.msra.mxu0 0
      %314 = vmatprep.subr.bf16.mxu0 0
      %315 = vmatpush1.bf16.msra.mxu0 0
      %316 = vmatprep.mubr.bf16.mxu0 0
      %317 = vmatmul.mubr.bf16.gmra.mrb[0].mxu0 %v187
      %v318 = vpop.f32.mrb[0].mxu0
      %v319 = vadd.f32 0.0, %v318
      %v320 = vpop.f32.mrb[0].mxu0
      %v321 = vadd.f32 0.0, %v320
      %v322 = vpop.f32.mrb[0].mxu0
      %v323 = vpop.f32.mrb[0].mxu0
      %324 = vdwg.mxu0
      %v325 = vld [vmem:[#allocation3] sm:$0xff]
      %v326 = vadd.f32 %v325, %v319
      %v327 = vxor.u32 %v326, 2147483648
      %v328 = vmul.f32 %v327, 1.442695
      %v329 = vpow.pop %v328
      %v330 = vadd.f32 %v329, 1.0
      %v331 = vrcp.pop %v330
      %v332 = vmul.f32 1.0, %v331
      %v333 = vld [vmem:[#allocation3 + $0x8] sm:$0xff]
      %v334 = vadd.f32 %v333, %v321
      %v335 = vxor.u32 %v334, 2147483648
      %v336 = vmul.f32 %v335, 1.442695
      %v337 = vpow.pop %v336
      %v338 = vadd.f32 %v337, 1.0
      %v339 = vrcp.pop %v338
      %v340 = vmul.f32 1.0, %v339
      %v341 = vld [vmem:[#allocation8 + $0x8] sm:$0xf]
      %v342 = vld [vmem:[#allocation8 + $0x14] sm:$0xf]
      %v343 = vld [vmem:[#allocation8 + $0x20] sm:$0xf]
      %v344 = vld [vmem:[#allocation8 + $0x2c] sm:$0xf]
      %v345 = vld [vmem:[#allocation8 + $0x38] sm:$0xf]
      %v346 = vld [vmem:[#allocation8 + $0x44] sm:$0xf]
      %v347 = vld [vmem:[#allocation8 + $0x50] sm:$0xf]
      %v348 = vld [vmem:[#allocation8 + $0x5c] sm:$0xf]
      %v349 = vld [vmem:[#allocation8 + $0x68] sm:$0xf]
      %v350 = vld [vmem:[#allocation8 + $0x74] sm:$0xf]
      %v351 = vld [vmem:[#allocation8 + $0x80] sm:$0xf]
      %v352 = vld [vmem:[#allocation8 + $0x8c] sm:$0xf]
      %v353 = vld [vmem:[#allocation8 + $0x98] sm:$0xf]
      %v354 = vld [vmem:[#allocation8 + $0xa4] sm:$0xf]
      %v355 = vld [vmem:[#allocation8 + $0xb0] sm:$0xf]
      %v356 = vld [vmem:[#allocation8 + $0xbc] sm:$0xf]
      %v357 = vld [vmem:[#allocation3 + $0x10] sm:$0xff]
      %v358 = vld [vmem:[%s4] sm:$0x1]
      %v360 = vlaneseq
      %v361 = vshrl.u32 %v360, 7
      %v362 = vsub.s32 0, %v361
      %v363 = vrot.slane %v358, %v362
      %v381 = vunpack.c.l.b16 %v341
      %v382 = vunpack.c.l.b16 %v342
      %v383 = vunpack.c.l.b16 %v343
      %v384 = vunpack.c.l.b16 %v344
      %v385 = vunpack.c.l.b16 %v345
      %v386 = vunpack.c.l.b16 %v346
      %v387 = vunpack.c.l.b16 %v347
      %v388 = vunpack.c.l.b16 %v348
      %v389 = vunpack.c.l.b16 %v349
      %v390 = vunpack.c.l.b16 %v350
      %v391 = vunpack.c.l.b16 %v351
      %v392 = vunpack.c.l.b16 %v352
      %v393 = vunpack.c.l.b16 %v353
      %v394 = vunpack.c.l.b16 %v354
      %v395 = vunpack.c.l.b16 %v355
      %v396 = vunpack.c.l.b16 %v356
      %v397 = vpack.c.b16 %v382, %v381
      %v398 = vpack.c.b16 %v384, %v383
      %v399 = vpack.c.b16 %v386, %v385
      %v400 = vpack.c.b16 %v388, %v387
      %v401 = vpack.c.b16 %v390, %v389
      %v402 = vpack.c.b16 %v392, %v391
      %v403 = vpack.c.b16 %v394, %v393
      %v404 = vpack.c.b16 %v396, %v395
      %413 = vmatprep.subr.bf16.mxu0 0
      %414 = vmatpush1.bf16.msra.mxu0 %v397
      %415 = vmatprep.subr.bf16.mxu0 0
      %416 = vmatpush1.bf16.msra.mxu0 %v398
      %417 = vmatprep.subr.bf16.mxu0 0
      %418 = vmatpush1.bf16.msra.mxu0 %v399
      %419 = vmatprep.subr.bf16.mxu0 0
      %420 = vmatpush1.bf16.msra.mxu0 %v400
      %421 = vmatprep.subr.bf16.mxu0 0
      %422 = vmatpush1.bf16.msra.mxu0 %v401
      %423 = vmatprep.subr.bf16.mxu0 0
      %424 = vmatpush1.bf16.msra.mxu0 %v402
      %425 = vmatprep.subr.bf16.mxu0 0
      %426 = vmatpush1.bf16.msra.mxu0 %v403
      %427 = vmatprep.subr.bf16.mxu0 0
      %428 = vmatpush1.bf16.msra.mxu0 %v404
      %429 = vmatprep.subr.bf16.mxu0 0
      %430 = vmatpush1.bf16.msra.mxu0 0
      %431 = vmatprep.subr.bf16.mxu0 0
      %432 = vmatpush1.bf16.msra.mxu0 0
      %433 = vmatprep.subr.bf16.mxu0 0
      %434 = vmatpush1.bf16.msra.mxu0 0
      %435 = vmatprep.subr.bf16.mxu0 0
      %436 = vmatpush1.bf16.msra.mxu0 0
      %437 = vmatprep.subr.bf16.mxu0 0
      %438 = vmatpush1.bf16.msra.mxu0 0
      %439 = vmatprep.subr.bf16.mxu0 0
      %440 = vmatpush1.bf16.msra.mxu0 0
      %441 = vmatprep.subr.bf16.mxu0 0
      %442 = vmatpush1.bf16.msra.mxu0 0
      %443 = vmatprep.subr.bf16.mxu0 0
      %444 = vmatpush1.bf16.msra.mxu0 0
      %445 = vmatprep.mubr.bf16.mxu0 0
      %446 = vmatmul.mubr.bf16.gmra.mrb[0].mxu0 %v187
      %v447 = vpop.f32.mrb[0].mxu0
      %v448 = vadd.f32 %v363, %v447
      %v449 = vpop.f32.mrb[0].mxu0
      %v450 = vpop.f32.mrb[0].mxu0
      %v451 = vpop.f32.mrb[0].mxu0
      %452 = vdwg.mxu0
      %v453 = vmul.f32 %v332, %v448
      %v454 = vadd.f32 %v357, %v453
      %v455 = vtanh.pop %v454
      %v456 = vsub.f32 1.0, %v340
      %v457 = vmul.f32 %v456, %v455
      %v458 = vmul.f32 %v340, %v184
      %v459 = vadd.f32 %v457, %v458
      %v460 = vpack.c.bf16 %v459, %v459
      %v461 = vld [vmem:[%s5] sm:$0xf]
      %v462 = vld [vmem:[%s5 + $0x4] sm:$0xf]
      %v463 = vld [vmem:[%s5 + $0x8] sm:$0xf]
      %v464 = vld [vmem:[%s5 + $0xc] sm:$0xf]
      %v465 = vld [vmem:[%s5 + $0x10] sm:$0xf]
      %v466 = vld [vmem:[%s5 + $0x14] sm:$0xf]
      %v467 = vld [vmem:[%s5 + $0x18] sm:$0xf]
      %v468 = vld [vmem:[%s5 + $0x1c] sm:$0xf]
      %v469 = vld [vmem:[%s5 + $0x20] sm:$0xf]
      %v470 = vld [vmem:[%s5 + $0x24] sm:$0xf]
      %v471 = vld [vmem:[%s5 + $0x28] sm:$0xf]
      %v472 = vld [vmem:[%s5 + $0x2c] sm:$0xf]
      %v473 = vld [vmem:[%s5 + $0x30] sm:$0xf]
      %v474 = vld [vmem:[%s5 + $0x34] sm:$0xf]
      %v475 = vld [vmem:[%s5 + $0x38] sm:$0xf]
      %v476 = vld [vmem:[%s5 + $0x3c] sm:$0xf]
      %v477 = vld [vmem:[%s6] sm:$0x1]
      %v479 = vlaneseq
      %v480 = vshrl.u32 %v479, 7
      %v481 = vsub.s32 0, %v480
      %v482 = vrot.slane %v477, %v481
      %v500 = vunpack.c.l.b16 %v461
      %v501 = vunpack.c.l.b16 %v462
      %v502 = vunpack.c.l.b16 %v463
      %v503 = vunpack.c.l.b16 %v464
      %v504 = vunpack.c.l.b16 %v465
      %v505 = vunpack.c.l.b16 %v466
      %v506 = vunpack.c.l.b16 %v467
      %v507 = vunpack.c.l.b16 %v468
      %v508 = vunpack.c.l.b16 %v469
      %v509 = vunpack.c.l.b16 %v470
      %v510 = vunpack.c.l.b16 %v471
      %v511 = vunpack.c.l.b16 %v472
      %v512 = vunpack.c.l.b16 %v473
      %v513 = vunpack.c.l.b16 %v474
      %v514 = vunpack.c.l.b16 %v475
      %v515 = vunpack.c.l.b16 %v476
      %v516 = vpack.c.b16 %v501, %v500
      %v517 = vpack.c.b16 %v503, %v502
      %v518 = vpack.c.b16 %v505, %v504
      %v519 = vpack.c.b16 %v507, %v506
      %v520 = vpack.c.b16 %v509, %v508
      %v521 = vpack.c.b16 %v511, %v510
      %v522 = vpack.c.b16 %v513, %v512
      %v523 = vpack.c.b16 %v515, %v514
      %532 = vmatprep.subr.bf16.mxu0 0
      %533 = vmatpush1.bf16.msra.mxu0 %v516
      %534 = vmatprep.subr.bf16.mxu0 0
      %535 = vmatpush1.bf16.msra.mxu0 %v517
      %536 = vmatprep.subr.bf16.mxu0 0
      %537 = vmatpush1.bf16.msra.mxu0 %v518
      %538 = vmatprep.subr.bf16.mxu0 0
      %539 = vmatpush1.bf16.msra.mxu0 %v519
      %540 = vmatprep.subr.bf16.mxu0 0
      %541 = vmatpush1.bf16.msra.mxu0 %v520
      %542 = vmatprep.subr.bf16.mxu0 0
      %543 = vmatpush1.bf16.msra.mxu0 %v521
      %544 = vmatprep.subr.bf16.mxu0 0
      %545 = vmatpush1.bf16.msra.mxu0 %v522
      %546 = vmatprep.subr.bf16.mxu0 0
      %547 = vmatpush1.bf16.msra.mxu0 %v523
      %548 = vmatprep.subr.bf16.mxu0 0
      %549 = vmatpush1.bf16.msra.mxu0 0
      %550 = vmatprep.subr.bf16.mxu0 0
      %551 = vmatpush1.bf16.msra.mxu0 0
      %552 = vmatprep.subr.bf16.mxu0 0
      %553 = vmatpush1.bf16.msra.mxu0 0
      %554 = vmatprep.subr.bf16.mxu0 0
      %555 = vmatpush1.bf16.msra.mxu0 0
      %556 = vmatprep.subr.bf16.mxu0 0
      %557 = vmatpush1.bf16.msra.mxu0 0
      %558 = vmatprep.subr.bf16.mxu0 0
      %559 = vmatpush1.bf16.msra.mxu0 0
      %560 = vmatprep.subr.bf16.mxu0 0
      %561 = vmatpush1.bf16.msra.mxu0 0
      %562 = vmatprep.subr.bf16.mxu0 0
      %563 = vmatpush1.bf16.msra.mxu0 0
      %564 = vmatprep.mubr.bf16.mxu0 0
      %565 = vmatmul.mubr.bf16.gmra.mrb[0].mxu0 %v460
      %v566 = vpop.f32.mrb[0].mxu0
      %v567 = vadd.f32 %v482, %v566
      %v568 = vpop.f32.mrb[0].mxu0
      %v569 = vpop.f32.mrb[0].mxu0
      %v570 = vpop.f32.mrb[0].mxu0
      %571 = vdwg.mxu0
      %vm572 = vcmp.gt.f32.partialorder %v567, 0.0
      %vm573 = vmand %vm186, %vm572
      %v574 = vld [vmem:[#allocation6] sm:$0xff]
      %576 = vrot.lane.b32.xlu0 %v567, 127
      %v577 = vpop.permute.xlu0 %576
      %v579 = vsel %vm573, %v577, %v574
      %580 = vst.msk [vmem:[#allocation6] sm:$0xff] %vm46, %v579
      %v581 = vsel %vm186, 1, 0
      %582 = vset.pattern.permute.xlu0 0
      %583 = vperm.xlu0 %582, %v581
      %v584 = vpop.permute.xlu0 %583
      %vm585 = vcmp.eq.s32.totalorder %v584, 1
      %v586 = vsel %vm585, %v459, %v184
      %587 = vst [vmem:[#allocation2] sm:$0xff] %v586
      %v588 = vld [vmem:[#allocation5] sm:$0xff]
      %v589 = vadd.f32 %v588, 1.0
      %v590 = vsel %vm186, %v589, %v588
      %591 = vst.msk [vmem:[#allocation5] sm:$0xff] %vm46, %v590
      %v592 = vld [vmem:[#allocation4] sm:$0xff]
      %v593 = vsel %vm573, 1.0, %v592
      %594 = vst.msk [vmem:[#allocation4] sm:$0xff] %vm46, %v593
      %v595 = vsel %vm46, %v593, 0.0
      %596 = vadd.xlane.f32.xlu0 %v595
      %v597 = vpop.xlane.xlu0 %596
      %v598 = vrot.slane %v597, 4
      %v599 = vadd.f32 %v597, %v598
      %v600 = vrot.slane %v599, 2
      %v601 = vadd.f32 %v599, %v600
      %v602 = vrot.slane %v601, 1
      %v603 = vadd.f32 %v601, %v602
      %s604 = vtos %v603
      %p605 = scmp.gt.f32.partialorder %s604, 7.5
      %s606 = scalar_select %p605, 1, 0
      %607 = sst [smem:[%s50]] %s606
    $region37: #{tpu_custom_call.1} parent=1 // pred_fallthru
      _
    %s608 = sld [smem:[#allocation7]]
    %p609 = scmp.eq.s32.totalorder %s608, 0
    // Predicated region
    $region38: #{tpu_custom_call.1} parent=1 // pred_check
      %p610 = pneg %p609
    $region39: #{tpu_custom_call.1} parent=1 // pred_check_branch
      %612 = sbr.rel (%p610) target = $region41
    $region40: #{tpu_custom_call.1} parent=1 // pred_region
      %v613 = vld [vmem:[#allocation2] sm:$0xff]
      %v614 = vld [vmem:[#allocation4] sm:$0xff]
      %vm615 = vcmp.lt.f32.partialorder %v614, 0.5
      %v616 = vpack.c.bf16 %v613, %v613
      %v617 = vld [vmem:[#allocation8] sm:$0xff]
      %v618 = vld [vmem:[#allocation8 + $0xc] sm:$0xff]
      %v619 = vld [vmem:[#allocation8 + $0x18] sm:$0xff]
      %v620 = vld [vmem:[#allocation8 + $0x24] sm:$0xff]
      %v621 = vld [vmem:[#allocation8 + $0x30] sm:$0xff]
      %v622 = vld [vmem:[#allocation8 + $0x3c] sm:$0xff]
      %v623 = vld [vmem:[#allocation8 + $0x48] sm:$0xff]
      %v624 = vld [vmem:[#allocation8 + $0x54] sm:$0xff]
      %v625 = vld [vmem:[#allocation8 + $0x60] sm:$0xff]
      %v626 = vld [vmem:[#allocation8 + $0x6c] sm:$0xff]
      %v627 = vld [vmem:[#allocation8 + $0x78] sm:$0xff]
      %v628 = vld [vmem:[#allocation8 + $0x84] sm:$0xff]
      %v629 = vld [vmem:[#allocation8 + $0x90] sm:$0xff]
      %v630 = vld [vmem:[#allocation8 + $0x9c] sm:$0xff]
      %v631 = vld [vmem:[#allocation8 + $0xa8] sm:$0xff]
      %v632 = vld [vmem:[#allocation8 + $0xb4] sm:$0xff]
      %v649 = vunpack.c.l.b16 %v617
      %v650 = vunpack.c.h.b16 %v617
      %v651 = vunpack.c.l.b16 %v618
      %v652 = vunpack.c.h.b16 %v618
      %v653 = vunpack.c.l.b16 %v619
      %v654 = vunpack.c.h.b16 %v619
      %v655 = vunpack.c.l.b16 %v620
      %v656 = vunpack.c.h.b16 %v620
      %v657 = vunpack.c.l.b16 %v621
      %v658 = vunpack.c.h.b16 %v621
      %v659 = vunpack.c.l.b16 %v622
      %v660 = vunpack.c.h.b16 %v622
      %v661 = vunpack.c.l.b16 %v623
      %v662 = vunpack.c.h.b16 %v623
      %v663 = vunpack.c.l.b16 %v624
      %v664 = vunpack.c.h.b16 %v624
      %v665 = vunpack.c.l.b16 %v625
      %v666 = vunpack.c.h.b16 %v625
      %v667 = vunpack.c.l.b16 %v626
      %v668 = vunpack.c.h.b16 %v626
      %v669 = vunpack.c.l.b16 %v627
      %v670 = vunpack.c.h.b16 %v627
      %v671 = vunpack.c.l.b16 %v628
      %v672 = vunpack.c.h.b16 %v628
      %v673 = vunpack.c.l.b16 %v629
      %v674 = vunpack.c.h.b16 %v629
      %v675 = vunpack.c.l.b16 %v630
      %v676 = vunpack.c.h.b16 %v630
      %v677 = vunpack.c.l.b16 %v631
      %v678 = vunpack.c.h.b16 %v631
      %v679 = vunpack.c.l.b16 %v632
      %v680 = vunpack.c.h.b16 %v632
      %v681 = vpack.c.b16 %v651, %v649
      %v682 = vpack.c.b16 %v652, %v650
      %v683 = vpack.c.b16 %v655, %v653
      %v684 = vpack.c.b16 %v656, %v654
      %v685 = vpack.c.b16 %v659, %v657
      %v686 = vpack.c.b16 %v660, %v658
      %v687 = vpack.c.b16 %v663, %v661
      %v688 = vpack.c.b16 %v664, %v662
      %v689 = vpack.c.b16 %v667, %v665
      %v690 = vpack.c.b16 %v668, %v666
      %v691 = vpack.c.b16 %v671, %v669
      %v692 = vpack.c.b16 %v672, %v670
      %v693 = vpack.c.b16 %v675, %v673
      %v694 = vpack.c.b16 %v676, %v674
      %v695 = vpack.c.b16 %v679, %v677
      %v696 = vpack.c.b16 %v680, %v678
      %713 = vmatprep.subr.bf16.mxu0 %v682
      %714 = vmatpush1.bf16.msra.mxu0 %v681
      %715 = vmatprep.subr.bf16.mxu0 %v684
      %716 = vmatpush1.bf16.msra.mxu0 %v683
      %717 = vmatprep.subr.bf16.mxu0 %v686
      %718 = vmatpush1.bf16.msra.mxu0 %v685
      %719 = vmatprep.subr.bf16.mxu0 %v688
      %720 = vmatpush1.bf16.msra.mxu0 %v687
      %721 = vmatprep.subr.bf16.mxu0 %v690
      %722 = vmatpush1.bf16.msra.mxu0 %v689
      %723 = vmatprep.subr.bf16.mxu0 %v692
      %724 = vmatpush1.bf16.msra.mxu0 %v691
      %725 = vmatprep.subr.bf16.mxu0 %v694
      %726 = vmatpush1.bf16.msra.mxu0 %v693
      %727 = vmatprep.subr.bf16.mxu0 %v696
      %728 = vmatpush1.bf16.msra.mxu0 %v695
      %729 = vmatprep.subr.bf16.mxu0 0
      %730 = vmatpush1.bf16.msra.mxu0 0
      %731 = vmatprep.subr.bf16.mxu0 0
      %732 = vmatpush1.bf16.msra.mxu0 0
      %733 = vmatprep.subr.bf16.mxu0 0
      %734 = vmatpush1.bf16.msra.mxu0 0
      %735 = vmatprep.subr.bf16.mxu0 0
      %736 = vmatpush1.bf16.msra.mxu0 0
      %737 = vmatprep.subr.bf16.mxu0 0
      %738 = vmatpush1.bf16.msra.mxu0 0
      %739 = vmatprep.subr.bf16.mxu0 0
      %740 = vmatpush1.bf16.msra.mxu0 0
      %741 = vmatprep.subr.bf16.mxu0 0
      %742 = vmatpush1.bf16.msra.mxu0 0
      %743 = vmatprep.subr.bf16.mxu0 0
      %744 = vmatpush1.bf16.msra.mxu0 0
      %745 = vmatprep.mubr.bf16.mxu0 0
      %746 = vmatmul.mubr.bf16.gmra.mrb[0].mxu0 %v616
      %v747 = vpop.f32.mrb[0].mxu0
      %v748 = vadd.f32 0.0, %v747
      %v749 = vpop.f32.mrb[0].mxu0
      %v750 = vadd.f32 0.0, %v749
      %v751 = vpop.f32.mrb[0].mxu0
      %v752 = vpop.f32.mrb[0].mxu0
      %753 = vdwg.mxu0
      %v754 = vld [vmem:[#allocation3] sm:$0xff]
      %v755 = vadd.f32 %v754, %v748
      %v756 = vxor.u32 %v755, 2147483648
      %v757 = vmul.f32 %v756, 1.442695
      %v758 = vpow.pop %v757
      %v759 = vadd.f32 %v758, 1.0
      %v760 = vrcp.pop %v759
      %v761 = vmul.f32 1.0, %v760
      %v762 = vld [vmem:[#allocation3 + $0x8] sm:$0xff]
      %v763 = vadd.f32 %v762, %v750
      %v764 = vxor.u32 %v763, 2147483648
      %v765 = vmul.f32 %v764, 1.442695
      %v766 = vpow.pop %v765
      %v767 = vadd.f32 %v766, 1.0
      %v768 = vrcp.pop %v767
      %v769 = vmul.f32 1.0, %v768
      %v770 = vld [vmem:[#allocation8 + $0x8] sm:$0xf]
      %v771 = vld [vmem:[#allocation8 + $0x14] sm:$0xf]
      %v772 = vld [vmem:[#allocation8 + $0x20] sm:$0xf]
      %v773 = vld [vmem:[#allocation8 + $0x2c] sm:$0xf]
      %v774 = vld [vmem:[#allocation8 + $0x38] sm:$0xf]
      %v775 = vld [vmem:[#allocation8 + $0x44] sm:$0xf]
      %v776 = vld [vmem:[#allocation8 + $0x50] sm:$0xf]
      %v777 = vld [vmem:[#allocation8 + $0x5c] sm:$0xf]
      %v778 = vld [vmem:[#allocation8 + $0x68] sm:$0xf]
      %v779 = vld [vmem:[#allocation8 + $0x74] sm:$0xf]
      %v780 = vld [vmem:[#allocation8 + $0x80] sm:$0xf]
      %v781 = vld [vmem:[#allocation8 + $0x8c] sm:$0xf]
      %v782 = vld [vmem:[#allocation8 + $0x98] sm:$0xf]
      %v783 = vld [vmem:[#allocation8 + $0xa4] sm:$0xf]
      %v784 = vld [vmem:[#allocation8 + $0xb0] sm:$0xf]
      %v785 = vld [vmem:[#allocation8 + $0xbc] sm:$0xf]
      %v786 = vld [vmem:[#allocation3 + $0x10] sm:$0xff]
      %v787 = vld [vmem:[%s4] sm:$0x1]
      %v789 = vlaneseq
      %v790 = vshrl.u32 %v789, 7
      %v791 = vsub.s32 0, %v790
      %v792 = vrot.slane %v787, %v791
      %v810 = vunpack.c.l.b16 %v770
      %v811 = vunpack.c.l.b16 %v771
      %v812 = vunpack.c.l.b16 %v772
      %v813 = vunpack.c.l.b16 %v773
      %v814 = vunpack.c.l.b16 %v774
      %v815 = vunpack.c.l.b16 %v775
      %v816 = vunpack.c.l.b16 %v776
      %v817 = vunpack.c.l.b16 %v777
      %v818 = vunpack.c.l.b16 %v778
      %v819 = vunpack.c.l.b16 %v779
      %v820 = vunpack.c.l.b16 %v780
      %v821 = vunpack.c.l.b16 %v781
      %v822 = vunpack.c.l.b16 %v782
      %v823 = vunpack.c.l.b16 %v783
      %v824 = vunpack.c.l.b16 %v784
      %v825 = vunpack.c.l.b16 %v785
      %v826 = vpack.c.b16 %v811, %v810
      %v827 = vpack.c.b16 %v813, %v812
      %v828 = vpack.c.b16 %v815, %v814
      %v829 = vpack.c.b16 %v817, %v816
      %v830 = vpack.c.b16 %v819, %v818
      %v831 = vpack.c.b16 %v821, %v820
      %v832 = vpack.c.b16 %v823, %v822
      %v833 = vpack.c.b16 %v825, %v824
      %842 = vmatprep.subr.bf16.mxu0 0
      %843 = vmatpush1.bf16.msra.mxu0 %v826
      %844 = vmatprep.subr.bf16.mxu0 0
      %845 = vmatpush1.bf16.msra.mxu0 %v827
      %846 = vmatprep.subr.bf16.mxu0 0
      %847 = vmatpush1.bf16.msra.mxu0 %v828
      %848 = vmatprep.subr.bf16.mxu0 0
      %849 = vmatpush1.bf16.msra.mxu0 %v829
      %850 = vmatprep.subr.bf16.mxu0 0
      %851 = vmatpush1.bf16.msra.mxu0 %v830
      %852 = vmatprep.subr.bf16.mxu0 0
      %853 = vmatpush1.bf16.msra.mxu0 %v831
      %854 = vmatprep.subr.bf16.mxu0 0
      %855 = vmatpush1.bf16.msra.mxu0 %v832
      %856 = vmatprep.subr.bf16.mxu0 0
      %857 = vmatpush1.bf16.msra.mxu0 %v833
      %858 = vmatprep.subr.bf16.mxu0 0
      %859 = vmatpush1.bf16.msra.mxu0 0
      %860 = vmatprep.subr.bf16.mxu0 0
      %861 = vmatpush1.bf16.msra.mxu0 0
      %862 = vmatprep.subr.bf16.mxu0 0
      %863 = vmatpush1.bf16.msra.mxu0 0
      %864 = vmatprep.subr.bf16.mxu0 0
      %865 = vmatpush1.bf16.msra.mxu0 0
      %866 = vmatprep.subr.bf16.mxu0 0
      %867 = vmatpush1.bf16.msra.mxu0 0
      %868 = vmatprep.subr.bf16.mxu0 0
      %869 = vmatpush1.bf16.msra.mxu0 0
      %870 = vmatprep.subr.bf16.mxu0 0
      %871 = vmatpush1.bf16.msra.mxu0 0
      %872 = vmatprep.subr.bf16.mxu0 0
      %873 = vmatpush1.bf16.msra.mxu0 0
      %874 = vmatprep.mubr.bf16.mxu0 0
      %875 = vmatmul.mubr.bf16.gmra.mrb[0].mxu0 %v616
      %v876 = vpop.f32.mrb[0].mxu0
      %v877 = vadd.f32 %v792, %v876
      %v878 = vpop.f32.mrb[0].mxu0
      %v879 = vpop.f32.mrb[0].mxu0
      %v880 = vpop.f32.mrb[0].mxu0
      %881 = vdwg.mxu0
      %v882 = vmul.f32 %v761, %v877
      %v883 = vadd.f32 %v786, %v882
      %v884 = vtanh.pop %v883
      %v885 = vsub.f32 1.0, %v769
      %v886 = vmul.f32 %v885, %v884
      %v887 = vmul.f32 %v769, %v613
      %v888 = vadd.f32 %v886, %v887
      %v889 = vpack.c.bf16 %v888, %v888
      %v890 = vld [vmem:[%s5] sm:$0xf]
      %v891 = vld [vmem:[%s5 + $0x4] sm:$0xf]
      %v892 = vld [vmem:[%s5 + $0x8] sm:$0xf]
      %v893 = vld [vmem:[%s5 + $0xc] sm:$0xf]
      %v894 = vld [vmem:[%s5 + $0x10] sm:$0xf]
      %v895 = vld [vmem:[%s5 + $0x14] sm:$0xf]
      %v896 = vld [vmem:[%s5 + $0x18] sm:$0xf]
      %v897 = vld [vmem:[%s5 + $0x1c] sm:$0xf]
      %v898 = vld [vmem:[%s5 + $0x20] sm:$0xf]
      %v899 = vld [vmem:[%s5 + $0x24] sm:$0xf]
      %v900 = vld [vmem:[%s5 + $0x28] sm:$0xf]
      %v901 = vld [vmem:[%s5 + $0x2c] sm:$0xf]
      %v902 = vld [vmem:[%s5 + $0x30] sm:$0xf]
      %v903 = vld [vmem:[%s5 + $0x34] sm:$0xf]
      %v904 = vld [vmem:[%s5 + $0x38] sm:$0xf]
      %v905 = vld [vmem:[%s5 + $0x3c] sm:$0xf]
      %v906 = vld [vmem:[%s6] sm:$0x1]
      %v908 = vlaneseq
      %v909 = vshrl.u32 %v908, 7
      %v910 = vsub.s32 0, %v909
      %v911 = vrot.slane %v906, %v910
      %v929 = vunpack.c.l.b16 %v890
      %v930 = vunpack.c.l.b16 %v891
      %v931 = vunpack.c.l.b16 %v892
      %v932 = vunpack.c.l.b16 %v893
      %v933 = vunpack.c.l.b16 %v894
      %v934 = vunpack.c.l.b16 %v895
      %v935 = vunpack.c.l.b16 %v896
      %v936 = vunpack.c.l.b16 %v897
      %v937 = vunpack.c.l.b16 %v898
      %v938 = vunpack.c.l.b16 %v899
      %v939 = vunpack.c.l.b16 %v900
      %v940 = vunpack.c.l.b16 %v901
      %v941 = vunpack.c.l.b16 %v902
      %v942 = vunpack.c.l.b16 %v903
      %v943 = vunpack.c.l.b16 %v904
      %v944 = vunpack.c.l.b16 %v905
      %v945 = vpack.c.b16 %v930, %v929
      %v946 = vpack.c.b16 %v932, %v931
      %v947 = vpack.c.b16 %v934, %v933
      %v948 = vpack.c.b16 %v936, %v935
      %v949 = vpack.c.b16 %v938, %v937
      %v950 = vpack.c.b16 %v940, %v939
      %v951 = vpack.c.b16 %v942, %v941
      %v952 = vpack.c.b16 %v944, %v943
      %961 = vmatprep.subr.bf16.mxu0 0
      %962 = vmatpush1.bf16.msra.mxu0 %v945
      %963 = vmatprep.subr.bf16.mxu0 0
      %964 = vmatpush1.bf16.msra.mxu0 %v946
      %965 = vmatprep.subr.bf16.mxu0 0
      %966 = vmatpush1.bf16.msra.mxu0 %v947
      %967 = vmatprep.subr.bf16.mxu0 0
      %968 = vmatpush1.bf16.msra.mxu0 %v948
      %969 = vmatprep.subr.bf16.mxu0 0
      %970 = vmatpush1.bf16.msra.mxu0 %v949
      %971 = vmatprep.subr.bf16.mxu0 0
      %972 = vmatpush1.bf16.msra.mxu0 %v950
      %973 = vmatprep.subr.bf16.mxu0 0
      %974 = vmatpush1.bf16.msra.mxu0 %v951
      %975 = vmatprep.subr.bf16.mxu0 0
      %976 = vmatpush1.bf16.msra.mxu0 %v952
      %977 = vmatprep.subr.bf16.mxu0 0
      %978 = vmatpush1.bf16.msra.mxu0 0
      %979 = vmatprep.subr.bf16.mxu0 0
      %980 = vmatpush1.bf16.msra.mxu0 0
      %981 = vmatprep.subr.bf16.mxu0 0
      %982 = vmatpush1.bf16.msra.mxu0 0
      %983 = vmatprep.subr.bf16.mxu0 0
      %984 = vmatpush1.bf16.msra.mxu0 0
      %985 = vmatprep.subr.bf16.mxu0 0
      %986 = vmatpush1.bf16.msra.mxu0 0
      %987 = vmatprep.subr.bf16.mxu0 0
      %988 = vmatpush1.bf16.msra.mxu0 0
      %989 = vmatprep.subr.bf16.mxu0 0
      %990 = vmatpush1.bf16.msra.mxu0 0
      %991 = vmatprep.subr.bf16.mxu0 0
      %992 = vmatpush1.bf16.msra.mxu0 0
      %993 = vmatprep.mubr.bf16.mxu0 0
      %994 = vmatmul.mubr.bf16.gmra.mrb[0].mxu0 %v889
      %v995 = vpop.f32.mrb[0].mxu0
      %v996 = vadd.f32 %v911, %v995
      %v997 = vpop.f32.mrb[0].mxu0
      %v998 = vpop.f32.mrb[0].mxu0
      %v999 = vpop.f32.mrb[0].mxu0
      %1000 = vdwg.mxu0
      %vm1001 = vcmp.gt.f32.partialorder %v996, 0.0
      %vm1002 = vmand %vm615, %vm1001
      %v1003 = vld [vmem:[#allocation6] sm:$0xff]
      %1005 = vrot.lane.b32.xlu0 %v996, 127
      %v1006 = vpop.permute.xlu0 %1005
      %v1008 = vsel %vm1002, %v1006, %v1003
      %1009 = vst.msk [vmem:[#allocation6] sm:$0xff] %vm46, %v1008
      %v1010 = vsel %vm615, 1, 0
      %1011 = vset.pattern.permute.xlu0 0
      %1012 = vperm.xlu0 %1011, %v1010
      %v1013 = vpop.permute.xlu0 %1012
      %vm1014 = vcmp.eq.s32.totalorder %v1013, 1
      %v1015 = vsel %vm1014, %v888, %v613
      %1016 = vst [vmem:[#allocation2] sm:$0xff] %v1015
      %v1017 = vld [vmem:[#allocation5] sm:$0xff]
      %v1018 = vadd.f32 %v1017, 1.0
      %v1019 = vsel %vm615, %v1018, %v1017
      %1020 = vst.msk [vmem:[#allocation5] sm:$0xff] %vm46, %v1019
      %v1021 = vld [vmem:[#allocation4] sm:$0xff]
      %v1022 = vsel %vm1002, 1.0, %v1021
      %1023 = vst.msk [vmem:[#allocation4] sm:$0xff] %vm46, %v1022
      %v1024 = vsel %vm46, %v1022, 0.0
      %1025 = vadd.xlane.f32.xlu0 %v1024
      %v1026 = vpop.xlane.xlu0 %1025
      %v1027 = vrot.slane %v1026, 4
      %v1028 = vadd.f32 %v1026, %v1027
      %v1029 = vrot.slane %v1028, 2
      %v1030 = vadd.f32 %v1028, %v1029
      %v1031 = vrot.slane %v1030, 1
      %v1032 = vadd.f32 %v1030, %v1031
      %s1033 = vtos %v1032
      %p1034 = scmp.gt.f32.partialorder %s1033, 7.5
      %s1035 = scalar_select %p1034, 1, 0
      %1036 = sst [smem:[%s50]] %s1035
    $region41: #{tpu_custom_call.1} parent=1 // pred_fallthru
      _
    %s1037 = sld [smem:[#allocation7]]
    %p1038 = scmp.eq.s32.totalorder %s1037, 0
    // Predicated region
    $region42: #{tpu_custom_call.1} parent=1 // pred_check
      %p1039 = pneg %p1038
    $region43: #{tpu_custom_call.1} parent=1 // pred_check_branch
      %1041 = sbr.rel (%p1039) target = $region45
    $region44: #{tpu_custom_call.1} parent=1 // pred_region
      %v1042 = vld [vmem:[#allocation2] sm:$0xff]
      %v1043 = vld [vmem:[#allocation4] sm:$0xff]
      %vm1044 = vcmp.lt.f32.partialorder %v1043, 0.5
      %v1045 = vpack.c.bf16 %v1042, %v1042
      %v1046 = vld [vmem:[#allocation8] sm:$0xff]
      %v1047 = vld [vmem:[#allocation8 + $0xc] sm:$0xff]
      %v1048 = vld [vmem:[#allocation8 + $0x18] sm:$0xff]
      %v1049 = vld [vmem:[#allocation8 + $0x24] sm:$0xff]
      %v1050 = vld [vmem:[#allocation8 + $0x30] sm:$0xff]
      %v1051 = vld [vmem:[#allocation8 + $0x3c] sm:$0xff]
      %v1052 = vld [vmem:[#allocation8 + $0x48] sm:$0xff]
      %v1053 = vld [vmem:[#allocation8 + $0x54] sm:$0xff]
      %v1054 = vld [vmem:[#allocation8 + $0x60] sm:$0xff]
      %v1055 = vld [vmem:[#allocation8 + $0x6c] sm:$0xff]
      %v1056 = vld [vmem:[#allocation8 + $0x78] sm:$0xff]
      %v1057 = vld [vmem:[#allocation8 + $0x84] sm:$0xff]
      %v1058 = vld [vmem:[#allocation8 + $0x90] sm:$0xff]
      %v1059 = vld [vmem:[#allocation8 + $0x9c] sm:$0xff]
      %v1060 = vld [vmem:[#allocation8 + $0xa8] sm:$0xff]
      %v1061 = vld [vmem:[#allocation8 + $0xb4] sm:$0xff]
      %v1078 = vunpack.c.l.b16 %v1046
      %v1079 = vunpack.c.h.b16 %v1046
      %v1080 = vunpack.c.l.b16 %v1047
      %v1081 = vunpack.c.h.b16 %v1047
      %v1082 = vunpack.c.l.b16 %v1048
      %v1083 = vunpack.c.h.b16 %v1048
      %v1084 = vunpack.c.l.b16 %v1049
      %v1085 = vunpack.c.h.b16 %v1049
      %v1086 = vunpack.c.l.b16 %v1050
      %v1087 = vunpack.c.h.b16 %v1050
      %v1088 = vunpack.c.l.b16 %v1051
      %v1089 = vunpack.c.h.b16 %v1051
      %v1090 = vunpack.c.l.b16 %v1052
      %v1091 = vunpack.c.h.b16 %v1052
      %v1092 = vunpack.c.l.b16 %v1053
      %v1093 = vunpack.c.h.b16 %v1053
      %v1094 = vunpack.c.l.b16 %v1054
      %v1095 = vunpack.c.h.b16 %v1054
      %v1096 = vunpack.c.l.b16 %v1055
      %v1097 = vunpack.c.h.b16 %v1055
      %v1098 = vunpack.c.l.b16 %v1056
      %v1099 = vunpack.c.h.b16 %v1056
      %v1100 = vunpack.c.l.b16 %v1057
      %v1101 = vunpack.c.h.b16 %v1057
      %v1102 = vunpack.c.l.b16 %v1058
      %v1103 = vunpack.c.h.b16 %v1058
      %v1104 = vunpack.c.l.b16 %v1059
      %v1105 = vunpack.c.h.b16 %v1059
      %v1106 = vunpack.c.l.b16 %v1060
      %v1107 = vunpack.c.h.b16 %v1060
      %v1108 = vunpack.c.l.b16 %v1061
      %v1109 = vunpack.c.h.b16 %v1061
      %v1110 = vpack.c.b16 %v1080, %v1078
      %v1111 = vpack.c.b16 %v1081, %v1079
      %v1112 = vpack.c.b16 %v1084, %v1082
      %v1113 = vpack.c.b16 %v1085, %v1083
      %v1114 = vpack.c.b16 %v1088, %v1086
      %v1115 = vpack.c.b16 %v1089, %v1087
      %v1116 = vpack.c.b16 %v1092, %v1090
      %v1117 = vpack.c.b16 %v1093, %v1091
      %v1118 = vpack.c.b16 %v1096, %v1094
      %v1119 = vpack.c.b16 %v1097, %v1095
      %v1120 = vpack.c.b16 %v1100, %v1098
      %v1121 = vpack.c.b16 %v1101, %v1099
      %v1122 = vpack.c.b16 %v1104, %v1102
      %v1123 = vpack.c.b16 %v1105, %v1103
      %v1124 = vpack.c.b16 %v1108, %v1106
      %v1125 = vpack.c.b16 %v1109, %v1107
      %1142 = vmatprep.subr.bf16.mxu0 %v1111
      %1143 = vmatpush1.bf16.msra.mxu0 %v1110
      %1144 = vmatprep.subr.bf16.mxu0 %v1113
      %1145 = vmatpush1.bf16.msra.mxu0 %v1112
      %1146 = vmatprep.subr.bf16.mxu0 %v1115
      %1147 = vmatpush1.bf16.msra.mxu0 %v1114
      %1148 = vmatprep.subr.bf16.mxu0 %v1117
      %1149 = vmatpush1.bf16.msra.mxu0 %v1116
      %1150 = vmatprep.subr.bf16.mxu0 %v1119
      %1151 = vmatpush1.bf16.msra.mxu0 %v1118
      %1152 = vmatprep.subr.bf16.mxu0 %v1121
      %1153 = vmatpush1.bf16.msra.mxu0 %v1120
      %1154 = vmatprep.subr.bf16.mxu0 %v1123
      %1155 = vmatpush1.bf16.msra.mxu0 %v1122
      %1156 = vmatprep.subr.bf16.mxu0 %v1125
      %1157 = vmatpush1.bf16.msra.mxu0 %v1124
      %1158 = vmatprep.subr.bf16.mxu0 0
      %1159 = vmatpush1.bf16.msra.mxu0 0
      %1160 = vmatprep.subr.bf16.mxu0 0
      %1161 = vmatpush1.bf16.msra.mxu0 0
      %1162 = vmatprep.subr.bf16.mxu0 0
      %1163 = vmatpush1.bf16.msra.mxu0 0
      %1164 = vmatprep.subr.bf16.mxu0 0
      %1165 = vmatpush1.bf16.msra.mxu0 0
      %1166 = vmatprep.subr.bf16.mxu0 0
      %1167 = vmatpush1.bf16.msra.mxu0 0
      %1168 = vmatprep.subr.bf16.mxu0 0
      %1169 = vmatpush1.bf16.msra.mxu0 0
      %1170 = vmatprep.subr.bf16.mxu0 0
      %1171 = vmatpush1.bf16.msra.mxu0 0
      %1172 = vmatprep.subr.bf16.mxu0 0
      %1173 = vmatpush1.bf16.msra.mxu0 0
      %1174 = vmatprep.mubr.bf16.mxu0 0
      %1175 = vmatmul.mubr.bf16.gmra.mrb[0].mxu0 %v1045
      %v1176 = vpop.f32.mrb[0].mxu0
      %v1177 = vadd.f32 0.0, %v1176
      %v1178 = vpop.f32.mrb[0].mxu0
      %v1179 = vadd.f32 0.0, %v1178
      %v1180 = vpop.f32.mrb[0].mxu0
      %v1181 = vpop.f32.mrb[0].mxu0
      %1182 = vdwg.mxu0
      %v1183 = vld [vmem:[#allocation3] sm:$0xff]
      %v1184 = vadd.f32 %v1183, %v1177
      %v1185 = vxor.u32 %v1184, 2147483648
      %v1186 = vmul.f32 %v1185, 1.442695
      %v1187 = vpow.pop %v1186
      %v1188 = vadd.f32 %v1187, 1.0
      %v1189 = vrcp.pop %v1188
      %v1190 = vmul.f32 1.0, %v1189
      %v1191 = vld [vmem:[#allocation3 + $0x8] sm:$0xff]
      %v1192 = vadd.f32 %v1191, %v1179
      %v1193 = vxor.u32 %v1192, 2147483648
      %v1194 = vmul.f32 %v1193, 1.442695
      %v1195 = vpow.pop %v1194
      %v1196 = vadd.f32 %v1195, 1.0
      %v1197 = vrcp.pop %v1196
      %v1198 = vmul.f32 1.0, %v1197
      %v1199 = vld [vmem:[#allocation8 + $0x8] sm:$0xf]
      %v1200 = vld [vmem:[#allocation8 + $0x14] sm:$0xf]
      %v1201 = vld [vmem:[#allocation8 + $0x20] sm:$0xf]
      %v1202 = vld [vmem:[#allocation8 + $0x2c] sm:$0xf]
      %v1203 = vld [vmem:[#allocation8 + $0x38] sm:$0xf]
      %v1204 = vld [vmem:[#allocation8 + $0x44] sm:$0xf]
      %v1205 = vld [vmem:[#allocation8 + $0x50] sm:$0xf]
      %v1206 = vld [vmem:[#allocation8 + $0x5c] sm:$0xf]
      %v1207 = vld [vmem:[#allocation8 + $0x68] sm:$0xf]
      %v1208 = vld [vmem:[#allocation8 + $0x74] sm:$0xf]
      %v1209 = vld [vmem:[#allocation8 + $0x80] sm:$0xf]
      %v1210 = vld [vmem:[#allocation8 + $0x8c] sm:$0xf]
      %v1211 = vld [vmem:[#allocation8 + $0x98] sm:$0xf]
      %v1212 = vld [vmem:[#allocation8 + $0xa4] sm:$0xf]
      %v1213 = vld [vmem:[#allocation8 + $0xb0] sm:$0xf]
      %v1214 = vld [vmem:[#allocation8 + $0xbc] sm:$0xf]
      %v1215 = vld [vmem:[#allocation3 + $0x10] sm:$0xff]
      %v1216 = vld [vmem:[%s4] sm:$0x1]
      %v1218 = vlaneseq
      %v1219 = vshrl.u32 %v1218, 7
      %v1220 = vsub.s32 0, %v1219
      %v1221 = vrot.slane %v1216, %v1220
      %v1239 = vunpack.c.l.b16 %v1199
      %v1240 = vunpack.c.l.b16 %v1200
      %v1241 = vunpack.c.l.b16 %v1201
      %v1242 = vunpack.c.l.b16 %v1202
      %v1243 = vunpack.c.l.b16 %v1203
      %v1244 = vunpack.c.l.b16 %v1204
      %v1245 = vunpack.c.l.b16 %v1205
      %v1246 = vunpack.c.l.b16 %v1206
      %v1247 = vunpack.c.l.b16 %v1207
      %v1248 = vunpack.c.l.b16 %v1208
      %v1249 = vunpack.c.l.b16 %v1209
      %v1250 = vunpack.c.l.b16 %v1210
      %v1251 = vunpack.c.l.b16 %v1211
      %v1252 = vunpack.c.l.b16 %v1212
      %v1253 = vunpack.c.l.b16 %v1213
      %v1254 = vunpack.c.l.b16 %v1214
      %v1255 = vpack.c.b16 %v1240, %v1239
      %v1256 = vpack.c.b16 %v1242, %v1241
      %v1257 = vpack.c.b16 %v1244, %v1243
      %v1258 = vpack.c.b16 %v1246, %v1245
      %v1259 = vpack.c.b16 %v1248, %v1247
      %v1260 = vpack.c.b16 %v1250, %v1249
      %v1261 = vpack.c.b16 %v1252, %v1251
      %v1262 = vpack.c.b16 %v1254, %v1253
      %1271 = vmatprep.subr.bf16.mxu0 0
      %1272 = vmatpush1.bf16.msra.mxu0 %v1255
      %1273 = vmatprep.subr.bf16.mxu0 0
      %1274 = vmatpush1.bf16.msra.mxu0 %v1256
      %1275 = vmatprep.subr.bf16.mxu0 0
      %1276 = vmatpush1.bf16.msra.mxu0 %v1257
      %1277 = vmatprep.subr.bf16.mxu0 0
      %1278 = vmatpush1.bf16.msra.mxu0 %v1258
      %1279 = vmatprep.subr.bf16.mxu0 0
      %1280 = vmatpush1.bf16.msra.mxu0 %v1259
      %1281 = vmatprep.subr.bf16.mxu0 0
      %1282 = vmatpush1.bf16.msra.mxu0 %v1260
      %1283 = vmatprep.subr.bf16.mxu0 0
      %1284 = vmatpush1.bf16.msra.mxu0 %v1261
      %1285 = vmatprep.subr.bf16.mxu0 0
      %1286 = vmatpush1.bf16.msra.mxu0 %v1262
      %1287 = vmatprep.subr.bf16.mxu0 0
      %1288 = vmatpush1.bf16.msra.mxu0 0
      %1289 = vmatprep.subr.bf16.mxu0 0
      %1290 = vmatpush1.bf16.msra.mxu0 0
      %1291 = vmatprep.subr.bf16.mxu0 0
      %1292 = vmatpush1.bf16.msra.mxu0 0
      %1293 = vmatprep.subr.bf16.mxu0 0
      %1294 = vmatpush1.bf16.msra.mxu0 0
      %1295 = vmatprep.subr.bf16.mxu0 0
      %1296 = vmatpush1.bf16.msra.mxu0 0
      %1297 = vmatprep.subr.bf16.mxu0 0
      %1298 = vmatpush1.bf16.msra.mxu0 0
      %1299 = vmatprep.subr.bf16.mxu0 0
      %1300 = vmatpush1.bf16.msra.mxu0 0
      %1301 = vmatprep.subr.bf16.mxu0 0
      %1302 = vmatpush1.bf16.msra.mxu0 0
      %1303 = vmatprep.mubr.bf16.mxu0 0
      %1304 = vmatmul.mubr.bf16.gmra.mrb[0].mxu0 %v1045
      %v1305 = vpop.f32.mrb[0].mxu0
      %v1306 = vadd.f32 %v1221, %v1305
      %v1307 = vpop.f32.mrb[0].mxu0
      %v1308 = vpop.f32.mrb[0].mxu0
      %v1309 = vpop.f32.mrb[0].mxu0
      %1310 = vdwg.mxu0
      %v1311 = vmul.f32 %v1190, %v1306
      %v1312 = vadd.f32 %v1215, %v1311
      %v1313 = vtanh.pop %v1312
      %v1314 = vsub.f32 1.0, %v1198
      %v1315 = vmul.f32 %v1314, %v1313
      %v1316 = vmul.f32 %v1198, %v1042
      %v1317 = vadd.f32 %v1315, %v1316
      %v1318 = vpack.c.bf16 %v1317, %v1317
      %v1319 = vld [vmem:[%s5] sm:$0xf]
      %v1320 = vld [vmem:[%s5 + $0x4] sm:$0xf]
      %v1321 = vld [vmem:[%s5 + $0x8] sm:$0xf]
      %v1322 = vld [vmem:[%s5 + $0xc] sm:$0xf]
      %v1323 = vld [vmem:[%s5 + $0x10] sm:$0xf]
      %v1324 = vld [vmem:[%s5 + $0x14] sm:$0xf]
      %v1325 = vld [vmem:[%s5 + $0x18] sm:$0xf]
      %v1326 = vld [vmem:[%s5 + $0x1c] sm:$0xf]
      %v1327 = vld [vmem:[%s5 + $0x20] sm:$0xf]
      %v1328 = vld [vmem:[%s5 + $0x24] sm:$0xf]
      %v1329 = vld [vmem:[%s5 + $0x28] sm:$0xf]
      %v1330 = vld [vmem:[%s5 + $0x2c] sm:$0xf]
      %v1331 = vld [vmem:[%s5 + $0x30] sm:$0xf]
      %v1332 = vld [vmem:[%s5 + $0x34] sm:$0xf]
      %v1333 = vld [vmem:[%s5 + $0x38] sm:$0xf]
      %v1334 = vld [vmem:[%s5 + $0x3c] sm:$0xf]
      %v1335 = vld [vmem:[%s6] sm:$0x1]
      %v1337 = vlaneseq
      %v1338 = vshrl.u32 %v1337, 7
      %v1339 = vsub.s32 0, %v1338
      %v1340 = vrot.slane %v1335, %v1339
      %v1358 = vunpack.c.l.b16 %v1319
      %v1359 = vunpack.c.l.b16 %v1320
      %v1360 = vunpack.c.l.b16 %v1321
      %v1361 = vunpack.c.l.b16 %v1322
      %v1362 = vunpack.c.l.b16 %v1323
      %v1363 = vunpack.c.l.b16 %v1324
      %v1364 = vunpack.c.l.b16 %v1325
      %v1365 = vunpack.c.l.b16 %v1326
      %v1366 = vunpack.c.l.b16 %v1327
      %v1367 = vunpack.c.l.b16 %v1328
      %v1368 = vunpack.c.l.b16 %v1329
      %v1369 = vunpack.c.l.b16 %v1330
      %v1370 = vunpack.c.l.b16 %v1331
      %v1371 = vunpack.c.l.b16 %v1332
      %v1372 = vunpack.c.l.b16 %v1333
      %v1373 = vunpack.c.l.b16 %v1334
      %v1374 = vpack.c.b16 %v1359, %v1358
      %v1375 = vpack.c.b16 %v1361, %v1360
      %v1376 = vpack.c.b16 %v1363, %v1362
      %v1377 = vpack.c.b16 %v1365, %v1364
      %v1378 = vpack.c.b16 %v1367, %v1366
      %v1379 = vpack.c.b16 %v1369, %v1368
      %v1380 = vpack.c.b16 %v1371, %v1370
      %v1381 = vpack.c.b16 %v1373, %v1372
      %1390 = vmatprep.subr.bf16.mxu0 0
      %1391 = vmatpush1.bf16.msra.mxu0 %v1374
      %1392 = vmatprep.subr.bf16.mxu0 0
      %1393 = vmatpush1.bf16.msra.mxu0 %v1375
      %1394 = vmatprep.subr.bf16.mxu0 0
      %1395 = vmatpush1.bf16.msra.mxu0 %v1376
      %1396 = vmatprep.subr.bf16.mxu0 0
      %1397 = vmatpush1.bf16.msra.mxu0 %v1377
      %1398 = vmatprep.subr.bf16.mxu0 0
      %1399 = vmatpush1.bf16.msra.mxu0 %v1378
      %1400 = vmatprep.subr.bf16.mxu0 0
      %1401 = vmatpush1.bf16.msra.mxu0 %v1379
      %1402 = vmatprep.subr.bf16.mxu0 0
      %1403 = vmatpush1.bf16.msra.mxu0 %v1380
      %1404 = vmatprep.subr.bf16.mxu0 0
      %1405 = vmatpush1.bf16.msra.mxu0 %v1381
      %1406 = vmatprep.subr.bf16.mxu0 0
      %1407 = vmatpush1.bf16.msra.mxu0 0
      %1408 = vmatprep.subr.bf16.mxu0 0
      %1409 = vmatpush1.bf16.msra.mxu0 0
      %1410 = vmatprep.subr.bf16.mxu0 0
      %1411 = vmatpush1.bf16.msra.mxu0 0
      %1412 = vmatprep.subr.bf16.mxu0 0
      %1413 = vmatpush1.bf16.msra.mxu0 0
      %1414 = vmatprep.subr.bf16.mxu0 0
      %1415 = vmatpush1.bf16.msra.mxu0 0
      %1416 = vmatprep.subr.bf16.mxu0 0
      %1417 = vmatpush1.bf16.msra.mxu0 0
      %1418 = vmatprep.subr.bf16.mxu0 0
      %1419 = vmatpush1.bf16.msra.mxu0 0
      %1420 = vmatprep.subr.bf16.mxu0 0
      %1421 = vmatpush1.bf16.msra.mxu0 0
      %1422 = vmatprep.mubr.bf16.mxu0 0
      %1423 = vmatmul.mubr.bf16.gmra.mrb[0].mxu0 %v1318
      %v1424 = vpop.f32.mrb[0].mxu0
      %v1425 = vadd.f32 %v1340, %v1424
      %v1426 = vpop.f32.mrb[0].mxu0
      %v1427 = vpop.f32.mrb[0].mxu0
      %v1428 = vpop.f32.mrb[0].mxu0
      %1429 = vdwg.mxu0
      %vm1430 = vcmp.gt.f32.partialorder %v1425, 0.0
      %vm1431 = vmand %vm1044, %vm1430
      %v1432 = vld [vmem:[#allocation6] sm:$0xff]
      %1434 = vrot.lane.b32.xlu0 %v1425, 127
      %v1435 = vpop.permute.xlu0 %1434
      %v1437 = vsel %vm1431, %v1435, %v1432
      %1438 = vst.msk [vmem:[#allocation6] sm:$0xff] %vm46, %v1437
      %v1439 = vsel %vm1044, 1, 0
      %1440 = vset.pattern.permute.xlu0 0
      %1441 = vperm.xlu0 %1440, %v1439
      %v1442 = vpop.permute.xlu0 %1441
      %vm1443 = vcmp.eq.s32.totalorder %v1442, 1
      %v1444 = vsel %vm1443, %v1317, %v1042
      %1445 = vst [vmem:[#allocation2] sm:$0xff] %v1444
      %v1446 = vld [vmem:[#allocation5] sm:$0xff]
      %v1447 = vadd.f32 %v1446, 1.0
      %v1448 = vsel %vm1044, %v1447, %v1446
      %1449 = vst.msk [vmem:[#allocation5] sm:$0xff] %vm46, %v1448
      %v1450 = vld [vmem:[#allocation4] sm:$0xff]
      %v1451 = vsel %vm1431, 1.0, %v1450
      %1452 = vst.msk [vmem:[#allocation4] sm:$0xff] %vm46, %v1451
      %v1453 = vsel %vm46, %v1451, 0.0
      %1454 = vadd.xlane.f32.xlu0 %v1453
      %v1455 = vpop.xlane.xlu0 %1454
      %v1456 = vrot.slane %v1455, 4
      %v1457 = vadd.f32 %v1455, %v1456
      %v1458 = vrot.slane %v1457, 2
      %v1459 = vadd.f32 %v1457, %v1458
      %v1460 = vrot.slane %v1459, 1
      %v1461 = vadd.f32 %v1459, %v1460
      %s1462 = vtos %v1461
      %p1463 = scmp.gt.f32.partialorder %s1462, 7.5
      %s1464 = scalar_select %p1463, 1, 0
      %1465 = sst [smem:[%s50]] %s1464
    $region45: #{tpu_custom_call.1} parent=1 // pred_fallthru
      _
    %s1466 = sld [smem:[#allocation7]]
    %p1467 = scmp.eq.s32.totalorder %s1466, 0
    // Predicated region
    $region46: #{tpu_custom_call.1} parent=1 // pred_check
      %p1468 = pneg %p1467
    $region47: #{tpu_custom_call.1} parent=1 // pred_check_branch
      %1470 = sbr.rel (%p1468) target = $region49
    $region48: #{tpu_custom_call.1} parent=1 // pred_region
      %v1471 = vld [vmem:[#allocation2] sm:$0xff]
      %v1472 = vld [vmem:[#allocation4] sm:$0xff]
      %vm1473 = vcmp.lt.f32.partialorder %v1472, 0.5
      %v1474 = vpack.c.bf16 %v1471, %v1471
      %v1475 = vld [vmem:[#allocation8] sm:$0xff]
      %v1476 = vld [vmem:[#allocation8 + $0xc] sm:$0xff]
      %v1477 = vld [vmem:[#allocation8 + $0x18] sm:$0xff]
      %v1478 = vld [vmem:[#allocation8 + $0x24] sm:$0xff]
      %v1479 = vld [vmem:[#allocation8 + $0x30] sm:$0xff]
      %v1480 = vld [vmem:[#allocation8 + $0x3c] sm:$0xff]
      %v1481 = vld [vmem:[#allocation8 + $0x48] sm:$0xff]
      %v1482 = vld [vmem:[#allocation8 + $0x54] sm:$0xff]
      %v1483 = vld [vmem:[#allocation8 + $0x60] sm:$0xff]
      %v1484 = vld [vmem:[#allocation8 + $0x6c] sm:$0xff]
      %v1485 = vld [vmem:[#allocation8 + $0x78] sm:$0xff]
      %v1486 = vld [vmem:[#allocation8 + $0x84] sm:$0xff]
      %v1487 = vld [vmem:[#allocation8 + $0x90] sm:$0xff]
      %v1488 = vld [vmem:[#allocation8 + $0x9c] sm:$0xff]
      %v1489 = vld [vmem:[#allocation8 + $0xa8] sm:$0xff]
      %v1490 = vld [vmem:[#allocation8 + $0xb4] sm:$0xff]
      %v1507 = vunpack.c.l.b16 %v1475
      %v1508 = vunpack.c.h.b16 %v1475
      %v1509 = vunpack.c.l.b16 %v1476
      %v1510 = vunpack.c.h.b16 %v1476
      %v1511 = vunpack.c.l.b16 %v1477
      %v1512 = vunpack.c.h.b16 %v1477
      %v1513 = vunpack.c.l.b16 %v1478
      %v1514 = vunpack.c.h.b16 %v1478
      %v1515 = vunpack.c.l.b16 %v1479
      %v1516 = vunpack.c.h.b16 %v1479
      %v1517 = vunpack.c.l.b16 %v1480
      %v1518 = vunpack.c.h.b16 %v1480
      %v1519 = vunpack.c.l.b16 %v1481
      %v1520 = vunpack.c.h.b16 %v1481
      %v1521 = vunpack.c.l.b16 %v1482
      %v1522 = vunpack.c.h.b16 %v1482
      %v1523 = vunpack.c.l.b16 %v1483
      %v1524 = vunpack.c.h.b16 %v1483
      %v1525 = vunpack.c.l.b16 %v1484
      %v1526 = vunpack.c.h.b16 %v1484
      %v1527 = vunpack.c.l.b16 %v1485
      %v1528 = vunpack.c.h.b16 %v1485
      %v1529 = vunpack.c.l.b16 %v1486
      %v1530 = vunpack.c.h.b16 %v1486
      %v1531 = vunpack.c.l.b16 %v1487
      %v1532 = vunpack.c.h.b16 %v1487
      %v1533 = vunpack.c.l.b16 %v1488
      %v1534 = vunpack.c.h.b16 %v1488
      %v1535 = vunpack.c.l.b16 %v1489
      %v1536 = vunpack.c.h.b16 %v1489
      %v1537 = vunpack.c.l.b16 %v1490
      %v1538 = vunpack.c.h.b16 %v1490
      %v1539 = vpack.c.b16 %v1509, %v1507
      %v1540 = vpack.c.b16 %v1510, %v1508
      %v1541 = vpack.c.b16 %v1513, %v1511
      %v1542 = vpack.c.b16 %v1514, %v1512
      %v1543 = vpack.c.b16 %v1517, %v1515
      %v1544 = vpack.c.b16 %v1518, %v1516
      %v1545 = vpack.c.b16 %v1521, %v1519
      %v1546 = vpack.c.b16 %v1522, %v1520
      %v1547 = vpack.c.b16 %v1525, %v1523
      %v1548 = vpack.c.b16 %v1526, %v1524
      %v1549 = vpack.c.b16 %v1529, %v1527
      %v1550 = vpack.c.b16 %v1530, %v1528
      %v1551 = vpack.c.b16 %v1533, %v1531
      %v1552 = vpack.c.b16 %v1534, %v1532
      %v1553 = vpack.c.b16 %v1537, %v1535
      %v1554 = vpack.c.b16 %v1538, %v1536
      %1571 = vmatprep.subr.bf16.mxu0 %v1540
      %1572 = vmatpush1.bf16.msra.mxu0 %v1539
      %1573 = vmatprep.subr.bf16.mxu0 %v1542
      %1574 = vmatpush1.bf16.msra.mxu0 %v1541
      %1575 = vmatprep.subr.bf16.mxu0 %v1544
      %1576 = vmatpush1.bf16.msra.mxu0 %v1543
      %1577 = vmatprep.subr.bf16.mxu0 %v1546
      %1578 = vmatpush1.bf16.msra.mxu0 %v1545
      %1579 = vmatprep.subr.bf16.mxu0 %v1548
      %1580 = vmatpush1.bf16.msra.mxu0 %v1547
      %1581 = vmatprep.subr.bf16.mxu0 %v1550
      %1582 = vmatpush1.bf16.msra.mxu0 %v1549
      %1583 = vmatprep.subr.bf16.mxu0 %v1552
      %1584 = vmatpush1.bf16.msra.mxu0 %v1551
      %1585 = vmatprep.subr.bf16.mxu0 %v1554
      %1586 = vmatpush1.bf16.msra.mxu0 %v1553
      %1587 = vmatprep.subr.bf16.mxu0 0
      %1588 = vmatpush1.bf16.msra.mxu0 0
      %1589 = vmatprep.subr.bf16.mxu0 0
      %1590 = vmatpush1.bf16.msra.mxu0 0
      %1591 = vmatprep.subr.bf16.mxu0 0
      %1592 = vmatpush1.bf16.msra.mxu0 0
      %1593 = vmatprep.subr.bf16.mxu0 0
      %1594 = vmatpush1.bf16.msra.mxu0 0
      %1595 = vmatprep.subr.bf16.mxu0 0
      %1596 = vmatpush1.bf16.msra.mxu0 0
      %1597 = vmatprep.subr.bf16.mxu0 0
      %1598 = vmatpush1.bf16.msra.mxu0 0
      %1599 = vmatprep.subr.bf16.mxu0 0
      %1600 = vmatpush1.bf16.msra.mxu0 0
      %1601 = vmatprep.subr.bf16.mxu0 0
      %1602 = vmatpush1.bf16.msra.mxu0 0
      %1603 = vmatprep.mubr.bf16.mxu0 0
      %1604 = vmatmul.mubr.bf16.gmra.mrb[0].mxu0 %v1474
      %v1605 = vpop.f32.mrb[0].mxu0
      %v1606 = vadd.f32 0.0, %v1605
      %v1607 = vpop.f32.mrb[0].mxu0
      %v1608 = vadd.f32 0.0, %v1607
      %v1609 = vpop.f32.mrb[0].mxu0
      %v1610 = vpop.f32.mrb[0].mxu0
      %1611 = vdwg.mxu0
      %v1612 = vld [vmem:[#allocation3] sm:$0xff]
      %v1613 = vadd.f32 %v1612, %v1606
      %v1614 = vxor.u32 %v1613, 2147483648
      %v1615 = vmul.f32 %v1614, 1.442695
      %v1616 = vpow.pop %v1615
      %v1617 = vadd.f32 %v1616, 1.0
      %v1618 = vrcp.pop %v1617
      %v1619 = vmul.f32 1.0, %v1618
      %v1620 = vld [vmem:[#allocation3 + $0x8] sm:$0xff]
      %v1621 = vadd.f32 %v1620, %v1608
      %v1622 = vxor.u32 %v1621, 2147483648
      %v1623 = vmul.f32 %v1622, 1.442695
      %v1624 = vpow.pop %v1623
      %v1625 = vadd.f32 %v1624, 1.0
      %v1626 = vrcp.pop %v1625
      %v1627 = vmul.f32 1.0, %v1626
      %v1628 = vld [vmem:[#allocation8 + $0x8] sm:$0xf]
      %v1629 = vld [vmem:[#allocation8 + $0x14] sm:$0xf]
      %v1630 = vld [vmem:[#allocation8 + $0x20] sm:$0xf]
      %v1631 = vld [vmem:[#allocation8 + $0x2c] sm:$0xf]
      %v1632 = vld [vmem:[#allocation8 + $0x38] sm:$0xf]
      %v1633 = vld [vmem:[#allocation8 + $0x44] sm:$0xf]
      %v1634 = vld [vmem:[#allocation8 + $0x50] sm:$0xf]
      %v1635 = vld [vmem:[#allocation8 + $0x5c] sm:$0xf]
      %v1636 = vld [vmem:[#allocation8 + $0x68] sm:$0xf]
      %v1637 = vld [vmem:[#allocation8 + $0x74] sm:$0xf]
      %v1638 = vld [vmem:[#allocation8 + $0x80] sm:$0xf]
      %v1639 = vld [vmem:[#allocation8 + $0x8c] sm:$0xf]
      %v1640 = vld [vmem:[#allocation8 + $0x98] sm:$0xf]
      %v1641 = vld [vmem:[#allocation8 + $0xa4] sm:$0xf]
      %v1642 = vld [vmem:[#allocation8 + $0xb0] sm:$0xf]
      %v1643 = vld [vmem:[#allocation8 + $0xbc] sm:$0xf]
      %v1644 = vld [vmem:[#allocation3 + $0x10] sm:$0xff]
      %v1645 = vld [vmem:[%s4] sm:$0x1]
      %v1647 = vlaneseq
      %v1648 = vshrl.u32 %v1647, 7
      %v1649 = vsub.s32 0, %v1648
      %v1650 = vrot.slane %v1645, %v1649
      %v1668 = vunpack.c.l.b16 %v1628
      %v1669 = vunpack.c.l.b16 %v1629
      %v1670 = vunpack.c.l.b16 %v1630
      %v1671 = vunpack.c.l.b16 %v1631
      %v1672 = vunpack.c.l.b16 %v1632
      %v1673 = vunpack.c.l.b16 %v1633
      %v1674 = vunpack.c.l.b16 %v1634
      %v1675 = vunpack.c.l.b16 %v1635
      %v1676 = vunpack.c.l.b16 %v1636
      %v1677 = vunpack.c.l.b16 %v1637
      %v1678 = vunpack.c.l.b16 %v1638
      %v1679 = vunpack.c.l.b16 %v1639
      %v1680 = vunpack.c.l.b16 %v1640
      %v1681 = vunpack.c.l.b16 %v1641
      %v1682 = vunpack.c.l.b16 %v1642
      %v1683 = vunpack.c.l.b16 %v1643
      %v1684 = vpack.c.b16 %v1669, %v1668
      %v1685 = vpack.c.b16 %v1671, %v1670
      %v1686 = vpack.c.b16 %v1673, %v1672
      %v1687 = vpack.c.b16 %v1675, %v1674
      %v1688 = vpack.c.b16 %v1677, %v1676
      %v1689 = vpack.c.b16 %v1679, %v1678
      %v1690 = vpack.c.b16 %v1681, %v1680
      %v1691 = vpack.c.b16 %v1683, %v1682
      %1700 = vmatprep.subr.bf16.mxu0 0
      %1701 = vmatpush1.bf16.msra.mxu0 %v1684
      %1702 = vmatprep.subr.bf16.mxu0 0
      %1703 = vmatpush1.bf16.msra.mxu0 %v1685
      %1704 = vmatprep.subr.bf16.mxu0 0
      %1705 = vmatpush1.bf16.msra.mxu0 %v1686
      %1706 = vmatprep.subr.bf16.mxu0 0
      %1707 = vmatpush1.bf16.msra.mxu0 %v1687
      %1708 = vmatprep.subr.bf16.mxu0 0
      %1709 = vmatpush1.bf16.msra.mxu0 %v1688
      %1710 = vmatprep.subr.bf16.mxu0 0
      %1711 = vmatpush1.bf16.msra.mxu0 %v1689
      %1712 = vmatprep.subr.bf16.mxu0 0
      %1713 = vmatpush1.bf16.msra.mxu0 %v1690
      %1714 = vmatprep.subr.bf16.mxu0 0
      %1715 = vmatpush1.bf16.msra.mxu0 %v1691
      %1716 = vmatprep.subr.bf16.mxu0 0
      %1717 = vmatpush1.bf16.msra.mxu0 0
      %1718 = vmatprep.subr.bf16.mxu0 0
      %1719 = vmatpush1.bf16.msra.mxu0 0
      %1720 = vmatprep.subr.bf16.mxu0 0
      %1721 = vmatpush1.bf16.msra.mxu0 0
      %1722 = vmatprep.subr.bf16.mxu0 0
      %1723 = vmatpush1.bf16.msra.mxu0 0
      %1724 = vmatprep.subr.bf16.mxu0 0
      %1725 = vmatpush1.bf16.msra.mxu0 0
      %1726 = vmatprep.subr.bf16.mxu0 0
      %1727 = vmatpush1.bf16.msra.mxu0 0
      %1728 = vmatprep.subr.bf16.mxu0 0
      %1729 = vmatpush1.bf16.msra.mxu0 0
      %1730 = vmatprep.subr.bf16.mxu0 0
      %1731 = vmatpush1.bf16.msra.mxu0 0
      %1732 = vmatprep.mubr.bf16.mxu0 0
      %1733 = vmatmul.mubr.bf16.gmra.mrb[0].mxu0 %v1474
      %v1734 = vpop.f32.mrb[0].mxu0
      %v1735 = vadd.f32 %v1650, %v1734
      %v1736 = vpop.f32.mrb[0].mxu0
      %v1737 = vpop.f32.mrb[0].mxu0
      %v1738 = vpop.f32.mrb[0].mxu0
      %1739 = vdwg.mxu0
      %v1740 = vmul.f32 %v1619, %v1735
      %v1741 = vadd.f32 %v1644, %v1740
      %v1742 = vtanh.pop %v1741
      %v1743 = vsub.f32 1.0, %v1627
      %v1744 = vmul.f32 %v1743, %v1742
      %v1745 = vmul.f32 %v1627, %v1471
      %v1746 = vadd.f32 %v1744, %v1745
      %v1747 = vpack.c.bf16 %v1746, %v1746
      %v1748 = vld [vmem:[%s5] sm:$0xf]
      %v1749 = vld [vmem:[%s5 + $0x4] sm:$0xf]
      %v1750 = vld [vmem:[%s5 + $0x8] sm:$0xf]
      %v1751 = vld [vmem:[%s5 + $0xc] sm:$0xf]
      %v1752 = vld [vmem:[%s5 + $0x10] sm:$0xf]
      %v1753 = vld [vmem:[%s5 + $0x14] sm:$0xf]
      %v1754 = vld [vmem:[%s5 + $0x18] sm:$0xf]
      %v1755 = vld [vmem:[%s5 + $0x1c] sm:$0xf]
      %v1756 = vld [vmem:[%s5 + $0x20] sm:$0xf]
      %v1757 = vld [vmem:[%s5 + $0x24] sm:$0xf]
      %v1758 = vld [vmem:[%s5 + $0x28] sm:$0xf]
      %v1759 = vld [vmem:[%s5 + $0x2c] sm:$0xf]
      %v1760 = vld [vmem:[%s5 + $0x30] sm:$0xf]
      %v1761 = vld [vmem:[%s5 + $0x34] sm:$0xf]
      %v1762 = vld [vmem:[%s5 + $0x38] sm:$0xf]
      %v1763 = vld [vmem:[%s5 + $0x3c] sm:$0xf]
      %v1764 = vld [vmem:[%s6] sm:$0x1]
      %v1766 = vlaneseq
      %v1767 = vshrl.u32 %v1766, 7
      %v1768 = vsub.s32 0, %v1767
      %v1769 = vrot.slane %v1764, %v1768
      %v1787 = vunpack.c.l.b16 %v1748
      %v1788 = vunpack.c.l.b16 %v1749
      %v1789 = vunpack.c.l.b16 %v1750
      %v1790 = vunpack.c.l.b16 %v1751
      %v1791 = vunpack.c.l.b16 %v1752
      %v1792 = vunpack.c.l.b16 %v1753
      %v1793 = vunpack.c.l.b16 %v1754
      %v1794 = vunpack.c.l.b16 %v1755
      %v1795 = vunpack.c.l.b16 %v1756
      %v1796 = vunpack.c.l.b16 %v1757
      %v1797 = vunpack.c.l.b16 %v1758
      %v1798 = vunpack.c.l.b16 %v1759
      %v1799 = vunpack.c.l.b16 %v1760
      %v1800 = vunpack.c.l.b16 %v1761
      %v1801 = vunpack.c.l.b16 %v1762
      %v1802 = vunpack.c.l.b16 %v1763
      %v1803 = vpack.c.b16 %v1788, %v1787
      %v1804 = vpack.c.b16 %v1790, %v1789
      %v1805 = vpack.c.b16 %v1792, %v1791
      %v1806 = vpack.c.b16 %v1794, %v1793
      %v1807 = vpack.c.b16 %v1796, %v1795
      %v1808 = vpack.c.b16 %v1798, %v1797
      %v1809 = vpack.c.b16 %v1800, %v1799
      %v1810 = vpack.c.b16 %v1802, %v1801
      %1819 = vmatprep.subr.bf16.mxu0 0
      %1820 = vmatpush1.bf16.msra.mxu0 %v1803
      %1821 = vmatprep.subr.bf16.mxu0 0
      %1822 = vmatpush1.bf16.msra.mxu0 %v1804
      %1823 = vmatprep.subr.bf16.mxu0 0
      %1824 = vmatpush1.bf16.msra.mxu0 %v1805
      %1825 = vmatprep.subr.bf16.mxu0 0
      %1826 = vmatpush1.bf16.msra.mxu0 %v1806
      %1827 = vmatprep.subr.bf16.mxu0 0
      %1828 = vmatpush1.bf16.msra.mxu0 %v1807
      %1829 = vmatprep.subr.bf16.mxu0 0
      %1830 = vmatpush1.bf16.msra.mxu0 %v1808
      %1831 = vmatprep.subr.bf16.mxu0 0
      %1832 = vmatpush1.bf16.msra.mxu0 %v1809
      %1833 = vmatprep.subr.bf16.mxu0 0
      %1834 = vmatpush1.bf16.msra.mxu0 %v1810
      %1835 = vmatprep.subr.bf16.mxu0 0
      %1836 = vmatpush1.bf16.msra.mxu0 0
      %1837 = vmatprep.subr.bf16.mxu0 0
      %1838 = vmatpush1.bf16.msra.mxu0 0
      %1839 = vmatprep.subr.bf16.mxu0 0
      %1840 = vmatpush1.bf16.msra.mxu0 0
      %1841 = vmatprep.subr.bf16.mxu0 0
      %1842 = vmatpush1.bf16.msra.mxu0 0
      %1843 = vmatprep.subr.bf16.mxu0 0
      %1844 = vmatpush1.bf16.msra.mxu0 0
      %1845 = vmatprep.subr.bf16.mxu0 0
      %1846 = vmatpush1.bf16.msra.mxu0 0
      %1847 = vmatprep.subr.bf16.mxu0 0
      %1848 = vmatpush1.bf16.msra.mxu0 0
      %1849 = vmatprep.subr.bf16.mxu0 0
      %1850 = vmatpush1.bf16.msra.mxu0 0
      %1851 = vmatprep.mubr.bf16.mxu0 0
      %1852 = vmatmul.mubr.bf16.gmra.mrb[0].mxu0 %v1747
      %v1853 = vpop.f32.mrb[0].mxu0
      %v1854 = vadd.f32 %v1769, %v1853
      %v1855 = vpop.f32.mrb[0].mxu0
      %v1856 = vpop.f32.mrb[0].mxu0
      %v1857 = vpop.f32.mrb[0].mxu0
      %1858 = vdwg.mxu0
      %vm1859 = vcmp.gt.f32.partialorder %v1854, 0.0
      %vm1860 = vmand %vm1473, %vm1859
      %v1861 = vld [vmem:[#allocation6] sm:$0xff]
      %1863 = vrot.lane.b32.xlu0 %v1854, 127
      %v1864 = vpop.permute.xlu0 %1863
      %v1866 = vsel %vm1860, %v1864, %v1861
      %1867 = vst.msk [vmem:[#allocation6] sm:$0xff] %vm46, %v1866
      %v1868 = vsel %vm1473, 1, 0
      %1869 = vset.pattern.permute.xlu0 0
      %1870 = vperm.xlu0 %1869, %v1868
      %v1871 = vpop.permute.xlu0 %1870
      %vm1872 = vcmp.eq.s32.totalorder %v1871, 1
      %v1873 = vsel %vm1872, %v1746, %v1471
      %1874 = vst [vmem:[#allocation2] sm:$0xff] %v1873
      %v1875 = vld [vmem:[#allocation5] sm:$0xff]
      %v1876 = vadd.f32 %v1875, 1.0
      %v1877 = vsel %vm1473, %v1876, %v1875
      %1878 = vst.msk [vmem:[#allocation5] sm:$0xff] %vm46, %v1877
      %v1879 = vld [vmem:[#allocation4] sm:$0xff]
      %v1880 = vsel %vm1860, 1.0, %v1879
      %1881 = vst.msk [vmem:[#allocation4] sm:$0xff] %vm46, %v1880
      %v1882 = vsel %vm46, %v1880, 0.0
      %1883 = vadd.xlane.f32.xlu0 %v1882
      %v1884 = vpop.xlane.xlu0 %1883
      %v1885 = vrot.slane %v1884, 4
      %v1886 = vadd.f32 %v1884, %v1885
      %v1887 = vrot.slane %v1886, 2
      %v1888 = vadd.f32 %v1886, %v1887
      %v1889 = vrot.slane %v1888, 1
      %v1890 = vadd.f32 %v1888, %v1889
      %s1891 = vtos %v1890
      %p1892 = scmp.gt.f32.partialorder %s1891, 7.5
      %s1893 = scalar_select %p1892, 1, 0
      %1894 = sst [smem:[%s50]] %s1893
    $region49: #{tpu_custom_call.1} parent=1 // pred_fallthru
      _
    %s1895 = sld [smem:[#allocation7]]
    %p1896 = scmp.eq.s32.totalorder %s1895, 0
    // Predicated region
    $region50: #{tpu_custom_call.1} parent=1 // pred_check
      %p1897 = pneg %p1896
    $region51: #{tpu_custom_call.1} parent=1 // pred_check_branch
      %1899 = sbr.rel (%p1897) target = $region53
    $region52: #{tpu_custom_call.1} parent=1 // pred_region
      %v1900 = vld [vmem:[#allocation2] sm:$0xff]
      %v1901 = vld [vmem:[#allocation4] sm:$0xff]
      %vm1902 = vcmp.lt.f32.partialorder %v1901, 0.5
      %v1903 = vpack.c.bf16 %v1900, %v1900
      %v1904 = vld [vmem:[#allocation8] sm:$0xff]
      %v1905 = vld [vmem:[#allocation8 + $0xc] sm:$0xff]
      %v1906 = vld [vmem:[#allocation8 + $0x18] sm:$0xff]
      %v1907 = vld [vmem:[#allocation8 + $0x24] sm:$0xff]
      %v1908 = vld [vmem:[#allocation8 + $0x30] sm:$0xff]
      %v1909 = vld [vmem:[#allocation8 + $0x3c] sm:$0xff]
      %v1910 = vld [vmem:[#allocation8 + $0x48] sm:$0xff]
      %v1911 = vld [vmem:[#allocation8 + $0x54] sm:$0xff]
      %v1912 = vld [vmem:[#allocation8 + $0x60] sm:$0xff]
      %v1913 = vld [vmem:[#allocation8 + $0x6c] sm:$0xff]
      %v1914 = vld [vmem:[#allocation8 + $0x78] sm:$0xff]
      %v1915 = vld [vmem:[#allocation8 + $0x84] sm:$0xff]
      %v1916 = vld [vmem:[#allocation8 + $0x90] sm:$0xff]
      %v1917 = vld [vmem:[#allocation8 + $0x9c] sm:$0xff]
      %v1918 = vld [vmem:[#allocation8 + $0xa8] sm:$0xff]
      %v1919 = vld [vmem:[#allocation8 + $0xb4] sm:$0xff]
      %v1936 = vunpack.c.l.b16 %v1904
      %v1937 = vunpack.c.h.b16 %v1904
      %v1938 = vunpack.c.l.b16 %v1905
      %v1939 = vunpack.c.h.b16 %v1905
      %v1940 = vunpack.c.l.b16 %v1906
      %v1941 = vunpack.c.h.b16 %v1906
      %v1942 = vunpack.c.l.b16 %v1907
      %v1943 = vunpack.c.h.b16 %v1907
      %v1944 = vunpack.c.l.b16 %v1908
      %v1945 = vunpack.c.h.b16 %v1908
      %v1946 = vunpack.c.l.b16 %v1909
      %v1947 = vunpack.c.h.b16 %v1909
      %v1948 = vunpack.c.l.b16 %v1910
      %v1949 = vunpack.c.h.b16 %v1910
      %v1950 = vunpack.c.l.b16 %v1911
      %v1951 = vunpack.c.h.b16 %v1911
      %v1952 = vunpack.c.l.b16 %v1912
      %v1953 = vunpack.c.h.b16 %v1912
      %v1954 = vunpack.c.l.b16 %v1913
      %v1955 = vunpack.c.h.b16 %v1913
      %v1956 = vunpack.c.l.b16 %v1914
      %v1957 = vunpack.c.h.b16 %v1914
      %v1958 = vunpack.c.l.b16 %v1915
      %v1959 = vunpack.c.h.b16 %v1915
      %v1960 = vunpack.c.l.b16 %v1916
      %v1961 = vunpack.c.h.b16 %v1916
      %v1962 = vunpack.c.l.b16 %v1917
      %v1963 = vunpack.c.h.b16 %v1917
      %v1964 = vunpack.c.l.b16 %v1918
      %v1965 = vunpack.c.h.b16 %v1918
      %v1966 = vunpack.c.l.b16 %v1919
      %v1967 = vunpack.c.h.b16 %v1919
      %v1968 = vpack.c.b16 %v1938, %v1936
      %v1969 = vpack.c.b16 %v1939, %v1937
      %v1970 = vpack.c.b16 %v1942, %v1940
      %v1971 = vpack.c.b16 %v1943, %v1941
      %v1972 = vpack.c.b16 %v1946, %v1944
      %v1973 = vpack.c.b16 %v1947, %v1945
      %v1974 = vpack.c.b16 %v1950, %v1948
      %v1975 = vpack.c.b16 %v1951, %v1949
      %v1976 = vpack.c.b16 %v1954, %v1952
      %v1977 = vpack.c.b16 %v1955, %v1953
      %v1978 = vpack.c.b16 %v1958, %v1956
      %v1979 = vpack.c.b16 %v1959, %v1957
      %v1980 = vpack.c.b16 %v1962, %v1960
      %v1981 = vpack.c.b16 %v1963, %v1961
      %v1982 = vpack.c.b16 %v1966, %v1964
      %v1983 = vpack.c.b16 %v1967, %v1965
      %2000 = vmatprep.subr.bf16.mxu0 %v1969
      %2001 = vmatpush1.bf16.msra.mxu0 %v1968
      %2002 = vmatprep.subr.bf16.mxu0 %v1971
      %2003 = vmatpush1.bf16.msra.mxu0 %v1970
      %2004 = vmatprep.subr.bf16.mxu0 %v1973
      %2005 = vmatpush1.bf16.msra.mxu0 %v1972
      %2006 = vmatprep.subr.bf16.mxu0 %v1975
      %2007 = vmatpush1.bf16.msra.mxu0 %v1974
      %2008 = vmatprep.subr.bf16.mxu0 %v1977
      %2009 = vmatpush1.bf16.msra.mxu0 %v1976
      %2010 = vmatprep.subr.bf16.mxu0 %v1979
      %2011 = vmatpush1.bf16.msra.mxu0 %v1978
      %2012 = vmatprep.subr.bf16.mxu0 %v1981
      %2013 = vmatpush1.bf16.msra.mxu0 %v1980
      %2014 = vmatprep.subr.bf16.mxu0 %v1983
      %2015 = vmatpush1.bf16.msra.mxu0 %v1982
      %2016 = vmatprep.subr.bf16.mxu0 0
      %2017 = vmatpush1.bf16.msra.mxu0 0
      %2018 = vmatprep.subr.bf16.mxu0 0
      %2019 = vmatpush1.bf16.msra.mxu0 0
      %2020 = vmatprep.subr.bf16.mxu0 0
      %2021 = vmatpush1.bf16.msra.mxu0 0
      %2022 = vmatprep.subr.bf16.mxu0 0
      %2023 = vmatpush1.bf16.msra.mxu0 0
      %2024 = vmatprep.subr.bf16.mxu0 0
      %2025 = vmatpush1.bf16.msra.mxu0 0
      %2026 = vmatprep.subr.bf16.mxu0 0
      %2027 = vmatpush1.bf16.msra.mxu0 0
      %2028 = vmatprep.subr.bf16.mxu0 0
      %2029 = vmatpush1.bf16.msra.mxu0 0
      %2030 = vmatprep.subr.bf16.mxu0 0
      %2031 = vmatpush1.bf16.msra.mxu0 0
      %2032 = vmatprep.mubr.bf16.mxu0 0
      %2033 = vmatmul.mubr.bf16.gmra.mrb[0].mxu0 %v1903
      %v2034 = vpop.f32.mrb[0].mxu0
      %v2035 = vadd.f32 0.0, %v2034
      %v2036 = vpop.f32.mrb[0].mxu0
      %v2037 = vadd.f32 0.0, %v2036
      %v2038 = vpop.f32.mrb[0].mxu0
      %v2039 = vpop.f32.mrb[0].mxu0
      %2040 = vdwg.mxu0
      %v2041 = vld [vmem:[#allocation3] sm:$0xff]
      %v2042 = vadd.f32 %v2041, %v2035
      %v2043 = vxor.u32 %v2042, 2147483648
      %v2044 = vmul.f32 %v2043, 1.442695
      %v2045 = vpow.pop %v2044
      %v2046 = vadd.f32 %v2045, 1.0
      %v2047 = vrcp.pop %v2046
      %v2048 = vmul.f32 1.0, %v2047
      %v2049 = vld [vmem:[#allocation3 + $0x8] sm:$0xff]
      %v2050 = vadd.f32 %v2049, %v2037
      %v2051 = vxor.u32 %v2050, 2147483648
      %v2052 = vmul.f32 %v2051, 1.442695
      %v2053 = vpow.pop %v2052
      %v2054 = vadd.f32 %v2053, 1.0
      %v2055 = vrcp.pop %v2054
      %v2056 = vmul.f32 1.0, %v2055
      %v2057 = vld [vmem:[#allocation8 + $0x8] sm:$0xf]
      %v2058 = vld [vmem:[#allocation8 + $0x14] sm:$0xf]
      %v2059 = vld [vmem:[#allocation8 + $0x20] sm:$0xf]
      %v2060 = vld [vmem:[#allocation8 + $0x2c] sm:$0xf]
      %v2061 = vld [vmem:[#allocation8 + $0x38] sm:$0xf]
      %v2062 = vld [vmem:[#allocation8 + $0x44] sm:$0xf]
      %v2063 = vld [vmem:[#allocation8 + $0x50] sm:$0xf]
      %v2064 = vld [vmem:[#allocation8 + $0x5c] sm:$0xf]
      %v2065 = vld [vmem:[#allocation8 + $0x68] sm:$0xf]
      %v2066 = vld [vmem:[#allocation8 + $0x74] sm:$0xf]
      %v2067 = vld [vmem:[#allocation8 + $0x80] sm:$0xf]
      %v2068 = vld [vmem:[#allocation8 + $0x8c] sm:$0xf]
      %v2069 = vld [vmem:[#allocation8 + $0x98] sm:$0xf]
      %v2070 = vld [vmem:[#allocation8 + $0xa4] sm:$0xf]
      %v2071 = vld [vmem:[#allocation8 + $0xb0] sm:$0xf]
      %v2072 = vld [vmem:[#allocation8 + $0xbc] sm:$0xf]
      %v2073 = vld [vmem:[#allocation3 + $0x10] sm:$0xff]
      %v2074 = vld [vmem:[%s4] sm:$0x1]
      %v2076 = vlaneseq
      %v2077 = vshrl.u32 %v2076, 7
      %v2078 = vsub.s32 0, %v2077
      %v2079 = vrot.slane %v2074, %v2078
      %v2097 = vunpack.c.l.b16 %v2057
      %v2098 = vunpack.c.l.b16 %v2058
      %v2099 = vunpack.c.l.b16 %v2059
      %v2100 = vunpack.c.l.b16 %v2060
      %v2101 = vunpack.c.l.b16 %v2061
      %v2102 = vunpack.c.l.b16 %v2062
      %v2103 = vunpack.c.l.b16 %v2063
      %v2104 = vunpack.c.l.b16 %v2064
      %v2105 = vunpack.c.l.b16 %v2065
      %v2106 = vunpack.c.l.b16 %v2066
      %v2107 = vunpack.c.l.b16 %v2067
      %v2108 = vunpack.c.l.b16 %v2068
      %v2109 = vunpack.c.l.b16 %v2069
      %v2110 = vunpack.c.l.b16 %v2070
      %v2111 = vunpack.c.l.b16 %v2071
      %v2112 = vunpack.c.l.b16 %v2072
      %v2113 = vpack.c.b16 %v2098, %v2097
      %v2114 = vpack.c.b16 %v2100, %v2099
      %v2115 = vpack.c.b16 %v2102, %v2101
      %v2116 = vpack.c.b16 %v2104, %v2103
      %v2117 = vpack.c.b16 %v2106, %v2105
      %v2118 = vpack.c.b16 %v2108, %v2107
      %v2119 = vpack.c.b16 %v2110, %v2109
      %v2120 = vpack.c.b16 %v2112, %v2111
      %2129 = vmatprep.subr.bf16.mxu0 0
      %2130 = vmatpush1.bf16.msra.mxu0 %v2113
      %2131 = vmatprep.subr.bf16.mxu0 0
      %2132 = vmatpush1.bf16.msra.mxu0 %v2114
      %2133 = vmatprep.subr.bf16.mxu0 0
      %2134 = vmatpush1.bf16.msra.mxu0 %v2115
      %2135 = vmatprep.subr.bf16.mxu0 0
      %2136 = vmatpush1.bf16.msra.mxu0 %v2116
      %2137 = vmatprep.subr.bf16.mxu0 0
      %2138 = vmatpush1.bf16.msra.mxu0 %v2117
      %2139 = vmatprep.subr.bf16.mxu0 0
      %2140 = vmatpush1.bf16.msra.mxu0 %v2118
      %2141 = vmatprep.subr.bf16.mxu0 0
      %2142 = vmatpush1.bf16.msra.mxu0 %v2119
      %2143 = vmatprep.subr.bf16.mxu0 0
      %2144 = vmatpush1.bf16.msra.mxu0 %v2120
      %2145 = vmatprep.subr.bf16.mxu0 0
      %2146 = vmatpush1.bf16.msra.mxu0 0
      %2147 = vmatprep.subr.bf16.mxu0 0
      %2148 = vmatpush1.bf16.msra.mxu0 0
      %2149 = vmatprep.subr.bf16.mxu0 0
      %2150 = vmatpush1.bf16.msra.mxu0 0
      %2151 = vmatprep.subr.bf16.mxu0 0
      %2152 = vmatpush1.bf16.msra.mxu0 0
      %2153 = vmatprep.subr.bf16.mxu0 0
      %2154 = vmatpush1.bf16.msra.mxu0 0
      %2155 = vmatprep.subr.bf16.mxu0 0
      %2156 = vmatpush1.bf16.msra.mxu0 0
      %2157 = vmatprep.subr.bf16.mxu0 0
      %2158 = vmatpush1.bf16.msra.mxu0 0
      %2159 = vmatprep.subr.bf16.mxu0 0
      %2160 = vmatpush1.bf16.msra.mxu0 0
      %2161 = vmatprep.mubr.bf16.mxu0 0
      %2162 = vmatmul.mubr.bf16.gmra.mrb[0].mxu0 %v1903
      %v2163 = vpop.f32.mrb[0].mxu0
      %v2164 = vadd.f32 %v2079, %v2163
      %v2165 = vpop.f32.mrb[0].mxu0
      %v2166 = vpop.f32.mrb[0].mxu0
      %v2167 = vpop.f32.mrb[0].mxu0
      %2168 = vdwg.mxu0
      %v2169 = vmul.f32 %v2048, %v2164
      %v2170 = vadd.f32 %v2073, %v2169
      %v2171 = vtanh.pop %v2170
      %v2172 = vsub.f32 1.0, %v2056
      %v2173 = vmul.f32 %v2172, %v2171
      %v2174 = vmul.f32 %v2056, %v1900
      %v2175 = vadd.f32 %v2173, %v2174
      %v2176 = vpack.c.bf16 %v2175, %v2175
      %v2177 = vld [vmem:[%s5] sm:$0xf]
      %v2178 = vld [vmem:[%s5 + $0x4] sm:$0xf]
      %v2179 = vld [vmem:[%s5 + $0x8] sm:$0xf]
      %v2180 = vld [vmem:[%s5 + $0xc] sm:$0xf]
      %v2181 = vld [vmem:[%s5 + $0x10] sm:$0xf]
      %v2182 = vld [vmem:[%s5 + $0x14] sm:$0xf]
      %v2183 = vld [vmem:[%s5 + $0x18] sm:$0xf]
      %v2184 = vld [vmem:[%s5 + $0x1c] sm:$0xf]
      %v2185 = vld [vmem:[%s5 + $0x20] sm:$0xf]
      %v2186 = vld [vmem:[%s5 + $0x24] sm:$0xf]
      %v2187 = vld [vmem:[%s5 + $0x28] sm:$0xf]
      %v2188 = vld [vmem:[%s5 + $0x2c] sm:$0xf]
      %v2189 = vld [vmem:[%s5 + $0x30] sm:$0xf]
      %v2190 = vld [vmem:[%s5 + $0x34] sm:$0xf]
      %v2191 = vld [vmem:[%s5 + $0x38] sm:$0xf]
      %v2192 = vld [vmem:[%s5 + $0x3c] sm:$0xf]
      %v2193 = vld [vmem:[%s6] sm:$0x1]
      %v2195 = vlaneseq
      %v2196 = vshrl.u32 %v2195, 7
      %v2197 = vsub.s32 0, %v2196
      %v2198 = vrot.slane %v2193, %v2197
      %v2216 = vunpack.c.l.b16 %v2177
      %v2217 = vunpack.c.l.b16 %v2178
      %v2218 = vunpack.c.l.b16 %v2179
      %v2219 = vunpack.c.l.b16 %v2180
      %v2220 = vunpack.c.l.b16 %v2181
      %v2221 = vunpack.c.l.b16 %v2182
      %v2222 = vunpack.c.l.b16 %v2183
      %v2223 = vunpack.c.l.b16 %v2184
      %v2224 = vunpack.c.l.b16 %v2185
      %v2225 = vunpack.c.l.b16 %v2186
      %v2226 = vunpack.c.l.b16 %v2187
      %v2227 = vunpack.c.l.b16 %v2188
      %v2228 = vunpack.c.l.b16 %v2189
      %v2229 = vunpack.c.l.b16 %v2190
      %v2230 = vunpack.c.l.b16 %v2191
      %v2231 = vunpack.c.l.b16 %v2192
      %v2232 = vpack.c.b16 %v2217, %v2216
      %v2233 = vpack.c.b16 %v2219, %v2218
      %v2234 = vpack.c.b16 %v2221, %v2220
      %v2235 = vpack.c.b16 %v2223, %v2222
      %v2236 = vpack.c.b16 %v2225, %v2224
      %v2237 = vpack.c.b16 %v2227, %v2226
      %v2238 = vpack.c.b16 %v2229, %v2228
      %v2239 = vpack.c.b16 %v2231, %v2230
      %2248 = vmatprep.subr.bf16.mxu0 0
      %2249 = vmatpush1.bf16.msra.mxu0 %v2232
      %2250 = vmatprep.subr.bf16.mxu0 0
      %2251 = vmatpush1.bf16.msra.mxu0 %v2233
      %2252 = vmatprep.subr.bf16.mxu0 0
      %2253 = vmatpush1.bf16.msra.mxu0 %v2234
      %2254 = vmatprep.subr.bf16.mxu0 0
      %2255 = vmatpush1.bf16.msra.mxu0 %v2235
      %2256 = vmatprep.subr.bf16.mxu0 0
      %2257 = vmatpush1.bf16.msra.mxu0 %v2236
      %2258 = vmatprep.subr.bf16.mxu0 0
      %2259 = vmatpush1.bf16.msra.mxu0 %v2237
      %2260 = vmatprep.subr.bf16.mxu0 0
      %2261 = vmatpush1.bf16.msra.mxu0 %v2238
      %2262 = vmatprep.subr.bf16.mxu0 0
      %2263 = vmatpush1.bf16.msra.mxu0 %v2239
      %2264 = vmatprep.subr.bf16.mxu0 0
      %2265 = vmatpush1.bf16.msra.mxu0 0
      %2266 = vmatprep.subr.bf16.mxu0 0
      %2267 = vmatpush1.bf16.msra.mxu0 0
      %2268 = vmatprep.subr.bf16.mxu0 0
      %2269 = vmatpush1.bf16.msra.mxu0 0
      %2270 = vmatprep.subr.bf16.mxu0 0
      %2271 = vmatpush1.bf16.msra.mxu0 0
      %2272 = vmatprep.subr.bf16.mxu0 0
      %2273 = vmatpush1.bf16.msra.mxu0 0
      %2274 = vmatprep.subr.bf16.mxu0 0
      %2275 = vmatpush1.bf16.msra.mxu0 0
      %2276 = vmatprep.subr.bf16.mxu0 0
      %2277 = vmatpush1.bf16.msra.mxu0 0
      %2278 = vmatprep.subr.bf16.mxu0 0
      %2279 = vmatpush1.bf16.msra.mxu0 0
      %2280 = vmatprep.mubr.bf16.mxu0 0
      %2281 = vmatmul.mubr.bf16.gmra.mrb[0].mxu0 %v2176
      %v2282 = vpop.f32.mrb[0].mxu0
      %v2283 = vadd.f32 %v2198, %v2282
      %v2284 = vpop.f32.mrb[0].mxu0
      %v2285 = vpop.f32.mrb[0].mxu0
      %v2286 = vpop.f32.mrb[0].mxu0
      %2287 = vdwg.mxu0
      %vm2288 = vcmp.gt.f32.partialorder %v2283, 0.0
      %v2289 = vld [vmem:[#allocation6] sm:$0xff]
      %2291 = vrot.lane.b32.xlu0 %v2283, 127
      %v2292 = vpop.permute.xlu0 %2291
      %v2294 = vsel %vm1902, %v2292, %v2289
      %2295 = vst.msk [vmem:[#allocation6] sm:$0xff] %vm46, %v2294
      %v2296 = vsel %vm1902, 1, 0
      %2297 = vset.pattern.permute.xlu0 0
      %2298 = vperm.xlu0 %2297, %v2296
      %v2299 = vpop.permute.xlu0 %2298
      %vm2300 = vcmp.eq.s32.totalorder %v2299, 1
      %v2301 = vsel %vm2300, %v2175, %v1900
      %2302 = vst [vmem:[#allocation2] sm:$0xff] %v2301
      %v2303 = vld [vmem:[#allocation5] sm:$0xff]
      %v2304 = vadd.f32 %v2303, 1.0
      %v2305 = vsel %vm1902, %v2304, %v2303
      %2306 = vst.msk [vmem:[#allocation5] sm:$0xff] %vm46, %v2305
      %vm2307 = vmand %vm1902, %vm2288
      %v2308 = vld [vmem:[#allocation4] sm:$0xff]
      %v2309 = vsel %vm2307, 1.0, %v2308
      %2310 = vst.msk [vmem:[#allocation4] sm:$0xff] %vm46, %v2309
      %v2311 = vsel %vm46, %v2309, 0.0
      %2312 = vadd.xlane.f32.xlu0 %v2311
      %v2313 = vpop.xlane.xlu0 %2312
      %v2314 = vrot.slane %v2313, 4
      %v2315 = vadd.f32 %v2313, %v2314
      %v2316 = vrot.slane %v2315, 2
      %v2317 = vadd.f32 %v2315, %v2316
      %v2318 = vrot.slane %v2317, 1
      %v2319 = vadd.f32 %v2317, %v2318
      %s2320 = vtos %v2319
      %p2321 = scmp.gt.f32.partialorder %s2320, 7.5
      %s2322 = scalar_select %p2321, 1, 0
      %2323 = sst [smem:[%s50]] %s2322
    $region53: #{tpu_custom_call.1} parent=1 // pred_fallthru
      _
    %v2324 = vld [vmem:[#allocation6] sm:$0xff]
    %2325 = vst.msk [vmem:[%s7] sm:$0xff] %vm46, %v2324
    %v2326 = vld [vmem:[#allocation5] sm:$0xff]
    %2328 = vrot.lane.b32.xlu0 %v2326, 1
    %v2329 = vpop.permute.xlu0 %2328
    %vm2331 = vcmask 15368
    %2332 = vst.msk [vmem:[%s7] sm:$0xff] %vm2331, %v2329
    // Predicated region
    $region54: #{tpu_custom_call.1} parent=1 // pred_check
      _
    $region55: #{tpu_custom_call.1} parent=1 // pred_check_branch
      %2334 = sbr.rel (0) target = $region57
    $region56: #{tpu_custom_call.1} parent=1 // pred_region
      _
    $region57: #{tpu_custom_call.1} parent=1 // pred_fallthru
      _
    // Predicated region
    $region58: #{tpu_custom_call.1} parent=1 // pred_check
      _
    $region59: #{tpu_custom_call.1} parent=1 // pred_check_branch
      %2336 = sbr.rel (0) target = $region61
    $region60: #{tpu_custom_call.1} parent=1 // pred_region
      _
    $region61: #{tpu_custom_call.1} parent=1 // pred_fallthru
      _
    %2337 = vsyncpa [#allocation9], 1

</llo_original>
